<compile_context>
chip_gen: v5e
topology: v5e:2x2
jax: 0.10.0
libtpu: 0.0.40
codegen_flags: <defaults>
</compile_context>

<pallas_src>
import functools

import jax
import jax.numpy as jnp
from jax.experimental import pallas as pl
from jax.experimental.pallas import tpu as pltpu


# ----------------------------- fused kernel body -------------------------------


def _build_fused_kernel(block_cfg, feat, classes):
    """block_cfg: tuple of (ksz, pool, cin, cout, H, W) per conv block (static)."""
    nblk = len(block_cfg)

    def kernel(*refs):
        x_ref = refs[0]
        conv_refs = refs[1:1 + 2 * nblk]              # (w, b) per block
        w3_ref = refs[1 + 2 * nblk]                   # (feat, classes)
        b3_ref = refs[2 + 2 * nblk]                   # (1, classes)
        o_ref = refs[3 + 2 * nblk]                    # (B_TILE, classes)
        pad_ref = refs[4 + 2 * nblk]                  # VMEM (B_TILE, maxHp, maxWp, maxC)
        flat_ref = refs[5 + 2 * nblk]                 # VMEM (B_TILE, feat)

        B = x_ref.shape[0]

        def zero_border(Hp, Wp, p, C):
            # Zero only the p-wide border ring; the interior is always written
            # before it is read.
            if p == 0:
                return
            zrow = jnp.zeros((B, p, Wp, C), jnp.float32)
            pad_ref[:, 0:p, 0:Wp, 0:C] = zrow
            pad_ref[:, Hp - p:Hp, 0:Wp, 0:C] = zrow
            zcol = jnp.zeros((B, Hp, p, C), jnp.float32)
            pad_ref[:, 0:Hp, 0:p, 0:C] = zcol
            pad_ref[:, 0:Hp, Wp - p:Wp, 0:C] = zcol

        # ---- stage the first block's zero-padded input in VMEM scratch ----
        ksz0, pool0, cin0, cout0, H0, W0 = block_cfg[0]
        p0 = ksz0 // 2
        zero_border(H0 + 2 * p0, W0 + 2 * p0, p0, cin0)
        pad_ref[:, p0:p0 + H0, p0:p0 + W0, 0:cin0] = x_ref[...]

        for i, (ksz, pool, cin, cout, H, W) in enumerate(block_cfg):
            p = ksz // 2
            Ho, Wo = H // pool, W // pool
            w_ref, b_ref = conv_refs[2 * i], conv_refs[2 * i + 1]

            # ---- Conv2d('same', stride 1) as a sum of ksz*ksz shifted taps ----
            if cin == 1:
                # VPU broadcast-FMA path (no MXU, no im2col concat).
                y = jnp.zeros((B, H, W, cout), jnp.float32)
                for dy in range(ksz):
                    for dx in range(ksz):
                        xs = pad_ref[:, dy:dy + H, dx:dx + W, 0:1]   # (B,H,W,1)
                        y = y + xs * w_ref[dy * ksz + dx]            # * (1,cout)
            else:
                # MXU path: one (B*H*W, cin) x (cin, cout) matmul per tap.
                y = jnp.zeros((B * H * W, cout), jnp.float32)
                for dy in range(ksz):
                    for dx in range(ksz):
                        xs = pad_ref[:, dy:dy + H, dx:dx + W, 0:cin]
                        y = y + jnp.dot(xs.reshape(B * H * W, cin),
                                        w_ref[dy * ksz + dx],
                                        preferred_element_type=jnp.float32)

            # ---- MaxPool over rows: free leading reshape + one VPU max ----
            zh = y.reshape(B * Ho, pool, W, cout).max(axis=1)
            zh = zh.reshape(B, Ho, W, cout)
            # bias + ReLU once (both commute with the remaining column max)
            a = jnp.maximum(zh + b_ref[...], 0.0)

            # ---- MaxPool over cols, fused with staging of the next stage ----
            if i + 1 < nblk:
                nksz = block_cfg[i + 1][0]
                np_ = nksz // 2
                zero_border(Ho + 2 * np_, Wo + 2 * np_, np_, cout)
                for w in range(Wo):
                    col = a[:, :, w * pool:w * pool + 1, :]
                    for q in range(1, pool):
                        col = jnp.maximum(
                            col, a[:, :, w * pool + q:w * pool + q + 1, :])
                    pad_ref[:, np_:np_ + Ho, np_ + w:np_ + w + 1, 0:cout] = col
            else:
                # last block: assemble the (h, w, c)-ordered flat feature vector
                for h in range(Ho):
                    for w in range(Wo):
                        v = a[:, h:h + 1, w * pool:w * pool + 1, :]
                        for q in range(1, pool):
                            v = jnp.maximum(
                                v, a[:, h:h + 1, w * pool + q:w * pool + q + 1, :])
                        j = (h * Wo + w) * cout
                        flat_ref[:, j:j + cout] = v.reshape(B, cout)

        # ---- classifier head: ONE matmul + log_softmax (dim=1) ----
        logits = jnp.dot(flat_ref[...], w3_ref[...],
                         preferred_element_type=jnp.float32) + b3_ref[...]
        m = jnp.max(logits, axis=-1, keepdims=True)
        s = logits - m
        lse = jnp.log(jnp.sum(jnp.exp(s), axis=-1, keepdims=True))
        o_ref[...] = (s - lse).astype(o_ref.dtype)

    return kernel


# ---------------------------------- wrapper -------------------------------------


@functools.partial(jax.jit, static_argnums=(2,))
def forward(params, x_nchw, conv_cfg):
    """NeuralNet.forward: conv stack -> flatten -> (dropout) -> linear -> log_softmax."""
    x = jnp.transpose(x_nchw, (0, 2, 3, 1)).astype(jnp.float32)    # NCHW -> NHWC
    N, H, W, Cin = x.shape
    B_TILE = N if N <= 8 else 8
    assert N % B_TILE == 0, "demo assumes batch divisible by the batch tile"

    kernel_inputs = [x]
    in_specs = [pl.BlockSpec((B_TILE, H, W, Cin), lambda t: (t, 0, 0, 0))]

    block_cfg = []
    h, w_sp, cin = H, W, Cin
    max_hp, max_wp, max_c = 1, 1, 1
    for (wgt, bias), (_, ksz, pool) in zip(params["conv"], conv_cfg):
        cout = wgt.shape[-1]
        assert ksz % 2 == 1, "padding='same' equivalence requires odd kernel size"
        assert h % pool == 0 and w_sp % pool == 0
        p = ksz // 2
        block_cfg.append((ksz, pool, cin, cout, h, w_sp))
        max_hp = max(max_hp, h + 2 * p)
        max_wp = max(max_wp, w_sp + 2 * p)
        max_c = max(max_c, cin)
        kernel_inputs += [wgt.reshape(ksz * ksz, cin, cout), bias.reshape(1, cout)]
        in_specs += [pl.BlockSpec((ksz * ksz, cin, cout), lambda t: (0, 0, 0)),
                     pl.BlockSpec((1, cout), lambda t: (0, 0))]
        h, w_sp, cin = h // pool, w_sp // pool, cout

    Hf, Wf, Cf = h, w_sp, cin
    feat = Hf * Wf * Cf
    classes = params["lin_w"].shape[1]
    # Linear weight rows: PyTorch NCHW .view() order (c, h, w) -> kernel (h, w, c)
    w3 = params["lin_w"].reshape(Cf, Hf, Wf, classes).transpose(1, 2, 0, 3)
    w3 = w3.reshape(feat, classes)
    b3 = params["lin_b"].reshape(1, classes)
    kernel_inputs += [w3, b3]
    in_specs += [pl.BlockSpec((feat, classes), lambda t: (0, 0)),
                 pl.BlockSpec((1, classes), lambda t: (0, 0))]

    # TODO(synk): nn.Dropout2d is modeled as inference-mode identity (no RNG masking).

    out = pl.pallas_call(
        _build_fused_kernel(tuple(block_cfg), feat, classes),
        out_shape=jax.ShapeDtypeStruct((N, classes), jnp.float32),
        grid=(N // B_TILE,),
        in_specs=in_specs,
        out_specs=pl.BlockSpec((B_TILE, classes), lambda t: (t, 0)),
        scratch_shapes=[
            pltpu.VMEM((B_TILE, max_hp, max_wp, max_c), jnp.float32),  # padded act
            pltpu.VMEM((B_TILE, feat), jnp.float32),                   # flat features
        ],
        compiler_params=pltpu.CompilerParams(
            dimension_semantics=("parallel",)),
    )(*kernel_inputs)
    return out


# ----------------------------- parameter creation --------------------------------


def init_params(key, conv_cfg, in_channels, classes, image_size):
    """Deterministic synthetic init mirroring the module's xavier_uniform scheme."""
    params = {"conv": []}
    size, cin = image_size, in_channels
    for (cout, ksz, pool) in conv_cfg:
        key, kw, kb = jax.random.split(key, 3)
        fan_in, fan_out = ksz * ksz * cin, ksz * ksz * cout
        limit = (6.0 / (fan_in + fan_out)) ** 0.5
        w = jax.random.uniform(kw, (ksz, ksz, cin, cout), jnp.float32, -limit, limit)
        b = jax.random.uniform(kb, (cout,), jnp.float32, -0.01, 0.01)
        params["conv"].append((w, b))
        size //= pool
        cin = cout
    feat = size * size * cin
    key, kw = jax.random.split(key)
    limit = (6.0 / (feat + classes)) ** 0.5
    params["lin_w"] = jax.random.uniform(kw, (feat, classes), jnp.float32, -limit, limit)
    params["lin_b"] = jnp.zeros((classes,), jnp.float32)        # Linear bias filled with 0.0
    return params


# ------------------------------ pure-JAX reference -------------------------------


def reference_forward(params, x_nchw, conv_cfg):
    x = jnp.transpose(x_nchw, (0, 2, 3, 1))
    for (w, b), (_, ksz, pool) in zip(params["conv"], conv_cfg):
        N, H, W, Cin = x.shape
        cout = w.shape[-1]
        p = ksz // 2
        xpad = jnp.pad(x, ((0, 0), (p, p), (p, p), (0, 0)))
        cols = [xpad[:, dy:dy + H, dx:dx + W, :]
                for dy in range(ksz) for dx in range(ksz)]
        patches = jnp.concatenate(cols, axis=-1)
        y = jnp.einsum("nhwk,kc->nhwc", patches, w.reshape(-1, cout),
                       precision=jax.lax.Precision.HIGHEST) + b
        y = jnp.maximum(y, 0.0)
        Ho, Wo = H // pool, W // pool
        x = y.reshape(N, Ho, pool, Wo, pool, cout).max(axis=(2, 4))
    N = x.shape[0]
    vec = jnp.transpose(x, (0, 3, 1, 2)).reshape(N, -1)          # PyTorch NCHW .view order
    logits = jnp.dot(vec, params["lin_w"],
                     precision=jax.lax.Precision.HIGHEST) + params["lin_b"]
    return jax.nn.log_softmax(logits, axis=1)


# ------------------------------------- main ---------------------------------------


if __name__ == "__main__":
    # ConvStack structure: two conv blocks [(8,3,2),(16,3,2)], 1 input channel,
    # 4 classes, 16x16 images, dropout 0.5 (inference identity).
    conv_cfg = ((8, 3, 2), (16, 3, 2))        # (num_convs, kernel_size, pooling)
    in_channels, classes, image_size, batch = 1, 4, 16, 2

    key = jax.random.PRNGKey(0)
    kx, kp = jax.random.split(key)
    params = init_params(kp, conv_cfg, in_channels, classes, image_size)
    x = jax.random.normal(kx, (batch, in_channels, image_size, image_size), jnp.float32)

    out = forward(params, x, conv_cfg)
    out = jax.block_until_ready(out)

    ref = reference_forward(params, x, conv_cfg)
    assert out.shape == (batch, classes), out.shape
    assert jnp.allclose(out, ref, atol=5e-3, rtol=5e-3), (out, ref)
    print("KERNEL_OK")
</pallas_src>

<mosaic_0001>
module attributes {stable_mosaic.version = 11 : i64} {
  func.func @kernel(%arg0: i32, %arg1: memref<2x16x16x1xf32, #tpu.memory_space<vmem>>, %arg2: memref<9x1x8xf32, #tpu.memory_space<vmem>>, %arg3: memref<1x8xf32, #tpu.memory_space<vmem>>, %arg4: memref<9x8x16xf32, #tpu.memory_space<vmem>>, %arg5: memref<1x16xf32, #tpu.memory_space<vmem>>, %arg6: memref<256x4xf32, #tpu.memory_space<vmem>>, %arg7: memref<1x4xf32, #tpu.memory_space<vmem>>, %arg8: memref<2x4xf32, #tpu.memory_space<vmem>>, %arg9: memref<2x18x18x8xf32, #tpu.memory_space<vmem>>, %arg10: memref<2x256xf32, #tpu.memory_space<vmem>>) attributes {dimension_semantics = [#tpu.dimension_semantics<parallel>], iteration_bounds = array<i64: 1>, scalar_prefetch = 0 : i64, scratch_operands = 2 : i64, tpu.core_type = #tpu.core_type<tc>, window_params = [{transform_indices = @transform_0, window_bounds = array<i64: 2, 16, 16, 1>}, {pipeline_mode = #tpu.pipeline_mode<synchronous>, transform_indices = @transform_1, window_bounds = array<i64: 9, 1, 8>}, {pipeline_mode = #tpu.pipeline_mode<synchronous>, transform_indices = @transform_2, window_bounds = array<i64: 1, 8>}, {pipeline_mode = #tpu.pipeline_mode<synchronous>, transform_indices = @transform_3, window_bounds = array<i64: 9, 8, 16>}, {pipeline_mode = #tpu.pipeline_mode<synchronous>, transform_indices = @transform_4, window_bounds = array<i64: 1, 16>}, {pipeline_mode = #tpu.pipeline_mode<synchronous>, transform_indices = @transform_5, window_bounds = array<i64: 256, 4>}, {pipeline_mode = #tpu.pipeline_mode<synchronous>, transform_indices = @transform_6, window_bounds = array<i64: 1, 4>}, {transform_indices = @transform_7, window_bounds = array<i64: 2, 4>}]} {
    %cst = arith.constant 0.000000e+00 : f32
    %0 = vector.broadcast %cst : f32 to vector<2x1x18x1xf32>
    %c0 = arith.constant 0 : index
    %c0_0 = arith.constant 0 : index
    %c0_1 = arith.constant 0 : index
    %c0_2 = arith.constant 0 : index
    %1 = vector.load %arg9[%c0, %c0_0, %c0_1, %c0_2] : memref<2x18x18x8xf32, #tpu.memory_space<vmem>>, vector<2x1x18x1xf32>
    tpu.vector_store %arg9[%c0, %c0_0, %c0_1, %c0_2], %0 {strides = array<i32>} : memref<2x18x18x8xf32, #tpu.memory_space<vmem>>, vector<2x1x18x1xf32>,
    %c0_3 = arith.constant 0 : index
    %c17 = arith.constant 17 : index
    %c0_4 = arith.constant 0 : index
    %c0_5 = arith.constant 0 : index
    %2 = vector.load %arg9[%c0_3, %c17, %c0_4, %c0_5] : memref<2x18x18x8xf32, #tpu.memory_space<vmem>>, vector<2x1x18x1xf32>
    tpu.vector_store %arg9[%c0_3, %c17, %c0_4, %c0_5], %0 {strides = array<i32>} : memref<2x18x18x8xf32, #tpu.memory_space<vmem>>, vector<2x1x18x1xf32>,
    %cst_6 = arith.constant 0.000000e+00 : f32
    %3 = vector.broadcast %cst_6 : f32 to vector<2x18x1x1xf32>
    %c0_7 = arith.constant 0 : index
    %c0_8 = arith.constant 0 : index
    %c0_9 = arith.constant 0 : index
    %c0_10 = arith.constant 0 : index
    %4 = vector.load %arg9[%c0_7, %c0_8, %c0_9, %c0_10] : memref<2x18x18x8xf32, #tpu.memory_space<vmem>>, vector<2x18x1x1xf32>
    tpu.vector_store %arg9[%c0_7, %c0_8, %c0_9, %c0_10], %3 {strides = array<i32>} : memref<2x18x18x8xf32, #tpu.memory_space<vmem>>, vector<2x18x1x1xf32>,
    %c0_11 = arith.constant 0 : index
    %c0_12 = arith.constant 0 : index
    %c17_13 = arith.constant 17 : index
    %c0_14 = arith.constant 0 : index
    %5 = vector.load %arg9[%c0_11, %c0_12, %c17_13, %c0_14] : memref<2x18x18x8xf32, #tpu.memory_space<vmem>>, vector<2x18x1x1xf32>
    tpu.vector_store %arg9[%c0_11, %c0_12, %c17_13, %c0_14], %3 {strides = array<i32>} : memref<2x18x18x8xf32, #tpu.memory_space<vmem>>, vector<2x18x1x1xf32>,
    %c0_15 = arith.constant 0 : index
    %c0_16 = arith.constant 0 : index
    %c0_17 = arith.constant 0 : index
    %c0_18 = arith.constant 0 : index
    %6 = vector.load %arg1[%c0_15, %c0_16, %c0_17, %c0_18] : memref<2x16x16x1xf32, #tpu.memory_space<vmem>>, vector<2x16x16x1xf32>
    %c0_19 = arith.constant 0 : index
    %c1 = arith.constant 1 : index
    %c1_20 = arith.constant 1 : index
    %c0_21 = arith.constant 0 : index
    %7 = vector.load %arg9[%c0_19, %c1, %c1_20, %c0_21] : memref<2x18x18x8xf32, #tpu.memory_space<vmem>>, vector<2x16x16x1xf32>
    tpu.vector_store %arg9[%c0_19, %c1, %c1_20, %c0_21], %6 {strides = array<i32>} : memref<2x18x18x8xf32, #tpu.memory_space<vmem>>, vector<2x16x16x1xf32>,
    %cst_22 = arith.constant 0.000000e+00 : f32
    %8 = vector.broadcast %cst_22 : f32 to vector<2x16x16x8xf32>
    %c0_23 = arith.constant 0 : index
    %c0_24 = arith.constant 0 : index
    %c0_25 = arith.constant 0 : index
    %c0_26 = arith.constant 0 : index
    %9 = vector.load %arg9[%c0_23, %c0_24, %c0_25, %c0_26] : memref<2x18x18x8xf32, #tpu.memory_space<vmem>>, vector<2x16x16x1xf32>
    %c0_27 = arith.constant 0 : index
    %c0_28 = arith.constant 0 : index
    %c0_29 = arith.constant 0 : index
    %10 = vector.load %arg2[%c0_27, %c0_28, %c0_29] : memref<9x1x8xf32, #tpu.memory_space<vmem>>, vector<1x1x8xf32>
    %11 = vector.shape_cast %10 : vector<1x1x8xf32> to vector<1x8xf32>
    %12 = vector.shape_cast %11 : vector<1x8xf32> to vector<1x1x1x8xf32>
    %13 = vector.broadcast %9 : vector<2x16x16x1xf32> to vector<2x16x16x8xf32>
    %14 = vector.broadcast %12 : vector<1x1x1x8xf32> to vector<2x16x16x8xf32>
    %15 = arith.mulf %13, %14 : vector<2x16x16x8xf32>
    %16 = arith.addf %8, %15 : vector<2x16x16x8xf32>
    %c0_30 = arith.constant 0 : index
    %c0_31 = arith.constant 0 : index
    %c1_32 = arith.constant 1 : index
    %c0_33 = arith.constant 0 : index
    %17 = vector.load %arg9[%c0_30, %c0_31, %c1_32, %c0_33] : memref<2x18x18x8xf32, #tpu.memory_space<vmem>>, vector<2x16x16x1xf32>
    %c1_34 = arith.constant 1 : index
    %c0_35 = arith.constant 0 : index
    %c0_36 = arith.constant 0 : index
    %18 = vector.load %arg2[%c1_34, %c0_35, %c0_36] : memref<9x1x8xf32, #tpu.memory_space<vmem>>, vector<1x1x8xf32>
    %19 = vector.shape_cast %18 : vector<1x1x8xf32> to vector<1x8xf32>
    %20 = vector.shape_cast %19 : vector<1x8xf32> to vector<1x1x1x8xf32>
    %21 = vector.broadcast %17 : vector<2x16x16x1xf32> to vector<2x16x16x8xf32>
    %22 = vector.broadcast %20 : vector<1x1x1x8xf32> to vector<2x16x16x8xf32>
    %23 = arith.mulf %21, %22 : vector<2x16x16x8xf32>
    %24 = arith.addf %16, %23 : vector<2x16x16x8xf32>
    %c0_37 = arith.constant 0 : index
    %c0_38 = arith.constant 0 : index
    %c2 = arith.constant 2 : index
    %c0_39 = arith.constant 0 : index
    %25 = vector.load %arg9[%c0_37, %c0_38, %c2, %c0_39] : memref<2x18x18x8xf32, #tpu.memory_space<vmem>>, vector<2x16x16x1xf32>
    %c2_40 = arith.constant 2 : index
    %c0_41 = arith.constant 0 : index
    %c0_42 = arith.constant 0 : index
    %26 = vector.load %arg2[%c2_40, %c0_41, %c0_42] : memref<9x1x8xf32, #tpu.memory_space<vmem>>, vector<1x1x8xf32>
    %27 = vector.shape_cast %26 : vector<1x1x8xf32> to vector<1x8xf32>
    %28 = vector.shape_cast %27 : vector<1x8xf32> to vector<1x1x1x8xf32>
    %29 = vector.broadcast %25 : vector<2x16x16x1xf32> to vector<2x16x16x8xf32>
    %30 = vector.broadcast %28 : vector<1x1x1x8xf32> to vector<2x16x16x8xf32>
    %31 = arith.mulf %29, %30 : vector<2x16x16x8xf32>
    %32 = arith.addf %24, %31 : vector<2x16x16x8xf32>
    %c0_43 = arith.constant 0 : index
    %c1_44 = arith.constant 1 : index
    %c0_45 = arith.constant 0 : index
    %c0_46 = arith.constant 0 : index
    %33 = vector.load %arg9[%c0_43, %c1_44, %c0_45, %c0_46] : memref<2x18x18x8xf32, #tpu.memory_space<vmem>>, vector<2x16x16x1xf32>
    %c3 = arith.constant 3 : index
    %c0_47 = arith.constant 0 : index
    %c0_48 = arith.constant 0 : index
    %34 = vector.load %arg2[%c3, %c0_47, %c0_48] : memref<9x1x8xf32, #tpu.memory_space<vmem>>, vector<1x1x8xf32>
    %35 = vector.shape_cast %34 : vector<1x1x8xf32> to vector<1x8xf32>
    %36 = vector.shape_cast %35 : vector<1x8xf32> to vector<1x1x1x8xf32>
    %37 = vector.broadcast %33 : vector<2x16x16x1xf32> to vector<2x16x16x8xf32>
    %38 = vector.broadcast %36 : vector<1x1x1x8xf32> to vector<2x16x16x8xf32>
    %39 = arith.mulf %37, %38 : vector<2x16x16x8xf32>
    %40 = arith.addf %32, %39 : vector<2x16x16x8xf32>
    %c0_49 = arith.constant 0 : index
    %c1_50 = arith.constant 1 : index
    %c1_51 = arith.constant 1 : index
    %c0_52 = arith.constant 0 : index
    %41 = vector.load %arg9[%c0_49, %c1_50, %c1_51, %c0_52] : memref<2x18x18x8xf32, #tpu.memory_space<vmem>>, vector<2x16x16x1xf32>
    %c4 = arith.constant 4 : index
    %c0_53 = arith.constant 0 : index
    %c0_54 = arith.constant 0 : index
    %42 = vector.load %arg2[%c4, %c0_53, %c0_54] : memref<9x1x8xf32, #tpu.memory_space<vmem>>, vector<1x1x8xf32>
    %43 = vector.shape_cast %42 : vector<1x1x8xf32> to vector<1x8xf32>
    %44 = vector.shape_cast %43 : vector<1x8xf32> to vector<1x1x1x8xf32>
    %45 = vector.broadcast %41 : vector<2x16x16x1xf32> to vector<2x16x16x8xf32>
    %46 = vector.broadcast %44 : vector<1x1x1x8xf32> to vector<2x16x16x8xf32>
    %47 = arith.mulf %45, %46 : vector<2x16x16x8xf32>
    %48 = arith.addf %40, %47 : vector<2x16x16x8xf32>
    %c0_55 = arith.constant 0 : index
    %c1_56 = arith.constant 1 : index
    %c2_57 = arith.constant 2 : index
    %c0_58 = arith.constant 0 : index
    %49 = vector.load %arg9[%c0_55, %c1_56, %c2_57, %c0_58] : memref<2x18x18x8xf32, #tpu.memory_space<vmem>>, vector<2x16x16x1xf32>
    %c5 = arith.constant 5 : index
    %c0_59 = arith.constant 0 : index
    %c0_60 = arith.constant 0 : index
    %50 = vector.load %arg2[%c5, %c0_59, %c0_60] : memref<9x1x8xf32, #tpu.memory_space<vmem>>, vector<1x1x8xf32>
    %51 = vector.shape_cast %50 : vector<1x1x8xf32> to vector<1x8xf32>
    %52 = vector.shape_cast %51 : vector<1x8xf32> to vector<1x1x1x8xf32>
    %53 = vector.broadcast %49 : vector<2x16x16x1xf32> to vector<2x16x16x8xf32>
    %54 = vector.broadcast %52 : vector<1x1x1x8xf32> to vector<2x16x16x8xf32>
    %55 = arith.mulf %53, %54 : vector<2x16x16x8xf32>
    %56 = arith.addf %48, %55 : vector<2x16x16x8xf32>
    %c0_61 = arith.constant 0 : index
    %c2_62 = arith.constant 2 : index
    %c0_63 = arith.constant 0 : index
    %c0_64 = arith.constant 0 : index
    %57 = vector.load %arg9[%c0_61, %c2_62, %c0_63, %c0_64] : memref<2x18x18x8xf32, #tpu.memory_space<vmem>>, vector<2x16x16x1xf32>
    %c6 = arith.constant 6 : index
    %c0_65 = arith.constant 0 : index
    %c0_66 = arith.constant 0 : index
    %58 = vector.load %arg2[%c6, %c0_65, %c0_66] : memref<9x1x8xf32, #tpu.memory_space<vmem>>, vector<1x1x8xf32>
    %59 = vector.shape_cast %58 : vector<1x1x8xf32> to vector<1x8xf32>
    %60 = vector.shape_cast %59 : vector<1x8xf32> to vector<1x1x1x8xf32>
    %61 = vector.broadcast %57 : vector<2x16x16x1xf32> to vector<2x16x16x8xf32>
    %62 = vector.broadcast %60 : vector<1x1x1x8xf32> to vector<2x16x16x8xf32>
    %63 = arith.mulf %61, %62 : vector<2x16x16x8xf32>
    %64 = arith.addf %56, %63 : vector<2x16x16x8xf32>
    %c0_67 = arith.constant 0 : index
    %c2_68 = arith.constant 2 : index
    %c1_69 = arith.constant 1 : index
    %c0_70 = arith.constant 0 : index
    %65 = vector.load %arg9[%c0_67, %c2_68, %c1_69, %c0_70] : memref<2x18x18x8xf32, #tpu.memory_space<vmem>>, vector<2x16x16x1xf32>
    %c7 = arith.constant 7 : index
    %c0_71 = arith.constant 0 : index
    %c0_72 = arith.constant 0 : index
    %66 = vector.load %arg2[%c7, %c0_71, %c0_72] : memref<9x1x8xf32, #tpu.memory_space<vmem>>, vector<1x1x8xf32>
    %67 = vector.shape_cast %66 : vector<1x1x8xf32> to vector<1x8xf32>
    %68 = vector.shape_cast %67 : vector<1x8xf32> to vector<1x1x1x8xf32>
    %69 = vector.broadcast %65 : vector<2x16x16x1xf32> to vector<2x16x16x8xf32>
    %70 = vector.broadcast %68 : vector<1x1x1x8xf32> to vector<2x16x16x8xf32>
    %71 = arith.mulf %69, %70 : vector<2x16x16x8xf32>
    %72 = arith.addf %64, %71 : vector<2x16x16x8xf32>
    %c0_73 = arith.constant 0 : index
    %c2_74 = arith.constant 2 : index
    %c2_75 = arith.constant 2 : index
    %c0_76 = arith.constant 0 : index
    %73 = vector.load %arg9[%c0_73, %c2_74, %c2_75, %c0_76] : memref<2x18x18x8xf32, #tpu.memory_space<vmem>>, vector<2x16x16x1xf32>
    %c8 = arith.constant 8 : index
    %c0_77 = arith.constant 0 : index
    %c0_78 = arith.constant 0 : index
    %74 = vector.load %arg2[%c8, %c0_77, %c0_78] : memref<9x1x8xf32, #tpu.memory_space<vmem>>, vector<1x1x8xf32>
    %75 = vector.shape_cast %74 : vector<1x1x8xf32> to vector<1x8xf32>
    %76 = vector.shape_cast %75 : vector<1x8xf32> to vector<1x1x1x8xf32>
    %77 = vector.broadcast %73 : vector<2x16x16x1xf32> to vector<2x16x16x8xf32>
    %78 = vector.broadcast %76 : vector<1x1x1x8xf32> to vector<2x16x16x8xf32>
    %79 = arith.mulf %77, %78 : vector<2x16x16x8xf32>
    %80 = arith.addf %72, %79 : vector<2x16x16x8xf32>
    %81 = vector.shape_cast %80 : vector<2x16x16x8xf32> to vector<16x2x16x8xf32>
    %cst_79 = arith.constant dense<0xFF800000> : vector<16x16x8xf32>
    %82 = vector.multi_reduction <maximumf>, %81, %cst_79 [1] : vector<16x2x16x8xf32> to vector<16x16x8xf32>
    %83 = vector.shape_cast %82 : vector<16x16x8xf32> to vector<2x8x16x8xf32>
    %c0_80 = arith.constant 0 : index
    %c0_81 = arith.constant 0 : index
    %84 = vector.load %arg3[%c0_80, %c0_81] : memref<1x8xf32, #tpu.memory_space<vmem>>, vector<1x8xf32>
    %85 = vector.shape_cast %84 : vector<1x8xf32> to vector<1x1x1x8xf32>
    %86 = vector.broadcast %85 : vector<1x1x1x8xf32> to vector<2x8x16x8xf32>
    %87 = arith.addf %83, %86 : vector<2x8x16x8xf32>
    %cst_82 = arith.constant 0.000000e+00 : f32
    %88 = vector.broadcast %cst_82 : f32 to vector<2x8x16x8xf32>
    %89 = arith.maximumf %87, %88 : vector<2x8x16x8xf32>
    %cst_83 = arith.constant 0.000000e+00 : f32
    %90 = vector.broadcast %cst_83 : f32 to vector<2x1x10x8xf32>
    %c0_84 = arith.constant 0 : index
    %c0_85 = arith.constant 0 : index
    %c0_86 = arith.constant 0 : index
    %c0_87 = arith.constant 0 : index
    %91 = vector.load %arg9[%c0_84, %c0_85, %c0_86, %c0_87] : memref<2x18x18x8xf32, #tpu.memory_space<vmem>>, vector<2x1x10x8xf32>
    tpu.vector_store %arg9[%c0_84, %c0_85, %c0_86, %c0_87], %90 {strides = array<i32>} : memref<2x18x18x8xf32, #tpu.memory_space<vmem>>, vector<2x1x10x8xf32>,
    %c0_88 = arith.constant 0 : index
    %c9 = arith.constant 9 : index
    %c0_89 = arith.constant 0 : index
    %c0_90 = arith.constant 0 : index
    %92 = vector.load %arg9[%c0_88, %c9, %c0_89, %c0_90] : memref<2x18x18x8xf32, #tpu.memory_space<vmem>>, vector<2x1x10x8xf32>
    tpu.vector_store %arg9[%c0_88, %c9, %c0_89, %c0_90], %90 {strides = array<i32>} : memref<2x18x18x8xf32, #tpu.memory_space<vmem>>, vector<2x1x10x8xf32>,
    %cst_91 = arith.constant 0.000000e+00 : f32
    %93 = vector.broadcast %cst_91 : f32 to vector<2x10x1x8xf32>
    %c0_92 = arith.constant 0 : index
    %c0_93 = arith.constant 0 : index
    %c0_94 = arith.constant 0 : index
    %c0_95 = arith.constant 0 : index
    %94 = vector.load %arg9[%c0_92, %c0_93, %c0_94, %c0_95] : memref<2x18x18x8xf32, #tpu.memory_space<vmem>>, vector<2x10x1x8xf32>
    tpu.vector_store %arg9[%c0_92, %c0_93, %c0_94, %c0_95], %93 {strides = array<i32>} : memref<2x18x18x8xf32, #tpu.memory_space<vmem>>, vector<2x10x1x8xf32>,
    %c0_96 = arith.constant 0 : index
    %c0_97 = arith.constant 0 : index
    %c9_98 = arith.constant 9 : index
    %c0_99 = arith.constant 0 : index
    %95 = vector.load %arg9[%c0_96, %c0_97, %c9_98, %c0_99] : memref<2x18x18x8xf32, #tpu.memory_space<vmem>>, vector<2x10x1x8xf32>
    tpu.vector_store %arg9[%c0_96, %c0_97, %c9_98, %c0_99], %93 {strides = array<i32>} : memref<2x18x18x8xf32, #tpu.memory_space<vmem>>, vector<2x10x1x8xf32>,
    %96 = vector.extract_strided_slice %89 {offsets = [0, 0, 0, 0], sizes = [2, 8, 1, 8], strides = [1, 1, 1, 1]} : vector<2x8x16x8xf32> to vector<2x8x1x8xf32>
    %97 = vector.extract_strided_slice %89 {offsets = [0, 0, 1, 0], sizes = [2, 8, 1, 8], strides = [1, 1, 1, 1]} : vector<2x8x16x8xf32> to vector<2x8x1x8xf32>
    %98 = arith.maximumf %96, %97 : vector<2x8x1x8xf32>
    %c0_100 = arith.constant 0 : index
    %c1_101 = arith.constant 1 : index
    %c1_102 = arith.constant 1 : index
    %c0_103 = arith.constant 0 : index
    %99 = vector.load %arg9[%c0_100, %c1_101, %c1_102, %c0_103] : memref<2x18x18x8xf32, #tpu.memory_space<vmem>>, vector<2x8x1x8xf32>
    tpu.vector_store %arg9[%c0_100, %c1_101, %c1_102, %c0_103], %98 {strides = array<i32>} : memref<2x18x18x8xf32, #tpu.memory_space<vmem>>, vector<2x8x1x8xf32>,
    %100 = vector.extract_strided_slice %89 {offsets = [0, 0, 2, 0], sizes = [2, 8, 1, 8], strides = [1, 1, 1, 1]} : vector<2x8x16x8xf32> to vector<2x8x1x8xf32>
    %101 = vector.extract_strided_slice %89 {offsets = [0, 0, 3, 0], sizes = [2, 8, 1, 8], strides = [1, 1, 1, 1]} : vector<2x8x16x8xf32> to vector<2x8x1x8xf32>
    %102 = arith.maximumf %100, %101 : vector<2x8x1x8xf32>
    %c0_104 = arith.constant 0 : index
    %c1_105 = arith.constant 1 : index
    %c2_106 = arith.constant 2 : index
    %c0_107 = arith.constant 0 : index
    %103 = vector.load %arg9[%c0_104, %c1_105, %c2_106, %c0_107] : memref<2x18x18x8xf32, #tpu.memory_space<vmem>>, vector<2x8x1x8xf32>
    tpu.vector_store %arg9[%c0_104, %c1_105, %c2_106, %c0_107], %102 {strides = array<i32>} : memref<2x18x18x8xf32, #tpu.memory_space<vmem>>, vector<2x8x1x8xf32>,
    %104 = vector.extract_strided_slice %89 {offsets = [0, 0, 4, 0], sizes = [2, 8, 1, 8], strides = [1, 1, 1, 1]} : vector<2x8x16x8xf32> to vector<2x8x1x8xf32>
    %105 = vector.extract_strided_slice %89 {offsets = [0, 0, 5, 0], sizes = [2, 8, 1, 8], strides = [1, 1, 1, 1]} : vector<2x8x16x8xf32> to vector<2x8x1x8xf32>
    %106 = arith.maximumf %104, %105 : vector<2x8x1x8xf32>
    %c0_108 = arith.constant 0 : index
    %c1_109 = arith.constant 1 : index
    %c3_110 = arith.constant 3 : index
    %c0_111 = arith.constant 0 : index
    %107 = vector.load %arg9[%c0_108, %c1_109, %c3_110, %c0_111] : memref<2x18x18x8xf32, #tpu.memory_space<vmem>>, vector<2x8x1x8xf32>
    tpu.vector_store %arg9[%c0_108, %c1_109, %c3_110, %c0_111], %106 {strides = array<i32>} : memref<2x18x18x8xf32, #tpu.memory_space<vmem>>, vector<2x8x1x8xf32>,
    %108 = vector.extract_strided_slice %89 {offsets = [0, 0, 6, 0], sizes = [2, 8, 1, 8], strides = [1, 1, 1, 1]} : vector<2x8x16x8xf32> to vector<2x8x1x8xf32>
    %109 = vector.extract_strided_slice %89 {offsets = [0, 0, 7, 0], sizes = [2, 8, 1, 8], strides = [1, 1, 1, 1]} : vector<2x8x16x8xf32> to vector<2x8x1x8xf32>
    %110 = arith.maximumf %108, %109 : vector<2x8x1x8xf32>
    %c0_112 = arith.constant 0 : index
    %c1_113 = arith.constant 1 : index
    %c4_114 = arith.constant 4 : index
    %c0_115 = arith.constant 0 : index
    %111 = vector.load %arg9[%c0_112, %c1_113, %c4_114, %c0_115] : memref<2x18x18x8xf32, #tpu.memory_space<vmem>>, vector<2x8x1x8xf32>
    tpu.vector_store %arg9[%c0_112, %c1_113, %c4_114, %c0_115], %110 {strides = array<i32>} : memref<2x18x18x8xf32, #tpu.memory_space<vmem>>, vector<2x8x1x8xf32>,
    %112 = vector.extract_strided_slice %89 {offsets = [0, 0, 8, 0], sizes = [2, 8, 1, 8], strides = [1, 1, 1, 1]} : vector<2x8x16x8xf32> to vector<2x8x1x8xf32>
    %113 = vector.extract_strided_slice %89 {offsets = [0, 0, 9, 0], sizes = [2, 8, 1, 8], strides = [1, 1, 1, 1]} : vector<2x8x16x8xf32> to vector<2x8x1x8xf32>
    %114 = arith.maximumf %112, %113 : vector<2x8x1x8xf32>
    %c0_116 = arith.constant 0 : index
    %c1_117 = arith.constant 1 : index
    %c5_118 = arith.constant 5 : index
    %c0_119 = arith.constant 0 : index
    %115 = vector.load %arg9[%c0_116, %c1_117, %c5_118, %c0_119] : memref<2x18x18x8xf32, #tpu.memory_space<vmem>>, vector<2x8x1x8xf32>
    tpu.vector_store %arg9[%c0_116, %c1_117, %c5_118, %c0_119], %114 {strides = array<i32>} : memref<2x18x18x8xf32, #tpu.memory_space<vmem>>, vector<2x8x1x8xf32>,
    %116 = vector.extract_strided_slice %89 {offsets = [0, 0, 10, 0], sizes = [2, 8, 1, 8], strides = [1, 1, 1, 1]} : vector<2x8x16x8xf32> to vector<2x8x1x8xf32>
    %117 = vector.extract_strided_slice %89 {offsets = [0, 0, 11, 0], sizes = [2, 8, 1, 8], strides = [1, 1, 1, 1]} : vector<2x8x16x8xf32> to vector<2x8x1x8xf32>
    %118 = arith.maximumf %116, %117 : vector<2x8x1x8xf32>
    %c0_120 = arith.constant 0 : index
    %c1_121 = arith.constant 1 : index
    %c6_122 = arith.constant 6 : index
    %c0_123 = arith.constant 0 : index
    %119 = vector.load %arg9[%c0_120, %c1_121, %c6_122, %c0_123] : memref<2x18x18x8xf32, #tpu.memory_space<vmem>>, vector<2x8x1x8xf32>
    tpu.vector_store %arg9[%c0_120, %c1_121, %c6_122, %c0_123], %118 {strides = array<i32>} : memref<2x18x18x8xf32, #tpu.memory_space<vmem>>, vector<2x8x1x8xf32>,
    %120 = vector.extract_strided_slice %89 {offsets = [0, 0, 12, 0], sizes = [2, 8, 1, 8], strides = [1, 1, 1, 1]} : vector<2x8x16x8xf32> to vector<2x8x1x8xf32>
    %121 = vector.extract_strided_slice %89 {offsets = [0, 0, 13, 0], sizes = [2, 8, 1, 8], strides = [1, 1, 1, 1]} : vector<2x8x16x8xf32> to vector<2x8x1x8xf32>
    %122 = arith.maximumf %120, %121 : vector<2x8x1x8xf32>
    %c0_124 = arith.constant 0 : index
    %c1_125 = arith.constant 1 : index
    %c7_126 = arith.constant 7 : index
    %c0_127 = arith.constant 0 : index
    %123 = vector.load %arg9[%c0_124, %c1_125, %c7_126, %c0_127] : memref<2x18x18x8xf32, #tpu.memory_space<vmem>>, vector<2x8x1x8xf32>
    tpu.vector_store %arg9[%c0_124, %c1_125, %c7_126, %c0_127], %122 {strides = array<i32>} : memref<2x18x18x8xf32, #tpu.memory_space<vmem>>, vector<2x8x1x8xf32>,
    %124 = vector.extract_strided_slice %89 {offsets = [0, 0, 14, 0], sizes = [2, 8, 1, 8], strides = [1, 1, 1, 1]} : vector<2x8x16x8xf32> to vector<2x8x1x8xf32>
    %125 = vector.extract_strided_slice %89 {offsets = [0, 0, 15, 0], sizes = [2, 8, 1, 8], strides = [1, 1, 1, 1]} : vector<2x8x16x8xf32> to vector<2x8x1x8xf32>
    %126 = arith.maximumf %124, %125 : vector<2x8x1x8xf32>
    %c0_128 = arith.constant 0 : index
    %c1_129 = arith.constant 1 : index
    %c8_130 = arith.constant 8 : index
    %c0_131 = arith.constant 0 : index
    %127 = vector.load %arg9[%c0_128, %c1_129, %c8_130, %c0_131] : memref<2x18x18x8xf32, #tpu.memory_space<vmem>>, vector<2x8x1x8xf32>
    tpu.vector_store %arg9[%c0_128, %c1_129, %c8_130, %c0_131], %126 {strides = array<i32>} : memref<2x18x18x8xf32, #tpu.memory_space<vmem>>, vector<2x8x1x8xf32>,
    %cst_132 = arith.constant 0.000000e+00 : f32
    %128 = vector.broadcast %cst_132 : f32 to vector<128x16xf32>
    %c0_133 = arith.constant 0 : index
    %c0_134 = arith.constant 0 : index
    %c0_135 = arith.constant 0 : index
    %c0_136 = arith.constant 0 : index
    %129 = vector.load %arg9[%c0_133, %c0_134, %c0_135, %c0_136] : memref<2x18x18x8xf32, #tpu.memory_space<vmem>>, vector<2x8x8x8xf32>
    %130 = vector.shape_cast %129 : vector<2x8x8x8xf32> to vector<128x8xf32>
    %c0_137 = arith.constant 0 : index
    %c0_138 = arith.constant 0 : index
    %c0_139 = arith.constant 0 : index
    %131 = vector.load %arg4[%c0_137, %c0_138, %c0_139] : memref<9x8x16xf32, #tpu.memory_space<vmem>>, vector<1x8x16xf32>
    %132 = vector.shape_cast %131 : vector<1x8x16xf32> to vector<8x16xf32>
    %cst_140 = arith.constant dense<0.000000e+00> : vector<128x16xf32>
    %133 = tpu.matmul %130, %132, %cst_140 {dimension_numbers = #tpu.dot_dimension_numbers<[1], [0], [0], [1], [0, 0, 1, 1], [], []>} : vector<128x8xf32>, vector<8x16xf32>, vector<128x16xf32> -> vector<128x16xf32>
    %134 = arith.addf %128, %133 : vector<128x16xf32>
    %c0_141 = arith.constant 0 : index
    %c0_142 = arith.constant 0 : index
    %c1_143 = arith.constant 1 : index
    %c0_144 = arith.constant 0 : index
    %135 = vector.load %arg9[%c0_141, %c0_142, %c1_143, %c0_144] : memref<2x18x18x8xf32, #tpu.memory_space<vmem>>, vector<2x8x8x8xf32>
    %136 = vector.shape_cast %135 : vector<2x8x8x8xf32> to vector<128x8xf32>
    %c1_145 = arith.constant 1 : index
    %c0_146 = arith.constant 0 : index
    %c0_147 = arith.constant 0 : index
    %137 = vector.load %arg4[%c1_145, %c0_146, %c0_147] : memref<9x8x16xf32, #tpu.memory_space<vmem>>, vector<1x8x16xf32>
    %138 = vector.shape_cast %137 : vector<1x8x16xf32> to vector<8x16xf32>
    %cst_148 = arith.constant dense<0.000000e+00> : vector<128x16xf32>
    %139 = tpu.matmul %136, %138, %cst_148 {dimension_numbers = #tpu.dot_dimension_numbers<[1], [0], [0], [1], [0, 0, 1, 1], [], []>} : vector<128x8xf32>, vector<8x16xf32>, vector<128x16xf32> -> vector<128x16xf32>
    %140 = arith.addf %134, %139 : vector<128x16xf32>
    %c0_149 = arith.constant 0 : index
    %c0_150 = arith.constant 0 : index
    %c2_151 = arith.constant 2 : index
    %c0_152 = arith.constant 0 : index
    %141 = vector.load %arg9[%c0_149, %c0_150, %c2_151, %c0_152] : memref<2x18x18x8xf32, #tpu.memory_space<vmem>>, vector<2x8x8x8xf32>
    %142 = vector.shape_cast %141 : vector<2x8x8x8xf32> to vector<128x8xf32>
    %c2_153 = arith.constant 2 : index
    %c0_154 = arith.constant 0 : index
    %c0_155 = arith.constant 0 : index
    %143 = vector.load %arg4[%c2_153, %c0_154, %c0_155] : memref<9x8x16xf32, #tpu.memory_space<vmem>>, vector<1x8x16xf32>
    %144 = vector.shape_cast %143 : vector<1x8x16xf32> to vector<8x16xf32>
    %cst_156 = arith.constant dense<0.000000e+00> : vector<128x16xf32>
    %145 = tpu.matmul %142, %144, %cst_156 {dimension_numbers = #tpu.dot_dimension_numbers<[1], [0], [0], [1], [0, 0, 1, 1], [], []>} : vector<128x8xf32>, vector<8x16xf32>, vector<128x16xf32> -> vector<128x16xf32>
    %146 = arith.addf %140, %145 : vector<128x16xf32>
    %c0_157 = arith.constant 0 : index
    %c1_158 = arith.constant 1 : index
    %c0_159 = arith.constant 0 : index
    %c0_160 = arith.constant 0 : index
    %147 = vector.load %arg9[%c0_157, %c1_158, %c0_159, %c0_160] : memref<2x18x18x8xf32, #tpu.memory_space<vmem>>, vector<2x8x8x8xf32>
    %148 = vector.shape_cast %147 : vector<2x8x8x8xf32> to vector<128x8xf32>
    %c3_161 = arith.constant 3 : index
    %c0_162 = arith.constant 0 : index
    %c0_163 = arith.constant 0 : index
    %149 = vector.load %arg4[%c3_161, %c0_162, %c0_163] : memref<9x8x16xf32, #tpu.memory_space<vmem>>, vector<1x8x16xf32>
    %150 = vector.shape_cast %149 : vector<1x8x16xf32> to vector<8x16xf32>
    %cst_164 = arith.constant dense<0.000000e+00> : vector<128x16xf32>
    %151 = tpu.matmul %148, %150, %cst_164 {dimension_numbers = #tpu.dot_dimension_numbers<[1], [0], [0], [1], [0, 0, 1, 1], [], []>} : vector<128x8xf32>, vector<8x16xf32>, vector<128x16xf32> -> vector<128x16xf32>
    %152 = arith.addf %146, %151 : vector<128x16xf32>
    %c0_165 = arith.constant 0 : index
    %c1_166 = arith.constant 1 : index
    %c1_167 = arith.constant 1 : index
    %c0_168 = arith.constant 0 : index
    %153 = vector.load %arg9[%c0_165, %c1_166, %c1_167, %c0_168] : memref<2x18x18x8xf32, #tpu.memory_space<vmem>>, vector<2x8x8x8xf32>
    %154 = vector.shape_cast %153 : vector<2x8x8x8xf32> to vector<128x8xf32>
    %c4_169 = arith.constant 4 : index
    %c0_170 = arith.constant 0 : index
    %c0_171 = arith.constant 0 : index
    %155 = vector.load %arg4[%c4_169, %c0_170, %c0_171] : memref<9x8x16xf32, #tpu.memory_space<vmem>>, vector<1x8x16xf32>
    %156 = vector.shape_cast %155 : vector<1x8x16xf32> to vector<8x16xf32>
    %cst_172 = arith.constant dense<0.000000e+00> : vector<128x16xf32>
    %157 = tpu.matmul %154, %156, %cst_172 {dimension_numbers = #tpu.dot_dimension_numbers<[1], [0], [0], [1], [0, 0, 1, 1], [], []>} : vector<128x8xf32>, vector<8x16xf32>, vector<128x16xf32> -> vector<128x16xf32>
    %158 = arith.addf %152, %157 : vector<128x16xf32>
    %c0_173 = arith.constant 0 : index
    %c1_174 = arith.constant 1 : index
    %c2_175 = arith.constant 2 : index
    %c0_176 = arith.constant 0 : index
    %159 = vector.load %arg9[%c0_173, %c1_174, %c2_175, %c0_176] : memref<2x18x18x8xf32, #tpu.memory_space<vmem>>, vector<2x8x8x8xf32>
    %160 = vector.shape_cast %159 : vector<2x8x8x8xf32> to vector<128x8xf32>
    %c5_177 = arith.constant 5 : index
    %c0_178 = arith.constant 0 : index
    %c0_179 = arith.constant 0 : index
    %161 = vector.load %arg4[%c5_177, %c0_178, %c0_179] : memref<9x8x16xf32, #tpu.memory_space<vmem>>, vector<1x8x16xf32>
    %162 = vector.shape_cast %161 : vector<1x8x16xf32> to vector<8x16xf32>
    %cst_180 = arith.constant dense<0.000000e+00> : vector<128x16xf32>
    %163 = tpu.matmul %160, %162, %cst_180 {dimension_numbers = #tpu.dot_dimension_numbers<[1], [0], [0], [1], [0, 0, 1, 1], [], []>} : vector<128x8xf32>, vector<8x16xf32>, vector<128x16xf32> -> vector<128x16xf32>
    %164 = arith.addf %158, %163 : vector<128x16xf32>
    %c0_181 = arith.constant 0 : index
    %c2_182 = arith.constant 2 : index
    %c0_183 = arith.constant 0 : index
    %c0_184 = arith.constant 0 : index
    %165 = vector.load %arg9[%c0_181, %c2_182, %c0_183, %c0_184] : memref<2x18x18x8xf32, #tpu.memory_space<vmem>>, vector<2x8x8x8xf32>
    %166 = vector.shape_cast %165 : vector<2x8x8x8xf32> to vector<128x8xf32>
    %c6_185 = arith.constant 6 : index
    %c0_186 = arith.constant 0 : index
    %c0_187 = arith.constant 0 : index
    %167 = vector.load %arg4[%c6_185, %c0_186, %c0_187] : memref<9x8x16xf32, #tpu.memory_space<vmem>>, vector<1x8x16xf32>
    %168 = vector.shape_cast %167 : vector<1x8x16xf32> to vector<8x16xf32>
    %cst_188 = arith.constant dense<0.000000e+00> : vector<128x16xf32>
    %169 = tpu.matmul %166, %168, %cst_188 {dimension_numbers = #tpu.dot_dimension_numbers<[1], [0], [0], [1], [0, 0, 1, 1], [], []>} : vector<128x8xf32>, vector<8x16xf32>, vector<128x16xf32> -> vector<128x16xf32>
    %170 = arith.addf %164, %169 : vector<128x16xf32>
    %c0_189 = arith.constant 0 : index
    %c2_190 = arith.constant 2 : index
    %c1_191 = arith.constant 1 : index
    %c0_192 = arith.constant 0 : index
    %171 = vector.load %arg9[%c0_189, %c2_190, %c1_191, %c0_192] : memref<2x18x18x8xf32, #tpu.memory_space<vmem>>, vector<2x8x8x8xf32>
    %172 = vector.shape_cast %171 : vector<2x8x8x8xf32> to vector<128x8xf32>
    %c7_193 = arith.constant 7 : index
    %c0_194 = arith.constant 0 : index
    %c0_195 = arith.constant 0 : index
    %173 = vector.load %arg4[%c7_193, %c0_194, %c0_195] : memref<9x8x16xf32, #tpu.memory_space<vmem>>, vector<1x8x16xf32>
    %174 = vector.shape_cast %173 : vector<1x8x16xf32> to vector<8x16xf32>
    %cst_196 = arith.constant dense<0.000000e+00> : vector<128x16xf32>
    %175 = tpu.matmul %172, %174, %cst_196 {dimension_numbers = #tpu.dot_dimension_numbers<[1], [0], [0], [1], [0, 0, 1, 1], [], []>} : vector<128x8xf32>, vector<8x16xf32>, vector<128x16xf32> -> vector<128x16xf32>
    %176 = arith.addf %170, %175 : vector<128x16xf32>
    %c0_197 = arith.constant 0 : index
    %c2_198 = arith.constant 2 : index
    %c2_199 = arith.constant 2 : index
    %c0_200 = arith.constant 0 : index
    %177 = vector.load %arg9[%c0_197, %c2_198, %c2_199, %c0_200] : memref<2x18x18x8xf32, #tpu.memory_space<vmem>>, vector<2x8x8x8xf32>
    %178 = vector.shape_cast %177 : vector<2x8x8x8xf32> to vector<128x8xf32>
    %c8_201 = arith.constant 8 : index
    %c0_202 = arith.constant 0 : index
    %c0_203 = arith.constant 0 : index
    %179 = vector.load %arg4[%c8_201, %c0_202, %c0_203] : memref<9x8x16xf32, #tpu.memory_space<vmem>>, vector<1x8x16xf32>
    %180 = vector.shape_cast %179 : vector<1x8x16xf32> to vector<8x16xf32>
    %cst_204 = arith.constant dense<0.000000e+00> : vector<128x16xf32>
    %181 = tpu.matmul %178, %180, %cst_204 {dimension_numbers = #tpu.dot_dimension_numbers<[1], [0], [0], [1], [0, 0, 1, 1], [], []>} : vector<128x8xf32>, vector<8x16xf32>, vector<128x16xf32> -> vector<128x16xf32>
    %182 = arith.addf %176, %181 : vector<128x16xf32>
    %183 = vector.shape_cast %182 : vector<128x16xf32> to vector<8x2x8x16xf32>
    %cst_205 = arith.constant dense<0xFF800000> : vector<8x8x16xf32>
    %184 = vector.multi_reduction <maximumf>, %183, %cst_205 [1] : vector<8x2x8x16xf32> to vector<8x8x16xf32>
    %185 = vector.shape_cast %184 : vector<8x8x16xf32> to vector<2x4x8x16xf32>
    %c0_206 = arith.constant 0 : index
    %c0_207 = arith.constant 0 : index
    %186 = vector.load %arg5[%c0_206, %c0_207] : memref<1x16xf32, #tpu.memory_space<vmem>>, vector<1x16xf32>
    %187 = vector.shape_cast %186 : vector<1x16xf32> to vector<1x1x1x16xf32>
    %188 = vector.broadcast %187 : vector<1x1x1x16xf32> to vector<2x4x8x16xf32>
    %189 = arith.addf %185, %188 : vector<2x4x8x16xf32>
    %cst_208 = arith.constant 0.000000e+00 : f32
    %190 = vector.broadcast %cst_208 : f32 to vector<2x4x8x16xf32>
    %191 = arith.maximumf %189, %190 : vector<2x4x8x16xf32>
    %192 = vector.extract_strided_slice %191 {offsets = [0, 0, 0, 0], sizes = [2, 1, 1, 16], strides = [1, 1, 1, 1]} : vector<2x4x8x16xf32> to vector<2x1x1x16xf32>
    %193 = vector.extract_strided_slice %191 {offsets = [0, 0, 1, 0], sizes = [2, 1, 1, 16], strides = [1, 1, 1, 1]} : vector<2x4x8x16xf32> to vector<2x1x1x16xf32>
    %194 = arith.maximumf %192, %193 : vector<2x1x1x16xf32>
    %195 = vector.shape_cast %194 : vector<2x1x1x16xf32> to vector<2x16xf32>
    %c0_209 = arith.constant 0 : index
    %c0_210 = arith.constant 0 : index
    %196 = vector.load %arg10[%c0_209, %c0_210] : memref<2x256xf32, #tpu.memory_space<vmem>>, vector<2x16xf32>
    tpu.vector_store %arg10[%c0_209, %c0_210], %195 {strides = array<i32>} : memref<2x256xf32, #tpu.memory_space<vmem>>, vector<2x16xf32>,
    %197 = vector.extract_strided_slice %191 {offsets = [0, 0, 2, 0], sizes = [2, 1, 1, 16], strides = [1, 1, 1, 1]} : vector<2x4x8x16xf32> to vector<2x1x1x16xf32>
    %198 = vector.extract_strided_slice %191 {offsets = [0, 0, 3, 0], sizes = [2, 1, 1, 16], strides = [1, 1, 1, 1]} : vector<2x4x8x16xf32> to vector<2x1x1x16xf32>
    %199 = arith.maximumf %197, %198 : vector<2x1x1x16xf32>
    %200 = vector.shape_cast %199 : vector<2x1x1x16xf32> to vector<2x16xf32>
    %c0_211 = arith.constant 0 : index
    %c16 = arith.constant 16 : index
    %201 = vector.load %arg10[%c0_211, %c16] : memref<2x256xf32, #tpu.memory_space<vmem>>, vector<2x16xf32>
    tpu.vector_store %arg10[%c0_211, %c16], %200 {strides = array<i32>} : memref<2x256xf32, #tpu.memory_space<vmem>>, vector<2x16xf32>,
    %202 = vector.extract_strided_slice %191 {offsets = [0, 0, 4, 0], sizes = [2, 1, 1, 16], strides = [1, 1, 1, 1]} : vector<2x4x8x16xf32> to vector<2x1x1x16xf32>
    %203 = vector.extract_strided_slice %191 {offsets = [0, 0, 5, 0], sizes = [2, 1, 1, 16], strides = [1, 1, 1, 1]} : vector<2x4x8x16xf32> to vector<2x1x1x16xf32>
    %204 = arith.maximumf %202, %203 : vector<2x1x1x16xf32>
    %205 = vector.shape_cast %204 : vector<2x1x1x16xf32> to vector<2x16xf32>
    %c0_212 = arith.constant 0 : index
    %c32 = arith.constant 32 : index
    %206 = vector.load %arg10[%c0_212, %c32] : memref<2x256xf32, #tpu.memory_space<vmem>>, vector<2x16xf32>
    tpu.vector_store %arg10[%c0_212, %c32], %205 {strides = array<i32>} : memref<2x256xf32, #tpu.memory_space<vmem>>, vector<2x16xf32>,
    %207 = vector.extract_strided_slice %191 {offsets = [0, 0, 6, 0], sizes = [2, 1, 1, 16], strides = [1, 1, 1, 1]} : vector<2x4x8x16xf32> to vector<2x1x1x16xf32>
    %208 = vector.extract_strided_slice %191 {offsets = [0, 0, 7, 0], sizes = [2, 1, 1, 16], strides = [1, 1, 1, 1]} : vector<2x4x8x16xf32> to vector<2x1x1x16xf32>
    %209 = arith.maximumf %207, %208 : vector<2x1x1x16xf32>
    %210 = vector.shape_cast %209 : vector<2x1x1x16xf32> to vector<2x16xf32>
    %c0_213 = arith.constant 0 : index
    %c48 = arith.constant 48 : index
    %211 = vector.load %arg10[%c0_213, %c48] : memref<2x256xf32, #tpu.memory_space<vmem>>, vector<2x16xf32>
    tpu.vector_store %arg10[%c0_213, %c48], %210 {strides = array<i32>} : memref<2x256xf32, #tpu.memory_space<vmem>>, vector<2x16xf32>,
    %212 = vector.extract_strided_slice %191 {offsets = [0, 1, 0, 0], sizes = [2, 1, 1, 16], strides = [1, 1, 1, 1]} : vector<2x4x8x16xf32> to vector<2x1x1x16xf32>
    %213 = vector.extract_strided_slice %191 {offsets = [0, 1, 1, 0], sizes = [2, 1, 1, 16], strides = [1, 1, 1, 1]} : vector<2x4x8x16xf32> to vector<2x1x1x16xf32>
    %214 = arith.maximumf %212, %213 : vector<2x1x1x16xf32>
    %215 = vector.shape_cast %214 : vector<2x1x1x16xf32> to vector<2x16xf32>
    %c0_214 = arith.constant 0 : index
    %c64 = arith.constant 64 : index
    %216 = vector.load %arg10[%c0_214, %c64] : memref<2x256xf32, #tpu.memory_space<vmem>>, vector<2x16xf32>
    tpu.vector_store %arg10[%c0_214, %c64], %215 {strides = array<i32>} : memref<2x256xf32, #tpu.memory_space<vmem>>, vector<2x16xf32>,
    %217 = vector.extract_strided_slice %191 {offsets = [0, 1, 2, 0], sizes = [2, 1, 1, 16], strides = [1, 1, 1, 1]} : vector<2x4x8x16xf32> to vector<2x1x1x16xf32>
    %218 = vector.extract_strided_slice %191 {offsets = [0, 1, 3, 0], sizes = [2, 1, 1, 16], strides = [1, 1, 1, 1]} : vector<2x4x8x16xf32> to vector<2x1x1x16xf32>
    %219 = arith.maximumf %217, %218 : vector<2x1x1x16xf32>
    %220 = vector.shape_cast %219 : vector<2x1x1x16xf32> to vector<2x16xf32>
    %c0_215 = arith.constant 0 : index
    %c80 = arith.constant 80 : index
    %221 = vector.load %arg10[%c0_215, %c80] : memref<2x256xf32, #tpu.memory_space<vmem>>, vector<2x16xf32>
    tpu.vector_store %arg10[%c0_215, %c80], %220 {strides = array<i32>} : memref<2x256xf32, #tpu.memory_space<vmem>>, vector<2x16xf32>,
    %222 = vector.extract_strided_slice %191 {offsets = [0, 1, 4, 0], sizes = [2, 1, 1, 16], strides = [1, 1, 1, 1]} : vector<2x4x8x16xf32> to vector<2x1x1x16xf32>
    %223 = vector.extract_strided_slice %191 {offsets = [0, 1, 5, 0], sizes = [2, 1, 1, 16], strides = [1, 1, 1, 1]} : vector<2x4x8x16xf32> to vector<2x1x1x16xf32>
    %224 = arith.maximumf %222, %223 : vector<2x1x1x16xf32>
    %225 = vector.shape_cast %224 : vector<2x1x1x16xf32> to vector<2x16xf32>
    %c0_216 = arith.constant 0 : index
    %c96 = arith.constant 96 : index
    %226 = vector.load %arg10[%c0_216, %c96] : memref<2x256xf32, #tpu.memory_space<vmem>>, vector<2x16xf32>
    tpu.vector_store %arg10[%c0_216, %c96], %225 {strides = array<i32>} : memref<2x256xf32, #tpu.memory_space<vmem>>, vector<2x16xf32>,
    %227 = vector.extract_strided_slice %191 {offsets = [0, 1, 6, 0], sizes = [2, 1, 1, 16], strides = [1, 1, 1, 1]} : vector<2x4x8x16xf32> to vector<2x1x1x16xf32>
    %228 = vector.extract_strided_slice %191 {offsets = [0, 1, 7, 0], sizes = [2, 1, 1, 16], strides = [1, 1, 1, 1]} : vector<2x4x8x16xf32> to vector<2x1x1x16xf32>
    %229 = arith.maximumf %227, %228 : vector<2x1x1x16xf32>
    %230 = vector.shape_cast %229 : vector<2x1x1x16xf32> to vector<2x16xf32>
    %c0_217 = arith.constant 0 : index
    %c112 = arith.constant 112 : index
    %231 = vector.load %arg10[%c0_217, %c112] : memref<2x256xf32, #tpu.memory_space<vmem>>, vector<2x16xf32>
    tpu.vector_store %arg10[%c0_217, %c112], %230 {strides = array<i32>} : memref<2x256xf32, #tpu.memory_space<vmem>>, vector<2x16xf32>,
    %232 = vector.extract_strided_slice %191 {offsets = [0, 2, 0, 0], sizes = [2, 1, 1, 16], strides = [1, 1, 1, 1]} : vector<2x4x8x16xf32> to vector<2x1x1x16xf32>
    %233 = vector.extract_strided_slice %191 {offsets = [0, 2, 1, 0], sizes = [2, 1, 1, 16], strides = [1, 1, 1, 1]} : vector<2x4x8x16xf32> to vector<2x1x1x16xf32>
    %234 = arith.maximumf %232, %233 : vector<2x1x1x16xf32>
    %235 = vector.shape_cast %234 : vector<2x1x1x16xf32> to vector<2x16xf32>
    %c0_218 = arith.constant 0 : index
    %c128 = arith.constant 128 : index
    %236 = vector.load %arg10[%c0_218, %c128] : memref<2x256xf32, #tpu.memory_space<vmem>>, vector<2x16xf32>
    tpu.vector_store %arg10[%c0_218, %c128], %235 {strides = array<i32>} : memref<2x256xf32, #tpu.memory_space<vmem>>, vector<2x16xf32>,
    %237 = vector.extract_strided_slice %191 {offsets = [0, 2, 2, 0], sizes = [2, 1, 1, 16], strides = [1, 1, 1, 1]} : vector<2x4x8x16xf32> to vector<2x1x1x16xf32>
    %238 = vector.extract_strided_slice %191 {offsets = [0, 2, 3, 0], sizes = [2, 1, 1, 16], strides = [1, 1, 1, 1]} : vector<2x4x8x16xf32> to vector<2x1x1x16xf32>
    %239 = arith.maximumf %237, %238 : vector<2x1x1x16xf32>
    %240 = vector.shape_cast %239 : vector<2x1x1x16xf32> to vector<2x16xf32>
    %c0_219 = arith.constant 0 : index
    %c144 = arith.constant 144 : index
    %241 = vector.load %arg10[%c0_219, %c144] : memref<2x256xf32, #tpu.memory_space<vmem>>, vector<2x16xf32>
    tpu.vector_store %arg10[%c0_219, %c144], %240 {strides = array<i32>} : memref<2x256xf32, #tpu.memory_space<vmem>>, vector<2x16xf32>,
    %242 = vector.extract_strided_slice %191 {offsets = [0, 2, 4, 0], sizes = [2, 1, 1, 16], strides = [1, 1, 1, 1]} : vector<2x4x8x16xf32> to vector<2x1x1x16xf32>
    %243 = vector.extract_strided_slice %191 {offsets = [0, 2, 5, 0], sizes = [2, 1, 1, 16], strides = [1, 1, 1, 1]} : vector<2x4x8x16xf32> to vector<2x1x1x16xf32>
    %244 = arith.maximumf %242, %243 : vector<2x1x1x16xf32>
    %245 = vector.shape_cast %244 : vector<2x1x1x16xf32> to vector<2x16xf32>
    %c0_220 = arith.constant 0 : index
    %c160 = arith.constant 160 : index
    %246 = vector.load %arg10[%c0_220, %c160] : memref<2x256xf32, #tpu.memory_space<vmem>>, vector<2x16xf32>
    tpu.vector_store %arg10[%c0_220, %c160], %245 {strides = array<i32>} : memref<2x256xf32, #tpu.memory_space<vmem>>, vector<2x16xf32>,
    %247 = vector.extract_strided_slice %191 {offsets = [0, 2, 6, 0], sizes = [2, 1, 1, 16], strides = [1, 1, 1, 1]} : vector<2x4x8x16xf32> to vector<2x1x1x16xf32>
    %248 = vector.extract_strided_slice %191 {offsets = [0, 2, 7, 0], sizes = [2, 1, 1, 16], strides = [1, 1, 1, 1]} : vector<2x4x8x16xf32> to vector<2x1x1x16xf32>
    %249 = arith.maximumf %247, %248 : vector<2x1x1x16xf32>
    %250 = vector.shape_cast %249 : vector<2x1x1x16xf32> to vector<2x16xf32>
    %c0_221 = arith.constant 0 : index
    %c176 = arith.constant 176 : index
    %251 = vector.load %arg10[%c0_221, %c176] : memref<2x256xf32, #tpu.memory_space<vmem>>, vector<2x16xf32>
    tpu.vector_store %arg10[%c0_221, %c176], %250 {strides = array<i32>} : memref<2x256xf32, #tpu.memory_space<vmem>>, vector<2x16xf32>,
    %252 = vector.extract_strided_slice %191 {offsets = [0, 3, 0, 0], sizes = [2, 1, 1, 16], strides = [1, 1, 1, 1]} : vector<2x4x8x16xf32> to vector<2x1x1x16xf32>
    %253 = vector.extract_strided_slice %191 {offsets = [0, 3, 1, 0], sizes = [2, 1, 1, 16], strides = [1, 1, 1, 1]} : vector<2x4x8x16xf32> to vector<2x1x1x16xf32>
    %254 = arith.maximumf %252, %253 : vector<2x1x1x16xf32>
    %255 = vector.shape_cast %254 : vector<2x1x1x16xf32> to vector<2x16xf32>
    %c0_222 = arith.constant 0 : index
    %c192 = arith.constant 192 : index
    %256 = vector.load %arg10[%c0_222, %c192] : memref<2x256xf32, #tpu.memory_space<vmem>>, vector<2x16xf32>
    tpu.vector_store %arg10[%c0_222, %c192], %255 {strides = array<i32>} : memref<2x256xf32, #tpu.memory_space<vmem>>, vector<2x16xf32>,
    %257 = vector.extract_strided_slice %191 {offsets = [0, 3, 2, 0], sizes = [2, 1, 1, 16], strides = [1, 1, 1, 1]} : vector<2x4x8x16xf32> to vector<2x1x1x16xf32>
    %258 = vector.extract_strided_slice %191 {offsets = [0, 3, 3, 0], sizes = [2, 1, 1, 16], strides = [1, 1, 1, 1]} : vector<2x4x8x16xf32> to vector<2x1x1x16xf32>
    %259 = arith.maximumf %257, %258 : vector<2x1x1x16xf32>
    %260 = vector.shape_cast %259 : vector<2x1x1x16xf32> to vector<2x16xf32>
    %c0_223 = arith.constant 0 : index
    %c208 = arith.constant 208 : index
    %261 = vector.load %arg10[%c0_223, %c208] : memref<2x256xf32, #tpu.memory_space<vmem>>, vector<2x16xf32>
    tpu.vector_store %arg10[%c0_223, %c208], %260 {strides = array<i32>} : memref<2x256xf32, #tpu.memory_space<vmem>>, vector<2x16xf32>,
    %262 = vector.extract_strided_slice %191 {offsets = [0, 3, 4, 0], sizes = [2, 1, 1, 16], strides = [1, 1, 1, 1]} : vector<2x4x8x16xf32> to vector<2x1x1x16xf32>
    %263 = vector.extract_strided_slice %191 {offsets = [0, 3, 5, 0], sizes = [2, 1, 1, 16], strides = [1, 1, 1, 1]} : vector<2x4x8x16xf32> to vector<2x1x1x16xf32>
    %264 = arith.maximumf %262, %263 : vector<2x1x1x16xf32>
    %265 = vector.shape_cast %264 : vector<2x1x1x16xf32> to vector<2x16xf32>
    %c0_224 = arith.constant 0 : index
    %c224 = arith.constant 224 : index
    %266 = vector.load %arg10[%c0_224, %c224] : memref<2x256xf32, #tpu.memory_space<vmem>>, vector<2x16xf32>
    tpu.vector_store %arg10[%c0_224, %c224], %265 {strides = array<i32>} : memref<2x256xf32, #tpu.memory_space<vmem>>, vector<2x16xf32>,
    %267 = vector.extract_strided_slice %191 {offsets = [0, 3, 6, 0], sizes = [2, 1, 1, 16], strides = [1, 1, 1, 1]} : vector<2x4x8x16xf32> to vector<2x1x1x16xf32>
    %268 = vector.extract_strided_slice %191 {offsets = [0, 3, 7, 0], sizes = [2, 1, 1, 16], strides = [1, 1, 1, 1]} : vector<2x4x8x16xf32> to vector<2x1x1x16xf32>
    %269 = arith.maximumf %267, %268 : vector<2x1x1x16xf32>
    %270 = vector.shape_cast %269 : vector<2x1x1x16xf32> to vector<2x16xf32>
    %c0_225 = arith.constant 0 : index
    %c240 = arith.constant 240 : index
    %271 = vector.load %arg10[%c0_225, %c240] : memref<2x256xf32, #tpu.memory_space<vmem>>, vector<2x16xf32>
    tpu.vector_store %arg10[%c0_225, %c240], %270 {strides = array<i32>} : memref<2x256xf32, #tpu.memory_space<vmem>>, vector<2x16xf32>,
    %c0_226 = arith.constant 0 : index
    %c0_227 = arith.constant 0 : index
    %272 = vector.load %arg10[%c0_226, %c0_227] : memref<2x256xf32, #tpu.memory_space<vmem>>, vector<2x256xf32>
    %c0_228 = arith.constant 0 : index
    %c0_229 = arith.constant 0 : index
    %273 = vector.load %arg6[%c0_228, %c0_229] : memref<256x4xf32, #tpu.memory_space<vmem>>, vector<256x4xf32>
    %cst_230 = arith.constant dense<0.000000e+00> : vector<2x4xf32>
    %274 = tpu.matmul %272, %273, %cst_230 {dimension_numbers = #tpu.dot_dimension_numbers<[1], [0], [0], [1], [0, 0, 1, 1], [], []>} : vector<2x256xf32>, vector<256x4xf32>, vector<2x4xf32> -> vector<2x4xf32>
    %c0_231 = arith.constant 0 : index
    %c0_232 = arith.constant 0 : index
    %275 = vector.load %arg7[%c0_231, %c0_232] : memref<1x4xf32, #tpu.memory_space<vmem>>, vector<1x4xf32>
    %276 = vector.broadcast %275 : vector<1x4xf32> to vector<2x4xf32>
    %277 = arith.addf %274, %276 : vector<2x4xf32>
    %cst_233 = arith.constant dense<0xFF800000> : vector<2xf32>
    %278 = vector.multi_reduction <maximumf>, %277, %cst_233 [1] : vector<2x4xf32> to vector<2xf32>
    %279 = vector.shape_cast %278 : vector<2xf32> to vector<2x1xf32>
    %280 = vector.broadcast %279 : vector<2x1xf32> to vector<2x4xf32>
    %281 = arith.subf %277, %280 : vector<2x4xf32>
    %282 = math.exp %281 : vector<2x4xf32>
    %cst_234 = arith.constant dense<0.000000e+00> : vector<2xf32>
    %283 = vector.multi_reduction <add>, %282, %cst_234 [1] : vector<2x4xf32> to vector<2xf32>
    %284 = vector.shape_cast %283 : vector<2xf32> to vector<2x1xf32>
    %285 = math.log %284 : vector<2x1xf32>
    %286 = vector.broadcast %285 : vector<2x1xf32> to vector<2x4xf32>
    %287 = arith.subf %281, %286 : vector<2x4xf32>
    %c0_235 = arith.constant 0 : index
    %c0_236 = arith.constant 0 : index
    %288 = vector.load %arg8[%c0_235, %c0_236] : memref<2x4xf32, #tpu.memory_space<vmem>>, vector<2x4xf32>
    tpu.vector_store %arg8[%c0_235, %c0_236], %287 {strides = array<i32>} : memref<2x4xf32, #tpu.memory_space<vmem>>, vector<2x4xf32>,
    return
  }
  func.func @transform_0(%arg0: i32) -> (i32, i32, i32, i32) {
    %c0_i32 = arith.constant 0 : i32
    %c0_i32_0 = arith.constant 0 : i32
    %c0_i32_1 = arith.constant 0 : i32
    %c0_i32_2 = arith.constant 0 : i32
    return %arg0, %c0_i32, %c0_i32_0, %c0_i32_1 : i32, i32, i32, i32
  }
  func.func @transform_1(%arg0: i32) -> (i32, i32, i32) {
    %c0_i32 = arith.constant 0 : i32
    %c0_i32_0 = arith.constant 0 : i32
    %c0_i32_1 = arith.constant 0 : i32
    %c0_i32_2 = arith.constant 0 : i32
    return %c0_i32, %c0_i32_0, %c0_i32_1 : i32, i32, i32
  }
  func.func @transform_2(%arg0: i32) -> (i32, i32) {
    %c0_i32 = arith.constant 0 : i32
    %c0_i32_0 = arith.constant 0 : i32
    %c0_i32_1 = arith.constant 0 : i32
    return %c0_i32, %c0_i32_0 : i32, i32
  }
  func.func @transform_3(%arg0: i32) -> (i32, i32, i32) {
    %c0_i32 = arith.constant 0 : i32
    %c0_i32_0 = arith.constant 0 : i32
    %c0_i32_1 = arith.constant 0 : i32
    %c0_i32_2 = arith.constant 0 : i32
    return %c0_i32, %c0_i32_0, %c0_i32_1 : i32, i32, i32
  }
  func.func @transform_4(%arg0: i32) -> (i32, i32) {
    %c0_i32 = arith.constant 0 : i32
    %c0_i32_0 = arith.constant 0 : i32
    %c0_i32_1 = arith.constant 0 : i32
    return %c0_i32, %c0_i32_0 : i32, i32
  }
  func.func @transform_5(%arg0: i32) -> (i32, i32) {
    %c0_i32 = arith.constant 0 : i32
    %c0_i32_0 = arith.constant 0 : i32
    %c0_i32_1 = arith.constant 0 : i32
    return %c0_i32, %c0_i32_0 : i32, i32
  }
  func.func @transform_6(%arg0: i32) -> (i32, i32) {
    %c0_i32 = arith.constant 0 : i32
    %c0_i32_0 = arith.constant 0 : i32
    %c0_i32_1 = arith.constant 0 : i32
    return %c0_i32, %c0_i32_0 : i32, i32
  }
  func.func @transform_7(%arg0: i32) -> (i32, i32) {
    %c0_i32 = arith.constant 0 : i32
    %c0_i32_0 = arith.constant 0 : i32
    return %arg0, %c0_i32 : i32, i32
  }
}

</mosaic_0001>

<llo_original>
// kernel: forward.1
$region0: #{forward.1}
  #allocation0 [shape = 'u32[]', space=smem, size = 0x4, offset = 0x4, fixed_abs, tag = 'smem constant byte address 0x4 - core index']
  #allocation1 [shape = 'u32[72,128]{1,0:T(1,128)}', space=vmem, size = 0x9000, scoped, tag = 'internal scratch']
  #allocation2 [shape = 'f32[2,18,18,8]{3,2,1,0:T(8,128)}', space=vmem, size = 0x6c000, scoped, tag = 'scratch operand']
  #allocation3 [shape = 'f32[2,256]{1,0:T(2,128)}', space=vmem, size = 0x800, scoped, tag = 'scratch operand']
  %s0 = inlined_call_operand.vmem [shape: f32[2,16,16,1], index: 0, kind: input, shape index: {}]
  %s1 = inlined_call_operand.vmem [shape: f32[9,1,8], index: 1, kind: input, shape index: {}]
  %s2 = inlined_call_operand.vmem [shape: f32[1,8], index: 2, kind: input, shape index: {}]
  %s3 = inlined_call_operand.vmem [shape: f32[9,8,16], index: 3, kind: input, shape index: {}]
  %s4 = inlined_call_operand.vmem [shape: f32[1,16], index: 4, kind: input, shape index: {}]
  %s5 = inlined_call_operand.vmem [shape: f32[256,4], index: 5, kind: input, shape index: {}]
  %s6 = inlined_call_operand.vmem [shape: f32[1,4], index: 6, kind: input, shape index: {}]
  %s7 = inlined_call_operand.hbm [shape: f32[2,4], index: 7, kind: output, shape index: {}]
  %s8 = sld [smem:[#allocation0]]
  $region38: #{forward.1} parent=0
    _
  %s10 = ssub.s32 1, %s8
  %s11 = scalar_select 0, %s10, %s8
  $region1: #{forward.1} parent=0
    #allocation4 [shape = 'u8[1024]{0}', space=vmem, size = 0x400, scoped, tag = 'output window, operand 0, single buffered']
    #allocation5 [shape = 's32[1]{0}', space=sflag, size = 0x4, scoped, tag = 'scoped memory for forward.1']
    %12 = vsyncpa [#allocation5], 0
    // Predicated region
    $region2: #{forward.1} parent=1 // pred_check
      _
    $region3: #{forward.1} parent=1 // pred_check_branch
      %14 = sbr.rel (0) target = $region5
    $region4: #{forward.1} parent=1 // pred_region
      _
    $region5: #{forward.1} parent=1 // pred_fallthru
      _
    // Predicated region
    $region6: #{forward.1} parent=1 // pred_check
      _
    $region7: #{forward.1} parent=1 // pred_check_branch
      %16 = sbr.rel (0) target = $region9
    $region8: #{forward.1} parent=1 // pred_region
      _
    $region9: #{forward.1} parent=1 // pred_fallthru
      _
    // Predicated region
    $region10: #{forward.1} parent=1 // pred_check
      _
    $region11: #{forward.1} parent=1 // pred_check_branch
      %18 = sbr.rel (0) target = $region13
    $region12: #{forward.1} parent=1 // pred_region
      _
    $region13: #{forward.1} parent=1 // pred_fallthru
      _
    // Predicated region
    $region14: #{forward.1} parent=1 // pred_check
      _
    $region15: #{forward.1} parent=1 // pred_check_branch
      %20 = sbr.rel (0) target = $region17
    $region16: #{forward.1} parent=1 // pred_region
      _
    $region17: #{forward.1} parent=1 // pred_fallthru
      _
    // Predicated region
    $region18: #{forward.1} parent=1 // pred_check
      _
    $region19: #{forward.1} parent=1 // pred_check_branch
      %22 = sbr.rel (0) target = $region21
    $region20: #{forward.1} parent=1 // pred_region
      _
    $region21: #{forward.1} parent=1 // pred_fallthru
      _
    // Predicated region
    $region22: #{forward.1} parent=1 // pred_check
      _
    $region23: #{forward.1} parent=1 // pred_check_branch
      %24 = sbr.rel (0) target = $region25
    $region24: #{forward.1} parent=1 // pred_region
      _
    $region25: #{forward.1} parent=1 // pred_fallthru
      _
    // Predicated region
    $region26: #{forward.1} parent=1 // pred_check
      _
    $region27: #{forward.1} parent=1 // pred_check_branch
      %26 = sbr.rel (0) target = $region29
    $region28: #{forward.1} parent=1 // pred_region
      _
    $region29: #{forward.1} parent=1 // pred_fallthru
      _
    %vm27 = vcmask 7168
    %28 = vst.msk [vmem:[#allocation2] sm:$0xff] %vm27, 0.0
    %29 = vst.msk [vmem:[#allocation2 + $0x8] sm:$0xff] %vm27, 0.0
    %vm30 = vcmask 1024
    %31 = vst.msk [vmem:[#allocation2 + $0x10] sm:$0x3] %vm30, 0.0
    %32 = vst.msk [vmem:[#allocation2 + $0x1b0] sm:$0xff] %vm27, 0.0
    %33 = vst.msk [vmem:[#allocation2 + $0x1b8] sm:$0xff] %vm27, 0.0
    %34 = vst.msk [vmem:[#allocation2 + $0x1c0] sm:$0x3] %vm30, 0.0
    %s35 = scalar_lea.vmem [#allocation2], 408
    %36 = vst.msk [vmem:[%s35] sm:$0xff] %vm27, 0.0
    %37 = vst.msk [vmem:[%s35 + $0x8] sm:$0xff] %vm27, 0.0
    %38 = vst.msk [vmem:[%s35 + $0x10] sm:$0x3] %vm30, 0.0
    %39 = vst.msk [vmem:[%s35 + $0x1b0] sm:$0xff] %vm27, 0.0
    %40 = vst.msk [vmem:[%s35 + $0x1b8] sm:$0xff] %vm27, 0.0
    %41 = vst.msk [vmem:[%s35 + $0x1c0] sm:$0x3] %vm30, 0.0
    %vm42 = vcmask 0
    %43 = vst.msk [vmem:[#allocation2] sm:$0x1] %vm42, 0.0
    %44 = vst.msk [vmem:[#allocation2 + $0x18] sm:$0x1] %vm42, 0.0
    %45 = vst.msk [vmem:[#allocation2 + $0x30] sm:$0x1] %vm42, 0.0
    %46 = vst.msk [vmem:[#allocation2 + $0x48] sm:$0x1] %vm42, 0.0
    %47 = vst.msk [vmem:[#allocation2 + $0x60] sm:$0x1] %vm42, 0.0
    %48 = vst.msk [vmem:[#allocation2 + $0x78] sm:$0x1] %vm42, 0.0
    %49 = vst.msk [vmem:[#allocation2 + $0x90] sm:$0x1] %vm42, 0.0
    %50 = vst.msk [vmem:[#allocation2 + $0xa8] sm:$0x1] %vm42, 0.0
    %51 = vst.msk [vmem:[#allocation2 + $0xc0] sm:$0x1] %vm42, 0.0
    %52 = vst.msk [vmem:[#allocation2 + $0xd8] sm:$0x1] %vm42, 0.0
    %53 = vst.msk [vmem:[#allocation2 + $0xf0] sm:$0x1] %vm42, 0.0
    %54 = vst.msk [vmem:[#allocation2 + $0x108] sm:$0x1] %vm42, 0.0
    %55 = vst.msk [vmem:[#allocation2 + $0x120] sm:$0x1] %vm42, 0.0
    %56 = vst.msk [vmem:[#allocation2 + $0x138] sm:$0x1] %vm42, 0.0
    %57 = vst.msk [vmem:[#allocation2 + $0x150] sm:$0x1] %vm42, 0.0
    %58 = vst.msk [vmem:[#allocation2 + $0x168] sm:$0x1] %vm42, 0.0
    %59 = vst.msk [vmem:[#allocation2 + $0x180] sm:$0x1] %vm42, 0.0
    %60 = vst.msk [vmem:[#allocation2 + $0x198] sm:$0x1] %vm42, 0.0
    %61 = vst.msk [vmem:[#allocation2 + $0x1b0] sm:$0x1] %vm42, 0.0
    %62 = vst.msk [vmem:[#allocation2 + $0x1c8] sm:$0x1] %vm42, 0.0
    %63 = vst.msk [vmem:[#allocation2 + $0x1e0] sm:$0x1] %vm42, 0.0
    %64 = vst.msk [vmem:[#allocation2 + $0x1f8] sm:$0x1] %vm42, 0.0
    %65 = vst.msk [vmem:[#allocation2 + $0x210] sm:$0x1] %vm42, 0.0
    %66 = vst.msk [vmem:[#allocation2 + $0x228] sm:$0x1] %vm42, 0.0
    %67 = vst.msk [vmem:[#allocation2 + $0x240] sm:$0x1] %vm42, 0.0
    %68 = vst.msk [vmem:[#allocation2 + $0x258] sm:$0x1] %vm42, 0.0
    %69 = vst.msk [vmem:[#allocation2 + $0x270] sm:$0x1] %vm42, 0.0
    %70 = vst.msk [vmem:[#allocation2 + $0x288] sm:$0x1] %vm42, 0.0
    %71 = vst.msk [vmem:[#allocation2 + $0x2a0] sm:$0x1] %vm42, 0.0
    %72 = vst.msk [vmem:[#allocation2 + $0x2b8] sm:$0x1] %vm42, 0.0
    %73 = vst.msk [vmem:[#allocation2 + $0x2d0] sm:$0x1] %vm42, 0.0
    %74 = vst.msk [vmem:[#allocation2 + $0x2e8] sm:$0x1] %vm42, 0.0
    %75 = vst.msk [vmem:[#allocation2 + $0x300] sm:$0x1] %vm42, 0.0
    %76 = vst.msk [vmem:[#allocation2 + $0x318] sm:$0x1] %vm42, 0.0
    %77 = vst.msk [vmem:[#allocation2 + $0x330] sm:$0x1] %vm42, 0.0
    %78 = vst.msk [vmem:[#allocation2 + $0x348] sm:$0x1] %vm42, 0.0
    %79 = vst.msk [vmem:[#allocation2 + $0x11] sm:$0x1] %vm42, 0.0
    %80 = vst.msk [vmem:[#allocation2 + $0x29] sm:$0x1] %vm42, 0.0
    %81 = vst.msk [vmem:[#allocation2 + $0x41] sm:$0x1] %vm42, 0.0
    %82 = vst.msk [vmem:[#allocation2 + $0x59] sm:$0x1] %vm42, 0.0
    %83 = vst.msk [vmem:[#allocation2 + $0x71] sm:$0x1] %vm42, 0.0
    %84 = vst.msk [vmem:[#allocation2 + $0x89] sm:$0x1] %vm42, 0.0
    %85 = vst.msk [vmem:[#allocation2 + $0xa1] sm:$0x1] %vm42, 0.0
    %86 = vst.msk [vmem:[#allocation2 + $0xb9] sm:$0x1] %vm42, 0.0
    %87 = vst.msk [vmem:[#allocation2 + $0xd1] sm:$0x1] %vm42, 0.0
    %88 = vst.msk [vmem:[#allocation2 + $0xe9] sm:$0x1] %vm42, 0.0
    %89 = vst.msk [vmem:[#allocation2 + $0x101] sm:$0x1] %vm42, 0.0
    %90 = vst.msk [vmem:[#allocation2 + $0x119] sm:$0x1] %vm42, 0.0
    %91 = vst.msk [vmem:[#allocation2 + $0x131] sm:$0x1] %vm42, 0.0
    %92 = vst.msk [vmem:[#allocation2 + $0x149] sm:$0x1] %vm42, 0.0
    %93 = vst.msk [vmem:[#allocation2 + $0x161] sm:$0x1] %vm42, 0.0
    %94 = vst.msk [vmem:[#allocation2 + $0x179] sm:$0x1] %vm42, 0.0
    %95 = vst.msk [vmem:[#allocation2 + $0x191] sm:$0x1] %vm42, 0.0
    %96 = vst.msk [vmem:[#allocation2 + $0x1a9] sm:$0x1] %vm42, 0.0
    %97 = vst.msk [vmem:[#allocation2 + $0x1c1] sm:$0x1] %vm42, 0.0
    %98 = vst.msk [vmem:[#allocation2 + $0x1d9] sm:$0x1] %vm42, 0.0
    %99 = vst.msk [vmem:[#allocation2 + $0x1f1] sm:$0x1] %vm42, 0.0
    %100 = vst.msk [vmem:[#allocation2 + $0x209] sm:$0x1] %vm42, 0.0
    %101 = vst.msk [vmem:[#allocation2 + $0x221] sm:$0x1] %vm42, 0.0
    %102 = vst.msk [vmem:[#allocation2 + $0x239] sm:$0x1] %vm42, 0.0
    %103 = vst.msk [vmem:[#allocation2 + $0x251] sm:$0x1] %vm42, 0.0
    %104 = vst.msk [vmem:[#allocation2 + $0x269] sm:$0x1] %vm42, 0.0
    %105 = vst.msk [vmem:[#allocation2 + $0x281] sm:$0x1] %vm42, 0.0
    %106 = vst.msk [vmem:[#allocation2 + $0x299] sm:$0x1] %vm42, 0.0
    %107 = vst.msk [vmem:[#allocation2 + $0x2b1] sm:$0x1] %vm42, 0.0
    %108 = vst.msk [vmem:[#allocation2 + $0x2c9] sm:$0x1] %vm42, 0.0
    %109 = vst.msk [vmem:[#allocation2 + $0x2e1] sm:$0x1] %vm42, 0.0
    %110 = vst.msk [vmem:[#allocation2 + $0x2f9] sm:$0x1] %vm42, 0.0
    %111 = vst.msk [vmem:[#allocation2 + $0x311] sm:$0x1] %vm42, 0.0
    %112 = vst.msk [vmem:[#allocation2 + $0x329] sm:$0x1] %vm42, 0.0
    %113 = vst.msk [vmem:[#allocation2 + $0x341] sm:$0x1] %vm42, 0.0
    %114 = vst.msk [vmem:[#allocation2 + $0x359] sm:$0x1] %vm42, 0.0
    %v115 = vld [vmem:[%s0] sm:$0xff]
    %v116 = vld [vmem:[%s0 + $0x8] sm:$0xff]
    %v117 = vld [vmem:[%s0 + $0x10] sm:$0xff]
    %v118 = vld [vmem:[%s0 + $0x18] sm:$0xff]
    %v119 = vld [vmem:[%s0 + $0x20] sm:$0xff]
    %v120 = vld [vmem:[%s0 + $0x28] sm:$0xff]
    %v121 = vld [vmem:[%s0 + $0x30] sm:$0xff]
    %v122 = vld [vmem:[%s0 + $0x38] sm:$0xff]
    %v123 = vld [vmem:[%s0 + $0x40] sm:$0xff]
    %v124 = vld [vmem:[%s0 + $0x48] sm:$0xff]
    %v125 = vld [vmem:[%s0 + $0x50] sm:$0xff]
    %v126 = vld [vmem:[%s0 + $0x58] sm:$0xff]
    %v127 = vld [vmem:[%s0 + $0x60] sm:$0xff]
    %v128 = vld [vmem:[%s0 + $0x68] sm:$0xff]
    %v129 = vld [vmem:[%s0 + $0x70] sm:$0xff]
    %v130 = vld [vmem:[%s0 + $0x78] sm:$0xff]
    %v131 = vld [vmem:[%s0 + $0x80] sm:$0xff]
    %v132 = vld [vmem:[%s0 + $0x88] sm:$0xff]
    %v133 = vld [vmem:[%s0 + $0x90] sm:$0xff]
    %v134 = vld [vmem:[%s0 + $0x98] sm:$0xff]
    %v135 = vld [vmem:[%s0 + $0xa0] sm:$0xff]
    %v136 = vld [vmem:[%s0 + $0xa8] sm:$0xff]
    %v137 = vld [vmem:[%s0 + $0xb0] sm:$0xff]
    %v138 = vld [vmem:[%s0 + $0xb8] sm:$0xff]
    %v139 = vld [vmem:[%s0 + $0xc0] sm:$0xff]
    %v140 = vld [vmem:[%s0 + $0xc8] sm:$0xff]
    %v141 = vld [vmem:[%s0 + $0xd0] sm:$0xff]
    %v142 = vld [vmem:[%s0 + $0xd8] sm:$0xff]
    %v143 = vld [vmem:[%s0 + $0xe0] sm:$0xff]
    %v144 = vld [vmem:[%s0 + $0xe8] sm:$0xff]
    %v145 = vld [vmem:[%s0 + $0xf0] sm:$0xff]
    %v146 = vld [vmem:[%s0 + $0xf8] sm:$0xff]
    %v147 = vld [vmem:[%s0 + $0x100] sm:$0xff]
    %v148 = vld [vmem:[%s0 + $0x108] sm:$0xff]
    %v149 = vld [vmem:[%s0 + $0x110] sm:$0xff]
    %v150 = vld [vmem:[%s0 + $0x118] sm:$0xff]
    %v151 = vld [vmem:[%s0 + $0x120] sm:$0xff]
    %v152 = vld [vmem:[%s0 + $0x128] sm:$0xff]
    %v153 = vld [vmem:[%s0 + $0x130] sm:$0xff]
    %v154 = vld [vmem:[%s0 + $0x138] sm:$0xff]
    %v155 = vld [vmem:[%s0 + $0x140] sm:$0xff]
    %v156 = vld [vmem:[%s0 + $0x148] sm:$0xff]
    %v157 = vld [vmem:[%s0 + $0x150] sm:$0xff]
    %v158 = vld [vmem:[%s0 + $0x158] sm:$0xff]
    %v159 = vld [vmem:[%s0 + $0x160] sm:$0xff]
    %v160 = vld [vmem:[%s0 + $0x168] sm:$0xff]
    %v161 = vld [vmem:[%s0 + $0x170] sm:$0xff]
    %v162 = vld [vmem:[%s0 + $0x178] sm:$0xff]
    %v163 = vld [vmem:[%s0 + $0x180] sm:$0xff]
    %v164 = vld [vmem:[%s0 + $0x188] sm:$0xff]
    %v165 = vld [vmem:[%s0 + $0x190] sm:$0xff]
    %v166 = vld [vmem:[%s0 + $0x198] sm:$0xff]
    %v167 = vld [vmem:[%s0 + $0x1a0] sm:$0xff]
    %v168 = vld [vmem:[%s0 + $0x1a8] sm:$0xff]
    %v169 = vld [vmem:[%s0 + $0x1b0] sm:$0xff]
    %v170 = vld [vmem:[%s0 + $0x1b8] sm:$0xff]
    %v171 = vld [vmem:[%s0 + $0x1c0] sm:$0xff]
    %v172 = vld [vmem:[%s0 + $0x1c8] sm:$0xff]
    %v173 = vld [vmem:[%s0 + $0x1d0] sm:$0xff]
    %v174 = vld [vmem:[%s0 + $0x1d8] sm:$0xff]
    %v175 = vld [vmem:[%s0 + $0x1e0] sm:$0xff]
    %v176 = vld [vmem:[%s0 + $0x1e8] sm:$0xff]
    %v177 = vld [vmem:[%s0 + $0x1f0] sm:$0xff]
    %v178 = vld [vmem:[%s0 + $0x1f8] sm:$0xff]
    %s179 = scalar_lea.vmem [#allocation2], 24
    %180 = vst.msk [vmem:[%s179 + $0x1] sm:$0xff] %vm27, %v115
    %181 = vst.msk [vmem:[%s179 + $0x9] sm:$0xff] %vm27, %v116
    %182 = vst.msk [vmem:[%s179 + $0x19] sm:$0xff] %vm27, %v117
    %183 = vst.msk [vmem:[%s179 + $0x21] sm:$0xff] %vm27, %v118
    %184 = vst.msk [vmem:[%s179 + $0x31] sm:$0xff] %vm27, %v119
    %185 = vst.msk [vmem:[%s179 + $0x39] sm:$0xff] %vm27, %v120
    %186 = vst.msk [vmem:[%s179 + $0x49] sm:$0xff] %vm27, %v121
    %187 = vst.msk [vmem:[%s179 + $0x51] sm:$0xff] %vm27, %v122
    %188 = vst.msk [vmem:[%s179 + $0x61] sm:$0xff] %vm27, %v123
    %189 = vst.msk [vmem:[%s179 + $0x69] sm:$0xff] %vm27, %v124
    %190 = vst.msk [vmem:[%s179 + $0x79] sm:$0xff] %vm27, %v125
    %191 = vst.msk [vmem:[%s179 + $0x81] sm:$0xff] %vm27, %v126
    %192 = vst.msk [vmem:[%s179 + $0x91] sm:$0xff] %vm27, %v127
    %193 = vst.msk [vmem:[%s179 + $0x99] sm:$0xff] %vm27, %v128
    %194 = vst.msk [vmem:[%s179 + $0xa9] sm:$0xff] %vm27, %v129
    %195 = vst.msk [vmem:[%s179 + $0xb1] sm:$0xff] %vm27, %v130
    %196 = vst.msk [vmem:[%s179 + $0xc1] sm:$0xff] %vm27, %v131
    %197 = vst.msk [vmem:[%s179 + $0xc9] sm:$0xff] %vm27, %v132
    %198 = vst.msk [vmem:[%s179 + $0xd9] sm:$0xff] %vm27, %v133
    %199 = vst.msk [vmem:[%s179 + $0xe1] sm:$0xff] %vm27, %v134
    %200 = vst.msk [vmem:[%s179 + $0xf1] sm:$0xff] %vm27, %v135
    %201 = vst.msk [vmem:[%s179 + $0xf9] sm:$0xff] %vm27, %v136
    %202 = vst.msk [vmem:[%s179 + $0x109] sm:$0xff] %vm27, %v137
    %203 = vst.msk [vmem:[%s179 + $0x111] sm:$0xff] %vm27, %v138
    %204 = vst.msk [vmem:[%s179 + $0x121] sm:$0xff] %vm27, %v139
    %205 = vst.msk [vmem:[%s179 + $0x129] sm:$0xff] %vm27, %v140
    %206 = vst.msk [vmem:[%s179 + $0x139] sm:$0xff] %vm27, %v141
    %207 = vst.msk [vmem:[%s179 + $0x141] sm:$0xff] %vm27, %v142
    %208 = vst.msk [vmem:[%s179 + $0x151] sm:$0xff] %vm27, %v143
    %209 = vst.msk [vmem:[%s179 + $0x159] sm:$0xff] %vm27, %v144
    %210 = vst.msk [vmem:[%s179 + $0x169] sm:$0xff] %vm27, %v145
    %211 = vst.msk [vmem:[%s179 + $0x171] sm:$0xff] %vm27, %v146
    %212 = vst.msk [vmem:[%s179 + $0x1b1] sm:$0xff] %vm27, %v147
    %213 = vst.msk [vmem:[%s179 + $0x1b9] sm:$0xff] %vm27, %v148
    %214 = vst.msk [vmem:[%s179 + $0x1c9] sm:$0xff] %vm27, %v149
    %215 = vst.msk [vmem:[%s179 + $0x1d1] sm:$0xff] %vm27, %v150
    %216 = vst.msk [vmem:[%s179 + $0x1e1] sm:$0xff] %vm27, %v151
    %217 = vst.msk [vmem:[%s179 + $0x1e9] sm:$0xff] %vm27, %v152
    %218 = vst.msk [vmem:[%s179 + $0x1f9] sm:$0xff] %vm27, %v153
    %219 = vst.msk [vmem:[%s179 + $0x201] sm:$0xff] %vm27, %v154
    %220 = vst.msk [vmem:[%s179 + $0x211] sm:$0xff] %vm27, %v155
    %221 = vst.msk [vmem:[%s179 + $0x219] sm:$0xff] %vm27, %v156
    %222 = vst.msk [vmem:[%s179 + $0x229] sm:$0xff] %vm27, %v157
    %223 = vst.msk [vmem:[%s179 + $0x231] sm:$0xff] %vm27, %v158
    %224 = vst.msk [vmem:[%s179 + $0x241] sm:$0xff] %vm27, %v159
    %225 = vst.msk [vmem:[%s179 + $0x249] sm:$0xff] %vm27, %v160
    %226 = vst.msk [vmem:[%s179 + $0x259] sm:$0xff] %vm27, %v161
    %227 = vst.msk [vmem:[%s179 + $0x261] sm:$0xff] %vm27, %v162
    %228 = vst.msk [vmem:[%s179 + $0x271] sm:$0xff] %vm27, %v163
    %229 = vst.msk [vmem:[%s179 + $0x279] sm:$0xff] %vm27, %v164
    %230 = vst.msk [vmem:[%s179 + $0x289] sm:$0xff] %vm27, %v165
    %231 = vst.msk [vmem:[%s179 + $0x291] sm:$0xff] %vm27, %v166
    %232 = vst.msk [vmem:[%s179 + $0x2a1] sm:$0xff] %vm27, %v167
    %233 = vst.msk [vmem:[%s179 + $0x2a9] sm:$0xff] %vm27, %v168
    %234 = vst.msk [vmem:[%s179 + $0x2b9] sm:$0xff] %vm27, %v169
    %235 = vst.msk [vmem:[%s179 + $0x2c1] sm:$0xff] %vm27, %v170
    %236 = vst.msk [vmem:[%s179 + $0x2d1] sm:$0xff] %vm27, %v171
    %237 = vst.msk [vmem:[%s179 + $0x2d9] sm:$0xff] %vm27, %v172
    %238 = vst.msk [vmem:[%s179 + $0x2e9] sm:$0xff] %vm27, %v173
    %239 = vst.msk [vmem:[%s179 + $0x2f1] sm:$0xff] %vm27, %v174
    %240 = vst.msk [vmem:[%s179 + $0x301] sm:$0xff] %vm27, %v175
    %241 = vst.msk [vmem:[%s179 + $0x309] sm:$0xff] %vm27, %v176
    %242 = vst.msk [vmem:[%s179 + $0x319] sm:$0xff] %vm27, %v177
    %243 = vst.msk [vmem:[%s179 + $0x321] sm:$0xff] %vm27, %v178
    %v244 = vld [vmem:[#allocation2] sm:$0xff]
    %v245 = vld [vmem:[#allocation2 + $0x8] sm:$0xff]
    %v246 = vld [vmem:[#allocation2 + $0x18] sm:$0xff]
    %v247 = vld [vmem:[#allocation2 + $0x20] sm:$0xff]
    %v248 = vld [vmem:[#allocation2 + $0x30] sm:$0xff]
    %v249 = vld [vmem:[#allocation2 + $0x38] sm:$0xff]
    %v250 = vld [vmem:[#allocation2 + $0x48] sm:$0xff]
    %v251 = vld [vmem:[#allocation2 + $0x50] sm:$0xff]
    %v252 = vld [vmem:[#allocation2 + $0x60] sm:$0xff]
    %v253 = vld [vmem:[#allocation2 + $0x68] sm:$0xff]
    %v254 = vld [vmem:[#allocation2 + $0x78] sm:$0xff]
    %v255 = vld [vmem:[#allocation2 + $0x80] sm:$0xff]
    %v256 = vld [vmem:[#allocation2 + $0x90] sm:$0xff]
    %v257 = vld [vmem:[#allocation2 + $0x98] sm:$0xff]
    %v258 = vld [vmem:[#allocation2 + $0xa8] sm:$0xff]
    %v259 = vld [vmem:[#allocation2 + $0xb0] sm:$0xff]
    %v260 = vld [vmem:[#allocation2 + $0xc0] sm:$0xff]
    %v261 = vld [vmem:[#allocation2 + $0xc8] sm:$0xff]
    %v262 = vld [vmem:[#allocation2 + $0xd8] sm:$0xff]
    %v263 = vld [vmem:[#allocation2 + $0xe0] sm:$0xff]
    %v264 = vld [vmem:[#allocation2 + $0xf0] sm:$0xff]
    %v265 = vld [vmem:[#allocation2 + $0xf8] sm:$0xff]
    %v266 = vld [vmem:[#allocation2 + $0x108] sm:$0xff]
    %v267 = vld [vmem:[#allocation2 + $0x110] sm:$0xff]
    %v268 = vld [vmem:[#allocation2 + $0x120] sm:$0xff]
    %v269 = vld [vmem:[#allocation2 + $0x128] sm:$0xff]
    %v270 = vld [vmem:[#allocation2 + $0x138] sm:$0xff]
    %v271 = vld [vmem:[#allocation2 + $0x140] sm:$0xff]
    %v272 = vld [vmem:[#allocation2 + $0x150] sm:$0xff]
    %v273 = vld [vmem:[#allocation2 + $0x158] sm:$0xff]
    %v274 = vld [vmem:[#allocation2 + $0x168] sm:$0xff]
    %v275 = vld [vmem:[#allocation2 + $0x170] sm:$0xff]
    %v276 = vld [vmem:[#allocation2 + $0x1b0] sm:$0xff]
    %v277 = vld [vmem:[#allocation2 + $0x1b8] sm:$0xff]
    %v278 = vld [vmem:[#allocation2 + $0x1c8] sm:$0xff]
    %v279 = vld [vmem:[#allocation2 + $0x1d0] sm:$0xff]
    %v280 = vld [vmem:[#allocation2 + $0x1e0] sm:$0xff]
    %v281 = vld [vmem:[#allocation2 + $0x1e8] sm:$0xff]
    %v282 = vld [vmem:[#allocation2 + $0x1f8] sm:$0xff]
    %v283 = vld [vmem:[#allocation2 + $0x200] sm:$0xff]
    %v284 = vld [vmem:[#allocation2 + $0x210] sm:$0xff]
    %v285 = vld [vmem:[#allocation2 + $0x218] sm:$0xff]
    %v286 = vld [vmem:[#allocation2 + $0x228] sm:$0xff]
    %v287 = vld [vmem:[#allocation2 + $0x230] sm:$0xff]
    %v288 = vld [vmem:[#allocation2 + $0x240] sm:$0xff]
    %v289 = vld [vmem:[#allocation2 + $0x248] sm:$0xff]
    %v290 = vld [vmem:[#allocation2 + $0x258] sm:$0xff]
    %v291 = vld [vmem:[#allocation2 + $0x260] sm:$0xff]
    %v292 = vld [vmem:[#allocation2 + $0x270] sm:$0xff]
    %v293 = vld [vmem:[#allocation2 + $0x278] sm:$0xff]
    %v294 = vld [vmem:[#allocation2 + $0x288] sm:$0xff]
    %v295 = vld [vmem:[#allocation2 + $0x290] sm:$0xff]
    %v296 = vld [vmem:[#allocation2 + $0x2a0] sm:$0xff]
    %v297 = vld [vmem:[#allocation2 + $0x2a8] sm:$0xff]
    %v298 = vld [vmem:[#allocation2 + $0x2b8] sm:$0xff]
    %v299 = vld [vmem:[#allocation2 + $0x2c0] sm:$0xff]
    %v300 = vld [vmem:[#allocation2 + $0x2d0] sm:$0xff]
    %v301 = vld [vmem:[#allocation2 + $0x2d8] sm:$0xff]
    %v302 = vld [vmem:[#allocation2 + $0x2e8] sm:$0xff]
    %v303 = vld [vmem:[#allocation2 + $0x2f0] sm:$0xff]
    %v304 = vld [vmem:[#allocation2 + $0x300] sm:$0xff]
    %v305 = vld [vmem:[#allocation2 + $0x308] sm:$0xff]
    %v306 = vld [vmem:[#allocation2 + $0x318] sm:$0xff]
    %v307 = vld [vmem:[#allocation2 + $0x320] sm:$0xff]
    %v308 = vld [vmem:[%s1] sm:$0x1]
    %310 = vset.pattern.permute.xlu0 0
    %311 = vperm.xlu0 %310, %v244
    %v312 = vpop.permute.xlu0 %311
    %315 = vset.pattern.permute.xlu0 0
    %316 = vperm.xlu0 %315, %v245
    %v317 = vpop.permute.xlu0 %316
    %320 = vset.pattern.permute.xlu0 0
    %321 = vperm.xlu0 %320, %v246
    %v322 = vpop.permute.xlu0 %321
    %325 = vset.pattern.permute.xlu0 0
    %326 = vperm.xlu0 %325, %v247
    %v327 = vpop.permute.xlu0 %326
    %330 = vset.pattern.permute.xlu0 0
    %331 = vperm.xlu0 %330, %v248
    %v332 = vpop.permute.xlu0 %331
    %335 = vset.pattern.permute.xlu0 0
    %336 = vperm.xlu0 %335, %v249
    %v337 = vpop.permute.xlu0 %336
    %340 = vset.pattern.permute.xlu0 0
    %341 = vperm.xlu0 %340, %v250
    %v342 = vpop.permute.xlu0 %341
    %345 = vset.pattern.permute.xlu0 0
    %346 = vperm.xlu0 %345, %v251
    %v347 = vpop.permute.xlu0 %346
    %350 = vset.pattern.permute.xlu0 0
    %351 = vperm.xlu0 %350, %v252
    %v352 = vpop.permute.xlu0 %351
    %355 = vset.pattern.permute.xlu0 0
    %356 = vperm.xlu0 %355, %v253
    %v357 = vpop.permute.xlu0 %356
    %360 = vset.pattern.permute.xlu0 0
    %361 = vperm.xlu0 %360, %v254
    %v362 = vpop.permute.xlu0 %361
    %365 = vset.pattern.permute.xlu0 0
    %366 = vperm.xlu0 %365, %v255
    %v367 = vpop.permute.xlu0 %366
    %370 = vset.pattern.permute.xlu0 0
    %371 = vperm.xlu0 %370, %v256
    %v372 = vpop.permute.xlu0 %371
    %375 = vset.pattern.permute.xlu0 0
    %376 = vperm.xlu0 %375, %v257
    %v377 = vpop.permute.xlu0 %376
    %380 = vset.pattern.permute.xlu0 0
    %381 = vperm.xlu0 %380, %v258
    %v382 = vpop.permute.xlu0 %381
    %385 = vset.pattern.permute.xlu0 0
    %386 = vperm.xlu0 %385, %v259
    %v387 = vpop.permute.xlu0 %386
    %390 = vset.pattern.permute.xlu0 0
    %391 = vperm.xlu0 %390, %v260
    %v392 = vpop.permute.xlu0 %391
    %395 = vset.pattern.permute.xlu0 0
    %396 = vperm.xlu0 %395, %v261
    %v397 = vpop.permute.xlu0 %396
    %400 = vset.pattern.permute.xlu0 0
    %401 = vperm.xlu0 %400, %v262
    %v402 = vpop.permute.xlu0 %401
    %405 = vset.pattern.permute.xlu0 0
    %406 = vperm.xlu0 %405, %v263
    %v407 = vpop.permute.xlu0 %406
    %410 = vset.pattern.permute.xlu0 0
    %411 = vperm.xlu0 %410, %v264
    %v412 = vpop.permute.xlu0 %411
    %415 = vset.pattern.permute.xlu0 0
    %416 = vperm.xlu0 %415, %v265
    %v417 = vpop.permute.xlu0 %416
    %420 = vset.pattern.permute.xlu0 0
    %421 = vperm.xlu0 %420, %v266
    %v422 = vpop.permute.xlu0 %421
    %425 = vset.pattern.permute.xlu0 0
    %426 = vperm.xlu0 %425, %v267
    %v427 = vpop.permute.xlu0 %426
    %430 = vset.pattern.permute.xlu0 0
    %431 = vperm.xlu0 %430, %v268
    %v432 = vpop.permute.xlu0 %431
    %435 = vset.pattern.permute.xlu0 0
    %436 = vperm.xlu0 %435, %v269
    %v437 = vpop.permute.xlu0 %436
    %440 = vset.pattern.permute.xlu0 0
    %441 = vperm.xlu0 %440, %v270
    %v442 = vpop.permute.xlu0 %441
    %445 = vset.pattern.permute.xlu0 0
    %446 = vperm.xlu0 %445, %v271
    %v447 = vpop.permute.xlu0 %446
    %450 = vset.pattern.permute.xlu0 0
    %451 = vperm.xlu0 %450, %v272
    %v452 = vpop.permute.xlu0 %451
    %455 = vset.pattern.permute.xlu0 0
    %456 = vperm.xlu0 %455, %v273
    %v457 = vpop.permute.xlu0 %456
    %460 = vset.pattern.permute.xlu0 0
    %461 = vperm.xlu0 %460, %v274
    %v462 = vpop.permute.xlu0 %461
    %465 = vset.pattern.permute.xlu0 0
    %466 = vperm.xlu0 %465, %v275
    %v467 = vpop.permute.xlu0 %466
    %470 = vset.pattern.permute.xlu0 0
    %471 = vperm.xlu0 %470, %v276
    %v472 = vpop.permute.xlu0 %471
    %475 = vset.pattern.permute.xlu0 0
    %476 = vperm.xlu0 %475, %v277
    %v477 = vpop.permute.xlu0 %476
    %480 = vset.pattern.permute.xlu0 0
    %481 = vperm.xlu0 %480, %v278
    %v482 = vpop.permute.xlu0 %481
    %485 = vset.pattern.permute.xlu0 0
    %486 = vperm.xlu0 %485, %v279
    %v487 = vpop.permute.xlu0 %486
    %490 = vset.pattern.permute.xlu0 0
    %491 = vperm.xlu0 %490, %v280
    %v492 = vpop.permute.xlu0 %491
    %495 = vset.pattern.permute.xlu0 0
    %496 = vperm.xlu0 %495, %v281
    %v497 = vpop.permute.xlu0 %496
    %500 = vset.pattern.permute.xlu0 0
    %501 = vperm.xlu0 %500, %v282
    %v502 = vpop.permute.xlu0 %501
    %505 = vset.pattern.permute.xlu0 0
    %506 = vperm.xlu0 %505, %v283
    %v507 = vpop.permute.xlu0 %506
    %510 = vset.pattern.permute.xlu0 0
    %511 = vperm.xlu0 %510, %v284
    %v512 = vpop.permute.xlu0 %511
    %515 = vset.pattern.permute.xlu0 0
    %516 = vperm.xlu0 %515, %v285
    %v517 = vpop.permute.xlu0 %516
    %520 = vset.pattern.permute.xlu0 0
    %521 = vperm.xlu0 %520, %v286
    %v522 = vpop.permute.xlu0 %521
    %525 = vset.pattern.permute.xlu0 0
    %526 = vperm.xlu0 %525, %v287
    %v527 = vpop.permute.xlu0 %526
    %530 = vset.pattern.permute.xlu0 0
    %531 = vperm.xlu0 %530, %v288
    %v532 = vpop.permute.xlu0 %531
    %535 = vset.pattern.permute.xlu0 0
    %536 = vperm.xlu0 %535, %v289
    %v537 = vpop.permute.xlu0 %536
    %540 = vset.pattern.permute.xlu0 0
    %541 = vperm.xlu0 %540, %v290
    %v542 = vpop.permute.xlu0 %541
    %545 = vset.pattern.permute.xlu0 0
    %546 = vperm.xlu0 %545, %v291
    %v547 = vpop.permute.xlu0 %546
    %550 = vset.pattern.permute.xlu0 0
    %551 = vperm.xlu0 %550, %v292
    %v552 = vpop.permute.xlu0 %551
    %555 = vset.pattern.permute.xlu0 0
    %556 = vperm.xlu0 %555, %v293
    %v557 = vpop.permute.xlu0 %556
    %560 = vset.pattern.permute.xlu0 0
    %561 = vperm.xlu0 %560, %v294
    %v562 = vpop.permute.xlu0 %561
    %565 = vset.pattern.permute.xlu0 0
    %566 = vperm.xlu0 %565, %v295
    %v567 = vpop.permute.xlu0 %566
    %570 = vset.pattern.permute.xlu0 0
    %571 = vperm.xlu0 %570, %v296
    %v572 = vpop.permute.xlu0 %571
    %575 = vset.pattern.permute.xlu0 0
    %576 = vperm.xlu0 %575, %v297
    %v577 = vpop.permute.xlu0 %576
    %580 = vset.pattern.permute.xlu0 0
    %581 = vperm.xlu0 %580, %v298
    %v582 = vpop.permute.xlu0 %581
    %585 = vset.pattern.permute.xlu0 0
    %586 = vperm.xlu0 %585, %v299
    %v587 = vpop.permute.xlu0 %586
    %590 = vset.pattern.permute.xlu0 0
    %591 = vperm.xlu0 %590, %v300
    %v592 = vpop.permute.xlu0 %591
    %595 = vset.pattern.permute.xlu0 0
    %596 = vperm.xlu0 %595, %v301
    %v597 = vpop.permute.xlu0 %596
    %600 = vset.pattern.permute.xlu0 0
    %601 = vperm.xlu0 %600, %v302
    %v602 = vpop.permute.xlu0 %601
    %605 = vset.pattern.permute.xlu0 0
    %606 = vperm.xlu0 %605, %v303
    %v607 = vpop.permute.xlu0 %606
    %610 = vset.pattern.permute.xlu0 0
    %611 = vperm.xlu0 %610, %v304
    %v612 = vpop.permute.xlu0 %611
    %615 = vset.pattern.permute.xlu0 0
    %616 = vperm.xlu0 %615, %v305
    %v617 = vpop.permute.xlu0 %616
    %620 = vset.pattern.permute.xlu0 0
    %621 = vperm.xlu0 %620, %v306
    %v622 = vpop.permute.xlu0 %621
    %625 = vset.pattern.permute.xlu0 0
    %626 = vperm.xlu0 %625, %v307
    %v627 = vpop.permute.xlu0 %626
    %v630 = vperm.slane %v308, 0
    %v632 = vmul.f32 %v312, %v630
    %v633 = vmul.f32 %v317, %v630
    %v634 = vmul.f32 %v322, %v630
    %v635 = vmul.f32 %v327, %v630
    %v636 = vmul.f32 %v332, %v630
    %v637 = vmul.f32 %v337, %v630
    %v638 = vmul.f32 %v342, %v630
    %v639 = vmul.f32 %v347, %v630
    %v640 = vmul.f32 %v352, %v630
    %v641 = vmul.f32 %v357, %v630
    %v642 = vmul.f32 %v362, %v630
    %v643 = vmul.f32 %v367, %v630
    %v644 = vmul.f32 %v372, %v630
    %v645 = vmul.f32 %v377, %v630
    %v646 = vmul.f32 %v382, %v630
    %v647 = vmul.f32 %v387, %v630
    %v648 = vmul.f32 %v392, %v630
    %v649 = vmul.f32 %v397, %v630
    %v650 = vmul.f32 %v402, %v630
    %v651 = vmul.f32 %v407, %v630
    %v652 = vmul.f32 %v412, %v630
    %v653 = vmul.f32 %v417, %v630
    %v654 = vmul.f32 %v422, %v630
    %v655 = vmul.f32 %v427, %v630
    %v656 = vmul.f32 %v432, %v630
    %v657 = vmul.f32 %v437, %v630
    %v658 = vmul.f32 %v442, %v630
    %v659 = vmul.f32 %v447, %v630
    %v660 = vmul.f32 %v452, %v630
    %v661 = vmul.f32 %v457, %v630
    %v662 = vmul.f32 %v462, %v630
    %v663 = vmul.f32 %v467, %v630
    %v664 = vmul.f32 %v472, %v630
    %v665 = vmul.f32 %v477, %v630
    %v666 = vmul.f32 %v482, %v630
    %v667 = vmul.f32 %v487, %v630
    %v668 = vmul.f32 %v492, %v630
    %v669 = vmul.f32 %v497, %v630
    %v670 = vmul.f32 %v502, %v630
    %v671 = vmul.f32 %v507, %v630
    %v672 = vmul.f32 %v512, %v630
    %v673 = vmul.f32 %v517, %v630
    %v674 = vmul.f32 %v522, %v630
    %v675 = vmul.f32 %v527, %v630
    %v676 = vmul.f32 %v532, %v630
    %v677 = vmul.f32 %v537, %v630
    %v678 = vmul.f32 %v542, %v630
    %v679 = vmul.f32 %v547, %v630
    %v680 = vmul.f32 %v552, %v630
    %v681 = vmul.f32 %v557, %v630
    %v682 = vmul.f32 %v562, %v630
    %v683 = vmul.f32 %v567, %v630
    %v684 = vmul.f32 %v572, %v630
    %v685 = vmul.f32 %v577, %v630
    %v686 = vmul.f32 %v582, %v630
    %v687 = vmul.f32 %v587, %v630
    %v688 = vmul.f32 %v592, %v630
    %v689 = vmul.f32 %v597, %v630
    %v690 = vmul.f32 %v602, %v630
    %v691 = vmul.f32 %v607, %v630
    %v692 = vmul.f32 %v612, %v630
    %v693 = vmul.f32 %v617, %v630
    %v694 = vmul.f32 %v622, %v630
    %v695 = vmul.f32 %v627, %v630
    %v696 = vadd.f32 %v632, 0.0
    %v697 = vadd.f32 %v633, 0.0
    %v698 = vadd.f32 %v634, 0.0
    %v699 = vadd.f32 %v635, 0.0
    %v700 = vadd.f32 %v636, 0.0
    %v701 = vadd.f32 %v637, 0.0
    %v702 = vadd.f32 %v638, 0.0
    %v703 = vadd.f32 %v639, 0.0
    %v704 = vadd.f32 %v640, 0.0
    %v705 = vadd.f32 %v641, 0.0
    %v706 = vadd.f32 %v642, 0.0
    %v707 = vadd.f32 %v643, 0.0
    %v708 = vadd.f32 %v644, 0.0
    %v709 = vadd.f32 %v645, 0.0
    %v710 = vadd.f32 %v646, 0.0
    %v711 = vadd.f32 %v647, 0.0
    %v712 = vadd.f32 %v648, 0.0
    %v713 = vadd.f32 %v649, 0.0
    %v714 = vadd.f32 %v650, 0.0
    %v715 = vadd.f32 %v651, 0.0
    %v716 = vadd.f32 %v652, 0.0
    %v717 = vadd.f32 %v653, 0.0
    %v718 = vadd.f32 %v654, 0.0
    %v719 = vadd.f32 %v655, 0.0
    %v720 = vadd.f32 %v656, 0.0
    %v721 = vadd.f32 %v657, 0.0
    %v722 = vadd.f32 %v658, 0.0
    %v723 = vadd.f32 %v659, 0.0
    %v724 = vadd.f32 %v660, 0.0
    %v725 = vadd.f32 %v661, 0.0
    %v726 = vadd.f32 %v662, 0.0
    %v727 = vadd.f32 %v663, 0.0
    %v728 = vadd.f32 %v664, 0.0
    %v729 = vadd.f32 %v665, 0.0
    %v730 = vadd.f32 %v666, 0.0
    %v731 = vadd.f32 %v667, 0.0
    %v732 = vadd.f32 %v668, 0.0
    %v733 = vadd.f32 %v669, 0.0
    %v734 = vadd.f32 %v670, 0.0
    %v735 = vadd.f32 %v671, 0.0
    %v736 = vadd.f32 %v672, 0.0
    %v737 = vadd.f32 %v673, 0.0
    %v738 = vadd.f32 %v674, 0.0
    %v739 = vadd.f32 %v675, 0.0
    %v740 = vadd.f32 %v676, 0.0
    %v741 = vadd.f32 %v677, 0.0
    %v742 = vadd.f32 %v678, 0.0
    %v743 = vadd.f32 %v679, 0.0
    %v744 = vadd.f32 %v680, 0.0
    %v745 = vadd.f32 %v681, 0.0
    %v746 = vadd.f32 %v682, 0.0
    %v747 = vadd.f32 %v683, 0.0
    %v748 = vadd.f32 %v684, 0.0
    %v749 = vadd.f32 %v685, 0.0
    %v750 = vadd.f32 %v686, 0.0
    %v751 = vadd.f32 %v687, 0.0
    %v752 = vadd.f32 %v688, 0.0
    %v753 = vadd.f32 %v689, 0.0
    %v754 = vadd.f32 %v690, 0.0
    %v755 = vadd.f32 %v691, 0.0
    %v756 = vadd.f32 %v692, 0.0
    %v757 = vadd.f32 %v693, 0.0
    %v758 = vadd.f32 %v694, 0.0
    %v759 = vadd.f32 %v695, 0.0
    %v760 = vld [vmem:[#allocation2 + $0x1] sm:$0xff]
    %v761 = vld [vmem:[#allocation2 + $0x9] sm:$0xff]
    %v762 = vld [vmem:[#allocation2 + $0x19] sm:$0xff]
    %v763 = vld [vmem:[#allocation2 + $0x21] sm:$0xff]
    %v764 = vld [vmem:[#allocation2 + $0x31] sm:$0xff]
    %v765 = vld [vmem:[#allocation2 + $0x39] sm:$0xff]
    %v766 = vld [vmem:[#allocation2 + $0x49] sm:$0xff]
    %v767 = vld [vmem:[#allocation2 + $0x51] sm:$0xff]
    %v768 = vld [vmem:[#allocation2 + $0x61] sm:$0xff]
    %v769 = vld [vmem:[#allocation2 + $0x69] sm:$0xff]
    %v770 = vld [vmem:[#allocation2 + $0x79] sm:$0xff]
    %v771 = vld [vmem:[#allocation2 + $0x81] sm:$0xff]
    %v772 = vld [vmem:[#allocation2 + $0x91] sm:$0xff]
    %v773 = vld [vmem:[#allocation2 + $0x99] sm:$0xff]
    %v774 = vld [vmem:[#allocation2 + $0xa9] sm:$0xff]
    %v775 = vld [vmem:[#allocation2 + $0xb1] sm:$0xff]
    %v776 = vld [vmem:[#allocation2 + $0xc1] sm:$0xff]
    %v777 = vld [vmem:[#allocation2 + $0xc9] sm:$0xff]
    %v778 = vld [vmem:[#allocation2 + $0xd9] sm:$0xff]
    %v779 = vld [vmem:[#allocation2 + $0xe1] sm:$0xff]
    %v780 = vld [vmem:[#allocation2 + $0xf1] sm:$0xff]
    %v781 = vld [vmem:[#allocation2 + $0xf9] sm:$0xff]
    %v782 = vld [vmem:[#allocation2 + $0x109] sm:$0xff]
    %v783 = vld [vmem:[#allocation2 + $0x111] sm:$0xff]
    %v784 = vld [vmem:[#allocation2 + $0x121] sm:$0xff]
    %v785 = vld [vmem:[#allocation2 + $0x129] sm:$0xff]
    %v786 = vld [vmem:[#allocation2 + $0x139] sm:$0xff]
    %v787 = vld [vmem:[#allocation2 + $0x141] sm:$0xff]
    %v788 = vld [vmem:[#allocation2 + $0x151] sm:$0xff]
    %v789 = vld [vmem:[#allocation2 + $0x159] sm:$0xff]
    %v790 = vld [vmem:[#allocation2 + $0x169] sm:$0xff]
    %v791 = vld [vmem:[#allocation2 + $0x171] sm:$0xff]
    %v792 = vld [vmem:[#allocation2 + $0x1b1] sm:$0xff]
    %v793 = vld [vmem:[#allocation2 + $0x1b9] sm:$0xff]
    %v794 = vld [vmem:[#allocation2 + $0x1c9] sm:$0xff]
    %v795 = vld [vmem:[#allocation2 + $0x1d1] sm:$0xff]
    %v796 = vld [vmem:[#allocation2 + $0x1e1] sm:$0xff]
    %v797 = vld [vmem:[#allocation2 + $0x1e9] sm:$0xff]
    %v798 = vld [vmem:[#allocation2 + $0x1f9] sm:$0xff]
    %v799 = vld [vmem:[#allocation2 + $0x201] sm:$0xff]
    %v800 = vld [vmem:[#allocation2 + $0x211] sm:$0xff]
    %v801 = vld [vmem:[#allocation2 + $0x219] sm:$0xff]
    %v802 = vld [vmem:[#allocation2 + $0x229] sm:$0xff]
    %v803 = vld [vmem:[#allocation2 + $0x231] sm:$0xff]
    %v804 = vld [vmem:[#allocation2 + $0x241] sm:$0xff]
    %v805 = vld [vmem:[#allocation2 + $0x249] sm:$0xff]
    %v806 = vld [vmem:[#allocation2 + $0x259] sm:$0xff]
    %v807 = vld [vmem:[#allocation2 + $0x261] sm:$0xff]
    %v808 = vld [vmem:[#allocation2 + $0x271] sm:$0xff]
    %v809 = vld [vmem:[#allocation2 + $0x279] sm:$0xff]
    %v810 = vld [vmem:[#allocation2 + $0x289] sm:$0xff]
    %v811 = vld [vmem:[#allocation2 + $0x291] sm:$0xff]
    %v812 = vld [vmem:[#allocation2 + $0x2a1] sm:$0xff]
    %v813 = vld [vmem:[#allocation2 + $0x2a9] sm:$0xff]
    %v814 = vld [vmem:[#allocation2 + $0x2b9] sm:$0xff]
    %v815 = vld [vmem:[#allocation2 + $0x2c1] sm:$0xff]
    %v816 = vld [vmem:[#allocation2 + $0x2d1] sm:$0xff]
    %v817 = vld [vmem:[#allocation2 + $0x2d9] sm:$0xff]
    %v818 = vld [vmem:[#allocation2 + $0x2e9] sm:$0xff]
    %v819 = vld [vmem:[#allocation2 + $0x2f1] sm:$0xff]
    %v820 = vld [vmem:[#allocation2 + $0x301] sm:$0xff]
    %v821 = vld [vmem:[#allocation2 + $0x309] sm:$0xff]
    %v822 = vld [vmem:[#allocation2 + $0x319] sm:$0xff]
    %v823 = vld [vmem:[#allocation2 + $0x321] sm:$0xff]
    %s824 = scalar_lea.vmem %s1, 1
    %v825 = vld [vmem:[%s824] sm:$0x1]
    %827 = vset.pattern.permute.xlu0 0
    %828 = vperm.xlu0 %827, %v760
    %v829 = vpop.permute.xlu0 %828
    %832 = vset.pattern.permute.xlu0 0
    %833 = vperm.xlu0 %832, %v761
    %v834 = vpop.permute.xlu0 %833
    %837 = vset.pattern.permute.xlu0 0
    %838 = vperm.xlu0 %837, %v762
    %v839 = vpop.permute.xlu0 %838
    %842 = vset.pattern.permute.xlu0 0
    %843 = vperm.xlu0 %842, %v763
    %v844 = vpop.permute.xlu0 %843
    %847 = vset.pattern.permute.xlu0 0
    %848 = vperm.xlu0 %847, %v764
    %v849 = vpop.permute.xlu0 %848
    %852 = vset.pattern.permute.xlu0 0
    %853 = vperm.xlu0 %852, %v765
    %v854 = vpop.permute.xlu0 %853
    %857 = vset.pattern.permute.xlu0 0
    %858 = vperm.xlu0 %857, %v766
    %v859 = vpop.permute.xlu0 %858
    %862 = vset.pattern.permute.xlu0 0
    %863 = vperm.xlu0 %862, %v767
    %v864 = vpop.permute.xlu0 %863
    %867 = vset.pattern.permute.xlu0 0
    %868 = vperm.xlu0 %867, %v768
    %v869 = vpop.permute.xlu0 %868
    %872 = vset.pattern.permute.xlu0 0
    %873 = vperm.xlu0 %872, %v769
    %v874 = vpop.permute.xlu0 %873
    %877 = vset.pattern.permute.xlu0 0
    %878 = vperm.xlu0 %877, %v770
    %v879 = vpop.permute.xlu0 %878
    %882 = vset.pattern.permute.xlu0 0
    %883 = vperm.xlu0 %882, %v771
    %v884 = vpop.permute.xlu0 %883
    %887 = vset.pattern.permute.xlu0 0
    %888 = vperm.xlu0 %887, %v772
    %v889 = vpop.permute.xlu0 %888
    %892 = vset.pattern.permute.xlu0 0
    %893 = vperm.xlu0 %892, %v773
    %v894 = vpop.permute.xlu0 %893
    %897 = vset.pattern.permute.xlu0 0
    %898 = vperm.xlu0 %897, %v774
    %v899 = vpop.permute.xlu0 %898
    %902 = vset.pattern.permute.xlu0 0
    %903 = vperm.xlu0 %902, %v775
    %v904 = vpop.permute.xlu0 %903
    %907 = vset.pattern.permute.xlu0 0
    %908 = vperm.xlu0 %907, %v776
    %v909 = vpop.permute.xlu0 %908
    %912 = vset.pattern.permute.xlu0 0
    %913 = vperm.xlu0 %912, %v777
    %v914 = vpop.permute.xlu0 %913
    %917 = vset.pattern.permute.xlu0 0
    %918 = vperm.xlu0 %917, %v778
    %v919 = vpop.permute.xlu0 %918
    %922 = vset.pattern.permute.xlu0 0
    %923 = vperm.xlu0 %922, %v779
    %v924 = vpop.permute.xlu0 %923
    %927 = vset.pattern.permute.xlu0 0
    %928 = vperm.xlu0 %927, %v780
    %v929 = vpop.permute.xlu0 %928
    %932 = vset.pattern.permute.xlu0 0
    %933 = vperm.xlu0 %932, %v781
    %v934 = vpop.permute.xlu0 %933
    %937 = vset.pattern.permute.xlu0 0
    %938 = vperm.xlu0 %937, %v782
    %v939 = vpop.permute.xlu0 %938
    %942 = vset.pattern.permute.xlu0 0
    %943 = vperm.xlu0 %942, %v783
    %v944 = vpop.permute.xlu0 %943
    %947 = vset.pattern.permute.xlu0 0
    %948 = vperm.xlu0 %947, %v784
    %v949 = vpop.permute.xlu0 %948
    %952 = vset.pattern.permute.xlu0 0
    %953 = vperm.xlu0 %952, %v785
    %v954 = vpop.permute.xlu0 %953
    %957 = vset.pattern.permute.xlu0 0
    %958 = vperm.xlu0 %957, %v786
    %v959 = vpop.permute.xlu0 %958
    %962 = vset.pattern.permute.xlu0 0
    %963 = vperm.xlu0 %962, %v787
    %v964 = vpop.permute.xlu0 %963
    %967 = vset.pattern.permute.xlu0 0
    %968 = vperm.xlu0 %967, %v788
    %v969 = vpop.permute.xlu0 %968
    %972 = vset.pattern.permute.xlu0 0
    %973 = vperm.xlu0 %972, %v789
    %v974 = vpop.permute.xlu0 %973
    %977 = vset.pattern.permute.xlu0 0
    %978 = vperm.xlu0 %977, %v790
    %v979 = vpop.permute.xlu0 %978
    %982 = vset.pattern.permute.xlu0 0
    %983 = vperm.xlu0 %982, %v791
    %v984 = vpop.permute.xlu0 %983
    %987 = vset.pattern.permute.xlu0 0
    %988 = vperm.xlu0 %987, %v792
    %v989 = vpop.permute.xlu0 %988
    %992 = vset.pattern.permute.xlu0 0
    %993 = vperm.xlu0 %992, %v793
    %v994 = vpop.permute.xlu0 %993
    %997 = vset.pattern.permute.xlu0 0
    %998 = vperm.xlu0 %997, %v794
    %v999 = vpop.permute.xlu0 %998
    %1002 = vset.pattern.permute.xlu0 0
    %1003 = vperm.xlu0 %1002, %v795
    %v1004 = vpop.permute.xlu0 %1003
    %1007 = vset.pattern.permute.xlu0 0
    %1008 = vperm.xlu0 %1007, %v796
    %v1009 = vpop.permute.xlu0 %1008
    %1012 = vset.pattern.permute.xlu0 0
    %1013 = vperm.xlu0 %1012, %v797
    %v1014 = vpop.permute.xlu0 %1013
    %1017 = vset.pattern.permute.xlu0 0
    %1018 = vperm.xlu0 %1017, %v798
    %v1019 = vpop.permute.xlu0 %1018
    %1022 = vset.pattern.permute.xlu0 0
    %1023 = vperm.xlu0 %1022, %v799
    %v1024 = vpop.permute.xlu0 %1023
    %1027 = vset.pattern.permute.xlu0 0
    %1028 = vperm.xlu0 %1027, %v800
    %v1029 = vpop.permute.xlu0 %1028
    %1032 = vset.pattern.permute.xlu0 0
    %1033 = vperm.xlu0 %1032, %v801
    %v1034 = vpop.permute.xlu0 %1033
    %1037 = vset.pattern.permute.xlu0 0
    %1038 = vperm.xlu0 %1037, %v802
    %v1039 = vpop.permute.xlu0 %1038
    %1042 = vset.pattern.permute.xlu0 0
    %1043 = vperm.xlu0 %1042, %v803
    %v1044 = vpop.permute.xlu0 %1043
    %1047 = vset.pattern.permute.xlu0 0
    %1048 = vperm.xlu0 %1047, %v804
    %v1049 = vpop.permute.xlu0 %1048
    %1052 = vset.pattern.permute.xlu0 0
    %1053 = vperm.xlu0 %1052, %v805
    %v1054 = vpop.permute.xlu0 %1053
    %1057 = vset.pattern.permute.xlu0 0
    %1058 = vperm.xlu0 %1057, %v806
    %v1059 = vpop.permute.xlu0 %1058
    %1062 = vset.pattern.permute.xlu0 0
    %1063 = vperm.xlu0 %1062, %v807
    %v1064 = vpop.permute.xlu0 %1063
    %1067 = vset.pattern.permute.xlu0 0
    %1068 = vperm.xlu0 %1067, %v808
    %v1069 = vpop.permute.xlu0 %1068
    %1072 = vset.pattern.permute.xlu0 0
    %1073 = vperm.xlu0 %1072, %v809
    %v1074 = vpop.permute.xlu0 %1073
    %1077 = vset.pattern.permute.xlu0 0
    %1078 = vperm.xlu0 %1077, %v810
    %v1079 = vpop.permute.xlu0 %1078
    %1082 = vset.pattern.permute.xlu0 0
    %1083 = vperm.xlu0 %1082, %v811
    %v1084 = vpop.permute.xlu0 %1083
    %1087 = vset.pattern.permute.xlu0 0
    %1088 = vperm.xlu0 %1087, %v812
    %v1089 = vpop.permute.xlu0 %1088
    %1092 = vset.pattern.permute.xlu0 0
    %1093 = vperm.xlu0 %1092, %v813
    %v1094 = vpop.permute.xlu0 %1093
    %1097 = vset.pattern.permute.xlu0 0
    %1098 = vperm.xlu0 %1097, %v814
    %v1099 = vpop.permute.xlu0 %1098
    %1102 = vset.pattern.permute.xlu0 0
    %1103 = vperm.xlu0 %1102, %v815
    %v1104 = vpop.permute.xlu0 %1103
    %1107 = vset.pattern.permute.xlu0 0
    %1108 = vperm.xlu0 %1107, %v816
    %v1109 = vpop.permute.xlu0 %1108
    %1112 = vset.pattern.permute.xlu0 0
    %1113 = vperm.xlu0 %1112, %v817
    %v1114 = vpop.permute.xlu0 %1113
    %1117 = vset.pattern.permute.xlu0 0
    %1118 = vperm.xlu0 %1117, %v818
    %v1119 = vpop.permute.xlu0 %1118
    %1122 = vset.pattern.permute.xlu0 0
    %1123 = vperm.xlu0 %1122, %v819
    %v1124 = vpop.permute.xlu0 %1123
    %1127 = vset.pattern.permute.xlu0 0
    %1128 = vperm.xlu0 %1127, %v820
    %v1129 = vpop.permute.xlu0 %1128
    %1132 = vset.pattern.permute.xlu0 0
    %1133 = vperm.xlu0 %1132, %v821
    %v1134 = vpop.permute.xlu0 %1133
    %1137 = vset.pattern.permute.xlu0 0
    %1138 = vperm.xlu0 %1137, %v822
    %v1139 = vpop.permute.xlu0 %1138
    %1142 = vset.pattern.permute.xlu0 0
    %1143 = vperm.xlu0 %1142, %v823
    %v1144 = vpop.permute.xlu0 %1143
    %v1147 = vperm.slane %v825, 0
    %v1149 = vmul.f32 %v829, %v1147
    %v1150 = vmul.f32 %v834, %v1147
    %v1151 = vmul.f32 %v839, %v1147
    %v1152 = vmul.f32 %v844, %v1147
    %v1153 = vmul.f32 %v849, %v1147
    %v1154 = vmul.f32 %v854, %v1147
    %v1155 = vmul.f32 %v859, %v1147
    %v1156 = vmul.f32 %v864, %v1147
    %v1157 = vmul.f32 %v869, %v1147
    %v1158 = vmul.f32 %v874, %v1147
    %v1159 = vmul.f32 %v879, %v1147
    %v1160 = vmul.f32 %v884, %v1147
    %v1161 = vmul.f32 %v889, %v1147
    %v1162 = vmul.f32 %v894, %v1147
    %v1163 = vmul.f32 %v899, %v1147
    %v1164 = vmul.f32 %v904, %v1147
    %v1165 = vmul.f32 %v909, %v1147
    %v1166 = vmul.f32 %v914, %v1147
    %v1167 = vmul.f32 %v919, %v1147
    %v1168 = vmul.f32 %v924, %v1147
    %v1169 = vmul.f32 %v929, %v1147
    %v1170 = vmul.f32 %v934, %v1147
    %v1171 = vmul.f32 %v939, %v1147
    %v1172 = vmul.f32 %v944, %v1147
    %v1173 = vmul.f32 %v949, %v1147
    %v1174 = vmul.f32 %v954, %v1147
    %v1175 = vmul.f32 %v959, %v1147
    %v1176 = vmul.f32 %v964, %v1147
    %v1177 = vmul.f32 %v969, %v1147
    %v1178 = vmul.f32 %v974, %v1147
    %v1179 = vmul.f32 %v979, %v1147
    %v1180 = vmul.f32 %v984, %v1147
    %v1181 = vmul.f32 %v989, %v1147
    %v1182 = vmul.f32 %v994, %v1147
    %v1183 = vmul.f32 %v999, %v1147
    %v1184 = vmul.f32 %v1004, %v1147
    %v1185 = vmul.f32 %v1009, %v1147
    %v1186 = vmul.f32 %v1014, %v1147
    %v1187 = vmul.f32 %v1019, %v1147
    %v1188 = vmul.f32 %v1024, %v1147
    %v1189 = vmul.f32 %v1029, %v1147
    %v1190 = vmul.f32 %v1034, %v1147
    %v1191 = vmul.f32 %v1039, %v1147
    %v1192 = vmul.f32 %v1044, %v1147
    %v1193 = vmul.f32 %v1049, %v1147
    %v1194 = vmul.f32 %v1054, %v1147
    %v1195 = vmul.f32 %v1059, %v1147
    %v1196 = vmul.f32 %v1064, %v1147
    %v1197 = vmul.f32 %v1069, %v1147
    %v1198 = vmul.f32 %v1074, %v1147
    %v1199 = vmul.f32 %v1079, %v1147
    %v1200 = vmul.f32 %v1084, %v1147
    %v1201 = vmul.f32 %v1089, %v1147
    %v1202 = vmul.f32 %v1094, %v1147
    %v1203 = vmul.f32 %v1099, %v1147
    %v1204 = vmul.f32 %v1104, %v1147
    %v1205 = vmul.f32 %v1109, %v1147
    %v1206 = vmul.f32 %v1114, %v1147
    %v1207 = vmul.f32 %v1119, %v1147
    %v1208 = vmul.f32 %v1124, %v1147
    %v1209 = vmul.f32 %v1129, %v1147
    %v1210 = vmul.f32 %v1134, %v1147
    %v1211 = vmul.f32 %v1139, %v1147
    %v1212 = vmul.f32 %v1144, %v1147
    %v1213 = vadd.f32 %v696, %v1149
    %v1214 = vadd.f32 %v697, %v1150
    %v1215 = vadd.f32 %v698, %v1151
    %v1216 = vadd.f32 %v699, %v1152
    %v1217 = vadd.f32 %v700, %v1153
    %v1218 = vadd.f32 %v701, %v1154
    %v1219 = vadd.f32 %v702, %v1155
    %v1220 = vadd.f32 %v703, %v1156
    %v1221 = vadd.f32 %v704, %v1157
    %v1222 = vadd.f32 %v705, %v1158
    %v1223 = vadd.f32 %v706, %v1159
    %v1224 = vadd.f32 %v707, %v1160
    %v1225 = vadd.f32 %v708, %v1161
    %v1226 = vadd.f32 %v709, %v1162
    %v1227 = vadd.f32 %v710, %v1163
    %v1228 = vadd.f32 %v711, %v1164
    %v1229 = vadd.f32 %v712, %v1165
    %v1230 = vadd.f32 %v713, %v1166
    %v1231 = vadd.f32 %v714, %v1167
    %v1232 = vadd.f32 %v715, %v1168
    %v1233 = vadd.f32 %v716, %v1169
    %v1234 = vadd.f32 %v717, %v1170
    %v1235 = vadd.f32 %v718, %v1171
    %v1236 = vadd.f32 %v719, %v1172
    %v1237 = vadd.f32 %v720, %v1173
    %v1238 = vadd.f32 %v721, %v1174
    %v1239 = vadd.f32 %v722, %v1175
    %v1240 = vadd.f32 %v723, %v1176
    %v1241 = vadd.f32 %v724, %v1177
    %v1242 = vadd.f32 %v725, %v1178
    %v1243 = vadd.f32 %v726, %v1179
    %v1244 = vadd.f32 %v727, %v1180
    %v1245 = vadd.f32 %v728, %v1181
    %v1246 = vadd.f32 %v729, %v1182
    %v1247 = vadd.f32 %v730, %v1183
    %v1248 = vadd.f32 %v731, %v1184
    %v1249 = vadd.f32 %v732, %v1185
    %v1250 = vadd.f32 %v733, %v1186
    %v1251 = vadd.f32 %v734, %v1187
    %v1252 = vadd.f32 %v735, %v1188
    %v1253 = vadd.f32 %v736, %v1189
    %v1254 = vadd.f32 %v737, %v1190
    %v1255 = vadd.f32 %v738, %v1191
    %v1256 = vadd.f32 %v739, %v1192
    %v1257 = vadd.f32 %v740, %v1193
    %v1258 = vadd.f32 %v741, %v1194
    %v1259 = vadd.f32 %v742, %v1195
    %v1260 = vadd.f32 %v743, %v1196
    %v1261 = vadd.f32 %v744, %v1197
    %v1262 = vadd.f32 %v745, %v1198
    %v1263 = vadd.f32 %v746, %v1199
    %v1264 = vadd.f32 %v747, %v1200
    %v1265 = vadd.f32 %v748, %v1201
    %v1266 = vadd.f32 %v749, %v1202
    %v1267 = vadd.f32 %v750, %v1203
    %v1268 = vadd.f32 %v751, %v1204
    %v1269 = vadd.f32 %v752, %v1205
    %v1270 = vadd.f32 %v753, %v1206
    %v1271 = vadd.f32 %v754, %v1207
    %v1272 = vadd.f32 %v755, %v1208
    %v1273 = vadd.f32 %v756, %v1209
    %v1274 = vadd.f32 %v757, %v1210
    %v1275 = vadd.f32 %v758, %v1211
    %v1276 = vadd.f32 %v759, %v1212
    %v1277 = vld [vmem:[#allocation2 + $0x2] sm:$0xff]
    %v1278 = vld [vmem:[#allocation2 + $0xa] sm:$0xff]
    %v1279 = vld [vmem:[#allocation2 + $0x1a] sm:$0xff]
    %v1280 = vld [vmem:[#allocation2 + $0x22] sm:$0xff]
    %v1281 = vld [vmem:[#allocation2 + $0x32] sm:$0xff]
    %v1282 = vld [vmem:[#allocation2 + $0x3a] sm:$0xff]
    %v1283 = vld [vmem:[#allocation2 + $0x4a] sm:$0xff]
    %v1284 = vld [vmem:[#allocation2 + $0x52] sm:$0xff]
    %v1285 = vld [vmem:[#allocation2 + $0x62] sm:$0xff]
    %v1286 = vld [vmem:[#allocation2 + $0x6a] sm:$0xff]
    %v1287 = vld [vmem:[#allocation2 + $0x7a] sm:$0xff]
    %v1288 = vld [vmem:[#allocation2 + $0x82] sm:$0xff]
    %v1289 = vld [vmem:[#allocation2 + $0x92] sm:$0xff]
    %v1290 = vld [vmem:[#allocation2 + $0x9a] sm:$0xff]
    %v1291 = vld [vmem:[#allocation2 + $0xaa] sm:$0xff]
    %v1292 = vld [vmem:[#allocation2 + $0xb2] sm:$0xff]
    %v1293 = vld [vmem:[#allocation2 + $0xc2] sm:$0xff]
    %v1294 = vld [vmem:[#allocation2 + $0xca] sm:$0xff]
    %v1295 = vld [vmem:[#allocation2 + $0xda] sm:$0xff]
    %v1296 = vld [vmem:[#allocation2 + $0xe2] sm:$0xff]
    %v1297 = vld [vmem:[#allocation2 + $0xf2] sm:$0xff]
    %v1298 = vld [vmem:[#allocation2 + $0xfa] sm:$0xff]
    %v1299 = vld [vmem:[#allocation2 + $0x10a] sm:$0xff]
    %v1300 = vld [vmem:[#allocation2 + $0x112] sm:$0xff]
    %v1301 = vld [vmem:[#allocation2 + $0x122] sm:$0xff]
    %v1302 = vld [vmem:[#allocation2 + $0x12a] sm:$0xff]
    %v1303 = vld [vmem:[#allocation2 + $0x13a] sm:$0xff]
    %v1304 = vld [vmem:[#allocation2 + $0x142] sm:$0xff]
    %v1305 = vld [vmem:[#allocation2 + $0x152] sm:$0xff]
    %v1306 = vld [vmem:[#allocation2 + $0x15a] sm:$0xff]
    %v1307 = vld [vmem:[#allocation2 + $0x16a] sm:$0xff]
    %v1308 = vld [vmem:[#allocation2 + $0x172] sm:$0xff]
    %v1309 = vld [vmem:[#allocation2 + $0x1b2] sm:$0xff]
    %v1310 = vld [vmem:[#allocation2 + $0x1ba] sm:$0xff]
    %v1311 = vld [vmem:[#allocation2 + $0x1ca] sm:$0xff]
    %v1312 = vld [vmem:[#allocation2 + $0x1d2] sm:$0xff]
    %v1313 = vld [vmem:[#allocation2 + $0x1e2] sm:$0xff]
    %v1314 = vld [vmem:[#allocation2 + $0x1ea] sm:$0xff]
    %v1315 = vld [vmem:[#allocation2 + $0x1fa] sm:$0xff]
    %v1316 = vld [vmem:[#allocation2 + $0x202] sm:$0xff]
    %v1317 = vld [vmem:[#allocation2 + $0x212] sm:$0xff]
    %v1318 = vld [vmem:[#allocation2 + $0x21a] sm:$0xff]
    %v1319 = vld [vmem:[#allocation2 + $0x22a] sm:$0xff]
    %v1320 = vld [vmem:[#allocation2 + $0x232] sm:$0xff]
    %v1321 = vld [vmem:[#allocation2 + $0x242] sm:$0xff]
    %v1322 = vld [vmem:[#allocation2 + $0x24a] sm:$0xff]
    %v1323 = vld [vmem:[#allocation2 + $0x25a] sm:$0xff]
    %v1324 = vld [vmem:[#allocation2 + $0x262] sm:$0xff]
    %v1325 = vld [vmem:[#allocation2 + $0x272] sm:$0xff]
    %v1326 = vld [vmem:[#allocation2 + $0x27a] sm:$0xff]
    %v1327 = vld [vmem:[#allocation2 + $0x28a] sm:$0xff]
    %v1328 = vld [vmem:[#allocation2 + $0x292] sm:$0xff]
    %v1329 = vld [vmem:[#allocation2 + $0x2a2] sm:$0xff]
    %v1330 = vld [vmem:[#allocation2 + $0x2aa] sm:$0xff]
    %v1331 = vld [vmem:[#allocation2 + $0x2ba] sm:$0xff]
    %v1332 = vld [vmem:[#allocation2 + $0x2c2] sm:$0xff]
    %v1333 = vld [vmem:[#allocation2 + $0x2d2] sm:$0xff]
    %v1334 = vld [vmem:[#allocation2 + $0x2da] sm:$0xff]
    %v1335 = vld [vmem:[#allocation2 + $0x2ea] sm:$0xff]
    %v1336 = vld [vmem:[#allocation2 + $0x2f2] sm:$0xff]
    %v1337 = vld [vmem:[#allocation2 + $0x302] sm:$0xff]
    %v1338 = vld [vmem:[#allocation2 + $0x30a] sm:$0xff]
    %v1339 = vld [vmem:[#allocation2 + $0x31a] sm:$0xff]
    %v1340 = vld [vmem:[#allocation2 + $0x322] sm:$0xff]
    %s1341 = scalar_lea.vmem %s1, 2
    %v1342 = vld [vmem:[%s1341] sm:$0x1]
    %1344 = vset.pattern.permute.xlu0 0
    %1345 = vperm.xlu0 %1344, %v1277
    %v1346 = vpop.permute.xlu0 %1345
    %1349 = vset.pattern.permute.xlu0 0
    %1350 = vperm.xlu0 %1349, %v1278
    %v1351 = vpop.permute.xlu0 %1350
    %1354 = vset.pattern.permute.xlu0 0
    %1355 = vperm.xlu0 %1354, %v1279
    %v1356 = vpop.permute.xlu0 %1355
    %1359 = vset.pattern.permute.xlu0 0
    %1360 = vperm.xlu0 %1359, %v1280
    %v1361 = vpop.permute.xlu0 %1360
    %1364 = vset.pattern.permute.xlu0 0
    %1365 = vperm.xlu0 %1364, %v1281
    %v1366 = vpop.permute.xlu0 %1365
    %1369 = vset.pattern.permute.xlu0 0
    %1370 = vperm.xlu0 %1369, %v1282
    %v1371 = vpop.permute.xlu0 %1370
    %1374 = vset.pattern.permute.xlu0 0
    %1375 = vperm.xlu0 %1374, %v1283
    %v1376 = vpop.permute.xlu0 %1375
    %1379 = vset.pattern.permute.xlu0 0
    %1380 = vperm.xlu0 %1379, %v1284
    %v1381 = vpop.permute.xlu0 %1380
    %1384 = vset.pattern.permute.xlu0 0
    %1385 = vperm.xlu0 %1384, %v1285
    %v1386 = vpop.permute.xlu0 %1385
    %1389 = vset.pattern.permute.xlu0 0
    %1390 = vperm.xlu0 %1389, %v1286
    %v1391 = vpop.permute.xlu0 %1390
    %1394 = vset.pattern.permute.xlu0 0
    %1395 = vperm.xlu0 %1394, %v1287
    %v1396 = vpop.permute.xlu0 %1395
    %1399 = vset.pattern.permute.xlu0 0
    %1400 = vperm.xlu0 %1399, %v1288
    %v1401 = vpop.permute.xlu0 %1400
    %1404 = vset.pattern.permute.xlu0 0
    %1405 = vperm.xlu0 %1404, %v1289
    %v1406 = vpop.permute.xlu0 %1405
    %1409 = vset.pattern.permute.xlu0 0
    %1410 = vperm.xlu0 %1409, %v1290
    %v1411 = vpop.permute.xlu0 %1410
    %1414 = vset.pattern.permute.xlu0 0
    %1415 = vperm.xlu0 %1414, %v1291
    %v1416 = vpop.permute.xlu0 %1415
    %1419 = vset.pattern.permute.xlu0 0
    %1420 = vperm.xlu0 %1419, %v1292
    %v1421 = vpop.permute.xlu0 %1420
    %1424 = vset.pattern.permute.xlu0 0
    %1425 = vperm.xlu0 %1424, %v1293
    %v1426 = vpop.permute.xlu0 %1425
    %1429 = vset.pattern.permute.xlu0 0
    %1430 = vperm.xlu0 %1429, %v1294
    %v1431 = vpop.permute.xlu0 %1430
    %1434 = vset.pattern.permute.xlu0 0
    %1435 = vperm.xlu0 %1434, %v1295
    %v1436 = vpop.permute.xlu0 %1435
    %1439 = vset.pattern.permute.xlu0 0
    %1440 = vperm.xlu0 %1439, %v1296
    %v1441 = vpop.permute.xlu0 %1440
    %1444 = vset.pattern.permute.xlu0 0
    %1445 = vperm.xlu0 %1444, %v1297
    %v1446 = vpop.permute.xlu0 %1445
    %1449 = vset.pattern.permute.xlu0 0
    %1450 = vperm.xlu0 %1449, %v1298
    %v1451 = vpop.permute.xlu0 %1450
    %1454 = vset.pattern.permute.xlu0 0
    %1455 = vperm.xlu0 %1454, %v1299
    %v1456 = vpop.permute.xlu0 %1455
    %1459 = vset.pattern.permute.xlu0 0
    %1460 = vperm.xlu0 %1459, %v1300
    %v1461 = vpop.permute.xlu0 %1460
    %1464 = vset.pattern.permute.xlu0 0
    %1465 = vperm.xlu0 %1464, %v1301
    %v1466 = vpop.permute.xlu0 %1465
    %1469 = vset.pattern.permute.xlu0 0
    %1470 = vperm.xlu0 %1469, %v1302
    %v1471 = vpop.permute.xlu0 %1470
    %1474 = vset.pattern.permute.xlu0 0
    %1475 = vperm.xlu0 %1474, %v1303
    %v1476 = vpop.permute.xlu0 %1475
    %1479 = vset.pattern.permute.xlu0 0
    %1480 = vperm.xlu0 %1479, %v1304
    %v1481 = vpop.permute.xlu0 %1480
    %1484 = vset.pattern.permute.xlu0 0
    %1485 = vperm.xlu0 %1484, %v1305
    %v1486 = vpop.permute.xlu0 %1485
    %1489 = vset.pattern.permute.xlu0 0
    %1490 = vperm.xlu0 %1489, %v1306
    %v1491 = vpop.permute.xlu0 %1490
    %1494 = vset.pattern.permute.xlu0 0
    %1495 = vperm.xlu0 %1494, %v1307
    %v1496 = vpop.permute.xlu0 %1495
    %1499 = vset.pattern.permute.xlu0 0
    %1500 = vperm.xlu0 %1499, %v1308
    %v1501 = vpop.permute.xlu0 %1500
    %1504 = vset.pattern.permute.xlu0 0
    %1505 = vperm.xlu0 %1504, %v1309
    %v1506 = vpop.permute.xlu0 %1505
    %1509 = vset.pattern.permute.xlu0 0
    %1510 = vperm.xlu0 %1509, %v1310
    %v1511 = vpop.permute.xlu0 %1510
    %1514 = vset.pattern.permute.xlu0 0
    %1515 = vperm.xlu0 %1514, %v1311
    %v1516 = vpop.permute.xlu0 %1515
    %1519 = vset.pattern.permute.xlu0 0
    %1520 = vperm.xlu0 %1519, %v1312
    %v1521 = vpop.permute.xlu0 %1520
    %1524 = vset.pattern.permute.xlu0 0
    %1525 = vperm.xlu0 %1524, %v1313
    %v1526 = vpop.permute.xlu0 %1525
    %1529 = vset.pattern.permute.xlu0 0
    %1530 = vperm.xlu0 %1529, %v1314
    %v1531 = vpop.permute.xlu0 %1530
    %1534 = vset.pattern.permute.xlu0 0
    %1535 = vperm.xlu0 %1534, %v1315
    %v1536 = vpop.permute.xlu0 %1535
    %1539 = vset.pattern.permute.xlu0 0
    %1540 = vperm.xlu0 %1539, %v1316
    %v1541 = vpop.permute.xlu0 %1540
    %1544 = vset.pattern.permute.xlu0 0
    %1545 = vperm.xlu0 %1544, %v1317
    %v1546 = vpop.permute.xlu0 %1545
    %1549 = vset.pattern.permute.xlu0 0
    %1550 = vperm.xlu0 %1549, %v1318
    %v1551 = vpop.permute.xlu0 %1550
    %1554 = vset.pattern.permute.xlu0 0
    %1555 = vperm.xlu0 %1554, %v1319
    %v1556 = vpop.permute.xlu0 %1555
    %1559 = vset.pattern.permute.xlu0 0
    %1560 = vperm.xlu0 %1559, %v1320
    %v1561 = vpop.permute.xlu0 %1560
    %1564 = vset.pattern.permute.xlu0 0
    %1565 = vperm.xlu0 %1564, %v1321
    %v1566 = vpop.permute.xlu0 %1565
    %1569 = vset.pattern.permute.xlu0 0
    %1570 = vperm.xlu0 %1569, %v1322
    %v1571 = vpop.permute.xlu0 %1570
    %1574 = vset.pattern.permute.xlu0 0
    %1575 = vperm.xlu0 %1574, %v1323
    %v1576 = vpop.permute.xlu0 %1575
    %1579 = vset.pattern.permute.xlu0 0
    %1580 = vperm.xlu0 %1579, %v1324
    %v1581 = vpop.permute.xlu0 %1580
    %1584 = vset.pattern.permute.xlu0 0
    %1585 = vperm.xlu0 %1584, %v1325
    %v1586 = vpop.permute.xlu0 %1585
    %1589 = vset.pattern.permute.xlu0 0
    %1590 = vperm.xlu0 %1589, %v1326
    %v1591 = vpop.permute.xlu0 %1590
    %1594 = vset.pattern.permute.xlu0 0
    %1595 = vperm.xlu0 %1594, %v1327
    %v1596 = vpop.permute.xlu0 %1595
    %1599 = vset.pattern.permute.xlu0 0
    %1600 = vperm.xlu0 %1599, %v1328
    %v1601 = vpop.permute.xlu0 %1600
    %1604 = vset.pattern.permute.xlu0 0
    %1605 = vperm.xlu0 %1604, %v1329
    %v1606 = vpop.permute.xlu0 %1605
    %1609 = vset.pattern.permute.xlu0 0
    %1610 = vperm.xlu0 %1609, %v1330
    %v1611 = vpop.permute.xlu0 %1610
    %1614 = vset.pattern.permute.xlu0 0
    %1615 = vperm.xlu0 %1614, %v1331
    %v1616 = vpop.permute.xlu0 %1615
    %1619 = vset.pattern.permute.xlu0 0
    %1620 = vperm.xlu0 %1619, %v1332
    %v1621 = vpop.permute.xlu0 %1620
    %1624 = vset.pattern.permute.xlu0 0
    %1625 = vperm.xlu0 %1624, %v1333
    %v1626 = vpop.permute.xlu0 %1625
    %1629 = vset.pattern.permute.xlu0 0
    %1630 = vperm.xlu0 %1629, %v1334
    %v1631 = vpop.permute.xlu0 %1630
    %1634 = vset.pattern.permute.xlu0 0
    %1635 = vperm.xlu0 %1634, %v1335
    %v1636 = vpop.permute.xlu0 %1635
    %1639 = vset.pattern.permute.xlu0 0
    %1640 = vperm.xlu0 %1639, %v1336
    %v1641 = vpop.permute.xlu0 %1640
    %1644 = vset.pattern.permute.xlu0 0
    %1645 = vperm.xlu0 %1644, %v1337
    %v1646 = vpop.permute.xlu0 %1645
    %1649 = vset.pattern.permute.xlu0 0
    %1650 = vperm.xlu0 %1649, %v1338
    %v1651 = vpop.permute.xlu0 %1650
    %1654 = vset.pattern.permute.xlu0 0
    %1655 = vperm.xlu0 %1654, %v1339
    %v1656 = vpop.permute.xlu0 %1655
    %1659 = vset.pattern.permute.xlu0 0
    %1660 = vperm.xlu0 %1659, %v1340
    %v1661 = vpop.permute.xlu0 %1660
    %v1664 = vperm.slane %v1342, 0
    %v1666 = vmul.f32 %v1346, %v1664
    %v1667 = vmul.f32 %v1351, %v1664
    %v1668 = vmul.f32 %v1356, %v1664
    %v1669 = vmul.f32 %v1361, %v1664
    %v1670 = vmul.f32 %v1366, %v1664
    %v1671 = vmul.f32 %v1371, %v1664
    %v1672 = vmul.f32 %v1376, %v1664
    %v1673 = vmul.f32 %v1381, %v1664
    %v1674 = vmul.f32 %v1386, %v1664
    %v1675 = vmul.f32 %v1391, %v1664
    %v1676 = vmul.f32 %v1396, %v1664
    %v1677 = vmul.f32 %v1401, %v1664
    %v1678 = vmul.f32 %v1406, %v1664
    %v1679 = vmul.f32 %v1411, %v1664
    %v1680 = vmul.f32 %v1416, %v1664
    %v1681 = vmul.f32 %v1421, %v1664
    %v1682 = vmul.f32 %v1426, %v1664
    %v1683 = vmul.f32 %v1431, %v1664
    %v1684 = vmul.f32 %v1436, %v1664
    %v1685 = vmul.f32 %v1441, %v1664
    %v1686 = vmul.f32 %v1446, %v1664
    %v1687 = vmul.f32 %v1451, %v1664
    %v1688 = vmul.f32 %v1456, %v1664
    %v1689 = vmul.f32 %v1461, %v1664
    %v1690 = vmul.f32 %v1466, %v1664
    %v1691 = vmul.f32 %v1471, %v1664
    %v1692 = vmul.f32 %v1476, %v1664
    %v1693 = vmul.f32 %v1481, %v1664
    %v1694 = vmul.f32 %v1486, %v1664
    %v1695 = vmul.f32 %v1491, %v1664
    %v1696 = vmul.f32 %v1496, %v1664
    %v1697 = vmul.f32 %v1501, %v1664
    %v1698 = vmul.f32 %v1506, %v1664
    %v1699 = vmul.f32 %v1511, %v1664
    %v1700 = vmul.f32 %v1516, %v1664
    %v1701 = vmul.f32 %v1521, %v1664
    %v1702 = vmul.f32 %v1526, %v1664
    %v1703 = vmul.f32 %v1531, %v1664
    %v1704 = vmul.f32 %v1536, %v1664
    %v1705 = vmul.f32 %v1541, %v1664
    %v1706 = vmul.f32 %v1546, %v1664
    %v1707 = vmul.f32 %v1551, %v1664
    %v1708 = vmul.f32 %v1556, %v1664
    %v1709 = vmul.f32 %v1561, %v1664
    %v1710 = vmul.f32 %v1566, %v1664
    %v1711 = vmul.f32 %v1571, %v1664
    %v1712 = vmul.f32 %v1576, %v1664
    %v1713 = vmul.f32 %v1581, %v1664
    %v1714 = vmul.f32 %v1586, %v1664
    %v1715 = vmul.f32 %v1591, %v1664
    %v1716 = vmul.f32 %v1596, %v1664
    %v1717 = vmul.f32 %v1601, %v1664
    %v1718 = vmul.f32 %v1606, %v1664
    %v1719 = vmul.f32 %v1611, %v1664
    %v1720 = vmul.f32 %v1616, %v1664
    %v1721 = vmul.f32 %v1621, %v1664
    %v1722 = vmul.f32 %v1626, %v1664
    %v1723 = vmul.f32 %v1631, %v1664
    %v1724 = vmul.f32 %v1636, %v1664
    %v1725 = vmul.f32 %v1641, %v1664
    %v1726 = vmul.f32 %v1646, %v1664
    %v1727 = vmul.f32 %v1651, %v1664
    %v1728 = vmul.f32 %v1656, %v1664
    %v1729 = vmul.f32 %v1661, %v1664
    %v1730 = vadd.f32 %v1213, %v1666
    %v1731 = vadd.f32 %v1214, %v1667
    %v1732 = vadd.f32 %v1215, %v1668
    %v1733 = vadd.f32 %v1216, %v1669
    %v1734 = vadd.f32 %v1217, %v1670
    %v1735 = vadd.f32 %v1218, %v1671
    %v1736 = vadd.f32 %v1219, %v1672
    %v1737 = vadd.f32 %v1220, %v1673
    %v1738 = vadd.f32 %v1221, %v1674
    %v1739 = vadd.f32 %v1222, %v1675
    %v1740 = vadd.f32 %v1223, %v1676
    %v1741 = vadd.f32 %v1224, %v1677
    %v1742 = vadd.f32 %v1225, %v1678
    %v1743 = vadd.f32 %v1226, %v1679
    %v1744 = vadd.f32 %v1227, %v1680
    %v1745 = vadd.f32 %v1228, %v1681
    %v1746 = vadd.f32 %v1229, %v1682
    %v1747 = vadd.f32 %v1230, %v1683
    %v1748 = vadd.f32 %v1231, %v1684
    %v1749 = vadd.f32 %v1232, %v1685
    %v1750 = vadd.f32 %v1233, %v1686
    %v1751 = vadd.f32 %v1234, %v1687
    %v1752 = vadd.f32 %v1235, %v1688
    %v1753 = vadd.f32 %v1236, %v1689
    %v1754 = vadd.f32 %v1237, %v1690
    %v1755 = vadd.f32 %v1238, %v1691
    %v1756 = vadd.f32 %v1239, %v1692
    %v1757 = vadd.f32 %v1240, %v1693
    %v1758 = vadd.f32 %v1241, %v1694
    %v1759 = vadd.f32 %v1242, %v1695
    %v1760 = vadd.f32 %v1243, %v1696
    %v1761 = vadd.f32 %v1244, %v1697
    %v1762 = vadd.f32 %v1245, %v1698
    %v1763 = vadd.f32 %v1246, %v1699
    %v1764 = vadd.f32 %v1247, %v1700
    %v1765 = vadd.f32 %v1248, %v1701
    %v1766 = vadd.f32 %v1249, %v1702
    %v1767 = vadd.f32 %v1250, %v1703
    %v1768 = vadd.f32 %v1251, %v1704
    %v1769 = vadd.f32 %v1252, %v1705
    %v1770 = vadd.f32 %v1253, %v1706
    %v1771 = vadd.f32 %v1254, %v1707
    %v1772 = vadd.f32 %v1255, %v1708
    %v1773 = vadd.f32 %v1256, %v1709
    %v1774 = vadd.f32 %v1257, %v1710
    %v1775 = vadd.f32 %v1258, %v1711
    %v1776 = vadd.f32 %v1259, %v1712
    %v1777 = vadd.f32 %v1260, %v1713
    %v1778 = vadd.f32 %v1261, %v1714
    %v1779 = vadd.f32 %v1262, %v1715
    %v1780 = vadd.f32 %v1263, %v1716
    %v1781 = vadd.f32 %v1264, %v1717
    %v1782 = vadd.f32 %v1265, %v1718
    %v1783 = vadd.f32 %v1266, %v1719
    %v1784 = vadd.f32 %v1267, %v1720
    %v1785 = vadd.f32 %v1268, %v1721
    %v1786 = vadd.f32 %v1269, %v1722
    %v1787 = vadd.f32 %v1270, %v1723
    %v1788 = vadd.f32 %v1271, %v1724
    %v1789 = vadd.f32 %v1272, %v1725
    %v1790 = vadd.f32 %v1273, %v1726
    %v1791 = vadd.f32 %v1274, %v1727
    %v1792 = vadd.f32 %v1275, %v1728
    %v1793 = vadd.f32 %v1276, %v1729
    %v1794 = vld [vmem:[%s179] sm:$0xff]
    %v1795 = vld [vmem:[%s179 + $0x8] sm:$0xff]
    %v1796 = vld [vmem:[%s179 + $0x18] sm:$0xff]
    %v1797 = vld [vmem:[%s179 + $0x20] sm:$0xff]
    %v1798 = vld [vmem:[%s179 + $0x30] sm:$0xff]
    %v1799 = vld [vmem:[%s179 + $0x38] sm:$0xff]
    %v1800 = vld [vmem:[%s179 + $0x48] sm:$0xff]
    %v1801 = vld [vmem:[%s179 + $0x50] sm:$0xff]
    %v1802 = vld [vmem:[%s179 + $0x60] sm:$0xff]
    %v1803 = vld [vmem:[%s179 + $0x68] sm:$0xff]
    %v1804 = vld [vmem:[%s179 + $0x78] sm:$0xff]
    %v1805 = vld [vmem:[%s179 + $0x80] sm:$0xff]
    %v1806 = vld [vmem:[%s179 + $0x90] sm:$0xff]
    %v1807 = vld [vmem:[%s179 + $0x98] sm:$0xff]
    %v1808 = vld [vmem:[%s179 + $0xa8] sm:$0xff]
    %v1809 = vld [vmem:[%s179 + $0xb0] sm:$0xff]
    %v1810 = vld [vmem:[%s179 + $0xc0] sm:$0xff]
    %v1811 = vld [vmem:[%s179 + $0xc8] sm:$0xff]
    %v1812 = vld [vmem:[%s179 + $0xd8] sm:$0xff]
    %v1813 = vld [vmem:[%s179 + $0xe0] sm:$0xff]
    %v1814 = vld [vmem:[%s179 + $0xf0] sm:$0xff]
    %v1815 = vld [vmem:[%s179 + $0xf8] sm:$0xff]
    %v1816 = vld [vmem:[%s179 + $0x108] sm:$0xff]
    %v1817 = vld [vmem:[%s179 + $0x110] sm:$0xff]
    %v1818 = vld [vmem:[%s179 + $0x120] sm:$0xff]
    %v1819 = vld [vmem:[%s179 + $0x128] sm:$0xff]
    %v1820 = vld [vmem:[%s179 + $0x138] sm:$0xff]
    %v1821 = vld [vmem:[%s179 + $0x140] sm:$0xff]
    %v1822 = vld [vmem:[%s179 + $0x150] sm:$0xff]
    %v1823 = vld [vmem:[%s179 + $0x158] sm:$0xff]
    %v1824 = vld [vmem:[%s179 + $0x168] sm:$0xff]
    %v1825 = vld [vmem:[%s179 + $0x170] sm:$0xff]
    %v1826 = vld [vmem:[%s179 + $0x1b0] sm:$0xff]
    %v1827 = vld [vmem:[%s179 + $0x1b8] sm:$0xff]
    %v1828 = vld [vmem:[%s179 + $0x1c8] sm:$0xff]
    %v1829 = vld [vmem:[%s179 + $0x1d0] sm:$0xff]
    %v1830 = vld [vmem:[%s179 + $0x1e0] sm:$0xff]
    %v1831 = vld [vmem:[%s179 + $0x1e8] sm:$0xff]
    %v1832 = vld [vmem:[%s179 + $0x1f8] sm:$0xff]
    %v1833 = vld [vmem:[%s179 + $0x200] sm:$0xff]
    %v1834 = vld [vmem:[%s179 + $0x210] sm:$0xff]
    %v1835 = vld [vmem:[%s179 + $0x218] sm:$0xff]
    %v1836 = vld [vmem:[%s179 + $0x228] sm:$0xff]
    %v1837 = vld [vmem:[%s179 + $0x230] sm:$0xff]
    %v1838 = vld [vmem:[%s179 + $0x240] sm:$0xff]
    %v1839 = vld [vmem:[%s179 + $0x248] sm:$0xff]
    %v1840 = vld [vmem:[%s179 + $0x258] sm:$0xff]
    %v1841 = vld [vmem:[%s179 + $0x260] sm:$0xff]
    %v1842 = vld [vmem:[%s179 + $0x270] sm:$0xff]
    %v1843 = vld [vmem:[%s179 + $0x278] sm:$0xff]
    %v1844 = vld [vmem:[%s179 + $0x288] sm:$0xff]
    %v1845 = vld [vmem:[%s179 + $0x290] sm:$0xff]
    %v1846 = vld [vmem:[%s179 + $0x2a0] sm:$0xff]
    %v1847 = vld [vmem:[%s179 + $0x2a8] sm:$0xff]
    %v1848 = vld [vmem:[%s179 + $0x2b8] sm:$0xff]
    %v1849 = vld [vmem:[%s179 + $0x2c0] sm:$0xff]
    %v1850 = vld [vmem:[%s179 + $0x2d0] sm:$0xff]
    %v1851 = vld [vmem:[%s179 + $0x2d8] sm:$0xff]
    %v1852 = vld [vmem:[%s179 + $0x2e8] sm:$0xff]
    %v1853 = vld [vmem:[%s179 + $0x2f0] sm:$0xff]
    %v1854 = vld [vmem:[%s179 + $0x300] sm:$0xff]
    %v1855 = vld [vmem:[%s179 + $0x308] sm:$0xff]
    %v1856 = vld [vmem:[%s179 + $0x318] sm:$0xff]
    %v1857 = vld [vmem:[%s179 + $0x320] sm:$0xff]
    %s1858 = scalar_lea.vmem %s1, 3
    %v1859 = vld [vmem:[%s1858] sm:$0x1]
    %1861 = vset.pattern.permute.xlu0 0
    %1862 = vperm.xlu0 %1861, %v1794
    %v1863 = vpop.permute.xlu0 %1862
    %1866 = vset.pattern.permute.xlu0 0
    %1867 = vperm.xlu0 %1866, %v1795
    %v1868 = vpop.permute.xlu0 %1867
    %1871 = vset.pattern.permute.xlu0 0
    %1872 = vperm.xlu0 %1871, %v1796
    %v1873 = vpop.permute.xlu0 %1872
    %1876 = vset.pattern.permute.xlu0 0
    %1877 = vperm.xlu0 %1876, %v1797
    %v1878 = vpop.permute.xlu0 %1877
    %1881 = vset.pattern.permute.xlu0 0
    %1882 = vperm.xlu0 %1881, %v1798
    %v1883 = vpop.permute.xlu0 %1882
    %1886 = vset.pattern.permute.xlu0 0
    %1887 = vperm.xlu0 %1886, %v1799
    %v1888 = vpop.permute.xlu0 %1887
    %1891 = vset.pattern.permute.xlu0 0
    %1892 = vperm.xlu0 %1891, %v1800
    %v1893 = vpop.permute.xlu0 %1892
    %1896 = vset.pattern.permute.xlu0 0
    %1897 = vperm.xlu0 %1896, %v1801
    %v1898 = vpop.permute.xlu0 %1897
    %1901 = vset.pattern.permute.xlu0 0
    %1902 = vperm.xlu0 %1901, %v1802
    %v1903 = vpop.permute.xlu0 %1902
    %1906 = vset.pattern.permute.xlu0 0
    %1907 = vperm.xlu0 %1906, %v1803
    %v1908 = vpop.permute.xlu0 %1907
    %1911 = vset.pattern.permute.xlu0 0
    %1912 = vperm.xlu0 %1911, %v1804
    %v1913 = vpop.permute.xlu0 %1912
    %1916 = vset.pattern.permute.xlu0 0
    %1917 = vperm.xlu0 %1916, %v1805
    %v1918 = vpop.permute.xlu0 %1917
    %1921 = vset.pattern.permute.xlu0 0
    %1922 = vperm.xlu0 %1921, %v1806
    %v1923 = vpop.permute.xlu0 %1922
    %1926 = vset.pattern.permute.xlu0 0
    %1927 = vperm.xlu0 %1926, %v1807
    %v1928 = vpop.permute.xlu0 %1927
    %1931 = vset.pattern.permute.xlu0 0
    %1932 = vperm.xlu0 %1931, %v1808
    %v1933 = vpop.permute.xlu0 %1932
    %1936 = vset.pattern.permute.xlu0 0
    %1937 = vperm.xlu0 %1936, %v1809
    %v1938 = vpop.permute.xlu0 %1937
    %1941 = vset.pattern.permute.xlu0 0
    %1942 = vperm.xlu0 %1941, %v1810
    %v1943 = vpop.permute.xlu0 %1942
    %1946 = vset.pattern.permute.xlu0 0
    %1947 = vperm.xlu0 %1946, %v1811
    %v1948 = vpop.permute.xlu0 %1947
    %1951 = vset.pattern.permute.xlu0 0
    %1952 = vperm.xlu0 %1951, %v1812
    %v1953 = vpop.permute.xlu0 %1952
    %1956 = vset.pattern.permute.xlu0 0
    %1957 = vperm.xlu0 %1956, %v1813
    %v1958 = vpop.permute.xlu0 %1957
    %1961 = vset.pattern.permute.xlu0 0
    %1962 = vperm.xlu0 %1961, %v1814
    %v1963 = vpop.permute.xlu0 %1962
    %1966 = vset.pattern.permute.xlu0 0
    %1967 = vperm.xlu0 %1966, %v1815
    %v1968 = vpop.permute.xlu0 %1967
    %1971 = vset.pattern.permute.xlu0 0
    %1972 = vperm.xlu0 %1971, %v1816
    %v1973 = vpop.permute.xlu0 %1972
    %1976 = vset.pattern.permute.xlu0 0
    %1977 = vperm.xlu0 %1976, %v1817
    %v1978 = vpop.permute.xlu0 %1977
    %1981 = vset.pattern.permute.xlu0 0
    %1982 = vperm.xlu0 %1981, %v1818
    %v1983 = vpop.permute.xlu0 %1982
    %1986 = vset.pattern.permute.xlu0 0
    %1987 = vperm.xlu0 %1986, %v1819
    %v1988 = vpop.permute.xlu0 %1987
    %1991 = vset.pattern.permute.xlu0 0
    %1992 = vperm.xlu0 %1991, %v1820
    %v1993 = vpop.permute.xlu0 %1992
    %1996 = vset.pattern.permute.xlu0 0
    %1997 = vperm.xlu0 %1996, %v1821
    %v1998 = vpop.permute.xlu0 %1997
    %2001 = vset.pattern.permute.xlu0 0
    %2002 = vperm.xlu0 %2001, %v1822
    %v2003 = vpop.permute.xlu0 %2002
    %2006 = vset.pattern.permute.xlu0 0
    %2007 = vperm.xlu0 %2006, %v1823
    %v2008 = vpop.permute.xlu0 %2007
    %2011 = vset.pattern.permute.xlu0 0
    %2012 = vperm.xlu0 %2011, %v1824
    %v2013 = vpop.permute.xlu0 %2012
    %2016 = vset.pattern.permute.xlu0 0
    %2017 = vperm.xlu0 %2016, %v1825
    %v2018 = vpop.permute.xlu0 %2017
    %2021 = vset.pattern.permute.xlu0 0
    %2022 = vperm.xlu0 %2021, %v1826
    %v2023 = vpop.permute.xlu0 %2022
    %2026 = vset.pattern.permute.xlu0 0
    %2027 = vperm.xlu0 %2026, %v1827
    %v2028 = vpop.permute.xlu0 %2027
    %2031 = vset.pattern.permute.xlu0 0
    %2032 = vperm.xlu0 %2031, %v1828
    %v2033 = vpop.permute.xlu0 %2032
    %2036 = vset.pattern.permute.xlu0 0
    %2037 = vperm.xlu0 %2036, %v1829
    %v2038 = vpop.permute.xlu0 %2037
    %2041 = vset.pattern.permute.xlu0 0
    %2042 = vperm.xlu0 %2041, %v1830
    %v2043 = vpop.permute.xlu0 %2042
    %2046 = vset.pattern.permute.xlu0 0
    %2047 = vperm.xlu0 %2046, %v1831
    %v2048 = vpop.permute.xlu0 %2047
    %2051 = vset.pattern.permute.xlu0 0
    %2052 = vperm.xlu0 %2051, %v1832
    %v2053 = vpop.permute.xlu0 %2052
    %2056 = vset.pattern.permute.xlu0 0
    %2057 = vperm.xlu0 %2056, %v1833
    %v2058 = vpop.permute.xlu0 %2057
    %2061 = vset.pattern.permute.xlu0 0
    %2062 = vperm.xlu0 %2061, %v1834
    %v2063 = vpop.permute.xlu0 %2062
    %2066 = vset.pattern.permute.xlu0 0
    %2067 = vperm.xlu0 %2066, %v1835
    %v2068 = vpop.permute.xlu0 %2067
    %2071 = vset.pattern.permute.xlu0 0
    %2072 = vperm.xlu0 %2071, %v1836
    %v2073 = vpop.permute.xlu0 %2072
    %2076 = vset.pattern.permute.xlu0 0
    %2077 = vperm.xlu0 %2076, %v1837
    %v2078 = vpop.permute.xlu0 %2077
    %2081 = vset.pattern.permute.xlu0 0
    %2082 = vperm.xlu0 %2081, %v1838
    %v2083 = vpop.permute.xlu0 %2082
    %2086 = vset.pattern.permute.xlu0 0
    %2087 = vperm.xlu0 %2086, %v1839
    %v2088 = vpop.permute.xlu0 %2087
    %2091 = vset.pattern.permute.xlu0 0
    %2092 = vperm.xlu0 %2091, %v1840
    %v2093 = vpop.permute.xlu0 %2092
    %2096 = vset.pattern.permute.xlu0 0
    %2097 = vperm.xlu0 %2096, %v1841
    %v2098 = vpop.permute.xlu0 %2097
    %2101 = vset.pattern.permute.xlu0 0
    %2102 = vperm.xlu0 %2101, %v1842
    %v2103 = vpop.permute.xlu0 %2102
    %2106 = vset.pattern.permute.xlu0 0
    %2107 = vperm.xlu0 %2106, %v1843
    %v2108 = vpop.permute.xlu0 %2107
    %2111 = vset.pattern.permute.xlu0 0
    %2112 = vperm.xlu0 %2111, %v1844
    %v2113 = vpop.permute.xlu0 %2112
    %2116 = vset.pattern.permute.xlu0 0
    %2117 = vperm.xlu0 %2116, %v1845
    %v2118 = vpop.permute.xlu0 %2117
    %2121 = vset.pattern.permute.xlu0 0
    %2122 = vperm.xlu0 %2121, %v1846
    %v2123 = vpop.permute.xlu0 %2122
    %2126 = vset.pattern.permute.xlu0 0
    %2127 = vperm.xlu0 %2126, %v1847
    %v2128 = vpop.permute.xlu0 %2127
    %2131 = vset.pattern.permute.xlu0 0
    %2132 = vperm.xlu0 %2131, %v1848
    %v2133 = vpop.permute.xlu0 %2132
    %2136 = vset.pattern.permute.xlu0 0
    %2137 = vperm.xlu0 %2136, %v1849
    %v2138 = vpop.permute.xlu0 %2137
    %2141 = vset.pattern.permute.xlu0 0
    %2142 = vperm.xlu0 %2141, %v1850
    %v2143 = vpop.permute.xlu0 %2142
    %2146 = vset.pattern.permute.xlu0 0
    %2147 = vperm.xlu0 %2146, %v1851
    %v2148 = vpop.permute.xlu0 %2147
    %2151 = vset.pattern.permute.xlu0 0
    %2152 = vperm.xlu0 %2151, %v1852
    %v2153 = vpop.permute.xlu0 %2152
    %2156 = vset.pattern.permute.xlu0 0
    %2157 = vperm.xlu0 %2156, %v1853
    %v2158 = vpop.permute.xlu0 %2157
    %2161 = vset.pattern.permute.xlu0 0
    %2162 = vperm.xlu0 %2161, %v1854
    %v2163 = vpop.permute.xlu0 %2162
    %2166 = vset.pattern.permute.xlu0 0
    %2167 = vperm.xlu0 %2166, %v1855
    %v2168 = vpop.permute.xlu0 %2167
    %2171 = vset.pattern.permute.xlu0 0
    %2172 = vperm.xlu0 %2171, %v1856
    %v2173 = vpop.permute.xlu0 %2172
    %2176 = vset.pattern.permute.xlu0 0
    %2177 = vperm.xlu0 %2176, %v1857
    %v2178 = vpop.permute.xlu0 %2177
    %v2181 = vperm.slane %v1859, 0
    %v2183 = vmul.f32 %v1863, %v2181
    %v2184 = vmul.f32 %v1868, %v2181
    %v2185 = vmul.f32 %v1873, %v2181
    %v2186 = vmul.f32 %v1878, %v2181
    %v2187 = vmul.f32 %v1883, %v2181
    %v2188 = vmul.f32 %v1888, %v2181
    %v2189 = vmul.f32 %v1893, %v2181
    %v2190 = vmul.f32 %v1898, %v2181
    %v2191 = vmul.f32 %v1903, %v2181
    %v2192 = vmul.f32 %v1908, %v2181
    %v2193 = vmul.f32 %v1913, %v2181
    %v2194 = vmul.f32 %v1918, %v2181
    %v2195 = vmul.f32 %v1923, %v2181
    %v2196 = vmul.f32 %v1928, %v2181
    %v2197 = vmul.f32 %v1933, %v2181
    %v2198 = vmul.f32 %v1938, %v2181
    %v2199 = vmul.f32 %v1943, %v2181
    %v2200 = vmul.f32 %v1948, %v2181
    %v2201 = vmul.f32 %v1953, %v2181
    %v2202 = vmul.f32 %v1958, %v2181
    %v2203 = vmul.f32 %v1963, %v2181
    %v2204 = vmul.f32 %v1968, %v2181
    %v2205 = vmul.f32 %v1973, %v2181
    %v2206 = vmul.f32 %v1978, %v2181
    %v2207 = vmul.f32 %v1983, %v2181
    %v2208 = vmul.f32 %v1988, %v2181
    %v2209 = vmul.f32 %v1993, %v2181
    %v2210 = vmul.f32 %v1998, %v2181
    %v2211 = vmul.f32 %v2003, %v2181
    %v2212 = vmul.f32 %v2008, %v2181
    %v2213 = vmul.f32 %v2013, %v2181
    %v2214 = vmul.f32 %v2018, %v2181
    %v2215 = vmul.f32 %v2023, %v2181
    %v2216 = vmul.f32 %v2028, %v2181
    %v2217 = vmul.f32 %v2033, %v2181
    %v2218 = vmul.f32 %v2038, %v2181
    %v2219 = vmul.f32 %v2043, %v2181
    %v2220 = vmul.f32 %v2048, %v2181
    %v2221 = vmul.f32 %v2053, %v2181
    %v2222 = vmul.f32 %v2058, %v2181
    %v2223 = vmul.f32 %v2063, %v2181
    %v2224 = vmul.f32 %v2068, %v2181
    %v2225 = vmul.f32 %v2073, %v2181
    %v2226 = vmul.f32 %v2078, %v2181
    %v2227 = vmul.f32 %v2083, %v2181
    %v2228 = vmul.f32 %v2088, %v2181
    %v2229 = vmul.f32 %v2093, %v2181
    %v2230 = vmul.f32 %v2098, %v2181
    %v2231 = vmul.f32 %v2103, %v2181
    %v2232 = vmul.f32 %v2108, %v2181
    %v2233 = vmul.f32 %v2113, %v2181
    %v2234 = vmul.f32 %v2118, %v2181
    %v2235 = vmul.f32 %v2123, %v2181
    %v2236 = vmul.f32 %v2128, %v2181
    %v2237 = vmul.f32 %v2133, %v2181
    %v2238 = vmul.f32 %v2138, %v2181
    %v2239 = vmul.f32 %v2143, %v2181
    %v2240 = vmul.f32 %v2148, %v2181
    %v2241 = vmul.f32 %v2153, %v2181
    %v2242 = vmul.f32 %v2158, %v2181
    %v2243 = vmul.f32 %v2163, %v2181
    %v2244 = vmul.f32 %v2168, %v2181
    %v2245 = vmul.f32 %v2173, %v2181
    %v2246 = vmul.f32 %v2178, %v2181
    %v2247 = vadd.f32 %v1730, %v2183
    %v2248 = vadd.f32 %v1731, %v2184
    %v2249 = vadd.f32 %v1732, %v2185
    %v2250 = vadd.f32 %v1733, %v2186
    %v2251 = vadd.f32 %v1734, %v2187
    %v2252 = vadd.f32 %v1735, %v2188
    %v2253 = vadd.f32 %v1736, %v2189
    %v2254 = vadd.f32 %v1737, %v2190
    %v2255 = vadd.f32 %v1738, %v2191
    %v2256 = vadd.f32 %v1739, %v2192
    %v2257 = vadd.f32 %v1740, %v2193
    %v2258 = vadd.f32 %v1741, %v2194
    %v2259 = vadd.f32 %v1742, %v2195
    %v2260 = vadd.f32 %v1743, %v2196
    %v2261 = vadd.f32 %v1744, %v2197
    %v2262 = vadd.f32 %v1745, %v2198
    %v2263 = vadd.f32 %v1746, %v2199
    %v2264 = vadd.f32 %v1747, %v2200
    %v2265 = vadd.f32 %v1748, %v2201
    %v2266 = vadd.f32 %v1749, %v2202
    %v2267 = vadd.f32 %v1750, %v2203
    %v2268 = vadd.f32 %v1751, %v2204
    %v2269 = vadd.f32 %v1752, %v2205
    %v2270 = vadd.f32 %v1753, %v2206
    %v2271 = vadd.f32 %v1754, %v2207
    %v2272 = vadd.f32 %v1755, %v2208
    %v2273 = vadd.f32 %v1756, %v2209
    %v2274 = vadd.f32 %v1757, %v2210
    %v2275 = vadd.f32 %v1758, %v2211
    %v2276 = vadd.f32 %v1759, %v2212
    %v2277 = vadd.f32 %v1760, %v2213
    %v2278 = vadd.f32 %v1761, %v2214
    %v2279 = vadd.f32 %v1762, %v2215
    %v2280 = vadd.f32 %v1763, %v2216
    %v2281 = vadd.f32 %v1764, %v2217
    %v2282 = vadd.f32 %v1765, %v2218
    %v2283 = vadd.f32 %v1766, %v2219
    %v2284 = vadd.f32 %v1767, %v2220
    %v2285 = vadd.f32 %v1768, %v2221
    %v2286 = vadd.f32 %v1769, %v2222
    %v2287 = vadd.f32 %v1770, %v2223
    %v2288 = vadd.f32 %v1771, %v2224
    %v2289 = vadd.f32 %v1772, %v2225
    %v2290 = vadd.f32 %v1773, %v2226
    %v2291 = vadd.f32 %v1774, %v2227
    %v2292 = vadd.f32 %v1775, %v2228
    %v2293 = vadd.f32 %v1776, %v2229
    %v2294 = vadd.f32 %v1777, %v2230
    %v2295 = vadd.f32 %v1778, %v2231
    %v2296 = vadd.f32 %v1779, %v2232
    %v2297 = vadd.f32 %v1780, %v2233
    %v2298 = vadd.f32 %v1781, %v2234
    %v2299 = vadd.f32 %v1782, %v2235
    %v2300 = vadd.f32 %v1783, %v2236
    %v2301 = vadd.f32 %v1784, %v2237
    %v2302 = vadd.f32 %v1785, %v2238
    %v2303 = vadd.f32 %v1786, %v2239
    %v2304 = vadd.f32 %v1787, %v2240
    %v2305 = vadd.f32 %v1788, %v2241
    %v2306 = vadd.f32 %v1789, %v2242
    %v2307 = vadd.f32 %v1790, %v2243
    %v2308 = vadd.f32 %v1791, %v2244
    %v2309 = vadd.f32 %v1792, %v2245
    %v2310 = vadd.f32 %v1793, %v2246
    %v2311 = vld [vmem:[%s179 + $0x1] sm:$0xff]
    %v2312 = vld [vmem:[%s179 + $0x9] sm:$0xff]
    %v2313 = vld [vmem:[%s179 + $0x19] sm:$0xff]
    %v2314 = vld [vmem:[%s179 + $0x21] sm:$0xff]
    %v2315 = vld [vmem:[%s179 + $0x31] sm:$0xff]
    %v2316 = vld [vmem:[%s179 + $0x39] sm:$0xff]
    %v2317 = vld [vmem:[%s179 + $0x49] sm:$0xff]
    %v2318 = vld [vmem:[%s179 + $0x51] sm:$0xff]
    %v2319 = vld [vmem:[%s179 + $0x61] sm:$0xff]
    %v2320 = vld [vmem:[%s179 + $0x69] sm:$0xff]
    %v2321 = vld [vmem:[%s179 + $0x79] sm:$0xff]
    %v2322 = vld [vmem:[%s179 + $0x81] sm:$0xff]
    %v2323 = vld [vmem:[%s179 + $0x91] sm:$0xff]
    %v2324 = vld [vmem:[%s179 + $0x99] sm:$0xff]
    %v2325 = vld [vmem:[%s179 + $0xa9] sm:$0xff]
    %v2326 = vld [vmem:[%s179 + $0xb1] sm:$0xff]
    %v2327 = vld [vmem:[%s179 + $0xc1] sm:$0xff]
    %v2328 = vld [vmem:[%s179 + $0xc9] sm:$0xff]
    %v2329 = vld [vmem:[%s179 + $0xd9] sm:$0xff]
    %v2330 = vld [vmem:[%s179 + $0xe1] sm:$0xff]
    %v2331 = vld [vmem:[%s179 + $0xf1] sm:$0xff]
    %v2332 = vld [vmem:[%s179 + $0xf9] sm:$0xff]
    %v2333 = vld [vmem:[%s179 + $0x109] sm:$0xff]
    %v2334 = vld [vmem:[%s179 + $0x111] sm:$0xff]
    %v2335 = vld [vmem:[%s179 + $0x121] sm:$0xff]
    %v2336 = vld [vmem:[%s179 + $0x129] sm:$0xff]
    %v2337 = vld [vmem:[%s179 + $0x139] sm:$0xff]
    %v2338 = vld [vmem:[%s179 + $0x141] sm:$0xff]
    %v2339 = vld [vmem:[%s179 + $0x151] sm:$0xff]
    %v2340 = vld [vmem:[%s179 + $0x159] sm:$0xff]
    %v2341 = vld [vmem:[%s179 + $0x169] sm:$0xff]
    %v2342 = vld [vmem:[%s179 + $0x171] sm:$0xff]
    %v2343 = vld [vmem:[%s179 + $0x1b1] sm:$0xff]
    %v2344 = vld [vmem:[%s179 + $0x1b9] sm:$0xff]
    %v2345 = vld [vmem:[%s179 + $0x1c9] sm:$0xff]
    %v2346 = vld [vmem:[%s179 + $0x1d1] sm:$0xff]
    %v2347 = vld [vmem:[%s179 + $0x1e1] sm:$0xff]
    %v2348 = vld [vmem:[%s179 + $0x1e9] sm:$0xff]
    %v2349 = vld [vmem:[%s179 + $0x1f9] sm:$0xff]
    %v2350 = vld [vmem:[%s179 + $0x201] sm:$0xff]
    %v2351 = vld [vmem:[%s179 + $0x211] sm:$0xff]
    %v2352 = vld [vmem:[%s179 + $0x219] sm:$0xff]
    %v2353 = vld [vmem:[%s179 + $0x229] sm:$0xff]
    %v2354 = vld [vmem:[%s179 + $0x231] sm:$0xff]
    %v2355 = vld [vmem:[%s179 + $0x241] sm:$0xff]
    %v2356 = vld [vmem:[%s179 + $0x249] sm:$0xff]
    %v2357 = vld [vmem:[%s179 + $0x259] sm:$0xff]
    %v2358 = vld [vmem:[%s179 + $0x261] sm:$0xff]
    %v2359 = vld [vmem:[%s179 + $0x271] sm:$0xff]
    %v2360 = vld [vmem:[%s179 + $0x279] sm:$0xff]
    %v2361 = vld [vmem:[%s179 + $0x289] sm:$0xff]
    %v2362 = vld [vmem:[%s179 + $0x291] sm:$0xff]
    %v2363 = vld [vmem:[%s179 + $0x2a1] sm:$0xff]
    %v2364 = vld [vmem:[%s179 + $0x2a9] sm:$0xff]
    %v2365 = vld [vmem:[%s179 + $0x2b9] sm:$0xff]
    %v2366 = vld [vmem:[%s179 + $0x2c1] sm:$0xff]
    %v2367 = vld [vmem:[%s179 + $0x2d1] sm:$0xff]
    %v2368 = vld [vmem:[%s179 + $0x2d9] sm:$0xff]
    %v2369 = vld [vmem:[%s179 + $0x2e9] sm:$0xff]
    %v2370 = vld [vmem:[%s179 + $0x2f1] sm:$0xff]
    %v2371 = vld [vmem:[%s179 + $0x301] sm:$0xff]
    %v2372 = vld [vmem:[%s179 + $0x309] sm:$0xff]
    %v2373 = vld [vmem:[%s179 + $0x319] sm:$0xff]
    %v2374 = vld [vmem:[%s179 + $0x321] sm:$0xff]
    %s2375 = scalar_lea.vmem %s1, 4
    %v2376 = vld [vmem:[%s2375] sm:$0x1]
    %2378 = vset.pattern.permute.xlu0 0
    %2379 = vperm.xlu0 %2378, %v2311
    %v2380 = vpop.permute.xlu0 %2379
    %2383 = vset.pattern.permute.xlu0 0
    %2384 = vperm.xlu0 %2383, %v2312
    %v2385 = vpop.permute.xlu0 %2384
    %2388 = vset.pattern.permute.xlu0 0
    %2389 = vperm.xlu0 %2388, %v2313
    %v2390 = vpop.permute.xlu0 %2389
    %2393 = vset.pattern.permute.xlu0 0
    %2394 = vperm.xlu0 %2393, %v2314
    %v2395 = vpop.permute.xlu0 %2394
    %2398 = vset.pattern.permute.xlu0 0
    %2399 = vperm.xlu0 %2398, %v2315
    %v2400 = vpop.permute.xlu0 %2399
    %2403 = vset.pattern.permute.xlu0 0
    %2404 = vperm.xlu0 %2403, %v2316
    %v2405 = vpop.permute.xlu0 %2404
    %2408 = vset.pattern.permute.xlu0 0
    %2409 = vperm.xlu0 %2408, %v2317
    %v2410 = vpop.permute.xlu0 %2409
    %2413 = vset.pattern.permute.xlu0 0
    %2414 = vperm.xlu0 %2413, %v2318
    %v2415 = vpop.permute.xlu0 %2414
    %2418 = vset.pattern.permute.xlu0 0
    %2419 = vperm.xlu0 %2418, %v2319
    %v2420 = vpop.permute.xlu0 %2419
    %2423 = vset.pattern.permute.xlu0 0
    %2424 = vperm.xlu0 %2423, %v2320
    %v2425 = vpop.permute.xlu0 %2424
    %2428 = vset.pattern.permute.xlu0 0
    %2429 = vperm.xlu0 %2428, %v2321
    %v2430 = vpop.permute.xlu0 %2429
    %2433 = vset.pattern.permute.xlu0 0
    %2434 = vperm.xlu0 %2433, %v2322
    %v2435 = vpop.permute.xlu0 %2434
    %2438 = vset.pattern.permute.xlu0 0
    %2439 = vperm.xlu0 %2438, %v2323
    %v2440 = vpop.permute.xlu0 %2439
    %2443 = vset.pattern.permute.xlu0 0
    %2444 = vperm.xlu0 %2443, %v2324
    %v2445 = vpop.permute.xlu0 %2444
    %2448 = vset.pattern.permute.xlu0 0
    %2449 = vperm.xlu0 %2448, %v2325
    %v2450 = vpop.permute.xlu0 %2449
    %2453 = vset.pattern.permute.xlu0 0
    %2454 = vperm.xlu0 %2453, %v2326
    %v2455 = vpop.permute.xlu0 %2454
    %2458 = vset.pattern.permute.xlu0 0
    %2459 = vperm.xlu0 %2458, %v2327
    %v2460 = vpop.permute.xlu0 %2459
    %2463 = vset.pattern.permute.xlu0 0
    %2464 = vperm.xlu0 %2463, %v2328
    %v2465 = vpop.permute.xlu0 %2464
    %2468 = vset.pattern.permute.xlu0 0
    %2469 = vperm.xlu0 %2468, %v2329
    %v2470 = vpop.permute.xlu0 %2469
    %2473 = vset.pattern.permute.xlu0 0
    %2474 = vperm.xlu0 %2473, %v2330
    %v2475 = vpop.permute.xlu0 %2474
    %2478 = vset.pattern.permute.xlu0 0
    %2479 = vperm.xlu0 %2478, %v2331
    %v2480 = vpop.permute.xlu0 %2479
    %2483 = vset.pattern.permute.xlu0 0
    %2484 = vperm.xlu0 %2483, %v2332
    %v2485 = vpop.permute.xlu0 %2484
    %2488 = vset.pattern.permute.xlu0 0
    %2489 = vperm.xlu0 %2488, %v2333
    %v2490 = vpop.permute.xlu0 %2489
    %2493 = vset.pattern.permute.xlu0 0
    %2494 = vperm.xlu0 %2493, %v2334
    %v2495 = vpop.permute.xlu0 %2494
    %2498 = vset.pattern.permute.xlu0 0
    %2499 = vperm.xlu0 %2498, %v2335
    %v2500 = vpop.permute.xlu0 %2499
    %2503 = vset.pattern.permute.xlu0 0
    %2504 = vperm.xlu0 %2503, %v2336
    %v2505 = vpop.permute.xlu0 %2504
    %2508 = vset.pattern.permute.xlu0 0
    %2509 = vperm.xlu0 %2508, %v2337
    %v2510 = vpop.permute.xlu0 %2509
    %2513 = vset.pattern.permute.xlu0 0
    %2514 = vperm.xlu0 %2513, %v2338
    %v2515 = vpop.permute.xlu0 %2514
    %2518 = vset.pattern.permute.xlu0 0
    %2519 = vperm.xlu0 %2518, %v2339
    %v2520 = vpop.permute.xlu0 %2519
    %2523 = vset.pattern.permute.xlu0 0
    %2524 = vperm.xlu0 %2523, %v2340
    %v2525 = vpop.permute.xlu0 %2524
    %2528 = vset.pattern.permute.xlu0 0
    %2529 = vperm.xlu0 %2528, %v2341
    %v2530 = vpop.permute.xlu0 %2529
    %2533 = vset.pattern.permute.xlu0 0
    %2534 = vperm.xlu0 %2533, %v2342
    %v2535 = vpop.permute.xlu0 %2534
    %2538 = vset.pattern.permute.xlu0 0
    %2539 = vperm.xlu0 %2538, %v2343
    %v2540 = vpop.permute.xlu0 %2539
    %2543 = vset.pattern.permute.xlu0 0
    %2544 = vperm.xlu0 %2543, %v2344
    %v2545 = vpop.permute.xlu0 %2544
    %2548 = vset.pattern.permute.xlu0 0
    %2549 = vperm.xlu0 %2548, %v2345
    %v2550 = vpop.permute.xlu0 %2549
    %2553 = vset.pattern.permute.xlu0 0
    %2554 = vperm.xlu0 %2553, %v2346
    %v2555 = vpop.permute.xlu0 %2554
    %2558 = vset.pattern.permute.xlu0 0
    %2559 = vperm.xlu0 %2558, %v2347
    %v2560 = vpop.permute.xlu0 %2559
    %2563 = vset.pattern.permute.xlu0 0
    %2564 = vperm.xlu0 %2563, %v2348
    %v2565 = vpop.permute.xlu0 %2564
    %2568 = vset.pattern.permute.xlu0 0
    %2569 = vperm.xlu0 %2568, %v2349
    %v2570 = vpop.permute.xlu0 %2569
    %2573 = vset.pattern.permute.xlu0 0
    %2574 = vperm.xlu0 %2573, %v2350
    %v2575 = vpop.permute.xlu0 %2574
    %2578 = vset.pattern.permute.xlu0 0
    %2579 = vperm.xlu0 %2578, %v2351
    %v2580 = vpop.permute.xlu0 %2579
    %2583 = vset.pattern.permute.xlu0 0
    %2584 = vperm.xlu0 %2583, %v2352
    %v2585 = vpop.permute.xlu0 %2584
    %2588 = vset.pattern.permute.xlu0 0
    %2589 = vperm.xlu0 %2588, %v2353
    %v2590 = vpop.permute.xlu0 %2589
    %2593 = vset.pattern.permute.xlu0 0
    %2594 = vperm.xlu0 %2593, %v2354
    %v2595 = vpop.permute.xlu0 %2594
    %2598 = vset.pattern.permute.xlu0 0
    %2599 = vperm.xlu0 %2598, %v2355
    %v2600 = vpop.permute.xlu0 %2599
    %2603 = vset.pattern.permute.xlu0 0
    %2604 = vperm.xlu0 %2603, %v2356
    %v2605 = vpop.permute.xlu0 %2604
    %2608 = vset.pattern.permute.xlu0 0
    %2609 = vperm.xlu0 %2608, %v2357
    %v2610 = vpop.permute.xlu0 %2609
    %2613 = vset.pattern.permute.xlu0 0
    %2614 = vperm.xlu0 %2613, %v2358
    %v2615 = vpop.permute.xlu0 %2614
    %2618 = vset.pattern.permute.xlu0 0
    %2619 = vperm.xlu0 %2618, %v2359
    %v2620 = vpop.permute.xlu0 %2619
    %2623 = vset.pattern.permute.xlu0 0
    %2624 = vperm.xlu0 %2623, %v2360
    %v2625 = vpop.permute.xlu0 %2624
    %2628 = vset.pattern.permute.xlu0 0
    %2629 = vperm.xlu0 %2628, %v2361
    %v2630 = vpop.permute.xlu0 %2629
    %2633 = vset.pattern.permute.xlu0 0
    %2634 = vperm.xlu0 %2633, %v2362
    %v2635 = vpop.permute.xlu0 %2634
    %2638 = vset.pattern.permute.xlu0 0
    %2639 = vperm.xlu0 %2638, %v2363
    %v2640 = vpop.permute.xlu0 %2639
    %2643 = vset.pattern.permute.xlu0 0
    %2644 = vperm.xlu0 %2643, %v2364
    %v2645 = vpop.permute.xlu0 %2644
    %2648 = vset.pattern.permute.xlu0 0
    %2649 = vperm.xlu0 %2648, %v2365
    %v2650 = vpop.permute.xlu0 %2649
    %2653 = vset.pattern.permute.xlu0 0
    %2654 = vperm.xlu0 %2653, %v2366
    %v2655 = vpop.permute.xlu0 %2654
    %2658 = vset.pattern.permute.xlu0 0
    %2659 = vperm.xlu0 %2658, %v2367
    %v2660 = vpop.permute.xlu0 %2659
    %2663 = vset.pattern.permute.xlu0 0
    %2664 = vperm.xlu0 %2663, %v2368
    %v2665 = vpop.permute.xlu0 %2664
    %2668 = vset.pattern.permute.xlu0 0
    %2669 = vperm.xlu0 %2668, %v2369
    %v2670 = vpop.permute.xlu0 %2669
    %2673 = vset.pattern.permute.xlu0 0
    %2674 = vperm.xlu0 %2673, %v2370
    %v2675 = vpop.permute.xlu0 %2674
    %2678 = vset.pattern.permute.xlu0 0
    %2679 = vperm.xlu0 %2678, %v2371
    %v2680 = vpop.permute.xlu0 %2679
    %2683 = vset.pattern.permute.xlu0 0
    %2684 = vperm.xlu0 %2683, %v2372
    %v2685 = vpop.permute.xlu0 %2684
    %2688 = vset.pattern.permute.xlu0 0
    %2689 = vperm.xlu0 %2688, %v2373
    %v2690 = vpop.permute.xlu0 %2689
    %2693 = vset.pattern.permute.xlu0 0
    %2694 = vperm.xlu0 %2693, %v2374
    %v2695 = vpop.permute.xlu0 %2694
    %v2698 = vperm.slane %v2376, 0
    %v2700 = vmul.f32 %v2380, %v2698
    %v2701 = vmul.f32 %v2385, %v2698
    %v2702 = vmul.f32 %v2390, %v2698
    %v2703 = vmul.f32 %v2395, %v2698
    %v2704 = vmul.f32 %v2400, %v2698
    %v2705 = vmul.f32 %v2405, %v2698
    %v2706 = vmul.f32 %v2410, %v2698
    %v2707 = vmul.f32 %v2415, %v2698
    %v2708 = vmul.f32 %v2420, %v2698
    %v2709 = vmul.f32 %v2425, %v2698
    %v2710 = vmul.f32 %v2430, %v2698
    %v2711 = vmul.f32 %v2435, %v2698
    %v2712 = vmul.f32 %v2440, %v2698
    %v2713 = vmul.f32 %v2445, %v2698
    %v2714 = vmul.f32 %v2450, %v2698
    %v2715 = vmul.f32 %v2455, %v2698
    %v2716 = vmul.f32 %v2460, %v2698
    %v2717 = vmul.f32 %v2465, %v2698
    %v2718 = vmul.f32 %v2470, %v2698
    %v2719 = vmul.f32 %v2475, %v2698
    %v2720 = vmul.f32 %v2480, %v2698
    %v2721 = vmul.f32 %v2485, %v2698
    %v2722 = vmul.f32 %v2490, %v2698
    %v2723 = vmul.f32 %v2495, %v2698
    %v2724 = vmul.f32 %v2500, %v2698
    %v2725 = vmul.f32 %v2505, %v2698
    %v2726 = vmul.f32 %v2510, %v2698
    %v2727 = vmul.f32 %v2515, %v2698
    %v2728 = vmul.f32 %v2520, %v2698
    %v2729 = vmul.f32 %v2525, %v2698
    %v2730 = vmul.f32 %v2530, %v2698
    %v2731 = vmul.f32 %v2535, %v2698
    %v2732 = vmul.f32 %v2540, %v2698
    %v2733 = vmul.f32 %v2545, %v2698
    %v2734 = vmul.f32 %v2550, %v2698
    %v2735 = vmul.f32 %v2555, %v2698
    %v2736 = vmul.f32 %v2560, %v2698
    %v2737 = vmul.f32 %v2565, %v2698
    %v2738 = vmul.f32 %v2570, %v2698
    %v2739 = vmul.f32 %v2575, %v2698
    %v2740 = vmul.f32 %v2580, %v2698
    %v2741 = vmul.f32 %v2585, %v2698
    %v2742 = vmul.f32 %v2590, %v2698
    %v2743 = vmul.f32 %v2595, %v2698
    %v2744 = vmul.f32 %v2600, %v2698
    %v2745 = vmul.f32 %v2605, %v2698
    %v2746 = vmul.f32 %v2610, %v2698
    %v2747 = vmul.f32 %v2615, %v2698
    %v2748 = vmul.f32 %v2620, %v2698
    %v2749 = vmul.f32 %v2625, %v2698
    %v2750 = vmul.f32 %v2630, %v2698
    %v2751 = vmul.f32 %v2635, %v2698
    %v2752 = vmul.f32 %v2640, %v2698
    %v2753 = vmul.f32 %v2645, %v2698
    %v2754 = vmul.f32 %v2650, %v2698
    %v2755 = vmul.f32 %v2655, %v2698
    %v2756 = vmul.f32 %v2660, %v2698
    %v2757 = vmul.f32 %v2665, %v2698
    %v2758 = vmul.f32 %v2670, %v2698
    %v2759 = vmul.f32 %v2675, %v2698
    %v2760 = vmul.f32 %v2680, %v2698
    %v2761 = vmul.f32 %v2685, %v2698
    %v2762 = vmul.f32 %v2690, %v2698
    %v2763 = vmul.f32 %v2695, %v2698
    %v2764 = vadd.f32 %v2247, %v2700
    %v2765 = vadd.f32 %v2248, %v2701
    %v2766 = vadd.f32 %v2249, %v2702
    %v2767 = vadd.f32 %v2250, %v2703
    %v2768 = vadd.f32 %v2251, %v2704
    %v2769 = vadd.f32 %v2252, %v2705
    %v2770 = vadd.f32 %v2253, %v2706
    %v2771 = vadd.f32 %v2254, %v2707
    %v2772 = vadd.f32 %v2255, %v2708
    %v2773 = vadd.f32 %v2256, %v2709
    %v2774 = vadd.f32 %v2257, %v2710
    %v2775 = vadd.f32 %v2258, %v2711
    %v2776 = vadd.f32 %v2259, %v2712
    %v2777 = vadd.f32 %v2260, %v2713
    %v2778 = vadd.f32 %v2261, %v2714
    %v2779 = vadd.f32 %v2262, %v2715
    %v2780 = vadd.f32 %v2263, %v2716
    %v2781 = vadd.f32 %v2264, %v2717
    %v2782 = vadd.f32 %v2265, %v2718
    %v2783 = vadd.f32 %v2266, %v2719
    %v2784 = vadd.f32 %v2267, %v2720
    %v2785 = vadd.f32 %v2268, %v2721
    %v2786 = vadd.f32 %v2269, %v2722
    %v2787 = vadd.f32 %v2270, %v2723
    %v2788 = vadd.f32 %v2271, %v2724
    %v2789 = vadd.f32 %v2272, %v2725
    %v2790 = vadd.f32 %v2273, %v2726
    %v2791 = vadd.f32 %v2274, %v2727
    %v2792 = vadd.f32 %v2275, %v2728
    %v2793 = vadd.f32 %v2276, %v2729
    %v2794 = vadd.f32 %v2277, %v2730
    %v2795 = vadd.f32 %v2278, %v2731
    %v2796 = vadd.f32 %v2279, %v2732
    %v2797 = vadd.f32 %v2280, %v2733
    %v2798 = vadd.f32 %v2281, %v2734
    %v2799 = vadd.f32 %v2282, %v2735
    %v2800 = vadd.f32 %v2283, %v2736
    %v2801 = vadd.f32 %v2284, %v2737
    %v2802 = vadd.f32 %v2285, %v2738
    %v2803 = vadd.f32 %v2286, %v2739
    %v2804 = vadd.f32 %v2287, %v2740
    %v2805 = vadd.f32 %v2288, %v2741
    %v2806 = vadd.f32 %v2289, %v2742
    %v2807 = vadd.f32 %v2290, %v2743
    %v2808 = vadd.f32 %v2291, %v2744
    %v2809 = vadd.f32 %v2292, %v2745
    %v2810 = vadd.f32 %v2293, %v2746
    %v2811 = vadd.f32 %v2294, %v2747
    %v2812 = vadd.f32 %v2295, %v2748
    %v2813 = vadd.f32 %v2296, %v2749
    %v2814 = vadd.f32 %v2297, %v2750
    %v2815 = vadd.f32 %v2298, %v2751
    %v2816 = vadd.f32 %v2299, %v2752
    %v2817 = vadd.f32 %v2300, %v2753
    %v2818 = vadd.f32 %v2301, %v2754
    %v2819 = vadd.f32 %v2302, %v2755
    %v2820 = vadd.f32 %v2303, %v2756
    %v2821 = vadd.f32 %v2304, %v2757
    %v2822 = vadd.f32 %v2305, %v2758
    %v2823 = vadd.f32 %v2306, %v2759
    %v2824 = vadd.f32 %v2307, %v2760
    %v2825 = vadd.f32 %v2308, %v2761
    %v2826 = vadd.f32 %v2309, %v2762
    %v2827 = vadd.f32 %v2310, %v2763
    %v2828 = vld [vmem:[%s179 + $0x2] sm:$0xff]
    %v2829 = vld [vmem:[%s179 + $0xa] sm:$0xff]
    %v2830 = vld [vmem:[%s179 + $0x1a] sm:$0xff]
    %v2831 = vld [vmem:[%s179 + $0x22] sm:$0xff]
    %v2832 = vld [vmem:[%s179 + $0x32] sm:$0xff]
    %v2833 = vld [vmem:[%s179 + $0x3a] sm:$0xff]
    %v2834 = vld [vmem:[%s179 + $0x4a] sm:$0xff]
    %v2835 = vld [vmem:[%s179 + $0x52] sm:$0xff]
    %v2836 = vld [vmem:[%s179 + $0x62] sm:$0xff]
    %v2837 = vld [vmem:[%s179 + $0x6a] sm:$0xff]
    %v2838 = vld [vmem:[%s179 + $0x7a] sm:$0xff]
    %v2839 = vld [vmem:[%s179 + $0x82] sm:$0xff]
    %v2840 = vld [vmem:[%s179 + $0x92] sm:$0xff]
    %v2841 = vld [vmem:[%s179 + $0x9a] sm:$0xff]
    %v2842 = vld [vmem:[%s179 + $0xaa] sm:$0xff]
    %v2843 = vld [vmem:[%s179 + $0xb2] sm:$0xff]
    %v2844 = vld [vmem:[%s179 + $0xc2] sm:$0xff]
    %v2845 = vld [vmem:[%s179 + $0xca] sm:$0xff]
    %v2846 = vld [vmem:[%s179 + $0xda] sm:$0xff]
    %v2847 = vld [vmem:[%s179 + $0xe2] sm:$0xff]
    %v2848 = vld [vmem:[%s179 + $0xf2] sm:$0xff]
    %v2849 = vld [vmem:[%s179 + $0xfa] sm:$0xff]
    %v2850 = vld [vmem:[%s179 + $0x10a] sm:$0xff]
    %v2851 = vld [vmem:[%s179 + $0x112] sm:$0xff]
    %v2852 = vld [vmem:[%s179 + $0x122] sm:$0xff]
    %v2853 = vld [vmem:[%s179 + $0x12a] sm:$0xff]
    %v2854 = vld [vmem:[%s179 + $0x13a] sm:$0xff]
    %v2855 = vld [vmem:[%s179 + $0x142] sm:$0xff]
    %v2856 = vld [vmem:[%s179 + $0x152] sm:$0xff]
    %v2857 = vld [vmem:[%s179 + $0x15a] sm:$0xff]
    %v2858 = vld [vmem:[%s179 + $0x16a] sm:$0xff]
    %v2859 = vld [vmem:[%s179 + $0x172] sm:$0xff]
    %v2860 = vld [vmem:[%s179 + $0x1b2] sm:$0xff]
    %v2861 = vld [vmem:[%s179 + $0x1ba] sm:$0xff]
    %v2862 = vld [vmem:[%s179 + $0x1ca] sm:$0xff]
    %v2863 = vld [vmem:[%s179 + $0x1d2] sm:$0xff]
    %v2864 = vld [vmem:[%s179 + $0x1e2] sm:$0xff]
    %v2865 = vld [vmem:[%s179 + $0x1ea] sm:$0xff]
    %v2866 = vld [vmem:[%s179 + $0x1fa] sm:$0xff]
    %v2867 = vld [vmem:[%s179 + $0x202] sm:$0xff]
    %v2868 = vld [vmem:[%s179 + $0x212] sm:$0xff]
    %v2869 = vld [vmem:[%s179 + $0x21a] sm:$0xff]
    %v2870 = vld [vmem:[%s179 + $0x22a] sm:$0xff]
    %v2871 = vld [vmem:[%s179 + $0x232] sm:$0xff]
    %v2872 = vld [vmem:[%s179 + $0x242] sm:$0xff]
    %v2873 = vld [vmem:[%s179 + $0x24a] sm:$0xff]
    %v2874 = vld [vmem:[%s179 + $0x25a] sm:$0xff]
    %v2875 = vld [vmem:[%s179 + $0x262] sm:$0xff]
    %v2876 = vld [vmem:[%s179 + $0x272] sm:$0xff]
    %v2877 = vld [vmem:[%s179 + $0x27a] sm:$0xff]
    %v2878 = vld [vmem:[%s179 + $0x28a] sm:$0xff]
    %v2879 = vld [vmem:[%s179 + $0x292] sm:$0xff]
    %v2880 = vld [vmem:[%s179 + $0x2a2] sm:$0xff]
    %v2881 = vld [vmem:[%s179 + $0x2aa] sm:$0xff]
    %v2882 = vld [vmem:[%s179 + $0x2ba] sm:$0xff]
    %v2883 = vld [vmem:[%s179 + $0x2c2] sm:$0xff]
    %v2884 = vld [vmem:[%s179 + $0x2d2] sm:$0xff]
    %v2885 = vld [vmem:[%s179 + $0x2da] sm:$0xff]
    %v2886 = vld [vmem:[%s179 + $0x2ea] sm:$0xff]
    %v2887 = vld [vmem:[%s179 + $0x2f2] sm:$0xff]
    %v2888 = vld [vmem:[%s179 + $0x302] sm:$0xff]
    %v2889 = vld [vmem:[%s179 + $0x30a] sm:$0xff]
    %v2890 = vld [vmem:[%s179 + $0x31a] sm:$0xff]
    %v2891 = vld [vmem:[%s179 + $0x322] sm:$0xff]
    %s2892 = scalar_lea.vmem %s1, 5
    %v2893 = vld [vmem:[%s2892] sm:$0x1]
    %2895 = vset.pattern.permute.xlu0 0
    %2896 = vperm.xlu0 %2895, %v2828
    %v2897 = vpop.permute.xlu0 %2896
    %2900 = vset.pattern.permute.xlu0 0
    %2901 = vperm.xlu0 %2900, %v2829
    %v2902 = vpop.permute.xlu0 %2901
    %2905 = vset.pattern.permute.xlu0 0
    %2906 = vperm.xlu0 %2905, %v2830
    %v2907 = vpop.permute.xlu0 %2906
    %2910 = vset.pattern.permute.xlu0 0
    %2911 = vperm.xlu0 %2910, %v2831
    %v2912 = vpop.permute.xlu0 %2911
    %2915 = vset.pattern.permute.xlu0 0
    %2916 = vperm.xlu0 %2915, %v2832
    %v2917 = vpop.permute.xlu0 %2916
    %2920 = vset.pattern.permute.xlu0 0
    %2921 = vperm.xlu0 %2920, %v2833
    %v2922 = vpop.permute.xlu0 %2921
    %2925 = vset.pattern.permute.xlu0 0
    %2926 = vperm.xlu0 %2925, %v2834
    %v2927 = vpop.permute.xlu0 %2926
    %2930 = vset.pattern.permute.xlu0 0
    %2931 = vperm.xlu0 %2930, %v2835
    %v2932 = vpop.permute.xlu0 %2931
    %2935 = vset.pattern.permute.xlu0 0
    %2936 = vperm.xlu0 %2935, %v2836
    %v2937 = vpop.permute.xlu0 %2936
    %2940 = vset.pattern.permute.xlu0 0
    %2941 = vperm.xlu0 %2940, %v2837
    %v2942 = vpop.permute.xlu0 %2941
    %2945 = vset.pattern.permute.xlu0 0
    %2946 = vperm.xlu0 %2945, %v2838
    %v2947 = vpop.permute.xlu0 %2946
    %2950 = vset.pattern.permute.xlu0 0
    %2951 = vperm.xlu0 %2950, %v2839
    %v2952 = vpop.permute.xlu0 %2951
    %2955 = vset.pattern.permute.xlu0 0
    %2956 = vperm.xlu0 %2955, %v2840
    %v2957 = vpop.permute.xlu0 %2956
    %2960 = vset.pattern.permute.xlu0 0
    %2961 = vperm.xlu0 %2960, %v2841
    %v2962 = vpop.permute.xlu0 %2961
    %2965 = vset.pattern.permute.xlu0 0
    %2966 = vperm.xlu0 %2965, %v2842
    %v2967 = vpop.permute.xlu0 %2966
    %2970 = vset.pattern.permute.xlu0 0
    %2971 = vperm.xlu0 %2970, %v2843
    %v2972 = vpop.permute.xlu0 %2971
    %2975 = vset.pattern.permute.xlu0 0
    %2976 = vperm.xlu0 %2975, %v2844
    %v2977 = vpop.permute.xlu0 %2976
    %2980 = vset.pattern.permute.xlu0 0
    %2981 = vperm.xlu0 %2980, %v2845
    %v2982 = vpop.permute.xlu0 %2981
    %2985 = vset.pattern.permute.xlu0 0
    %2986 = vperm.xlu0 %2985, %v2846
    %v2987 = vpop.permute.xlu0 %2986
    %2990 = vset.pattern.permute.xlu0 0
    %2991 = vperm.xlu0 %2990, %v2847
    %v2992 = vpop.permute.xlu0 %2991
    %2995 = vset.pattern.permute.xlu0 0
    %2996 = vperm.xlu0 %2995, %v2848
    %v2997 = vpop.permute.xlu0 %2996
    %3000 = vset.pattern.permute.xlu0 0
    %3001 = vperm.xlu0 %3000, %v2849
    %v3002 = vpop.permute.xlu0 %3001
    %3005 = vset.pattern.permute.xlu0 0
    %3006 = vperm.xlu0 %3005, %v2850
    %v3007 = vpop.permute.xlu0 %3006
    %3010 = vset.pattern.permute.xlu0 0
    %3011 = vperm.xlu0 %3010, %v2851
    %v3012 = vpop.permute.xlu0 %3011
    %3015 = vset.pattern.permute.xlu0 0
    %3016 = vperm.xlu0 %3015, %v2852
    %v3017 = vpop.permute.xlu0 %3016
    %3020 = vset.pattern.permute.xlu0 0
    %3021 = vperm.xlu0 %3020, %v2853
    %v3022 = vpop.permute.xlu0 %3021
    %3025 = vset.pattern.permute.xlu0 0
    %3026 = vperm.xlu0 %3025, %v2854
    %v3027 = vpop.permute.xlu0 %3026
    %3030 = vset.pattern.permute.xlu0 0
    %3031 = vperm.xlu0 %3030, %v2855
    %v3032 = vpop.permute.xlu0 %3031
    %3035 = vset.pattern.permute.xlu0 0
    %3036 = vperm.xlu0 %3035, %v2856
    %v3037 = vpop.permute.xlu0 %3036
    %3040 = vset.pattern.permute.xlu0 0
    %3041 = vperm.xlu0 %3040, %v2857
    %v3042 = vpop.permute.xlu0 %3041
    %3045 = vset.pattern.permute.xlu0 0
    %3046 = vperm.xlu0 %3045, %v2858
    %v3047 = vpop.permute.xlu0 %3046
    %3050 = vset.pattern.permute.xlu0 0
    %3051 = vperm.xlu0 %3050, %v2859
    %v3052 = vpop.permute.xlu0 %3051
    %3055 = vset.pattern.permute.xlu0 0
    %3056 = vperm.xlu0 %3055, %v2860
    %v3057 = vpop.permute.xlu0 %3056
    %3060 = vset.pattern.permute.xlu0 0
    %3061 = vperm.xlu0 %3060, %v2861
    %v3062 = vpop.permute.xlu0 %3061
    %3065 = vset.pattern.permute.xlu0 0
    %3066 = vperm.xlu0 %3065, %v2862
    %v3067 = vpop.permute.xlu0 %3066
    %3070 = vset.pattern.permute.xlu0 0
    %3071 = vperm.xlu0 %3070, %v2863
    %v3072 = vpop.permute.xlu0 %3071
    %3075 = vset.pattern.permute.xlu0 0
    %3076 = vperm.xlu0 %3075, %v2864
    %v3077 = vpop.permute.xlu0 %3076
    %3080 = vset.pattern.permute.xlu0 0
    %3081 = vperm.xlu0 %3080, %v2865
    %v3082 = vpop.permute.xlu0 %3081
    %3085 = vset.pattern.permute.xlu0 0
    %3086 = vperm.xlu0 %3085, %v2866
    %v3087 = vpop.permute.xlu0 %3086
    %3090 = vset.pattern.permute.xlu0 0
    %3091 = vperm.xlu0 %3090, %v2867
    %v3092 = vpop.permute.xlu0 %3091
    %3095 = vset.pattern.permute.xlu0 0
    %3096 = vperm.xlu0 %3095, %v2868
    %v3097 = vpop.permute.xlu0 %3096
    %3100 = vset.pattern.permute.xlu0 0
    %3101 = vperm.xlu0 %3100, %v2869
    %v3102 = vpop.permute.xlu0 %3101
    %3105 = vset.pattern.permute.xlu0 0
    %3106 = vperm.xlu0 %3105, %v2870
    %v3107 = vpop.permute.xlu0 %3106
    %3110 = vset.pattern.permute.xlu0 0
    %3111 = vperm.xlu0 %3110, %v2871
    %v3112 = vpop.permute.xlu0 %3111
    %3115 = vset.pattern.permute.xlu0 0
    %3116 = vperm.xlu0 %3115, %v2872
    %v3117 = vpop.permute.xlu0 %3116
    %3120 = vset.pattern.permute.xlu0 0
    %3121 = vperm.xlu0 %3120, %v2873
    %v3122 = vpop.permute.xlu0 %3121
    %3125 = vset.pattern.permute.xlu0 0
    %3126 = vperm.xlu0 %3125, %v2874
    %v3127 = vpop.permute.xlu0 %3126
    %3130 = vset.pattern.permute.xlu0 0
    %3131 = vperm.xlu0 %3130, %v2875
    %v3132 = vpop.permute.xlu0 %3131
    %3135 = vset.pattern.permute.xlu0 0
    %3136 = vperm.xlu0 %3135, %v2876
    %v3137 = vpop.permute.xlu0 %3136
    %3140 = vset.pattern.permute.xlu0 0
    %3141 = vperm.xlu0 %3140, %v2877
    %v3142 = vpop.permute.xlu0 %3141
    %3145 = vset.pattern.permute.xlu0 0
    %3146 = vperm.xlu0 %3145, %v2878
    %v3147 = vpop.permute.xlu0 %3146
    %3150 = vset.pattern.permute.xlu0 0
    %3151 = vperm.xlu0 %3150, %v2879
    %v3152 = vpop.permute.xlu0 %3151
    %3155 = vset.pattern.permute.xlu0 0
    %3156 = vperm.xlu0 %3155, %v2880
    %v3157 = vpop.permute.xlu0 %3156
    %3160 = vset.pattern.permute.xlu0 0
    %3161 = vperm.xlu0 %3160, %v2881
    %v3162 = vpop.permute.xlu0 %3161
    %3165 = vset.pattern.permute.xlu0 0
    %3166 = vperm.xlu0 %3165, %v2882
    %v3167 = vpop.permute.xlu0 %3166
    %3170 = vset.pattern.permute.xlu0 0
    %3171 = vperm.xlu0 %3170, %v2883
    %v3172 = vpop.permute.xlu0 %3171
    %3175 = vset.pattern.permute.xlu0 0
    %3176 = vperm.xlu0 %3175, %v2884
    %v3177 = vpop.permute.xlu0 %3176
    %3180 = vset.pattern.permute.xlu0 0
    %3181 = vperm.xlu0 %3180, %v2885
    %v3182 = vpop.permute.xlu0 %3181
    %3185 = vset.pattern.permute.xlu0 0
    %3186 = vperm.xlu0 %3185, %v2886
    %v3187 = vpop.permute.xlu0 %3186
    %3190 = vset.pattern.permute.xlu0 0
    %3191 = vperm.xlu0 %3190, %v2887
    %v3192 = vpop.permute.xlu0 %3191
    %3195 = vset.pattern.permute.xlu0 0
    %3196 = vperm.xlu0 %3195, %v2888
    %v3197 = vpop.permute.xlu0 %3196
    %3200 = vset.pattern.permute.xlu0 0
    %3201 = vperm.xlu0 %3200, %v2889
    %v3202 = vpop.permute.xlu0 %3201
    %3205 = vset.pattern.permute.xlu0 0
    %3206 = vperm.xlu0 %3205, %v2890
    %v3207 = vpop.permute.xlu0 %3206
    %3210 = vset.pattern.permute.xlu0 0
    %3211 = vperm.xlu0 %3210, %v2891
    %v3212 = vpop.permute.xlu0 %3211
    %v3215 = vperm.slane %v2893, 0
    %v3217 = vmul.f32 %v2897, %v3215
    %v3218 = vmul.f32 %v2902, %v3215
    %v3219 = vmul.f32 %v2907, %v3215
    %v3220 = vmul.f32 %v2912, %v3215
    %v3221 = vmul.f32 %v2917, %v3215
    %v3222 = vmul.f32 %v2922, %v3215
    %v3223 = vmul.f32 %v2927, %v3215
    %v3224 = vmul.f32 %v2932, %v3215
    %v3225 = vmul.f32 %v2937, %v3215
    %v3226 = vmul.f32 %v2942, %v3215
    %v3227 = vmul.f32 %v2947, %v3215
    %v3228 = vmul.f32 %v2952, %v3215
    %v3229 = vmul.f32 %v2957, %v3215
    %v3230 = vmul.f32 %v2962, %v3215
    %v3231 = vmul.f32 %v2967, %v3215
    %v3232 = vmul.f32 %v2972, %v3215
    %v3233 = vmul.f32 %v2977, %v3215
    %v3234 = vmul.f32 %v2982, %v3215
    %v3235 = vmul.f32 %v2987, %v3215
    %v3236 = vmul.f32 %v2992, %v3215
    %v3237 = vmul.f32 %v2997, %v3215
    %v3238 = vmul.f32 %v3002, %v3215
    %v3239 = vmul.f32 %v3007, %v3215
    %v3240 = vmul.f32 %v3012, %v3215
    %v3241 = vmul.f32 %v3017, %v3215
    %v3242 = vmul.f32 %v3022, %v3215
    %v3243 = vmul.f32 %v3027, %v3215
    %v3244 = vmul.f32 %v3032, %v3215
    %v3245 = vmul.f32 %v3037, %v3215
    %v3246 = vmul.f32 %v3042, %v3215
    %v3247 = vmul.f32 %v3047, %v3215
    %v3248 = vmul.f32 %v3052, %v3215
    %v3249 = vmul.f32 %v3057, %v3215
    %v3250 = vmul.f32 %v3062, %v3215
    %v3251 = vmul.f32 %v3067, %v3215
    %v3252 = vmul.f32 %v3072, %v3215
    %v3253 = vmul.f32 %v3077, %v3215
    %v3254 = vmul.f32 %v3082, %v3215
    %v3255 = vmul.f32 %v3087, %v3215
    %v3256 = vmul.f32 %v3092, %v3215
    %v3257 = vmul.f32 %v3097, %v3215
    %v3258 = vmul.f32 %v3102, %v3215
    %v3259 = vmul.f32 %v3107, %v3215
    %v3260 = vmul.f32 %v3112, %v3215
    %v3261 = vmul.f32 %v3117, %v3215
    %v3262 = vmul.f32 %v3122, %v3215
    %v3263 = vmul.f32 %v3127, %v3215
    %v3264 = vmul.f32 %v3132, %v3215
    %v3265 = vmul.f32 %v3137, %v3215
    %v3266 = vmul.f32 %v3142, %v3215
    %v3267 = vmul.f32 %v3147, %v3215
    %v3268 = vmul.f32 %v3152, %v3215
    %v3269 = vmul.f32 %v3157, %v3215
    %v3270 = vmul.f32 %v3162, %v3215
    %v3271 = vmul.f32 %v3167, %v3215
    %v3272 = vmul.f32 %v3172, %v3215
    %v3273 = vmul.f32 %v3177, %v3215
    %v3274 = vmul.f32 %v3182, %v3215
    %v3275 = vmul.f32 %v3187, %v3215
    %v3276 = vmul.f32 %v3192, %v3215
    %v3277 = vmul.f32 %v3197, %v3215
    %v3278 = vmul.f32 %v3202, %v3215
    %v3279 = vmul.f32 %v3207, %v3215
    %v3280 = vmul.f32 %v3212, %v3215
    %v3281 = vadd.f32 %v2764, %v3217
    %v3282 = vadd.f32 %v2765, %v3218
    %v3283 = vadd.f32 %v2766, %v3219
    %v3284 = vadd.f32 %v2767, %v3220
    %v3285 = vadd.f32 %v2768, %v3221
    %v3286 = vadd.f32 %v2769, %v3222
    %v3287 = vadd.f32 %v2770, %v3223
    %v3288 = vadd.f32 %v2771, %v3224
    %v3289 = vadd.f32 %v2772, %v3225
    %v3290 = vadd.f32 %v2773, %v3226
    %v3291 = vadd.f32 %v2774, %v3227
    %v3292 = vadd.f32 %v2775, %v3228
    %v3293 = vadd.f32 %v2776, %v3229
    %v3294 = vadd.f32 %v2777, %v3230
    %v3295 = vadd.f32 %v2778, %v3231
    %v3296 = vadd.f32 %v2779, %v3232
    %v3297 = vadd.f32 %v2780, %v3233
    %v3298 = vadd.f32 %v2781, %v3234
    %v3299 = vadd.f32 %v2782, %v3235
    %v3300 = vadd.f32 %v2783, %v3236
    %v3301 = vadd.f32 %v2784, %v3237
    %v3302 = vadd.f32 %v2785, %v3238
    %v3303 = vadd.f32 %v2786, %v3239
    %v3304 = vadd.f32 %v2787, %v3240
    %v3305 = vadd.f32 %v2788, %v3241
    %v3306 = vadd.f32 %v2789, %v3242
    %v3307 = vadd.f32 %v2790, %v3243
    %v3308 = vadd.f32 %v2791, %v3244
    %v3309 = vadd.f32 %v2792, %v3245
    %v3310 = vadd.f32 %v2793, %v3246
    %v3311 = vadd.f32 %v2794, %v3247
    %v3312 = vadd.f32 %v2795, %v3248
    %v3313 = vadd.f32 %v2796, %v3249
    %v3314 = vadd.f32 %v2797, %v3250
    %v3315 = vadd.f32 %v2798, %v3251
    %v3316 = vadd.f32 %v2799, %v3252
    %v3317 = vadd.f32 %v2800, %v3253
    %v3318 = vadd.f32 %v2801, %v3254
    %v3319 = vadd.f32 %v2802, %v3255
    %v3320 = vadd.f32 %v2803, %v3256
    %v3321 = vadd.f32 %v2804, %v3257
    %v3322 = vadd.f32 %v2805, %v3258
    %v3323 = vadd.f32 %v2806, %v3259
    %v3324 = vadd.f32 %v2807, %v3260
    %v3325 = vadd.f32 %v2808, %v3261
    %v3326 = vadd.f32 %v2809, %v3262
    %v3327 = vadd.f32 %v2810, %v3263
    %v3328 = vadd.f32 %v2811, %v3264
    %v3329 = vadd.f32 %v2812, %v3265
    %v3330 = vadd.f32 %v2813, %v3266
    %v3331 = vadd.f32 %v2814, %v3267
    %v3332 = vadd.f32 %v2815, %v3268
    %v3333 = vadd.f32 %v2816, %v3269
    %v3334 = vadd.f32 %v2817, %v3270
    %v3335 = vadd.f32 %v2818, %v3271
    %v3336 = vadd.f32 %v2819, %v3272
    %v3337 = vadd.f32 %v2820, %v3273
    %v3338 = vadd.f32 %v2821, %v3274
    %v3339 = vadd.f32 %v2822, %v3275
    %v3340 = vadd.f32 %v2823, %v3276
    %v3341 = vadd.f32 %v2824, %v3277
    %v3342 = vadd.f32 %v2825, %v3278
    %v3343 = vadd.f32 %v2826, %v3279
    %v3344 = vadd.f32 %v2827, %v3280
    %s3345 = scalar_lea.vmem [#allocation2], 48
    %v3346 = vld [vmem:[%s3345] sm:$0xff]
    %v3347 = vld [vmem:[%s3345 + $0x8] sm:$0xff]
    %v3348 = vld [vmem:[%s3345 + $0x18] sm:$0xff]
    %v3349 = vld [vmem:[%s3345 + $0x20] sm:$0xff]
    %v3350 = vld [vmem:[%s3345 + $0x30] sm:$0xff]
    %v3351 = vld [vmem:[%s3345 + $0x38] sm:$0xff]
    %v3352 = vld [vmem:[%s3345 + $0x48] sm:$0xff]
    %v3353 = vld [vmem:[%s3345 + $0x50] sm:$0xff]
    %v3354 = vld [vmem:[%s3345 + $0x60] sm:$0xff]
    %v3355 = vld [vmem:[%s3345 + $0x68] sm:$0xff]
    %v3356 = vld [vmem:[%s3345 + $0x78] sm:$0xff]
    %v3357 = vld [vmem:[%s3345 + $0x80] sm:$0xff]
    %v3358 = vld [vmem:[%s3345 + $0x90] sm:$0xff]
    %v3359 = vld [vmem:[%s3345 + $0x98] sm:$0xff]
    %v3360 = vld [vmem:[%s3345 + $0xa8] sm:$0xff]
    %v3361 = vld [vmem:[%s3345 + $0xb0] sm:$0xff]
    %v3362 = vld [vmem:[%s3345 + $0xc0] sm:$0xff]
    %v3363 = vld [vmem:[%s3345 + $0xc8] sm:$0xff]
    %v3364 = vld [vmem:[%s3345 + $0xd8] sm:$0xff]
    %v3365 = vld [vmem:[%s3345 + $0xe0] sm:$0xff]
    %v3366 = vld [vmem:[%s3345 + $0xf0] sm:$0xff]
    %v3367 = vld [vmem:[%s3345 + $0xf8] sm:$0xff]
    %v3368 = vld [vmem:[%s3345 + $0x108] sm:$0xff]
    %v3369 = vld [vmem:[%s3345 + $0x110] sm:$0xff]
    %v3370 = vld [vmem:[%s3345 + $0x120] sm:$0xff]
    %v3371 = vld [vmem:[%s3345 + $0x128] sm:$0xff]
    %v3372 = vld [vmem:[%s3345 + $0x138] sm:$0xff]
    %v3373 = vld [vmem:[%s3345 + $0x140] sm:$0xff]
    %v3374 = vld [vmem:[%s3345 + $0x150] sm:$0xff]
    %v3375 = vld [vmem:[%s3345 + $0x158] sm:$0xff]
    %v3376 = vld [vmem:[%s3345 + $0x168] sm:$0xff]
    %v3377 = vld [vmem:[%s3345 + $0x170] sm:$0xff]
    %v3378 = vld [vmem:[%s3345 + $0x1b0] sm:$0xff]
    %v3379 = vld [vmem:[%s3345 + $0x1b8] sm:$0xff]
    %v3380 = vld [vmem:[%s3345 + $0x1c8] sm:$0xff]
    %v3381 = vld [vmem:[%s3345 + $0x1d0] sm:$0xff]
    %v3382 = vld [vmem:[%s3345 + $0x1e0] sm:$0xff]
    %v3383 = vld [vmem:[%s3345 + $0x1e8] sm:$0xff]
    %v3384 = vld [vmem:[%s3345 + $0x1f8] sm:$0xff]
    %v3385 = vld [vmem:[%s3345 + $0x200] sm:$0xff]
    %v3386 = vld [vmem:[%s3345 + $0x210] sm:$0xff]
    %v3387 = vld [vmem:[%s3345 + $0x218] sm:$0xff]
    %v3388 = vld [vmem:[%s3345 + $0x228] sm:$0xff]
    %v3389 = vld [vmem:[%s3345 + $0x230] sm:$0xff]
    %v3390 = vld [vmem:[%s3345 + $0x240] sm:$0xff]
    %v3391 = vld [vmem:[%s3345 + $0x248] sm:$0xff]
    %v3392 = vld [vmem:[%s3345 + $0x258] sm:$0xff]
    %v3393 = vld [vmem:[%s3345 + $0x260] sm:$0xff]
    %v3394 = vld [vmem:[%s3345 + $0x270] sm:$0xff]
    %v3395 = vld [vmem:[%s3345 + $0x278] sm:$0xff]
    %v3396 = vld [vmem:[%s3345 + $0x288] sm:$0xff]
    %v3397 = vld [vmem:[%s3345 + $0x290] sm:$0xff]
    %v3398 = vld [vmem:[%s3345 + $0x2a0] sm:$0xff]
    %v3399 = vld [vmem:[%s3345 + $0x2a8] sm:$0xff]
    %v3400 = vld [vmem:[%s3345 + $0x2b8] sm:$0xff]
    %v3401 = vld [vmem:[%s3345 + $0x2c0] sm:$0xff]
    %v3402 = vld [vmem:[%s3345 + $0x2d0] sm:$0xff]
    %v3403 = vld [vmem:[%s3345 + $0x2d8] sm:$0xff]
    %v3404 = vld [vmem:[%s3345 + $0x2e8] sm:$0xff]
    %v3405 = vld [vmem:[%s3345 + $0x2f0] sm:$0xff]
    %v3406 = vld [vmem:[%s3345 + $0x300] sm:$0xff]
    %v3407 = vld [vmem:[%s3345 + $0x308] sm:$0xff]
    %v3408 = vld [vmem:[%s3345 + $0x318] sm:$0xff]
    %v3409 = vld [vmem:[%s3345 + $0x320] sm:$0xff]
    %s3410 = scalar_lea.vmem %s1, 6
    %v3411 = vld [vmem:[%s3410] sm:$0x1]
    %3413 = vset.pattern.permute.xlu0 0
    %3414 = vperm.xlu0 %3413, %v3346
    %v3415 = vpop.permute.xlu0 %3414
    %3418 = vset.pattern.permute.xlu0 0
    %3419 = vperm.xlu0 %3418, %v3347
    %v3420 = vpop.permute.xlu0 %3419
    %3423 = vset.pattern.permute.xlu0 0
    %3424 = vperm.xlu0 %3423, %v3348
    %v3425 = vpop.permute.xlu0 %3424
    %3428 = vset.pattern.permute.xlu0 0
    %3429 = vperm.xlu0 %3428, %v3349
    %v3430 = vpop.permute.xlu0 %3429
    %3433 = vset.pattern.permute.xlu0 0
    %3434 = vperm.xlu0 %3433, %v3350
    %v3435 = vpop.permute.xlu0 %3434
    %3438 = vset.pattern.permute.xlu0 0
    %3439 = vperm.xlu0 %3438, %v3351
    %v3440 = vpop.permute.xlu0 %3439
    %3443 = vset.pattern.permute.xlu0 0
    %3444 = vperm.xlu0 %3443, %v3352
    %v3445 = vpop.permute.xlu0 %3444
    %3448 = vset.pattern.permute.xlu0 0
    %3449 = vperm.xlu0 %3448, %v3353
    %v3450 = vpop.permute.xlu0 %3449
    %3453 = vset.pattern.permute.xlu0 0
    %3454 = vperm.xlu0 %3453, %v3354
    %v3455 = vpop.permute.xlu0 %3454
    %3458 = vset.pattern.permute.xlu0 0
    %3459 = vperm.xlu0 %3458, %v3355
    %v3460 = vpop.permute.xlu0 %3459
    %3463 = vset.pattern.permute.xlu0 0
    %3464 = vperm.xlu0 %3463, %v3356
    %v3465 = vpop.permute.xlu0 %3464
    %3468 = vset.pattern.permute.xlu0 0
    %3469 = vperm.xlu0 %3468, %v3357
    %v3470 = vpop.permute.xlu0 %3469
    %3473 = vset.pattern.permute.xlu0 0
    %3474 = vperm.xlu0 %3473, %v3358
    %v3475 = vpop.permute.xlu0 %3474
    %3478 = vset.pattern.permute.xlu0 0
    %3479 = vperm.xlu0 %3478, %v3359
    %v3480 = vpop.permute.xlu0 %3479
    %3483 = vset.pattern.permute.xlu0 0
    %3484 = vperm.xlu0 %3483, %v3360
    %v3485 = vpop.permute.xlu0 %3484
    %3488 = vset.pattern.permute.xlu0 0
    %3489 = vperm.xlu0 %3488, %v3361
    %v3490 = vpop.permute.xlu0 %3489
    %3493 = vset.pattern.permute.xlu0 0
    %3494 = vperm.xlu0 %3493, %v3362
    %v3495 = vpop.permute.xlu0 %3494
    %3498 = vset.pattern.permute.xlu0 0
    %3499 = vperm.xlu0 %3498, %v3363
    %v3500 = vpop.permute.xlu0 %3499
    %3503 = vset.pattern.permute.xlu0 0
    %3504 = vperm.xlu0 %3503, %v3364
    %v3505 = vpop.permute.xlu0 %3504
    %3508 = vset.pattern.permute.xlu0 0
    %3509 = vperm.xlu0 %3508, %v3365
    %v3510 = vpop.permute.xlu0 %3509
    %3513 = vset.pattern.permute.xlu0 0
    %3514 = vperm.xlu0 %3513, %v3366
    %v3515 = vpop.permute.xlu0 %3514
    %3518 = vset.pattern.permute.xlu0 0
    %3519 = vperm.xlu0 %3518, %v3367
    %v3520 = vpop.permute.xlu0 %3519
    %3523 = vset.pattern.permute.xlu0 0
    %3524 = vperm.xlu0 %3523, %v3368
    %v3525 = vpop.permute.xlu0 %3524
    %3528 = vset.pattern.permute.xlu0 0
    %3529 = vperm.xlu0 %3528, %v3369
    %v3530 = vpop.permute.xlu0 %3529
    %3533 = vset.pattern.permute.xlu0 0
    %3534 = vperm.xlu0 %3533, %v3370
    %v3535 = vpop.permute.xlu0 %3534
    %3538 = vset.pattern.permute.xlu0 0
    %3539 = vperm.xlu0 %3538, %v3371
    %v3540 = vpop.permute.xlu0 %3539
    %3543 = vset.pattern.permute.xlu0 0
    %3544 = vperm.xlu0 %3543, %v3372
    %v3545 = vpop.permute.xlu0 %3544
    %3548 = vset.pattern.permute.xlu0 0
    %3549 = vperm.xlu0 %3548, %v3373
    %v3550 = vpop.permute.xlu0 %3549
    %3553 = vset.pattern.permute.xlu0 0
    %3554 = vperm.xlu0 %3553, %v3374
    %v3555 = vpop.permute.xlu0 %3554
    %3558 = vset.pattern.permute.xlu0 0
    %3559 = vperm.xlu0 %3558, %v3375
    %v3560 = vpop.permute.xlu0 %3559
    %3563 = vset.pattern.permute.xlu0 0
    %3564 = vperm.xlu0 %3563, %v3376
    %v3565 = vpop.permute.xlu0 %3564
    %3568 = vset.pattern.permute.xlu0 0
    %3569 = vperm.xlu0 %3568, %v3377
    %v3570 = vpop.permute.xlu0 %3569
    %3573 = vset.pattern.permute.xlu0 0
    %3574 = vperm.xlu0 %3573, %v3378
    %v3575 = vpop.permute.xlu0 %3574
    %3578 = vset.pattern.permute.xlu0 0
    %3579 = vperm.xlu0 %3578, %v3379
    %v3580 = vpop.permute.xlu0 %3579
    %3583 = vset.pattern.permute.xlu0 0
    %3584 = vperm.xlu0 %3583, %v3380
    %v3585 = vpop.permute.xlu0 %3584
    %3588 = vset.pattern.permute.xlu0 0
    %3589 = vperm.xlu0 %3588, %v3381
    %v3590 = vpop.permute.xlu0 %3589
    %3593 = vset.pattern.permute.xlu0 0
    %3594 = vperm.xlu0 %3593, %v3382
    %v3595 = vpop.permute.xlu0 %3594
    %3598 = vset.pattern.permute.xlu0 0
    %3599 = vperm.xlu0 %3598, %v3383
    %v3600 = vpop.permute.xlu0 %3599
    %3603 = vset.pattern.permute.xlu0 0
    %3604 = vperm.xlu0 %3603, %v3384
    %v3605 = vpop.permute.xlu0 %3604
    %3608 = vset.pattern.permute.xlu0 0
    %3609 = vperm.xlu0 %3608, %v3385
    %v3610 = vpop.permute.xlu0 %3609
    %3613 = vset.pattern.permute.xlu0 0
    %3614 = vperm.xlu0 %3613, %v3386
    %v3615 = vpop.permute.xlu0 %3614
    %3618 = vset.pattern.permute.xlu0 0
    %3619 = vperm.xlu0 %3618, %v3387
    %v3620 = vpop.permute.xlu0 %3619
    %3623 = vset.pattern.permute.xlu0 0
    %3624 = vperm.xlu0 %3623, %v3388
    %v3625 = vpop.permute.xlu0 %3624
    %3628 = vset.pattern.permute.xlu0 0
    %3629 = vperm.xlu0 %3628, %v3389
    %v3630 = vpop.permute.xlu0 %3629
    %3633 = vset.pattern.permute.xlu0 0
    %3634 = vperm.xlu0 %3633, %v3390
    %v3635 = vpop.permute.xlu0 %3634
    %3638 = vset.pattern.permute.xlu0 0
    %3639 = vperm.xlu0 %3638, %v3391
    %v3640 = vpop.permute.xlu0 %3639
    %3643 = vset.pattern.permute.xlu0 0
    %3644 = vperm.xlu0 %3643, %v3392
    %v3645 = vpop.permute.xlu0 %3644
    %3648 = vset.pattern.permute.xlu0 0
    %3649 = vperm.xlu0 %3648, %v3393
    %v3650 = vpop.permute.xlu0 %3649
    %3653 = vset.pattern.permute.xlu0 0
    %3654 = vperm.xlu0 %3653, %v3394
    %v3655 = vpop.permute.xlu0 %3654
    %3658 = vset.pattern.permute.xlu0 0
    %3659 = vperm.xlu0 %3658, %v3395
    %v3660 = vpop.permute.xlu0 %3659
    %3663 = vset.pattern.permute.xlu0 0
    %3664 = vperm.xlu0 %3663, %v3396
    %v3665 = vpop.permute.xlu0 %3664
    %3668 = vset.pattern.permute.xlu0 0
    %3669 = vperm.xlu0 %3668, %v3397
    %v3670 = vpop.permute.xlu0 %3669
    %3673 = vset.pattern.permute.xlu0 0
    %3674 = vperm.xlu0 %3673, %v3398
    %v3675 = vpop.permute.xlu0 %3674
    %3678 = vset.pattern.permute.xlu0 0
    %3679 = vperm.xlu0 %3678, %v3399
    %v3680 = vpop.permute.xlu0 %3679
    %3683 = vset.pattern.permute.xlu0 0
    %3684 = vperm.xlu0 %3683, %v3400
    %v3685 = vpop.permute.xlu0 %3684
    %3688 = vset.pattern.permute.xlu0 0
    %3689 = vperm.xlu0 %3688, %v3401
    %v3690 = vpop.permute.xlu0 %3689
    %3693 = vset.pattern.permute.xlu0 0
    %3694 = vperm.xlu0 %3693, %v3402
    %v3695 = vpop.permute.xlu0 %3694
    %3698 = vset.pattern.permute.xlu0 0
    %3699 = vperm.xlu0 %3698, %v3403
    %v3700 = vpop.permute.xlu0 %3699
    %3703 = vset.pattern.permute.xlu0 0
    %3704 = vperm.xlu0 %3703, %v3404
    %v3705 = vpop.permute.xlu0 %3704
    %3708 = vset.pattern.permute.xlu0 0
    %3709 = vperm.xlu0 %3708, %v3405
    %v3710 = vpop.permute.xlu0 %3709
    %3713 = vset.pattern.permute.xlu0 0
    %3714 = vperm.xlu0 %3713, %v3406
    %v3715 = vpop.permute.xlu0 %3714
    %3718 = vset.pattern.permute.xlu0 0
    %3719 = vperm.xlu0 %3718, %v3407
    %v3720 = vpop.permute.xlu0 %3719
    %3723 = vset.pattern.permute.xlu0 0
    %3724 = vperm.xlu0 %3723, %v3408
    %v3725 = vpop.permute.xlu0 %3724
    %3728 = vset.pattern.permute.xlu0 0
    %3729 = vperm.xlu0 %3728, %v3409
    %v3730 = vpop.permute.xlu0 %3729
    %v3733 = vperm.slane %v3411, 0
    %v3735 = vmul.f32 %v3415, %v3733
    %v3736 = vmul.f32 %v3420, %v3733
    %v3737 = vmul.f32 %v3425, %v3733
    %v3738 = vmul.f32 %v3430, %v3733
    %v3739 = vmul.f32 %v3435, %v3733
    %v3740 = vmul.f32 %v3440, %v3733
    %v3741 = vmul.f32 %v3445, %v3733
    %v3742 = vmul.f32 %v3450, %v3733
    %v3743 = vmul.f32 %v3455, %v3733
    %v3744 = vmul.f32 %v3460, %v3733
    %v3745 = vmul.f32 %v3465, %v3733
    %v3746 = vmul.f32 %v3470, %v3733
    %v3747 = vmul.f32 %v3475, %v3733
    %v3748 = vmul.f32 %v3480, %v3733
    %v3749 = vmul.f32 %v3485, %v3733
    %v3750 = vmul.f32 %v3490, %v3733
    %v3751 = vmul.f32 %v3495, %v3733
    %v3752 = vmul.f32 %v3500, %v3733
    %v3753 = vmul.f32 %v3505, %v3733
    %v3754 = vmul.f32 %v3510, %v3733
    %v3755 = vmul.f32 %v3515, %v3733
    %v3756 = vmul.f32 %v3520, %v3733
    %v3757 = vmul.f32 %v3525, %v3733
    %v3758 = vmul.f32 %v3530, %v3733
    %v3759 = vmul.f32 %v3535, %v3733
    %v3760 = vmul.f32 %v3540, %v3733
    %v3761 = vmul.f32 %v3545, %v3733
    %v3762 = vmul.f32 %v3550, %v3733
    %v3763 = vmul.f32 %v3555, %v3733
    %v3764 = vmul.f32 %v3560, %v3733
    %v3765 = vmul.f32 %v3565, %v3733
    %v3766 = vmul.f32 %v3570, %v3733
    %v3767 = vmul.f32 %v3575, %v3733
    %v3768 = vmul.f32 %v3580, %v3733
    %v3769 = vmul.f32 %v3585, %v3733
    %v3770 = vmul.f32 %v3590, %v3733
    %v3771 = vmul.f32 %v3595, %v3733
    %v3772 = vmul.f32 %v3600, %v3733
    %v3773 = vmul.f32 %v3605, %v3733
    %v3774 = vmul.f32 %v3610, %v3733
    %v3775 = vmul.f32 %v3615, %v3733
    %v3776 = vmul.f32 %v3620, %v3733
    %v3777 = vmul.f32 %v3625, %v3733
    %v3778 = vmul.f32 %v3630, %v3733
    %v3779 = vmul.f32 %v3635, %v3733
    %v3780 = vmul.f32 %v3640, %v3733
    %v3781 = vmul.f32 %v3645, %v3733
    %v3782 = vmul.f32 %v3650, %v3733
    %v3783 = vmul.f32 %v3655, %v3733
    %v3784 = vmul.f32 %v3660, %v3733
    %v3785 = vmul.f32 %v3665, %v3733
    %v3786 = vmul.f32 %v3670, %v3733
    %v3787 = vmul.f32 %v3675, %v3733
    %v3788 = vmul.f32 %v3680, %v3733
    %v3789 = vmul.f32 %v3685, %v3733
    %v3790 = vmul.f32 %v3690, %v3733
    %v3791 = vmul.f32 %v3695, %v3733
    %v3792 = vmul.f32 %v3700, %v3733
    %v3793 = vmul.f32 %v3705, %v3733
    %v3794 = vmul.f32 %v3710, %v3733
    %v3795 = vmul.f32 %v3715, %v3733
    %v3796 = vmul.f32 %v3720, %v3733
    %v3797 = vmul.f32 %v3725, %v3733
    %v3798 = vmul.f32 %v3730, %v3733
    %v3799 = vadd.f32 %v3281, %v3735
    %v3800 = vadd.f32 %v3282, %v3736
    %v3801 = vadd.f32 %v3283, %v3737
    %v3802 = vadd.f32 %v3284, %v3738
    %v3803 = vadd.f32 %v3285, %v3739
    %v3804 = vadd.f32 %v3286, %v3740
    %v3805 = vadd.f32 %v3287, %v3741
    %v3806 = vadd.f32 %v3288, %v3742
    %v3807 = vadd.f32 %v3289, %v3743
    %v3808 = vadd.f32 %v3290, %v3744
    %v3809 = vadd.f32 %v3291, %v3745
    %v3810 = vadd.f32 %v3292, %v3746
    %v3811 = vadd.f32 %v3293, %v3747
    %v3812 = vadd.f32 %v3294, %v3748
    %v3813 = vadd.f32 %v3295, %v3749
    %v3814 = vadd.f32 %v3296, %v3750
    %v3815 = vadd.f32 %v3297, %v3751
    %v3816 = vadd.f32 %v3298, %v3752
    %v3817 = vadd.f32 %v3299, %v3753
    %v3818 = vadd.f32 %v3300, %v3754
    %v3819 = vadd.f32 %v3301, %v3755
    %v3820 = vadd.f32 %v3302, %v3756
    %v3821 = vadd.f32 %v3303, %v3757
    %v3822 = vadd.f32 %v3304, %v3758
    %v3823 = vadd.f32 %v3305, %v3759
    %v3824 = vadd.f32 %v3306, %v3760
    %v3825 = vadd.f32 %v3307, %v3761
    %v3826 = vadd.f32 %v3308, %v3762
    %v3827 = vadd.f32 %v3309, %v3763
    %v3828 = vadd.f32 %v3310, %v3764
    %v3829 = vadd.f32 %v3311, %v3765
    %v3830 = vadd.f32 %v3312, %v3766
    %v3831 = vadd.f32 %v3313, %v3767
    %v3832 = vadd.f32 %v3314, %v3768
    %v3833 = vadd.f32 %v3315, %v3769
    %v3834 = vadd.f32 %v3316, %v3770
    %v3835 = vadd.f32 %v3317, %v3771
    %v3836 = vadd.f32 %v3318, %v3772
    %v3837 = vadd.f32 %v3319, %v3773
    %v3838 = vadd.f32 %v3320, %v3774
    %v3839 = vadd.f32 %v3321, %v3775
    %v3840 = vadd.f32 %v3322, %v3776
    %v3841 = vadd.f32 %v3323, %v3777
    %v3842 = vadd.f32 %v3324, %v3778
    %v3843 = vadd.f32 %v3325, %v3779
    %v3844 = vadd.f32 %v3326, %v3780
    %v3845 = vadd.f32 %v3327, %v3781
    %v3846 = vadd.f32 %v3328, %v3782
    %v3847 = vadd.f32 %v3329, %v3783
    %v3848 = vadd.f32 %v3330, %v3784
    %v3849 = vadd.f32 %v3331, %v3785
    %v3850 = vadd.f32 %v3332, %v3786
    %v3851 = vadd.f32 %v3333, %v3787
    %v3852 = vadd.f32 %v3334, %v3788
    %v3853 = vadd.f32 %v3335, %v3789
    %v3854 = vadd.f32 %v3336, %v3790
    %v3855 = vadd.f32 %v3337, %v3791
    %v3856 = vadd.f32 %v3338, %v3792
    %v3857 = vadd.f32 %v3339, %v3793
    %v3858 = vadd.f32 %v3340, %v3794
    %v3859 = vadd.f32 %v3341, %v3795
    %v3860 = vadd.f32 %v3342, %v3796
    %v3861 = vadd.f32 %v3343, %v3797
    %v3862 = vadd.f32 %v3344, %v3798
    %v3863 = vld [vmem:[%s3345 + $0x1] sm:$0xff]
    %v3864 = vld [vmem:[%s3345 + $0x9] sm:$0xff]
    %v3865 = vld [vmem:[%s3345 + $0x19] sm:$0xff]
    %v3866 = vld [vmem:[%s3345 + $0x21] sm:$0xff]
    %v3867 = vld [vmem:[%s3345 + $0x31] sm:$0xff]
    %v3868 = vld [vmem:[%s3345 + $0x39] sm:$0xff]
    %v3869 = vld [vmem:[%s3345 + $0x49] sm:$0xff]
    %v3870 = vld [vmem:[%s3345 + $0x51] sm:$0xff]
    %v3871 = vld [vmem:[%s3345 + $0x61] sm:$0xff]
    %v3872 = vld [vmem:[%s3345 + $0x69] sm:$0xff]
    %v3873 = vld [vmem:[%s3345 + $0x79] sm:$0xff]
    %v3874 = vld [vmem:[%s3345 + $0x81] sm:$0xff]
    %v3875 = vld [vmem:[%s3345 + $0x91] sm:$0xff]
    %v3876 = vld [vmem:[%s3345 + $0x99] sm:$0xff]
    %v3877 = vld [vmem:[%s3345 + $0xa9] sm:$0xff]
    %v3878 = vld [vmem:[%s3345 + $0xb1] sm:$0xff]
    %v3879 = vld [vmem:[%s3345 + $0xc1] sm:$0xff]
    %v3880 = vld [vmem:[%s3345 + $0xc9] sm:$0xff]
    %v3881 = vld [vmem:[%s3345 + $0xd9] sm:$0xff]
    %v3882 = vld [vmem:[%s3345 + $0xe1] sm:$0xff]
    %v3883 = vld [vmem:[%s3345 + $0xf1] sm:$0xff]
    %v3884 = vld [vmem:[%s3345 + $0xf9] sm:$0xff]
    %v3885 = vld [vmem:[%s3345 + $0x109] sm:$0xff]
    %v3886 = vld [vmem:[%s3345 + $0x111] sm:$0xff]
    %v3887 = vld [vmem:[%s3345 + $0x121] sm:$0xff]
    %v3888 = vld [vmem:[%s3345 + $0x129] sm:$0xff]
    %v3889 = vld [vmem:[%s3345 + $0x139] sm:$0xff]
    %v3890 = vld [vmem:[%s3345 + $0x141] sm:$0xff]
    %v3891 = vld [vmem:[%s3345 + $0x151] sm:$0xff]
    %v3892 = vld [vmem:[%s3345 + $0x159] sm:$0xff]
    %v3893 = vld [vmem:[%s3345 + $0x169] sm:$0xff]
    %v3894 = vld [vmem:[%s3345 + $0x171] sm:$0xff]
    %v3895 = vld [vmem:[%s3345 + $0x1b1] sm:$0xff]
    %v3896 = vld [vmem:[%s3345 + $0x1b9] sm:$0xff]
    %v3897 = vld [vmem:[%s3345 + $0x1c9] sm:$0xff]
    %v3898 = vld [vmem:[%s3345 + $0x1d1] sm:$0xff]
    %v3899 = vld [vmem:[%s3345 + $0x1e1] sm:$0xff]
    %v3900 = vld [vmem:[%s3345 + $0x1e9] sm:$0xff]
    %v3901 = vld [vmem:[%s3345 + $0x1f9] sm:$0xff]
    %v3902 = vld [vmem:[%s3345 + $0x201] sm:$0xff]
    %v3903 = vld [vmem:[%s3345 + $0x211] sm:$0xff]
    %v3904 = vld [vmem:[%s3345 + $0x219] sm:$0xff]
    %v3905 = vld [vmem:[%s3345 + $0x229] sm:$0xff]
    %v3906 = vld [vmem:[%s3345 + $0x231] sm:$0xff]
    %v3907 = vld [vmem:[%s3345 + $0x241] sm:$0xff]
    %v3908 = vld [vmem:[%s3345 + $0x249] sm:$0xff]
    %v3909 = vld [vmem:[%s3345 + $0x259] sm:$0xff]
    %v3910 = vld [vmem:[%s3345 + $0x261] sm:$0xff]
    %v3911 = vld [vmem:[%s3345 + $0x271] sm:$0xff]
    %v3912 = vld [vmem:[%s3345 + $0x279] sm:$0xff]
    %v3913 = vld [vmem:[%s3345 + $0x289] sm:$0xff]
    %v3914 = vld [vmem:[%s3345 + $0x291] sm:$0xff]
    %v3915 = vld [vmem:[%s3345 + $0x2a1] sm:$0xff]
    %v3916 = vld [vmem:[%s3345 + $0x2a9] sm:$0xff]
    %v3917 = vld [vmem:[%s3345 + $0x2b9] sm:$0xff]
    %v3918 = vld [vmem:[%s3345 + $0x2c1] sm:$0xff]
    %v3919 = vld [vmem:[%s3345 + $0x2d1] sm:$0xff]
    %v3920 = vld [vmem:[%s3345 + $0x2d9] sm:$0xff]
    %v3921 = vld [vmem:[%s3345 + $0x2e9] sm:$0xff]
    %v3922 = vld [vmem:[%s3345 + $0x2f1] sm:$0xff]
    %v3923 = vld [vmem:[%s3345 + $0x301] sm:$0xff]
    %v3924 = vld [vmem:[%s3345 + $0x309] sm:$0xff]
    %v3925 = vld [vmem:[%s3345 + $0x319] sm:$0xff]
    %v3926 = vld [vmem:[%s3345 + $0x321] sm:$0xff]
    %s3927 = scalar_lea.vmem %s1, 7
    %v3928 = vld [vmem:[%s3927] sm:$0x1]
    %3930 = vset.pattern.permute.xlu0 0
    %3931 = vperm.xlu0 %3930, %v3863
    %v3932 = vpop.permute.xlu0 %3931
    %3935 = vset.pattern.permute.xlu0 0
    %3936 = vperm.xlu0 %3935, %v3864
    %v3937 = vpop.permute.xlu0 %3936
    %3940 = vset.pattern.permute.xlu0 0
    %3941 = vperm.xlu0 %3940, %v3865
    %v3942 = vpop.permute.xlu0 %3941
    %3945 = vset.pattern.permute.xlu0 0
    %3946 = vperm.xlu0 %3945, %v3866
    %v3947 = vpop.permute.xlu0 %3946
    %3950 = vset.pattern.permute.xlu0 0
    %3951 = vperm.xlu0 %3950, %v3867
    %v3952 = vpop.permute.xlu0 %3951
    %3955 = vset.pattern.permute.xlu0 0
    %3956 = vperm.xlu0 %3955, %v3868
    %v3957 = vpop.permute.xlu0 %3956
    %3960 = vset.pattern.permute.xlu0 0
    %3961 = vperm.xlu0 %3960, %v3869
    %v3962 = vpop.permute.xlu0 %3961
    %3965 = vset.pattern.permute.xlu0 0
    %3966 = vperm.xlu0 %3965, %v3870
    %v3967 = vpop.permute.xlu0 %3966
    %3970 = vset.pattern.permute.xlu0 0
    %3971 = vperm.xlu0 %3970, %v3871
    %v3972 = vpop.permute.xlu0 %3971
    %3975 = vset.pattern.permute.xlu0 0
    %3976 = vperm.xlu0 %3975, %v3872
    %v3977 = vpop.permute.xlu0 %3976
    %3980 = vset.pattern.permute.xlu0 0
    %3981 = vperm.xlu0 %3980, %v3873
    %v3982 = vpop.permute.xlu0 %3981
    %3985 = vset.pattern.permute.xlu0 0
    %3986 = vperm.xlu0 %3985, %v3874
    %v3987 = vpop.permute.xlu0 %3986
    %3990 = vset.pattern.permute.xlu0 0
    %3991 = vperm.xlu0 %3990, %v3875
    %v3992 = vpop.permute.xlu0 %3991
    %3995 = vset.pattern.permute.xlu0 0
    %3996 = vperm.xlu0 %3995, %v3876
    %v3997 = vpop.permute.xlu0 %3996
    %4000 = vset.pattern.permute.xlu0 0
    %4001 = vperm.xlu0 %4000, %v3877
    %v4002 = vpop.permute.xlu0 %4001
    %4005 = vset.pattern.permute.xlu0 0
    %4006 = vperm.xlu0 %4005, %v3878
    %v4007 = vpop.permute.xlu0 %4006
    %4010 = vset.pattern.permute.xlu0 0
    %4011 = vperm.xlu0 %4010, %v3879
    %v4012 = vpop.permute.xlu0 %4011
    %4015 = vset.pattern.permute.xlu0 0
    %4016 = vperm.xlu0 %4015, %v3880
    %v4017 = vpop.permute.xlu0 %4016
    %4020 = vset.pattern.permute.xlu0 0
    %4021 = vperm.xlu0 %4020, %v3881
    %v4022 = vpop.permute.xlu0 %4021
    %4025 = vset.pattern.permute.xlu0 0
    %4026 = vperm.xlu0 %4025, %v3882
    %v4027 = vpop.permute.xlu0 %4026
    %4030 = vset.pattern.permute.xlu0 0
    %4031 = vperm.xlu0 %4030, %v3883
    %v4032 = vpop.permute.xlu0 %4031
    %4035 = vset.pattern.permute.xlu0 0
    %4036 = vperm.xlu0 %4035, %v3884
    %v4037 = vpop.permute.xlu0 %4036
    %4040 = vset.pattern.permute.xlu0 0
    %4041 = vperm.xlu0 %4040, %v3885
    %v4042 = vpop.permute.xlu0 %4041
    %4045 = vset.pattern.permute.xlu0 0
    %4046 = vperm.xlu0 %4045, %v3886
    %v4047 = vpop.permute.xlu0 %4046
    %4050 = vset.pattern.permute.xlu0 0
    %4051 = vperm.xlu0 %4050, %v3887
    %v4052 = vpop.permute.xlu0 %4051
    %4055 = vset.pattern.permute.xlu0 0
    %4056 = vperm.xlu0 %4055, %v3888
    %v4057 = vpop.permute.xlu0 %4056
    %4060 = vset.pattern.permute.xlu0 0
    %4061 = vperm.xlu0 %4060, %v3889
    %v4062 = vpop.permute.xlu0 %4061
    %4065 = vset.pattern.permute.xlu0 0
    %4066 = vperm.xlu0 %4065, %v3890
    %v4067 = vpop.permute.xlu0 %4066
    %4070 = vset.pattern.permute.xlu0 0
    %4071 = vperm.xlu0 %4070, %v3891
    %v4072 = vpop.permute.xlu0 %4071
    %4075 = vset.pattern.permute.xlu0 0
    %4076 = vperm.xlu0 %4075, %v3892
    %v4077 = vpop.permute.xlu0 %4076
    %4080 = vset.pattern.permute.xlu0 0
    %4081 = vperm.xlu0 %4080, %v3893
    %v4082 = vpop.permute.xlu0 %4081
    %4085 = vset.pattern.permute.xlu0 0
    %4086 = vperm.xlu0 %4085, %v3894
    %v4087 = vpop.permute.xlu0 %4086
    %4090 = vset.pattern.permute.xlu0 0
    %4091 = vperm.xlu0 %4090, %v3895
    %v4092 = vpop.permute.xlu0 %4091
    %4095 = vset.pattern.permute.xlu0 0
    %4096 = vperm.xlu0 %4095, %v3896
    %v4097 = vpop.permute.xlu0 %4096
    %4100 = vset.pattern.permute.xlu0 0
    %4101 = vperm.xlu0 %4100, %v3897
    %v4102 = vpop.permute.xlu0 %4101
    %4105 = vset.pattern.permute.xlu0 0
    %4106 = vperm.xlu0 %4105, %v3898
    %v4107 = vpop.permute.xlu0 %4106
    %4110 = vset.pattern.permute.xlu0 0
    %4111 = vperm.xlu0 %4110, %v3899
    %v4112 = vpop.permute.xlu0 %4111
    %4115 = vset.pattern.permute.xlu0 0
    %4116 = vperm.xlu0 %4115, %v3900
    %v4117 = vpop.permute.xlu0 %4116
    %4120 = vset.pattern.permute.xlu0 0
    %4121 = vperm.xlu0 %4120, %v3901
    %v4122 = vpop.permute.xlu0 %4121
    %4125 = vset.pattern.permute.xlu0 0
    %4126 = vperm.xlu0 %4125, %v3902
    %v4127 = vpop.permute.xlu0 %4126
    %4130 = vset.pattern.permute.xlu0 0
    %4131 = vperm.xlu0 %4130, %v3903
    %v4132 = vpop.permute.xlu0 %4131
    %4135 = vset.pattern.permute.xlu0 0
    %4136 = vperm.xlu0 %4135, %v3904
    %v4137 = vpop.permute.xlu0 %4136
    %4140 = vset.pattern.permute.xlu0 0
    %4141 = vperm.xlu0 %4140, %v3905
    %v4142 = vpop.permute.xlu0 %4141
    %4145 = vset.pattern.permute.xlu0 0
    %4146 = vperm.xlu0 %4145, %v3906
    %v4147 = vpop.permute.xlu0 %4146
    %4150 = vset.pattern.permute.xlu0 0
    %4151 = vperm.xlu0 %4150, %v3907
    %v4152 = vpop.permute.xlu0 %4151
    %4155 = vset.pattern.permute.xlu0 0
    %4156 = vperm.xlu0 %4155, %v3908
    %v4157 = vpop.permute.xlu0 %4156
    %4160 = vset.pattern.permute.xlu0 0
    %4161 = vperm.xlu0 %4160, %v3909
    %v4162 = vpop.permute.xlu0 %4161
    %4165 = vset.pattern.permute.xlu0 0
    %4166 = vperm.xlu0 %4165, %v3910
    %v4167 = vpop.permute.xlu0 %4166
    %4170 = vset.pattern.permute.xlu0 0
    %4171 = vperm.xlu0 %4170, %v3911
    %v4172 = vpop.permute.xlu0 %4171
    %4175 = vset.pattern.permute.xlu0 0
    %4176 = vperm.xlu0 %4175, %v3912
    %v4177 = vpop.permute.xlu0 %4176
    %4180 = vset.pattern.permute.xlu0 0
    %4181 = vperm.xlu0 %4180, %v3913
    %v4182 = vpop.permute.xlu0 %4181
    %4185 = vset.pattern.permute.xlu0 0
    %4186 = vperm.xlu0 %4185, %v3914
    %v4187 = vpop.permute.xlu0 %4186
    %4190 = vset.pattern.permute.xlu0 0
    %4191 = vperm.xlu0 %4190, %v3915
    %v4192 = vpop.permute.xlu0 %4191
    %4195 = vset.pattern.permute.xlu0 0
    %4196 = vperm.xlu0 %4195, %v3916
    %v4197 = vpop.permute.xlu0 %4196
    %4200 = vset.pattern.permute.xlu0 0
    %4201 = vperm.xlu0 %4200, %v3917
    %v4202 = vpop.permute.xlu0 %4201
    %4205 = vset.pattern.permute.xlu0 0
    %4206 = vperm.xlu0 %4205, %v3918
    %v4207 = vpop.permute.xlu0 %4206
    %4210 = vset.pattern.permute.xlu0 0
    %4211 = vperm.xlu0 %4210, %v3919
    %v4212 = vpop.permute.xlu0 %4211
    %4215 = vset.pattern.permute.xlu0 0
    %4216 = vperm.xlu0 %4215, %v3920
    %v4217 = vpop.permute.xlu0 %4216
    %4220 = vset.pattern.permute.xlu0 0
    %4221 = vperm.xlu0 %4220, %v3921
    %v4222 = vpop.permute.xlu0 %4221
    %4225 = vset.pattern.permute.xlu0 0
    %4226 = vperm.xlu0 %4225, %v3922
    %v4227 = vpop.permute.xlu0 %4226
    %4230 = vset.pattern.permute.xlu0 0
    %4231 = vperm.xlu0 %4230, %v3923
    %v4232 = vpop.permute.xlu0 %4231
    %4235 = vset.pattern.permute.xlu0 0
    %4236 = vperm.xlu0 %4235, %v3924
    %v4237 = vpop.permute.xlu0 %4236
    %4240 = vset.pattern.permute.xlu0 0
    %4241 = vperm.xlu0 %4240, %v3925
    %v4242 = vpop.permute.xlu0 %4241
    %4245 = vset.pattern.permute.xlu0 0
    %4246 = vperm.xlu0 %4245, %v3926
    %v4247 = vpop.permute.xlu0 %4246
    %v4250 = vperm.slane %v3928, 0
    %v4252 = vmul.f32 %v3932, %v4250
    %v4253 = vmul.f32 %v3937, %v4250
    %v4254 = vmul.f32 %v3942, %v4250
    %v4255 = vmul.f32 %v3947, %v4250
    %v4256 = vmul.f32 %v3952, %v4250
    %v4257 = vmul.f32 %v3957, %v4250
    %v4258 = vmul.f32 %v3962, %v4250
    %v4259 = vmul.f32 %v3967, %v4250
    %v4260 = vmul.f32 %v3972, %v4250
    %v4261 = vmul.f32 %v3977, %v4250
    %v4262 = vmul.f32 %v3982, %v4250
    %v4263 = vmul.f32 %v3987, %v4250
    %v4264 = vmul.f32 %v3992, %v4250
    %v4265 = vmul.f32 %v3997, %v4250
    %v4266 = vmul.f32 %v4002, %v4250
    %v4267 = vmul.f32 %v4007, %v4250
    %v4268 = vmul.f32 %v4012, %v4250
    %v4269 = vmul.f32 %v4017, %v4250
    %v4270 = vmul.f32 %v4022, %v4250
    %v4271 = vmul.f32 %v4027, %v4250
    %v4272 = vmul.f32 %v4032, %v4250
    %v4273 = vmul.f32 %v4037, %v4250
    %v4274 = vmul.f32 %v4042, %v4250
    %v4275 = vmul.f32 %v4047, %v4250
    %v4276 = vmul.f32 %v4052, %v4250
    %v4277 = vmul.f32 %v4057, %v4250
    %v4278 = vmul.f32 %v4062, %v4250
    %v4279 = vmul.f32 %v4067, %v4250
    %v4280 = vmul.f32 %v4072, %v4250
    %v4281 = vmul.f32 %v4077, %v4250
    %v4282 = vmul.f32 %v4082, %v4250
    %v4283 = vmul.f32 %v4087, %v4250
    %v4284 = vmul.f32 %v4092, %v4250
    %v4285 = vmul.f32 %v4097, %v4250
    %v4286 = vmul.f32 %v4102, %v4250
    %v4287 = vmul.f32 %v4107, %v4250
    %v4288 = vmul.f32 %v4112, %v4250
    %v4289 = vmul.f32 %v4117, %v4250
    %v4290 = vmul.f32 %v4122, %v4250
    %v4291 = vmul.f32 %v4127, %v4250
    %v4292 = vmul.f32 %v4132, %v4250
    %v4293 = vmul.f32 %v4137, %v4250
    %v4294 = vmul.f32 %v4142, %v4250
    %v4295 = vmul.f32 %v4147, %v4250
    %v4296 = vmul.f32 %v4152, %v4250
    %v4297 = vmul.f32 %v4157, %v4250
    %v4298 = vmul.f32 %v4162, %v4250
    %v4299 = vmul.f32 %v4167, %v4250
    %v4300 = vmul.f32 %v4172, %v4250
    %v4301 = vmul.f32 %v4177, %v4250
    %v4302 = vmul.f32 %v4182, %v4250
    %v4303 = vmul.f32 %v4187, %v4250
    %v4304 = vmul.f32 %v4192, %v4250
    %v4305 = vmul.f32 %v4197, %v4250
    %v4306 = vmul.f32 %v4202, %v4250
    %v4307 = vmul.f32 %v4207, %v4250
    %v4308 = vmul.f32 %v4212, %v4250
    %v4309 = vmul.f32 %v4217, %v4250
    %v4310 = vmul.f32 %v4222, %v4250
    %v4311 = vmul.f32 %v4227, %v4250
    %v4312 = vmul.f32 %v4232, %v4250
    %v4313 = vmul.f32 %v4237, %v4250
    %v4314 = vmul.f32 %v4242, %v4250
    %v4315 = vmul.f32 %v4247, %v4250
    %v4316 = vadd.f32 %v3799, %v4252
    %v4317 = vadd.f32 %v3800, %v4253
    %v4318 = vadd.f32 %v3801, %v4254
    %v4319 = vadd.f32 %v3802, %v4255
    %v4320 = vadd.f32 %v3803, %v4256
    %v4321 = vadd.f32 %v3804, %v4257
    %v4322 = vadd.f32 %v3805, %v4258
    %v4323 = vadd.f32 %v3806, %v4259
    %v4324 = vadd.f32 %v3807, %v4260
    %v4325 = vadd.f32 %v3808, %v4261
    %v4326 = vadd.f32 %v3809, %v4262
    %v4327 = vadd.f32 %v3810, %v4263
    %v4328 = vadd.f32 %v3811, %v4264
    %v4329 = vadd.f32 %v3812, %v4265
    %v4330 = vadd.f32 %v3813, %v4266
    %v4331 = vadd.f32 %v3814, %v4267
    %v4332 = vadd.f32 %v3815, %v4268
    %v4333 = vadd.f32 %v3816, %v4269
    %v4334 = vadd.f32 %v3817, %v4270
    %v4335 = vadd.f32 %v3818, %v4271
    %v4336 = vadd.f32 %v3819, %v4272
    %v4337 = vadd.f32 %v3820, %v4273
    %v4338 = vadd.f32 %v3821, %v4274
    %v4339 = vadd.f32 %v3822, %v4275
    %v4340 = vadd.f32 %v3823, %v4276
    %v4341 = vadd.f32 %v3824, %v4277
    %v4342 = vadd.f32 %v3825, %v4278
    %v4343 = vadd.f32 %v3826, %v4279
    %v4344 = vadd.f32 %v3827, %v4280
    %v4345 = vadd.f32 %v3828, %v4281
    %v4346 = vadd.f32 %v3829, %v4282
    %v4347 = vadd.f32 %v3830, %v4283
    %v4348 = vadd.f32 %v3831, %v4284
    %v4349 = vadd.f32 %v3832, %v4285
    %v4350 = vadd.f32 %v3833, %v4286
    %v4351 = vadd.f32 %v3834, %v4287
    %v4352 = vadd.f32 %v3835, %v4288
    %v4353 = vadd.f32 %v3836, %v4289
    %v4354 = vadd.f32 %v3837, %v4290
    %v4355 = vadd.f32 %v3838, %v4291
    %v4356 = vadd.f32 %v3839, %v4292
    %v4357 = vadd.f32 %v3840, %v4293
    %v4358 = vadd.f32 %v3841, %v4294
    %v4359 = vadd.f32 %v3842, %v4295
    %v4360 = vadd.f32 %v3843, %v4296
    %v4361 = vadd.f32 %v3844, %v4297
    %v4362 = vadd.f32 %v3845, %v4298
    %v4363 = vadd.f32 %v3846, %v4299
    %v4364 = vadd.f32 %v3847, %v4300
    %v4365 = vadd.f32 %v3848, %v4301
    %v4366 = vadd.f32 %v3849, %v4302
    %v4367 = vadd.f32 %v3850, %v4303
    %v4368 = vadd.f32 %v3851, %v4304
    %v4369 = vadd.f32 %v3852, %v4305
    %v4370 = vadd.f32 %v3853, %v4306
    %v4371 = vadd.f32 %v3854, %v4307
    %v4372 = vadd.f32 %v3855, %v4308
    %v4373 = vadd.f32 %v3856, %v4309
    %v4374 = vadd.f32 %v3857, %v4310
    %v4375 = vadd.f32 %v3858, %v4311
    %v4376 = vadd.f32 %v3859, %v4312
    %v4377 = vadd.f32 %v3860, %v4313
    %v4378 = vadd.f32 %v3861, %v4314
    %v4379 = vadd.f32 %v3862, %v4315
    %v4380 = vld [vmem:[%s3345 + $0x2] sm:$0xff]
    %v4381 = vld [vmem:[%s3345 + $0xa] sm:$0xff]
    %v4382 = vld [vmem:[%s3345 + $0x1a] sm:$0xff]
    %v4383 = vld [vmem:[%s3345 + $0x22] sm:$0xff]
    %v4384 = vld [vmem:[%s3345 + $0x32] sm:$0xff]
    %v4385 = vld [vmem:[%s3345 + $0x3a] sm:$0xff]
    %v4386 = vld [vmem:[%s3345 + $0x4a] sm:$0xff]
    %v4387 = vld [vmem:[%s3345 + $0x52] sm:$0xff]
    %v4388 = vld [vmem:[%s3345 + $0x62] sm:$0xff]
    %v4389 = vld [vmem:[%s3345 + $0x6a] sm:$0xff]
    %v4390 = vld [vmem:[%s3345 + $0x7a] sm:$0xff]
    %v4391 = vld [vmem:[%s3345 + $0x82] sm:$0xff]
    %v4392 = vld [vmem:[%s3345 + $0x92] sm:$0xff]
    %v4393 = vld [vmem:[%s3345 + $0x9a] sm:$0xff]
    %v4394 = vld [vmem:[%s3345 + $0xaa] sm:$0xff]
    %v4395 = vld [vmem:[%s3345 + $0xb2] sm:$0xff]
    %v4396 = vld [vmem:[%s3345 + $0xc2] sm:$0xff]
    %v4397 = vld [vmem:[%s3345 + $0xca] sm:$0xff]
    %v4398 = vld [vmem:[%s3345 + $0xda] sm:$0xff]
    %v4399 = vld [vmem:[%s3345 + $0xe2] sm:$0xff]
    %v4400 = vld [vmem:[%s3345 + $0xf2] sm:$0xff]
    %v4401 = vld [vmem:[%s3345 + $0xfa] sm:$0xff]
    %v4402 = vld [vmem:[%s3345 + $0x10a] sm:$0xff]
    %v4403 = vld [vmem:[%s3345 + $0x112] sm:$0xff]
    %v4404 = vld [vmem:[%s3345 + $0x122] sm:$0xff]
    %v4405 = vld [vmem:[%s3345 + $0x12a] sm:$0xff]
    %v4406 = vld [vmem:[%s3345 + $0x13a] sm:$0xff]
    %v4407 = vld [vmem:[%s3345 + $0x142] sm:$0xff]
    %v4408 = vld [vmem:[%s3345 + $0x152] sm:$0xff]
    %v4409 = vld [vmem:[%s3345 + $0x15a] sm:$0xff]
    %v4410 = vld [vmem:[%s3345 + $0x16a] sm:$0xff]
    %v4411 = vld [vmem:[%s3345 + $0x172] sm:$0xff]
    %v4412 = vld [vmem:[%s3345 + $0x1b2] sm:$0xff]
    %v4413 = vld [vmem:[%s3345 + $0x1ba] sm:$0xff]
    %v4414 = vld [vmem:[%s3345 + $0x1ca] sm:$0xff]
    %v4415 = vld [vmem:[%s3345 + $0x1d2] sm:$0xff]
    %v4416 = vld [vmem:[%s3345 + $0x1e2] sm:$0xff]
    %v4417 = vld [vmem:[%s3345 + $0x1ea] sm:$0xff]
    %v4418 = vld [vmem:[%s3345 + $0x1fa] sm:$0xff]
    %v4419 = vld [vmem:[%s3345 + $0x202] sm:$0xff]
    %v4420 = vld [vmem:[%s3345 + $0x212] sm:$0xff]
    %v4421 = vld [vmem:[%s3345 + $0x21a] sm:$0xff]
    %v4422 = vld [vmem:[%s3345 + $0x22a] sm:$0xff]
    %v4423 = vld [vmem:[%s3345 + $0x232] sm:$0xff]
    %v4424 = vld [vmem:[%s3345 + $0x242] sm:$0xff]
    %v4425 = vld [vmem:[%s3345 + $0x24a] sm:$0xff]
    %v4426 = vld [vmem:[%s3345 + $0x25a] sm:$0xff]
    %v4427 = vld [vmem:[%s3345 + $0x262] sm:$0xff]
    %v4428 = vld [vmem:[%s3345 + $0x272] sm:$0xff]
    %v4429 = vld [vmem:[%s3345 + $0x27a] sm:$0xff]
    %v4430 = vld [vmem:[%s3345 + $0x28a] sm:$0xff]
    %v4431 = vld [vmem:[%s3345 + $0x292] sm:$0xff]
    %v4432 = vld [vmem:[%s3345 + $0x2a2] sm:$0xff]
    %v4433 = vld [vmem:[%s3345 + $0x2aa] sm:$0xff]
    %v4434 = vld [vmem:[%s3345 + $0x2ba] sm:$0xff]
    %v4435 = vld [vmem:[%s3345 + $0x2c2] sm:$0xff]
    %v4436 = vld [vmem:[%s3345 + $0x2d2] sm:$0xff]
    %v4437 = vld [vmem:[%s3345 + $0x2da] sm:$0xff]
    %v4438 = vld [vmem:[%s3345 + $0x2ea] sm:$0xff]
    %v4439 = vld [vmem:[%s3345 + $0x2f2] sm:$0xff]
    %v4440 = vld [vmem:[%s3345 + $0x302] sm:$0xff]
    %v4441 = vld [vmem:[%s3345 + $0x30a] sm:$0xff]
    %v4442 = vld [vmem:[%s3345 + $0x31a] sm:$0xff]
    %v4443 = vld [vmem:[%s3345 + $0x322] sm:$0xff]
    %s4444 = scalar_lea.vmem %s1, 8
    %v4445 = vld [vmem:[%s4444] sm:$0x1]
    %4447 = vset.pattern.permute.xlu0 0
    %4448 = vperm.xlu0 %4447, %v4380
    %v4449 = vpop.permute.xlu0 %4448
    %4452 = vset.pattern.permute.xlu0 0
    %4453 = vperm.xlu0 %4452, %v4381
    %v4454 = vpop.permute.xlu0 %4453
    %4457 = vset.pattern.permute.xlu0 0
    %4458 = vperm.xlu0 %4457, %v4382
    %v4459 = vpop.permute.xlu0 %4458
    %4462 = vset.pattern.permute.xlu0 0
    %4463 = vperm.xlu0 %4462, %v4383
    %v4464 = vpop.permute.xlu0 %4463
    %4467 = vset.pattern.permute.xlu0 0
    %4468 = vperm.xlu0 %4467, %v4384
    %v4469 = vpop.permute.xlu0 %4468
    %4472 = vset.pattern.permute.xlu0 0
    %4473 = vperm.xlu0 %4472, %v4385
    %v4474 = vpop.permute.xlu0 %4473
    %4477 = vset.pattern.permute.xlu0 0
    %4478 = vperm.xlu0 %4477, %v4386
    %v4479 = vpop.permute.xlu0 %4478
    %4482 = vset.pattern.permute.xlu0 0
    %4483 = vperm.xlu0 %4482, %v4387
    %v4484 = vpop.permute.xlu0 %4483
    %4487 = vset.pattern.permute.xlu0 0
    %4488 = vperm.xlu0 %4487, %v4388
    %v4489 = vpop.permute.xlu0 %4488
    %4492 = vset.pattern.permute.xlu0 0
    %4493 = vperm.xlu0 %4492, %v4389
    %v4494 = vpop.permute.xlu0 %4493
    %4497 = vset.pattern.permute.xlu0 0
    %4498 = vperm.xlu0 %4497, %v4390
    %v4499 = vpop.permute.xlu0 %4498
    %4502 = vset.pattern.permute.xlu0 0
    %4503 = vperm.xlu0 %4502, %v4391
    %v4504 = vpop.permute.xlu0 %4503
    %4507 = vset.pattern.permute.xlu0 0
    %4508 = vperm.xlu0 %4507, %v4392
    %v4509 = vpop.permute.xlu0 %4508
    %4512 = vset.pattern.permute.xlu0 0
    %4513 = vperm.xlu0 %4512, %v4393
    %v4514 = vpop.permute.xlu0 %4513
    %4517 = vset.pattern.permute.xlu0 0
    %4518 = vperm.xlu0 %4517, %v4394
    %v4519 = vpop.permute.xlu0 %4518
    %4522 = vset.pattern.permute.xlu0 0
    %4523 = vperm.xlu0 %4522, %v4395
    %v4524 = vpop.permute.xlu0 %4523
    %4527 = vset.pattern.permute.xlu0 0
    %4528 = vperm.xlu0 %4527, %v4396
    %v4529 = vpop.permute.xlu0 %4528
    %4532 = vset.pattern.permute.xlu0 0
    %4533 = vperm.xlu0 %4532, %v4397
    %v4534 = vpop.permute.xlu0 %4533
    %4537 = vset.pattern.permute.xlu0 0
    %4538 = vperm.xlu0 %4537, %v4398
    %v4539 = vpop.permute.xlu0 %4538
    %4542 = vset.pattern.permute.xlu0 0
    %4543 = vperm.xlu0 %4542, %v4399
    %v4544 = vpop.permute.xlu0 %4543
    %4547 = vset.pattern.permute.xlu0 0
    %4548 = vperm.xlu0 %4547, %v4400
    %v4549 = vpop.permute.xlu0 %4548
    %4552 = vset.pattern.permute.xlu0 0
    %4553 = vperm.xlu0 %4552, %v4401
    %v4554 = vpop.permute.xlu0 %4553
    %4557 = vset.pattern.permute.xlu0 0
    %4558 = vperm.xlu0 %4557, %v4402
    %v4559 = vpop.permute.xlu0 %4558
    %4562 = vset.pattern.permute.xlu0 0
    %4563 = vperm.xlu0 %4562, %v4403
    %v4564 = vpop.permute.xlu0 %4563
    %4567 = vset.pattern.permute.xlu0 0
    %4568 = vperm.xlu0 %4567, %v4404
    %v4569 = vpop.permute.xlu0 %4568
    %4572 = vset.pattern.permute.xlu0 0
    %4573 = vperm.xlu0 %4572, %v4405
    %v4574 = vpop.permute.xlu0 %4573
    %4577 = vset.pattern.permute.xlu0 0
    %4578 = vperm.xlu0 %4577, %v4406
    %v4579 = vpop.permute.xlu0 %4578
    %4582 = vset.pattern.permute.xlu0 0
    %4583 = vperm.xlu0 %4582, %v4407
    %v4584 = vpop.permute.xlu0 %4583
    %4587 = vset.pattern.permute.xlu0 0
    %4588 = vperm.xlu0 %4587, %v4408
    %v4589 = vpop.permute.xlu0 %4588
    %4592 = vset.pattern.permute.xlu0 0
    %4593 = vperm.xlu0 %4592, %v4409
    %v4594 = vpop.permute.xlu0 %4593
    %4597 = vset.pattern.permute.xlu0 0
    %4598 = vperm.xlu0 %4597, %v4410
    %v4599 = vpop.permute.xlu0 %4598
    %4602 = vset.pattern.permute.xlu0 0
    %4603 = vperm.xlu0 %4602, %v4411
    %v4604 = vpop.permute.xlu0 %4603
    %4607 = vset.pattern.permute.xlu0 0
    %4608 = vperm.xlu0 %4607, %v4412
    %v4609 = vpop.permute.xlu0 %4608
    %4612 = vset.pattern.permute.xlu0 0
    %4613 = vperm.xlu0 %4612, %v4413
    %v4614 = vpop.permute.xlu0 %4613
    %4617 = vset.pattern.permute.xlu0 0
    %4618 = vperm.xlu0 %4617, %v4414
    %v4619 = vpop.permute.xlu0 %4618
    %4622 = vset.pattern.permute.xlu0 0
    %4623 = vperm.xlu0 %4622, %v4415
    %v4624 = vpop.permute.xlu0 %4623
    %4627 = vset.pattern.permute.xlu0 0
    %4628 = vperm.xlu0 %4627, %v4416
    %v4629 = vpop.permute.xlu0 %4628
    %4632 = vset.pattern.permute.xlu0 0
    %4633 = vperm.xlu0 %4632, %v4417
    %v4634 = vpop.permute.xlu0 %4633
    %4637 = vset.pattern.permute.xlu0 0
    %4638 = vperm.xlu0 %4637, %v4418
    %v4639 = vpop.permute.xlu0 %4638
    %4642 = vset.pattern.permute.xlu0 0
    %4643 = vperm.xlu0 %4642, %v4419
    %v4644 = vpop.permute.xlu0 %4643
    %4647 = vset.pattern.permute.xlu0 0
    %4648 = vperm.xlu0 %4647, %v4420
    %v4649 = vpop.permute.xlu0 %4648
    %4652 = vset.pattern.permute.xlu0 0
    %4653 = vperm.xlu0 %4652, %v4421
    %v4654 = vpop.permute.xlu0 %4653
    %4657 = vset.pattern.permute.xlu0 0
    %4658 = vperm.xlu0 %4657, %v4422
    %v4659 = vpop.permute.xlu0 %4658
    %4662 = vset.pattern.permute.xlu0 0
    %4663 = vperm.xlu0 %4662, %v4423
    %v4664 = vpop.permute.xlu0 %4663
    %4667 = vset.pattern.permute.xlu0 0
    %4668 = vperm.xlu0 %4667, %v4424
    %v4669 = vpop.permute.xlu0 %4668
    %4672 = vset.pattern.permute.xlu0 0
    %4673 = vperm.xlu0 %4672, %v4425
    %v4674 = vpop.permute.xlu0 %4673
    %4677 = vset.pattern.permute.xlu0 0
    %4678 = vperm.xlu0 %4677, %v4426
    %v4679 = vpop.permute.xlu0 %4678
    %4682 = vset.pattern.permute.xlu0 0
    %4683 = vperm.xlu0 %4682, %v4427
    %v4684 = vpop.permute.xlu0 %4683
    %4687 = vset.pattern.permute.xlu0 0
    %4688 = vperm.xlu0 %4687, %v4428
    %v4689 = vpop.permute.xlu0 %4688
    %4692 = vset.pattern.permute.xlu0 0
    %4693 = vperm.xlu0 %4692, %v4429
    %v4694 = vpop.permute.xlu0 %4693
    %4697 = vset.pattern.permute.xlu0 0
    %4698 = vperm.xlu0 %4697, %v4430
    %v4699 = vpop.permute.xlu0 %4698
    %4702 = vset.pattern.permute.xlu0 0
    %4703 = vperm.xlu0 %4702, %v4431
    %v4704 = vpop.permute.xlu0 %4703
    %4707 = vset.pattern.permute.xlu0 0
    %4708 = vperm.xlu0 %4707, %v4432
    %v4709 = vpop.permute.xlu0 %4708
    %4712 = vset.pattern.permute.xlu0 0
    %4713 = vperm.xlu0 %4712, %v4433
    %v4714 = vpop.permute.xlu0 %4713
    %4717 = vset.pattern.permute.xlu0 0
    %4718 = vperm.xlu0 %4717, %v4434
    %v4719 = vpop.permute.xlu0 %4718
    %4722 = vset.pattern.permute.xlu0 0
    %4723 = vperm.xlu0 %4722, %v4435
    %v4724 = vpop.permute.xlu0 %4723
    %4727 = vset.pattern.permute.xlu0 0
    %4728 = vperm.xlu0 %4727, %v4436
    %v4729 = vpop.permute.xlu0 %4728
    %4732 = vset.pattern.permute.xlu0 0
    %4733 = vperm.xlu0 %4732, %v4437
    %v4734 = vpop.permute.xlu0 %4733
    %4737 = vset.pattern.permute.xlu0 0
    %4738 = vperm.xlu0 %4737, %v4438
    %v4739 = vpop.permute.xlu0 %4738
    %4742 = vset.pattern.permute.xlu0 0
    %4743 = vperm.xlu0 %4742, %v4439
    %v4744 = vpop.permute.xlu0 %4743
    %4747 = vset.pattern.permute.xlu0 0
    %4748 = vperm.xlu0 %4747, %v4440
    %v4749 = vpop.permute.xlu0 %4748
    %4752 = vset.pattern.permute.xlu0 0
    %4753 = vperm.xlu0 %4752, %v4441
    %v4754 = vpop.permute.xlu0 %4753
    %4757 = vset.pattern.permute.xlu0 0
    %4758 = vperm.xlu0 %4757, %v4442
    %v4759 = vpop.permute.xlu0 %4758
    %4762 = vset.pattern.permute.xlu0 0
    %4763 = vperm.xlu0 %4762, %v4443
    %v4764 = vpop.permute.xlu0 %4763
    %v4767 = vperm.slane %v4445, 0
    %v4769 = vmul.f32 %v4449, %v4767
    %v4770 = vmul.f32 %v4454, %v4767
    %v4771 = vmul.f32 %v4459, %v4767
    %v4772 = vmul.f32 %v4464, %v4767
    %v4773 = vmul.f32 %v4469, %v4767
    %v4774 = vmul.f32 %v4474, %v4767
    %v4775 = vmul.f32 %v4479, %v4767
    %v4776 = vmul.f32 %v4484, %v4767
    %v4777 = vmul.f32 %v4489, %v4767
    %v4778 = vmul.f32 %v4494, %v4767
    %v4779 = vmul.f32 %v4499, %v4767
    %v4780 = vmul.f32 %v4504, %v4767
    %v4781 = vmul.f32 %v4509, %v4767
    %v4782 = vmul.f32 %v4514, %v4767
    %v4783 = vmul.f32 %v4519, %v4767
    %v4784 = vmul.f32 %v4524, %v4767
    %v4785 = vmul.f32 %v4529, %v4767
    %v4786 = vmul.f32 %v4534, %v4767
    %v4787 = vmul.f32 %v4539, %v4767
    %v4788 = vmul.f32 %v4544, %v4767
    %v4789 = vmul.f32 %v4549, %v4767
    %v4790 = vmul.f32 %v4554, %v4767
    %v4791 = vmul.f32 %v4559, %v4767
    %v4792 = vmul.f32 %v4564, %v4767
    %v4793 = vmul.f32 %v4569, %v4767
    %v4794 = vmul.f32 %v4574, %v4767
    %v4795 = vmul.f32 %v4579, %v4767
    %v4796 = vmul.f32 %v4584, %v4767
    %v4797 = vmul.f32 %v4589, %v4767
    %v4798 = vmul.f32 %v4594, %v4767
    %v4799 = vmul.f32 %v4599, %v4767
    %v4800 = vmul.f32 %v4604, %v4767
    %v4801 = vmul.f32 %v4609, %v4767
    %v4802 = vmul.f32 %v4614, %v4767
    %v4803 = vmul.f32 %v4619, %v4767
    %v4804 = vmul.f32 %v4624, %v4767
    %v4805 = vmul.f32 %v4629, %v4767
    %v4806 = vmul.f32 %v4634, %v4767
    %v4807 = vmul.f32 %v4639, %v4767
    %v4808 = vmul.f32 %v4644, %v4767
    %v4809 = vmul.f32 %v4649, %v4767
    %v4810 = vmul.f32 %v4654, %v4767
    %v4811 = vmul.f32 %v4659, %v4767
    %v4812 = vmul.f32 %v4664, %v4767
    %v4813 = vmul.f32 %v4669, %v4767
    %v4814 = vmul.f32 %v4674, %v4767
    %v4815 = vmul.f32 %v4679, %v4767
    %v4816 = vmul.f32 %v4684, %v4767
    %v4817 = vmul.f32 %v4689, %v4767
    %v4818 = vmul.f32 %v4694, %v4767
    %v4819 = vmul.f32 %v4699, %v4767
    %v4820 = vmul.f32 %v4704, %v4767
    %v4821 = vmul.f32 %v4709, %v4767
    %v4822 = vmul.f32 %v4714, %v4767
    %v4823 = vmul.f32 %v4719, %v4767
    %v4824 = vmul.f32 %v4724, %v4767
    %v4825 = vmul.f32 %v4729, %v4767
    %v4826 = vmul.f32 %v4734, %v4767
    %v4827 = vmul.f32 %v4739, %v4767
    %v4828 = vmul.f32 %v4744, %v4767
    %v4829 = vmul.f32 %v4749, %v4767
    %v4830 = vmul.f32 %v4754, %v4767
    %v4831 = vmul.f32 %v4759, %v4767
    %v4832 = vmul.f32 %v4764, %v4767
    %v4833 = vadd.f32 %v4316, %v4769
    %v4834 = vadd.f32 %v4317, %v4770
    %v4835 = vadd.f32 %v4318, %v4771
    %v4836 = vadd.f32 %v4319, %v4772
    %v4837 = vadd.f32 %v4320, %v4773
    %v4838 = vadd.f32 %v4321, %v4774
    %v4839 = vadd.f32 %v4322, %v4775
    %v4840 = vadd.f32 %v4323, %v4776
    %v4841 = vadd.f32 %v4324, %v4777
    %v4842 = vadd.f32 %v4325, %v4778
    %v4843 = vadd.f32 %v4326, %v4779
    %v4844 = vadd.f32 %v4327, %v4780
    %v4845 = vadd.f32 %v4328, %v4781
    %v4846 = vadd.f32 %v4329, %v4782
    %v4847 = vadd.f32 %v4330, %v4783
    %v4848 = vadd.f32 %v4331, %v4784
    %v4849 = vadd.f32 %v4332, %v4785
    %v4850 = vadd.f32 %v4333, %v4786
    %v4851 = vadd.f32 %v4334, %v4787
    %v4852 = vadd.f32 %v4335, %v4788
    %v4853 = vadd.f32 %v4336, %v4789
    %v4854 = vadd.f32 %v4337, %v4790
    %v4855 = vadd.f32 %v4338, %v4791
    %v4856 = vadd.f32 %v4339, %v4792
    %v4857 = vadd.f32 %v4340, %v4793
    %v4858 = vadd.f32 %v4341, %v4794
    %v4859 = vadd.f32 %v4342, %v4795
    %v4860 = vadd.f32 %v4343, %v4796
    %v4861 = vadd.f32 %v4344, %v4797
    %v4862 = vadd.f32 %v4345, %v4798
    %v4863 = vadd.f32 %v4346, %v4799
    %v4864 = vadd.f32 %v4347, %v4800
    %v4865 = vadd.f32 %v4348, %v4801
    %v4866 = vadd.f32 %v4349, %v4802
    %v4867 = vadd.f32 %v4350, %v4803
    %v4868 = vadd.f32 %v4351, %v4804
    %v4869 = vadd.f32 %v4352, %v4805
    %v4870 = vadd.f32 %v4353, %v4806
    %v4871 = vadd.f32 %v4354, %v4807
    %v4872 = vadd.f32 %v4355, %v4808
    %v4873 = vadd.f32 %v4356, %v4809
    %v4874 = vadd.f32 %v4357, %v4810
    %v4875 = vadd.f32 %v4358, %v4811
    %v4876 = vadd.f32 %v4359, %v4812
    %v4877 = vadd.f32 %v4360, %v4813
    %v4878 = vadd.f32 %v4361, %v4814
    %v4879 = vadd.f32 %v4362, %v4815
    %v4880 = vadd.f32 %v4363, %v4816
    %v4881 = vadd.f32 %v4364, %v4817
    %v4882 = vadd.f32 %v4365, %v4818
    %v4883 = vadd.f32 %v4366, %v4819
    %v4884 = vadd.f32 %v4367, %v4820
    %v4885 = vadd.f32 %v4368, %v4821
    %v4886 = vadd.f32 %v4369, %v4822
    %v4887 = vadd.f32 %v4370, %v4823
    %v4888 = vadd.f32 %v4371, %v4824
    %v4889 = vadd.f32 %v4372, %v4825
    %v4890 = vadd.f32 %v4373, %v4826
    %v4891 = vadd.f32 %v4374, %v4827
    %v4892 = vadd.f32 %v4375, %v4828
    %v4893 = vadd.f32 %v4376, %v4829
    %v4894 = vadd.f32 %v4377, %v4830
    %v4895 = vadd.f32 %v4378, %v4831
    %v4896 = vadd.f32 %v4379, %v4832
    %vm4897 = vcmask 64512
    %v4898 = vsel %vm4897, %v4833, -inf
    %v4899 = vsel %vm4897, %v4835, -inf
    %v4900 = vmax.f32 %v4898, %v4899
    %v4901 = vsel %vm4897, %v4834, -inf
    %v4902 = vsel %vm4897, %v4836, -inf
    %v4903 = vmax.f32 %v4901, %v4902
    %v4904 = vsel %vm4897, %v4837, -inf
    %v4905 = vsel %vm4897, %v4839, -inf
    %v4906 = vmax.f32 %v4904, %v4905
    %v4907 = vsel %vm4897, %v4838, -inf
    %v4908 = vsel %vm4897, %v4840, -inf
    %v4909 = vmax.f32 %v4907, %v4908
    %v4910 = vsel %vm4897, %v4841, -inf
    %v4911 = vsel %vm4897, %v4843, -inf
    %v4912 = vmax.f32 %v4910, %v4911
    %v4913 = vsel %vm4897, %v4842, -inf
    %v4914 = vsel %vm4897, %v4844, -inf
    %v4915 = vmax.f32 %v4913, %v4914
    %v4916 = vsel %vm4897, %v4845, -inf
    %v4917 = vsel %vm4897, %v4847, -inf
    %v4918 = vmax.f32 %v4916, %v4917
    %v4919 = vsel %vm4897, %v4846, -inf
    %v4920 = vsel %vm4897, %v4848, -inf
    %v4921 = vmax.f32 %v4919, %v4920
    %v4922 = vsel %vm4897, %v4849, -inf
    %v4923 = vsel %vm4897, %v4851, -inf
    %v4924 = vmax.f32 %v4922, %v4923
    %v4925 = vsel %vm4897, %v4850, -inf
    %v4926 = vsel %vm4897, %v4852, -inf
    %v4927 = vmax.f32 %v4925, %v4926
    %v4928 = vsel %vm4897, %v4853, -inf
    %v4929 = vsel %vm4897, %v4855, -inf
    %v4930 = vmax.f32 %v4928, %v4929
    %v4931 = vsel %vm4897, %v4854, -inf
    %v4932 = vsel %vm4897, %v4856, -inf
    %v4933 = vmax.f32 %v4931, %v4932
    %v4934 = vsel %vm4897, %v4857, -inf
    %v4935 = vsel %vm4897, %v4859, -inf
    %v4936 = vmax.f32 %v4934, %v4935
    %v4937 = vsel %vm4897, %v4858, -inf
    %v4938 = vsel %vm4897, %v4860, -inf
    %v4939 = vmax.f32 %v4937, %v4938
    %v4940 = vsel %vm4897, %v4861, -inf
    %v4941 = vsel %vm4897, %v4863, -inf
    %v4942 = vmax.f32 %v4940, %v4941
    %v4943 = vsel %vm4897, %v4862, -inf
    %v4944 = vsel %vm4897, %v4864, -inf
    %v4945 = vmax.f32 %v4943, %v4944
    %v4946 = vsel %vm4897, %v4865, -inf
    %v4947 = vsel %vm4897, %v4867, -inf
    %v4948 = vmax.f32 %v4946, %v4947
    %v4949 = vsel %vm4897, %v4866, -inf
    %v4950 = vsel %vm4897, %v4868, -inf
    %v4951 = vmax.f32 %v4949, %v4950
    %v4952 = vsel %vm4897, %v4869, -inf
    %v4953 = vsel %vm4897, %v4871, -inf
    %v4954 = vmax.f32 %v4952, %v4953
    %v4955 = vsel %vm4897, %v4870, -inf
    %v4956 = vsel %vm4897, %v4872, -inf
    %v4957 = vmax.f32 %v4955, %v4956
    %v4958 = vsel %vm4897, %v4873, -inf
    %v4959 = vsel %vm4897, %v4875, -inf
    %v4960 = vmax.f32 %v4958, %v4959
    %v4961 = vsel %vm4897, %v4874, -inf
    %v4962 = vsel %vm4897, %v4876, -inf
    %v4963 = vmax.f32 %v4961, %v4962
    %v4964 = vsel %vm4897, %v4877, -inf
    %v4965 = vsel %vm4897, %v4879, -inf
    %v4966 = vmax.f32 %v4964, %v4965
    %v4967 = vsel %vm4897, %v4878, -inf
    %v4968 = vsel %vm4897, %v4880, -inf
    %v4969 = vmax.f32 %v4967, %v4968
    %v4970 = vsel %vm4897, %v4881, -inf
    %v4971 = vsel %vm4897, %v4883, -inf
    %v4972 = vmax.f32 %v4970, %v4971
    %v4973 = vsel %vm4897, %v4882, -inf
    %v4974 = vsel %vm4897, %v4884, -inf
    %v4975 = vmax.f32 %v4973, %v4974
    %v4976 = vsel %vm4897, %v4885, -inf
    %v4977 = vsel %vm4897, %v4887, -inf
    %v4978 = vmax.f32 %v4976, %v4977
    %v4979 = vsel %vm4897, %v4886, -inf
    %v4980 = vsel %vm4897, %v4888, -inf
    %v4981 = vmax.f32 %v4979, %v4980
    %v4982 = vsel %vm4897, %v4889, -inf
    %v4983 = vsel %vm4897, %v4891, -inf
    %v4984 = vmax.f32 %v4982, %v4983
    %v4985 = vsel %vm4897, %v4890, -inf
    %v4986 = vsel %vm4897, %v4892, -inf
    %v4987 = vmax.f32 %v4985, %v4986
    %v4988 = vsel %vm4897, %v4893, -inf
    %v4989 = vsel %vm4897, %v4895, -inf
    %v4990 = vmax.f32 %v4988, %v4989
    %v4991 = vsel %vm4897, %v4894, -inf
    %v4992 = vsel %vm4897, %v4896, -inf
    %v4993 = vmax.f32 %v4991, %v4992
    %v4994 = vld [vmem:[%s2] sm:$0x1]
    %v4996 = vperm.slane %v4994, 0
    %v4998 = vadd.f32 %v4900, %v4996
    %v4999 = vadd.f32 %v4903, %v4996
    %v5000 = vadd.f32 %v4906, %v4996
    %v5001 = vadd.f32 %v4909, %v4996
    %v5002 = vadd.f32 %v4912, %v4996
    %v5003 = vadd.f32 %v4915, %v4996
    %v5004 = vadd.f32 %v4918, %v4996
    %v5005 = vadd.f32 %v4921, %v4996
    %v5006 = vadd.f32 %v4924, %v4996
    %v5007 = vadd.f32 %v4927, %v4996
    %v5008 = vadd.f32 %v4930, %v4996
    %v5009 = vadd.f32 %v4933, %v4996
    %v5010 = vadd.f32 %v4936, %v4996
    %v5011 = vadd.f32 %v4939, %v4996
    %v5012 = vadd.f32 %v4942, %v4996
    %v5013 = vadd.f32 %v4945, %v4996
    %v5014 = vadd.f32 %v4948, %v4996
    %v5015 = vadd.f32 %v4951, %v4996
    %v5016 = vadd.f32 %v4954, %v4996
    %v5017 = vadd.f32 %v4957, %v4996
    %v5018 = vadd.f32 %v4960, %v4996
    %v5019 = vadd.f32 %v4963, %v4996
    %v5020 = vadd.f32 %v4966, %v4996
    %v5021 = vadd.f32 %v4969, %v4996
    %v5022 = vadd.f32 %v4972, %v4996
    %v5023 = vadd.f32 %v4975, %v4996
    %v5024 = vadd.f32 %v4978, %v4996
    %v5025 = vadd.f32 %v4981, %v4996
    %v5026 = vadd.f32 %v4984, %v4996
    %v5027 = vadd.f32 %v4987, %v4996
    %v5028 = vadd.f32 %v4990, %v4996
    %v5029 = vadd.f32 %v4993, %v4996
    %v5030 = vmax.f32 %v4998, 0.0
    %v5031 = vmax.f32 %v4999, 0.0
    %v5032 = vmax.f32 %v5000, 0.0
    %v5033 = vmax.f32 %v5001, 0.0
    %v5034 = vmax.f32 %v5002, 0.0
    %v5035 = vmax.f32 %v5003, 0.0
    %v5036 = vmax.f32 %v5004, 0.0
    %v5037 = vmax.f32 %v5005, 0.0
    %v5038 = vmax.f32 %v5006, 0.0
    %v5039 = vmax.f32 %v5007, 0.0
    %v5040 = vmax.f32 %v5008, 0.0
    %v5041 = vmax.f32 %v5009, 0.0
    %v5042 = vmax.f32 %v5010, 0.0
    %v5043 = vmax.f32 %v5011, 0.0
    %v5044 = vmax.f32 %v5012, 0.0
    %v5045 = vmax.f32 %v5013, 0.0
    %v5046 = vmax.f32 %v5014, 0.0
    %v5047 = vmax.f32 %v5015, 0.0
    %v5048 = vmax.f32 %v5016, 0.0
    %v5049 = vmax.f32 %v5017, 0.0
    %v5050 = vmax.f32 %v5018, 0.0
    %v5051 = vmax.f32 %v5019, 0.0
    %v5052 = vmax.f32 %v5020, 0.0
    %v5053 = vmax.f32 %v5021, 0.0
    %v5054 = vmax.f32 %v5022, 0.0
    %v5055 = vmax.f32 %v5023, 0.0
    %v5056 = vmax.f32 %v5024, 0.0
    %v5057 = vmax.f32 %v5025, 0.0
    %v5058 = vmax.f32 %v5026, 0.0
    %v5059 = vmax.f32 %v5027, 0.0
    %v5060 = vmax.f32 %v5028, 0.0
    %v5061 = vmax.f32 %v5029, 0.0
    %5062 = vst.msk [vmem:[#allocation2] sm:$0xff] %vm4897, 0.0
    %vm5063 = vcmask 58368
    %5064 = vst.msk [vmem:[#allocation2 + $0x8] sm:$0x3] %vm5063, 0.0
    %5065 = vst.msk [vmem:[#allocation2 + $0x1b0] sm:$0xff] %vm4897, 0.0
    %5066 = vst.msk [vmem:[#allocation2 + $0x1b8] sm:$0x3] %vm5063, 0.0
    %s5067 = scalar_lea.vmem [#allocation2], 216
    %5068 = vst.msk [vmem:[%s5067] sm:$0xff] %vm4897, 0.0
    %5069 = vst.msk [vmem:[%s5067 + $0x8] sm:$0x3] %vm5063, 0.0
    %5070 = vst.msk [vmem:[%s5067 + $0x1b0] sm:$0xff] %vm4897, 0.0
    %5071 = vst.msk [vmem:[%s5067 + $0x1b8] sm:$0x3] %vm5063, 0.0
    %vm5072 = vcmask 57344
    %5073 = vst.msk [vmem:[#allocation2] sm:$0x1] %vm5072, 0.0
    %5074 = vst.msk [vmem:[#allocation2 + $0x18] sm:$0x1] %vm5072, 0.0
    %5075 = vst.msk [vmem:[#allocation2 + $0x30] sm:$0x1] %vm5072, 0.0
    %5076 = vst.msk [vmem:[#allocation2 + $0x48] sm:$0x1] %vm5072, 0.0
    %5077 = vst.msk [vmem:[#allocation2 + $0x60] sm:$0x1] %vm5072, 0.0
    %5078 = vst.msk [vmem:[#allocation2 + $0x78] sm:$0x1] %vm5072, 0.0
    %5079 = vst.msk [vmem:[#allocation2 + $0x90] sm:$0x1] %vm5072, 0.0
    %5080 = vst.msk [vmem:[#allocation2 + $0xa8] sm:$0x1] %vm5072, 0.0
    %5081 = vst.msk [vmem:[#allocation2 + $0xc0] sm:$0x1] %vm5072, 0.0
    %5082 = vst.msk [vmem:[#allocation2 + $0xd8] sm:$0x1] %vm5072, 0.0
    %5083 = vst.msk [vmem:[#allocation2 + $0x1b0] sm:$0x1] %vm5072, 0.0
    %5084 = vst.msk [vmem:[#allocation2 + $0x1c8] sm:$0x1] %vm5072, 0.0
    %5085 = vst.msk [vmem:[#allocation2 + $0x1e0] sm:$0x1] %vm5072, 0.0
    %5086 = vst.msk [vmem:[#allocation2 + $0x1f8] sm:$0x1] %vm5072, 0.0
    %5087 = vst.msk [vmem:[#allocation2 + $0x210] sm:$0x1] %vm5072, 0.0
    %5088 = vst.msk [vmem:[#allocation2 + $0x228] sm:$0x1] %vm5072, 0.0
    %5089 = vst.msk [vmem:[#allocation2 + $0x240] sm:$0x1] %vm5072, 0.0
    %5090 = vst.msk [vmem:[#allocation2 + $0x258] sm:$0x1] %vm5072, 0.0
    %5091 = vst.msk [vmem:[#allocation2 + $0x270] sm:$0x1] %vm5072, 0.0
    %5092 = vst.msk [vmem:[#allocation2 + $0x288] sm:$0x1] %vm5072, 0.0
    %5093 = vst.msk [vmem:[#allocation2 + $0x9] sm:$0x1] %vm5072, 0.0
    %5094 = vst.msk [vmem:[#allocation2 + $0x21] sm:$0x1] %vm5072, 0.0
    %5095 = vst.msk [vmem:[#allocation2 + $0x39] sm:$0x1] %vm5072, 0.0
    %5096 = vst.msk [vmem:[#allocation2 + $0x51] sm:$0x1] %vm5072, 0.0
    %5097 = vst.msk [vmem:[#allocation2 + $0x69] sm:$0x1] %vm5072, 0.0
    %5098 = vst.msk [vmem:[#allocation2 + $0x81] sm:$0x1] %vm5072, 0.0
    %5099 = vst.msk [vmem:[#allocation2 + $0x99] sm:$0x1] %vm5072, 0.0
    %5100 = vst.msk [vmem:[#allocation2 + $0xb1] sm:$0x1] %vm5072, 0.0
    %5101 = vst.msk [vmem:[#allocation2 + $0xc9] sm:$0x1] %vm5072, 0.0
    %5102 = vst.msk [vmem:[#allocation2 + $0xe1] sm:$0x1] %vm5072, 0.0
    %5103 = vst.msk [vmem:[#allocation2 + $0x1b9] sm:$0x1] %vm5072, 0.0
    %5104 = vst.msk [vmem:[#allocation2 + $0x1d1] sm:$0x1] %vm5072, 0.0
    %5105 = vst.msk [vmem:[#allocation2 + $0x1e9] sm:$0x1] %vm5072, 0.0
    %5106 = vst.msk [vmem:[#allocation2 + $0x201] sm:$0x1] %vm5072, 0.0
    %5107 = vst.msk [vmem:[#allocation2 + $0x219] sm:$0x1] %vm5072, 0.0
    %5108 = vst.msk [vmem:[#allocation2 + $0x231] sm:$0x1] %vm5072, 0.0
    %5109 = vst.msk [vmem:[#allocation2 + $0x249] sm:$0x1] %vm5072, 0.0
    %5110 = vst.msk [vmem:[#allocation2 + $0x261] sm:$0x1] %vm5072, 0.0
    %5111 = vst.msk [vmem:[#allocation2 + $0x279] sm:$0x1] %vm5072, 0.0
    %5112 = vst.msk [vmem:[#allocation2 + $0x291] sm:$0x1] %vm5072, 0.0
    %v5129 = vrot.slane %v5030, 1
    %v5130 = vrot.slane %v5032, 1
    %v5131 = vrot.slane %v5034, 1
    %v5132 = vrot.slane %v5036, 1
    %v5133 = vrot.slane %v5038, 1
    %v5134 = vrot.slane %v5040, 1
    %v5135 = vrot.slane %v5042, 1
    %v5136 = vrot.slane %v5044, 1
    %v5137 = vrot.slane %v5046, 1
    %v5138 = vrot.slane %v5048, 1
    %v5139 = vrot.slane %v5050, 1
    %v5140 = vrot.slane %v5052, 1
    %v5141 = vrot.slane %v5054, 1
    %v5142 = vrot.slane %v5056, 1
    %v5143 = vrot.slane %v5058, 1
    %v5144 = vrot.slane %v5060, 1
    %v5161 = vmax.f32 %v5030, %v5129
    %v5162 = vmax.f32 %v5032, %v5130
    %v5163 = vmax.f32 %v5034, %v5131
    %v5164 = vmax.f32 %v5036, %v5132
    %v5165 = vmax.f32 %v5038, %v5133
    %v5166 = vmax.f32 %v5040, %v5134
    %v5167 = vmax.f32 %v5042, %v5135
    %v5168 = vmax.f32 %v5044, %v5136
    %v5169 = vmax.f32 %v5046, %v5137
    %v5170 = vmax.f32 %v5048, %v5138
    %v5171 = vmax.f32 %v5050, %v5139
    %v5172 = vmax.f32 %v5052, %v5140
    %v5173 = vmax.f32 %v5054, %v5141
    %v5174 = vmax.f32 %v5056, %v5142
    %v5175 = vmax.f32 %v5058, %v5143
    %v5176 = vmax.f32 %v5060, %v5144
    %5177 = vst.msk [vmem:[%s179 + $0x1] sm:$0x1] %vm5072, %v5161
    %5178 = vst.msk [vmem:[%s179 + $0x19] sm:$0x1] %vm5072, %v5162
    %5179 = vst.msk [vmem:[%s179 + $0x31] sm:$0x1] %vm5072, %v5163
    %5180 = vst.msk [vmem:[%s179 + $0x49] sm:$0x1] %vm5072, %v5164
    %5181 = vst.msk [vmem:[%s179 + $0x61] sm:$0x1] %vm5072, %v5165
    %5182 = vst.msk [vmem:[%s179 + $0x79] sm:$0x1] %vm5072, %v5166
    %5183 = vst.msk [vmem:[%s179 + $0x91] sm:$0x1] %vm5072, %v5167
    %5184 = vst.msk [vmem:[%s179 + $0xa9] sm:$0x1] %vm5072, %v5168
    %5185 = vst.msk [vmem:[%s179 + $0x1b1] sm:$0x1] %vm5072, %v5169
    %5186 = vst.msk [vmem:[%s179 + $0x1c9] sm:$0x1] %vm5072, %v5170
    %5187 = vst.msk [vmem:[%s179 + $0x1e1] sm:$0x1] %vm5072, %v5171
    %5188 = vst.msk [vmem:[%s179 + $0x1f9] sm:$0x1] %vm5072, %v5172
    %5189 = vst.msk [vmem:[%s179 + $0x211] sm:$0x1] %vm5072, %v5173
    %5190 = vst.msk [vmem:[%s179 + $0x229] sm:$0x1] %vm5072, %v5174
    %5191 = vst.msk [vmem:[%s179 + $0x241] sm:$0x1] %vm5072, %v5175
    %5192 = vst.msk [vmem:[%s179 + $0x259] sm:$0x1] %vm5072, %v5176
    %vm5193 = vcmask 59394
    %5194 = vst.msk [vmem:[%s179] sm:$0x4] %vm5193, %v5161
    %5195 = vst.msk [vmem:[%s179 + $0x18] sm:$0x4] %vm5193, %v5162
    %5196 = vst.msk [vmem:[%s179 + $0x30] sm:$0x4] %vm5193, %v5163
    %5197 = vst.msk [vmem:[%s179 + $0x48] sm:$0x4] %vm5193, %v5164
    %5198 = vst.msk [vmem:[%s179 + $0x60] sm:$0x4] %vm5193, %v5165
    %5199 = vst.msk [vmem:[%s179 + $0x78] sm:$0x4] %vm5193, %v5166
    %5200 = vst.msk [vmem:[%s179 + $0x90] sm:$0x4] %vm5193, %v5167
    %5201 = vst.msk [vmem:[%s179 + $0xa8] sm:$0x4] %vm5193, %v5168
    %5202 = vst.msk [vmem:[%s179 + $0x1b0] sm:$0x4] %vm5193, %v5169
    %5203 = vst.msk [vmem:[%s179 + $0x1c8] sm:$0x4] %vm5193, %v5170
    %5204 = vst.msk [vmem:[%s179 + $0x1e0] sm:$0x4] %vm5193, %v5171
    %5205 = vst.msk [vmem:[%s179 + $0x1f8] sm:$0x4] %vm5193, %v5172
    %5206 = vst.msk [vmem:[%s179 + $0x210] sm:$0x4] %vm5193, %v5173
    %5207 = vst.msk [vmem:[%s179 + $0x228] sm:$0x4] %vm5193, %v5174
    %5208 = vst.msk [vmem:[%s179 + $0x240] sm:$0x4] %vm5193, %v5175
    %5209 = vst.msk [vmem:[%s179 + $0x258] sm:$0x4] %vm5193, %v5176
    %vm5210 = vcmask 61444
    %5211 = vst.msk [vmem:[%s179 - $0x1] sm:$0x10] %vm5210, %v5161
    %5212 = vst.msk [vmem:[%s179 + $0x17] sm:$0x10] %vm5210, %v5162
    %5213 = vst.msk [vmem:[%s179 + $0x2f] sm:$0x10] %vm5210, %v5163
    %5214 = vst.msk [vmem:[%s179 + $0x47] sm:$0x10] %vm5210, %v5164
    %5215 = vst.msk [vmem:[%s179 + $0x5f] sm:$0x10] %vm5210, %v5165
    %5216 = vst.msk [vmem:[%s179 + $0x77] sm:$0x10] %vm5210, %v5166
    %5217 = vst.msk [vmem:[%s179 + $0x8f] sm:$0x10] %vm5210, %v5167
    %5218 = vst.msk [vmem:[%s179 + $0xa7] sm:$0x10] %vm5210, %v5168
    %5219 = vst.msk [vmem:[%s179 + $0x1af] sm:$0x10] %vm5210, %v5169
    %5220 = vst.msk [vmem:[%s179 + $0x1c7] sm:$0x10] %vm5210, %v5170
    %5221 = vst.msk [vmem:[%s179 + $0x1df] sm:$0x10] %vm5210, %v5171
    %5222 = vst.msk [vmem:[%s179 + $0x1f7] sm:$0x10] %vm5210, %v5172
    %5223 = vst.msk [vmem:[%s179 + $0x20f] sm:$0x10] %vm5210, %v5173
    %5224 = vst.msk [vmem:[%s179 + $0x227] sm:$0x10] %vm5210, %v5174
    %5225 = vst.msk [vmem:[%s179 + $0x23f] sm:$0x10] %vm5210, %v5175
    %5226 = vst.msk [vmem:[%s179 + $0x257] sm:$0x10] %vm5210, %v5176
    %vm5227 = vcmask 63494
    %5228 = vst.msk [vmem:[%s179 - $0x2] sm:$0x40] %vm5227, %v5161
    %5229 = vst.msk [vmem:[%s179 + $0x16] sm:$0x40] %vm5227, %v5162
    %5230 = vst.msk [vmem:[%s179 + $0x2e] sm:$0x40] %vm5227, %v5163
    %5231 = vst.msk [vmem:[%s179 + $0x46] sm:$0x40] %vm5227, %v5164
    %5232 = vst.msk [vmem:[%s179 + $0x5e] sm:$0x40] %vm5227, %v5165
    %5233 = vst.msk [vmem:[%s179 + $0x76] sm:$0x40] %vm5227, %v5166
    %5234 = vst.msk [vmem:[%s179 + $0x8e] sm:$0x40] %vm5227, %v5167
    %5235 = vst.msk [vmem:[%s179 + $0xa6] sm:$0x40] %vm5227, %v5168
    %5236 = vst.msk [vmem:[%s179 + $0x1ae] sm:$0x40] %vm5227, %v5169
    %5237 = vst.msk [vmem:[%s179 + $0x1c6] sm:$0x40] %vm5227, %v5170
    %5238 = vst.msk [vmem:[%s179 + $0x1de] sm:$0x40] %vm5227, %v5171
    %5239 = vst.msk [vmem:[%s179 + $0x1f6] sm:$0x40] %vm5227, %v5172
    %5240 = vst.msk [vmem:[%s179 + $0x20e] sm:$0x40] %vm5227, %v5173
    %5241 = vst.msk [vmem:[%s179 + $0x226] sm:$0x40] %vm5227, %v5174
    %5242 = vst.msk [vmem:[%s179 + $0x23e] sm:$0x40] %vm5227, %v5175
    %5243 = vst.msk [vmem:[%s179 + $0x256] sm:$0x40] %vm5227, %v5176
    %v5260 = vrot.slane %v5031, 1
    %v5261 = vrot.slane %v5033, 1
    %v5262 = vrot.slane %v5035, 1
    %v5263 = vrot.slane %v5037, 1
    %v5264 = vrot.slane %v5039, 1
    %v5265 = vrot.slane %v5041, 1
    %v5266 = vrot.slane %v5043, 1
    %v5267 = vrot.slane %v5045, 1
    %v5268 = vrot.slane %v5047, 1
    %v5269 = vrot.slane %v5049, 1
    %v5270 = vrot.slane %v5051, 1
    %v5271 = vrot.slane %v5053, 1
    %v5272 = vrot.slane %v5055, 1
    %v5273 = vrot.slane %v5057, 1
    %v5274 = vrot.slane %v5059, 1
    %v5275 = vrot.slane %v5061, 1
    %v5292 = vmax.f32 %v5031, %v5260
    %v5293 = vmax.f32 %v5033, %v5261
    %v5294 = vmax.f32 %v5035, %v5262
    %v5295 = vmax.f32 %v5037, %v5263
    %v5296 = vmax.f32 %v5039, %v5264
    %v5297 = vmax.f32 %v5041, %v5265
    %v5298 = vmax.f32 %v5043, %v5266
    %v5299 = vmax.f32 %v5045, %v5267
    %v5300 = vmax.f32 %v5047, %v5268
    %v5301 = vmax.f32 %v5049, %v5269
    %v5302 = vmax.f32 %v5051, %v5270
    %v5303 = vmax.f32 %v5053, %v5271
    %v5304 = vmax.f32 %v5055, %v5272
    %v5305 = vmax.f32 %v5057, %v5273
    %v5306 = vmax.f32 %v5059, %v5274
    %v5307 = vmax.f32 %v5061, %v5275
    %5308 = vst.msk [vmem:[%s179 + $0x5] sm:$0x1] %vm5072, %v5292
    %5309 = vst.msk [vmem:[%s179 + $0x1d] sm:$0x1] %vm5072, %v5293
    %5310 = vst.msk [vmem:[%s179 + $0x35] sm:$0x1] %vm5072, %v5294
    %5311 = vst.msk [vmem:[%s179 + $0x4d] sm:$0x1] %vm5072, %v5295
    %5312 = vst.msk [vmem:[%s179 + $0x65] sm:$0x1] %vm5072, %v5296
    %5313 = vst.msk [vmem:[%s179 + $0x7d] sm:$0x1] %vm5072, %v5297
    %5314 = vst.msk [vmem:[%s179 + $0x95] sm:$0x1] %vm5072, %v5298
    %5315 = vst.msk [vmem:[%s179 + $0xad] sm:$0x1] %vm5072, %v5299
    %5316 = vst.msk [vmem:[%s179 + $0x1b5] sm:$0x1] %vm5072, %v5300
    %5317 = vst.msk [vmem:[%s179 + $0x1cd] sm:$0x1] %vm5072, %v5301
    %5318 = vst.msk [vmem:[%s179 + $0x1e5] sm:$0x1] %vm5072, %v5302
    %5319 = vst.msk [vmem:[%s179 + $0x1fd] sm:$0x1] %vm5072, %v5303
    %5320 = vst.msk [vmem:[%s179 + $0x215] sm:$0x1] %vm5072, %v5304
    %5321 = vst.msk [vmem:[%s179 + $0x22d] sm:$0x1] %vm5072, %v5305
    %5322 = vst.msk [vmem:[%s179 + $0x245] sm:$0x1] %vm5072, %v5306
    %5323 = vst.msk [vmem:[%s179 + $0x25d] sm:$0x1] %vm5072, %v5307
    %5324 = vst.msk [vmem:[%s179 + $0x4] sm:$0x4] %vm5193, %v5292
    %5325 = vst.msk [vmem:[%s179 + $0x1c] sm:$0x4] %vm5193, %v5293
    %5326 = vst.msk [vmem:[%s179 + $0x34] sm:$0x4] %vm5193, %v5294
    %5327 = vst.msk [vmem:[%s179 + $0x4c] sm:$0x4] %vm5193, %v5295
    %5328 = vst.msk [vmem:[%s179 + $0x64] sm:$0x4] %vm5193, %v5296
    %5329 = vst.msk [vmem:[%s179 + $0x7c] sm:$0x4] %vm5193, %v5297
    %5330 = vst.msk [vmem:[%s179 + $0x94] sm:$0x4] %vm5193, %v5298
    %5331 = vst.msk [vmem:[%s179 + $0xac] sm:$0x4] %vm5193, %v5299
    %5332 = vst.msk [vmem:[%s179 + $0x1b4] sm:$0x4] %vm5193, %v5300
    %5333 = vst.msk [vmem:[%s179 + $0x1cc] sm:$0x4] %vm5193, %v5301
    %5334 = vst.msk [vmem:[%s179 + $0x1e4] sm:$0x4] %vm5193, %v5302
    %5335 = vst.msk [vmem:[%s179 + $0x1fc] sm:$0x4] %vm5193, %v5303
    %5336 = vst.msk [vmem:[%s179 + $0x214] sm:$0x4] %vm5193, %v5304
    %5337 = vst.msk [vmem:[%s179 + $0x22c] sm:$0x4] %vm5193, %v5305
    %5338 = vst.msk [vmem:[%s179 + $0x244] sm:$0x4] %vm5193, %v5306
    %5339 = vst.msk [vmem:[%s179 + $0x25c] sm:$0x4] %vm5193, %v5307
    %5340 = vst.msk [vmem:[%s179 + $0x3] sm:$0x10] %vm5210, %v5292
    %5341 = vst.msk [vmem:[%s179 + $0x1b] sm:$0x10] %vm5210, %v5293
    %5342 = vst.msk [vmem:[%s179 + $0x33] sm:$0x10] %vm5210, %v5294
    %5343 = vst.msk [vmem:[%s179 + $0x4b] sm:$0x10] %vm5210, %v5295
    %5344 = vst.msk [vmem:[%s179 + $0x63] sm:$0x10] %vm5210, %v5296
    %5345 = vst.msk [vmem:[%s179 + $0x7b] sm:$0x10] %vm5210, %v5297
    %5346 = vst.msk [vmem:[%s179 + $0x93] sm:$0x10] %vm5210, %v5298
    %5347 = vst.msk [vmem:[%s179 + $0xab] sm:$0x10] %vm5210, %v5299
    %5348 = vst.msk [vmem:[%s179 + $0x1b3] sm:$0x10] %vm5210, %v5300
    %5349 = vst.msk [vmem:[%s179 + $0x1cb] sm:$0x10] %vm5210, %v5301
    %5350 = vst.msk [vmem:[%s179 + $0x1e3] sm:$0x10] %vm5210, %v5302
    %5351 = vst.msk [vmem:[%s179 + $0x1fb] sm:$0x10] %vm5210, %v5303
    %5352 = vst.msk [vmem:[%s179 + $0x213] sm:$0x10] %vm5210, %v5304
    %5353 = vst.msk [vmem:[%s179 + $0x22b] sm:$0x10] %vm5210, %v5305
    %5354 = vst.msk [vmem:[%s179 + $0x243] sm:$0x10] %vm5210, %v5306
    %5355 = vst.msk [vmem:[%s179 + $0x25b] sm:$0x10] %vm5210, %v5307
    %5356 = vst.msk [vmem:[%s179 + $0x2] sm:$0x40] %vm5227, %v5292
    %5357 = vst.msk [vmem:[%s179 + $0x1a] sm:$0x40] %vm5227, %v5293
    %5358 = vst.msk [vmem:[%s179 + $0x32] sm:$0x40] %vm5227, %v5294
    %5359 = vst.msk [vmem:[%s179 + $0x4a] sm:$0x40] %vm5227, %v5295
    %5360 = vst.msk [vmem:[%s179 + $0x62] sm:$0x40] %vm5227, %v5296
    %5361 = vst.msk [vmem:[%s179 + $0x7a] sm:$0x40] %vm5227, %v5297
    %5362 = vst.msk [vmem:[%s179 + $0x92] sm:$0x40] %vm5227, %v5298
    %5363 = vst.msk [vmem:[%s179 + $0xaa] sm:$0x40] %vm5227, %v5299
    %5364 = vst.msk [vmem:[%s179 + $0x1b2] sm:$0x40] %vm5227, %v5300
    %5365 = vst.msk [vmem:[%s179 + $0x1ca] sm:$0x40] %vm5227, %v5301
    %5366 = vst.msk [vmem:[%s179 + $0x1e2] sm:$0x40] %vm5227, %v5302
    %5367 = vst.msk [vmem:[%s179 + $0x1fa] sm:$0x40] %vm5227, %v5303
    %5368 = vst.msk [vmem:[%s179 + $0x212] sm:$0x40] %vm5227, %v5304
    %5369 = vst.msk [vmem:[%s179 + $0x22a] sm:$0x40] %vm5227, %v5305
    %5370 = vst.msk [vmem:[%s179 + $0x242] sm:$0x40] %vm5227, %v5306
    %5371 = vst.msk [vmem:[%s179 + $0x25a] sm:$0x40] %vm5227, %v5307
    %v5372 = vld [vmem:[#allocation2] sm:$0xff]
    %v5373 = vld [vmem:[#allocation2 + $0x18] sm:$0xff]
    %v5374 = vld [vmem:[#allocation2 + $0x30] sm:$0xff]
    %v5375 = vld [vmem:[#allocation2 + $0x48] sm:$0xff]
    %v5376 = vld [vmem:[#allocation2 + $0x60] sm:$0xff]
    %v5377 = vld [vmem:[#allocation2 + $0x78] sm:$0xff]
    %v5378 = vld [vmem:[#allocation2 + $0x90] sm:$0xff]
    %v5379 = vld [vmem:[#allocation2 + $0xa8] sm:$0xff]
    %v5380 = vld [vmem:[#allocation2 + $0x1b0] sm:$0xff]
    %v5381 = vld [vmem:[#allocation2 + $0x1c8] sm:$0xff]
    %v5382 = vld [vmem:[#allocation2 + $0x1e0] sm:$0xff]
    %v5383 = vld [vmem:[#allocation2 + $0x1f8] sm:$0xff]
    %v5384 = vld [vmem:[#allocation2 + $0x210] sm:$0xff]
    %v5385 = vld [vmem:[#allocation2 + $0x228] sm:$0xff]
    %v5386 = vld [vmem:[#allocation2 + $0x240] sm:$0xff]
    %v5387 = vld [vmem:[#allocation2 + $0x258] sm:$0xff]
    %v5388 = vld [vmem:[%s3] sm:$0xff]
    %v5389 = vld [vmem:[#allocation2 + $0x1] sm:$0xff]
    %v5390 = vld [vmem:[#allocation2 + $0x19] sm:$0xff]
    %v5391 = vld [vmem:[#allocation2 + $0x31] sm:$0xff]
    %v5392 = vld [vmem:[#allocation2 + $0x49] sm:$0xff]
    %v5393 = vld [vmem:[#allocation2 + $0x61] sm:$0xff]
    %v5394 = vld [vmem:[#allocation2 + $0x79] sm:$0xff]
    %v5395 = vld [vmem:[#allocation2 + $0x91] sm:$0xff]
    %v5396 = vld [vmem:[#allocation2 + $0xa9] sm:$0xff]
    %v5397 = vld [vmem:[#allocation2 + $0x1b1] sm:$0xff]
    %v5398 = vld [vmem:[#allocation2 + $0x1c9] sm:$0xff]
    %v5399 = vld [vmem:[#allocation2 + $0x1e1] sm:$0xff]
    %v5400 = vld [vmem:[#allocation2 + $0x1f9] sm:$0xff]
    %v5401 = vld [vmem:[#allocation2 + $0x211] sm:$0xff]
    %v5402 = vld [vmem:[#allocation2 + $0x229] sm:$0xff]
    %v5403 = vld [vmem:[#allocation2 + $0x241] sm:$0xff]
    %v5404 = vld [vmem:[#allocation2 + $0x259] sm:$0xff]
    %s5405 = scalar_lea.vmem %s3, 8
    %v5406 = vld [vmem:[%s5405] sm:$0xff]
    %v5408 = vsel %vm4897, %v5389, 0
    %v5411 = vsel %vm4897, %v5390, 0
    %v5414 = vsel %vm4897, %v5391, 0
    %v5417 = vsel %vm4897, %v5392, 0
    %v5420 = vsel %vm4897, %v5393, 0
    %v5423 = vsel %vm4897, %v5394, 0
    %v5426 = vsel %vm4897, %v5395, 0
    %v5429 = vsel %vm4897, %v5396, 0
    %v5432 = vsel %vm4897, %v5397, 0
    %v5435 = vsel %vm4897, %v5398, 0
    %v5438 = vsel %vm4897, %v5399, 0
    %v5441 = vsel %vm4897, %v5400, 0
    %v5444 = vsel %vm4897, %v5401, 0
    %v5447 = vsel %vm4897, %v5402, 0
    %v5450 = vsel %vm4897, %v5403, 0
    %v5453 = vsel %vm4897, %v5404, 0
    %5455 = vmatpush.msra.mxu0 0.0
    %5456 = vmatpush.msra.mxu0 0.0
    %5457 = vmatpush.msra.mxu0 0.0
    %5458 = vmatpush.msra.mxu0 0.0
    %5459 = vmatpush.msra.mxu0 0.0
    %5460 = vmatpush.msra.mxu0 0.0
    %5461 = vmatpush.msra.mxu0 0.0
    %5462 = vmatpush.msra.mxu0 0.0
    %5463 = vmatpush.msra.mxu0 0.0
    %5464 = vmatpush.msra.mxu0 0.0
    %5465 = vmatpush.msra.mxu0 0.0
    %5466 = vmatpush.msra.mxu0 0.0
    %5467 = vmatpush.msra.mxu0 0.0
    %5468 = vmatpush.msra.mxu0 0.0
    %5469 = vmatpush.msra.mxu0 0.0
    %5470 = vmatpush.msra.mxu0 %v5406
    %5471 = vmatmul.f32.gmra.mxu0 %v5408
    %v5472 = vpop.f32.mrf.mxu0
    %v5473 = vadd.f32 0.0, %v5472
    %5474 = vmatmul.f32.gmra.mxu0 %v5411
    %v5475 = vpop.f32.mrf.mxu0
    %v5476 = vadd.f32 0.0, %v5475
    %5477 = vmatmul.f32.gmra.mxu0 %v5414
    %v5478 = vpop.f32.mrf.mxu0
    %v5479 = vadd.f32 0.0, %v5478
    %5480 = vmatmul.f32.gmra.mxu0 %v5417
    %v5481 = vpop.f32.mrf.mxu0
    %v5482 = vadd.f32 0.0, %v5481
    %5483 = vmatmul.f32.gmra.mxu0 %v5420
    %v5484 = vpop.f32.mrf.mxu0
    %v5485 = vadd.f32 0.0, %v5484
    %5486 = vmatmul.f32.gmra.mxu0 %v5423
    %v5487 = vpop.f32.mrf.mxu0
    %v5488 = vadd.f32 0.0, %v5487
    %5489 = vmatmul.f32.gmra.mxu0 %v5426
    %v5490 = vpop.f32.mrf.mxu0
    %v5491 = vadd.f32 0.0, %v5490
    %5492 = vmatmul.f32.gmra.mxu0 %v5429
    %v5493 = vpop.f32.mrf.mxu0
    %v5494 = vadd.f32 0.0, %v5493
    %5495 = vmatmul.f32.gmra.mxu0 %v5432
    %v5496 = vpop.f32.mrf.mxu0
    %v5497 = vadd.f32 0.0, %v5496
    %5498 = vmatmul.f32.gmra.mxu0 %v5435
    %v5499 = vpop.f32.mrf.mxu0
    %v5500 = vadd.f32 0.0, %v5499
    %5501 = vmatmul.f32.gmra.mxu0 %v5438
    %v5502 = vpop.f32.mrf.mxu0
    %v5503 = vadd.f32 0.0, %v5502
    %5504 = vmatmul.f32.gmra.mxu0 %v5441
    %v5505 = vpop.f32.mrf.mxu0
    %v5506 = vadd.f32 0.0, %v5505
    %5507 = vmatmul.f32.gmra.mxu0 %v5444
    %v5508 = vpop.f32.mrf.mxu0
    %v5509 = vadd.f32 0.0, %v5508
    %5510 = vmatmul.f32.gmra.mxu0 %v5447
    %v5511 = vpop.f32.mrf.mxu0
    %v5512 = vadd.f32 0.0, %v5511
    %5513 = vmatmul.f32.gmra.mxu0 %v5450
    %v5514 = vpop.f32.mrf.mxu0
    %v5515 = vadd.f32 0.0, %v5514
    %5516 = vmatmul.f32.gmra.mxu0 %v5453
    %v5517 = vpop.f32.mrf.mxu0
    %v5518 = vadd.f32 0.0, %v5517
    %5519 = vdwg.mxu0
    %v5521 = vsel %vm4897, %v5372, 0
    %v5524 = vsel %vm4897, %v5373, 0
    %v5527 = vsel %vm4897, %v5374, 0
    %v5530 = vsel %vm4897, %v5375, 0
    %v5533 = vsel %vm4897, %v5376, 0
    %v5536 = vsel %vm4897, %v5377, 0
    %v5539 = vsel %vm4897, %v5378, 0
    %v5542 = vsel %vm4897, %v5379, 0
    %v5545 = vsel %vm4897, %v5380, 0
    %v5548 = vsel %vm4897, %v5381, 0
    %v5551 = vsel %vm4897, %v5382, 0
    %v5554 = vsel %vm4897, %v5383, 0
    %v5557 = vsel %vm4897, %v5384, 0
    %v5560 = vsel %vm4897, %v5385, 0
    %v5563 = vsel %vm4897, %v5386, 0
    %v5566 = vsel %vm4897, %v5387, 0
    %5568 = vmatpush.msra.mxu0 0.0
    %5569 = vmatpush.msra.mxu0 0.0
    %5570 = vmatpush.msra.mxu0 0.0
    %5571 = vmatpush.msra.mxu0 0.0
    %5572 = vmatpush.msra.mxu0 0.0
    %5573 = vmatpush.msra.mxu0 0.0
    %5574 = vmatpush.msra.mxu0 0.0
    %5575 = vmatpush.msra.mxu0 0.0
    %5576 = vmatpush.msra.mxu0 0.0
    %5577 = vmatpush.msra.mxu0 0.0
    %5578 = vmatpush.msra.mxu0 0.0
    %5579 = vmatpush.msra.mxu0 0.0
    %5580 = vmatpush.msra.mxu0 0.0
    %5581 = vmatpush.msra.mxu0 0.0
    %5582 = vmatpush.msra.mxu0 0.0
    %5583 = vmatpush.msra.mxu0 %v5388
    %5584 = vmatmul.f32.gmra.mxu0 %v5521
    %v5585 = vpop.f32.mrf.mxu0
    %v5586 = vadd.f32 %v5473, %v5585
    %5587 = vmatmul.f32.gmra.mxu0 %v5524
    %v5588 = vpop.f32.mrf.mxu0
    %v5589 = vadd.f32 %v5476, %v5588
    %5590 = vmatmul.f32.gmra.mxu0 %v5527
    %v5591 = vpop.f32.mrf.mxu0
    %v5592 = vadd.f32 %v5479, %v5591
    %5593 = vmatmul.f32.gmra.mxu0 %v5530
    %v5594 = vpop.f32.mrf.mxu0
    %v5595 = vadd.f32 %v5482, %v5594
    %5596 = vmatmul.f32.gmra.mxu0 %v5533
    %v5597 = vpop.f32.mrf.mxu0
    %v5598 = vadd.f32 %v5485, %v5597
    %5599 = vmatmul.f32.gmra.mxu0 %v5536
    %v5600 = vpop.f32.mrf.mxu0
    %v5601 = vadd.f32 %v5488, %v5600
    %5602 = vmatmul.f32.gmra.mxu0 %v5539
    %v5603 = vpop.f32.mrf.mxu0
    %v5604 = vadd.f32 %v5491, %v5603
    %5605 = vmatmul.f32.gmra.mxu0 %v5542
    %v5606 = vpop.f32.mrf.mxu0
    %v5607 = vadd.f32 %v5494, %v5606
    %5608 = vmatmul.f32.gmra.mxu0 %v5545
    %v5609 = vpop.f32.mrf.mxu0
    %v5610 = vadd.f32 %v5497, %v5609
    %5611 = vmatmul.f32.gmra.mxu0 %v5548
    %v5612 = vpop.f32.mrf.mxu0
    %v5613 = vadd.f32 %v5500, %v5612
    %5614 = vmatmul.f32.gmra.mxu0 %v5551
    %v5615 = vpop.f32.mrf.mxu0
    %v5616 = vadd.f32 %v5503, %v5615
    %5617 = vmatmul.f32.gmra.mxu0 %v5554
    %v5618 = vpop.f32.mrf.mxu0
    %v5619 = vadd.f32 %v5506, %v5618
    %5620 = vmatmul.f32.gmra.mxu0 %v5557
    %v5621 = vpop.f32.mrf.mxu0
    %v5622 = vadd.f32 %v5509, %v5621
    %5623 = vmatmul.f32.gmra.mxu0 %v5560
    %v5624 = vpop.f32.mrf.mxu0
    %v5625 = vadd.f32 %v5512, %v5624
    %5626 = vmatmul.f32.gmra.mxu0 %v5563
    %v5627 = vpop.f32.mrf.mxu0
    %v5628 = vadd.f32 %v5515, %v5627
    %5629 = vmatmul.f32.gmra.mxu0 %v5566
    %v5630 = vpop.f32.mrf.mxu0
    %v5631 = vadd.f32 %v5518, %v5630
    %5632 = vdwg.mxu0
    %v5633 = vld [vmem:[#allocation2 + $0x2] sm:$0xff]
    %v5634 = vld [vmem:[#allocation2 + $0x1a] sm:$0xff]
    %v5635 = vld [vmem:[#allocation2 + $0x32] sm:$0xff]
    %v5636 = vld [vmem:[#allocation2 + $0x4a] sm:$0xff]
    %v5637 = vld [vmem:[#allocation2 + $0x62] sm:$0xff]
    %v5638 = vld [vmem:[#allocation2 + $0x7a] sm:$0xff]
    %v5639 = vld [vmem:[#allocation2 + $0x92] sm:$0xff]
    %v5640 = vld [vmem:[#allocation2 + $0xaa] sm:$0xff]
    %v5641 = vld [vmem:[#allocation2 + $0x1b2] sm:$0xff]
    %v5642 = vld [vmem:[#allocation2 + $0x1ca] sm:$0xff]
    %v5643 = vld [vmem:[#allocation2 + $0x1e2] sm:$0xff]
    %v5644 = vld [vmem:[#allocation2 + $0x1fa] sm:$0xff]
    %v5645 = vld [vmem:[#allocation2 + $0x212] sm:$0xff]
    %v5646 = vld [vmem:[#allocation2 + $0x22a] sm:$0xff]
    %v5647 = vld [vmem:[#allocation2 + $0x242] sm:$0xff]
    %v5648 = vld [vmem:[#allocation2 + $0x25a] sm:$0xff]
    %s5649 = scalar_lea.vmem %s3, 16
    %v5650 = vld [vmem:[%s5649] sm:$0xff]
    %v5652 = vsel %vm4897, %v5633, 0
    %v5655 = vsel %vm4897, %v5634, 0
    %v5658 = vsel %vm4897, %v5635, 0
    %v5661 = vsel %vm4897, %v5636, 0
    %v5664 = vsel %vm4897, %v5637, 0
    %v5667 = vsel %vm4897, %v5638, 0
    %v5670 = vsel %vm4897, %v5639, 0
    %v5673 = vsel %vm4897, %v5640, 0
    %v5676 = vsel %vm4897, %v5641, 0
    %v5679 = vsel %vm4897, %v5642, 0
    %v5682 = vsel %vm4897, %v5643, 0
    %v5685 = vsel %vm4897, %v5644, 0
    %v5688 = vsel %vm4897, %v5645, 0
    %v5691 = vsel %vm4897, %v5646, 0
    %v5694 = vsel %vm4897, %v5647, 0
    %v5697 = vsel %vm4897, %v5648, 0
    %5699 = vmatpush.msra.mxu0 0.0
    %5700 = vmatpush.msra.mxu0 0.0
    %5701 = vmatpush.msra.mxu0 0.0
    %5702 = vmatpush.msra.mxu0 0.0
    %5703 = vmatpush.msra.mxu0 0.0
    %5704 = vmatpush.msra.mxu0 0.0
    %5705 = vmatpush.msra.mxu0 0.0
    %5706 = vmatpush.msra.mxu0 0.0
    %5707 = vmatpush.msra.mxu0 0.0
    %5708 = vmatpush.msra.mxu0 0.0
    %5709 = vmatpush.msra.mxu0 0.0
    %5710 = vmatpush.msra.mxu0 0.0
    %5711 = vmatpush.msra.mxu0 0.0
    %5712 = vmatpush.msra.mxu0 0.0
    %5713 = vmatpush.msra.mxu0 0.0
    %5714 = vmatpush.msra.mxu0 %v5650
    %5715 = vmatmul.f32.gmra.mxu0 %v5652
    %v5716 = vpop.f32.mrf.mxu0
    %v5717 = vadd.f32 0.0, %v5716
    %5718 = vmatmul.f32.gmra.mxu0 %v5655
    %v5719 = vpop.f32.mrf.mxu0
    %v5720 = vadd.f32 0.0, %v5719
    %5721 = vmatmul.f32.gmra.mxu0 %v5658
    %v5722 = vpop.f32.mrf.mxu0
    %v5723 = vadd.f32 0.0, %v5722
    %5724 = vmatmul.f32.gmra.mxu0 %v5661
    %v5725 = vpop.f32.mrf.mxu0
    %v5726 = vadd.f32 0.0, %v5725
    %5727 = vmatmul.f32.gmra.mxu0 %v5664
    %v5728 = vpop.f32.mrf.mxu0
    %v5729 = vadd.f32 0.0, %v5728
    %5730 = vmatmul.f32.gmra.mxu0 %v5667
    %v5731 = vpop.f32.mrf.mxu0
    %v5732 = vadd.f32 0.0, %v5731
    %5733 = vmatmul.f32.gmra.mxu0 %v5670
    %v5734 = vpop.f32.mrf.mxu0
    %v5735 = vadd.f32 0.0, %v5734
    %5736 = vmatmul.f32.gmra.mxu0 %v5673
    %v5737 = vpop.f32.mrf.mxu0
    %v5738 = vadd.f32 0.0, %v5737
    %5739 = vmatmul.f32.gmra.mxu0 %v5676
    %v5740 = vpop.f32.mrf.mxu0
    %v5741 = vadd.f32 0.0, %v5740
    %5742 = vmatmul.f32.gmra.mxu0 %v5679
    %v5743 = vpop.f32.mrf.mxu0
    %v5744 = vadd.f32 0.0, %v5743
    %5745 = vmatmul.f32.gmra.mxu0 %v5682
    %v5746 = vpop.f32.mrf.mxu0
    %v5747 = vadd.f32 0.0, %v5746
    %5748 = vmatmul.f32.gmra.mxu0 %v5685
    %v5749 = vpop.f32.mrf.mxu0
    %v5750 = vadd.f32 0.0, %v5749
    %5751 = vmatmul.f32.gmra.mxu0 %v5688
    %v5752 = vpop.f32.mrf.mxu0
    %v5753 = vadd.f32 0.0, %v5752
    %5754 = vmatmul.f32.gmra.mxu0 %v5691
    %v5755 = vpop.f32.mrf.mxu0
    %v5756 = vadd.f32 0.0, %v5755
    %5757 = vmatmul.f32.gmra.mxu0 %v5694
    %v5758 = vpop.f32.mrf.mxu0
    %v5759 = vadd.f32 0.0, %v5758
    %5760 = vmatmul.f32.gmra.mxu0 %v5697
    %v5761 = vpop.f32.mrf.mxu0
    %v5762 = vadd.f32 0.0, %v5761
    %5763 = vdwg.mxu0
    %v5764 = vadd.f32 %v5586, %v5717
    %v5765 = vadd.f32 %v5589, %v5720
    %v5766 = vadd.f32 %v5592, %v5723
    %v5767 = vadd.f32 %v5595, %v5726
    %v5768 = vadd.f32 %v5598, %v5729
    %v5769 = vadd.f32 %v5601, %v5732
    %v5770 = vadd.f32 %v5604, %v5735
    %v5771 = vadd.f32 %v5607, %v5738
    %v5772 = vadd.f32 %v5610, %v5741
    %v5773 = vadd.f32 %v5613, %v5744
    %v5774 = vadd.f32 %v5616, %v5747
    %v5775 = vadd.f32 %v5619, %v5750
    %v5776 = vadd.f32 %v5622, %v5753
    %v5777 = vadd.f32 %v5625, %v5756
    %v5778 = vadd.f32 %v5628, %v5759
    %v5779 = vadd.f32 %v5631, %v5762
    %v5780 = vld [vmem:[%s179] sm:$0xff]
    %v5781 = vld [vmem:[%s179 + $0x18] sm:$0xff]
    %v5782 = vld [vmem:[%s179 + $0x30] sm:$0xff]
    %v5783 = vld [vmem:[%s179 + $0x48] sm:$0xff]
    %v5784 = vld [vmem:[%s179 + $0x60] sm:$0xff]
    %v5785 = vld [vmem:[%s179 + $0x78] sm:$0xff]
    %v5786 = vld [vmem:[%s179 + $0x90] sm:$0xff]
    %v5787 = vld [vmem:[%s179 + $0xa8] sm:$0xff]
    %v5788 = vld [vmem:[%s179 + $0x1b0] sm:$0xff]
    %v5789 = vld [vmem:[%s179 + $0x1c8] sm:$0xff]
    %v5790 = vld [vmem:[%s179 + $0x1e0] sm:$0xff]
    %v5791 = vld [vmem:[%s179 + $0x1f8] sm:$0xff]
    %v5792 = vld [vmem:[%s179 + $0x210] sm:$0xff]
    %v5793 = vld [vmem:[%s179 + $0x228] sm:$0xff]
    %v5794 = vld [vmem:[%s179 + $0x240] sm:$0xff]
    %v5795 = vld [vmem:[%s179 + $0x258] sm:$0xff]
    %s5796 = scalar_lea.vmem %s3, 24
    %v5797 = vld [vmem:[%s5796] sm:$0xff]
    %v5799 = vsel %vm4897, %v5780, 0
    %v5802 = vsel %vm4897, %v5781, 0
    %v5805 = vsel %vm4897, %v5782, 0
    %v5808 = vsel %vm4897, %v5783, 0
    %v5811 = vsel %vm4897, %v5784, 0
    %v5814 = vsel %vm4897, %v5785, 0
    %v5817 = vsel %vm4897, %v5786, 0
    %v5820 = vsel %vm4897, %v5787, 0
    %v5823 = vsel %vm4897, %v5788, 0
    %v5826 = vsel %vm4897, %v5789, 0
    %v5829 = vsel %vm4897, %v5790, 0
    %v5832 = vsel %vm4897, %v5791, 0
    %v5835 = vsel %vm4897, %v5792, 0
    %v5838 = vsel %vm4897, %v5793, 0
    %v5841 = vsel %vm4897, %v5794, 0
    %v5844 = vsel %vm4897, %v5795, 0
    %5846 = vmatpush.msra.mxu0 0.0
    %5847 = vmatpush.msra.mxu0 0.0
    %5848 = vmatpush.msra.mxu0 0.0
    %5849 = vmatpush.msra.mxu0 0.0
    %5850 = vmatpush.msra.mxu0 0.0
    %5851 = vmatpush.msra.mxu0 0.0
    %5852 = vmatpush.msra.mxu0 0.0
    %5853 = vmatpush.msra.mxu0 0.0
    %5854 = vmatpush.msra.mxu0 0.0
    %5855 = vmatpush.msra.mxu0 0.0
    %5856 = vmatpush.msra.mxu0 0.0
    %5857 = vmatpush.msra.mxu0 0.0
    %5858 = vmatpush.msra.mxu0 0.0
    %5859 = vmatpush.msra.mxu0 0.0
    %5860 = vmatpush.msra.mxu0 0.0
    %5861 = vmatpush.msra.mxu0 %v5797
    %5862 = vmatmul.f32.gmra.mxu0 %v5799
    %v5863 = vpop.f32.mrf.mxu0
    %v5864 = vadd.f32 0.0, %v5863
    %5865 = vmatmul.f32.gmra.mxu0 %v5802
    %v5866 = vpop.f32.mrf.mxu0
    %v5867 = vadd.f32 0.0, %v5866
    %5868 = vmatmul.f32.gmra.mxu0 %v5805
    %v5869 = vpop.f32.mrf.mxu0
    %v5870 = vadd.f32 0.0, %v5869
    %5871 = vmatmul.f32.gmra.mxu0 %v5808
    %v5872 = vpop.f32.mrf.mxu0
    %v5873 = vadd.f32 0.0, %v5872
    %5874 = vmatmul.f32.gmra.mxu0 %v5811
    %v5875 = vpop.f32.mrf.mxu0
    %v5876 = vadd.f32 0.0, %v5875
    %5877 = vmatmul.f32.gmra.mxu0 %v5814
    %v5878 = vpop.f32.mrf.mxu0
    %v5879 = vadd.f32 0.0, %v5878
    %5880 = vmatmul.f32.gmra.mxu0 %v5817
    %v5881 = vpop.f32.mrf.mxu0
    %v5882 = vadd.f32 0.0, %v5881
    %5883 = vmatmul.f32.gmra.mxu0 %v5820
    %v5884 = vpop.f32.mrf.mxu0
    %v5885 = vadd.f32 0.0, %v5884
    %5886 = vmatmul.f32.gmra.mxu0 %v5823
    %v5887 = vpop.f32.mrf.mxu0
    %v5888 = vadd.f32 0.0, %v5887
    %5889 = vmatmul.f32.gmra.mxu0 %v5826
    %v5890 = vpop.f32.mrf.mxu0
    %v5891 = vadd.f32 0.0, %v5890
    %5892 = vmatmul.f32.gmra.mxu0 %v5829
    %v5893 = vpop.f32.mrf.mxu0
    %v5894 = vadd.f32 0.0, %v5893
    %5895 = vmatmul.f32.gmra.mxu0 %v5832
    %v5896 = vpop.f32.mrf.mxu0
    %v5897 = vadd.f32 0.0, %v5896
    %5898 = vmatmul.f32.gmra.mxu0 %v5835
    %v5899 = vpop.f32.mrf.mxu0
    %v5900 = vadd.f32 0.0, %v5899
    %5901 = vmatmul.f32.gmra.mxu0 %v5838
    %v5902 = vpop.f32.mrf.mxu0
    %v5903 = vadd.f32 0.0, %v5902
    %5904 = vmatmul.f32.gmra.mxu0 %v5841
    %v5905 = vpop.f32.mrf.mxu0
    %v5906 = vadd.f32 0.0, %v5905
    %5907 = vmatmul.f32.gmra.mxu0 %v5844
    %v5908 = vpop.f32.mrf.mxu0
    %v5909 = vadd.f32 0.0, %v5908
    %5910 = vdwg.mxu0
    %v5911 = vadd.f32 %v5764, %v5864
    %v5912 = vadd.f32 %v5765, %v5867
    %v5913 = vadd.f32 %v5766, %v5870
    %v5914 = vadd.f32 %v5767, %v5873
    %v5915 = vadd.f32 %v5768, %v5876
    %v5916 = vadd.f32 %v5769, %v5879
    %v5917 = vadd.f32 %v5770, %v5882
    %v5918 = vadd.f32 %v5771, %v5885
    %v5919 = vadd.f32 %v5772, %v5888
    %v5920 = vadd.f32 %v5773, %v5891
    %v5921 = vadd.f32 %v5774, %v5894
    %v5922 = vadd.f32 %v5775, %v5897
    %v5923 = vadd.f32 %v5776, %v5900
    %v5924 = vadd.f32 %v5777, %v5903
    %v5925 = vadd.f32 %v5778, %v5906
    %v5926 = vadd.f32 %v5779, %v5909
    %v5927 = vld [vmem:[%s179 + $0x1] sm:$0xff]
    %v5928 = vld [vmem:[%s179 + $0x19] sm:$0xff]
    %v5929 = vld [vmem:[%s179 + $0x31] sm:$0xff]
    %v5930 = vld [vmem:[%s179 + $0x49] sm:$0xff]
    %v5931 = vld [vmem:[%s179 + $0x61] sm:$0xff]
    %v5932 = vld [vmem:[%s179 + $0x79] sm:$0xff]
    %v5933 = vld [vmem:[%s179 + $0x91] sm:$0xff]
    %v5934 = vld [vmem:[%s179 + $0xa9] sm:$0xff]
    %v5935 = vld [vmem:[%s179 + $0x1b1] sm:$0xff]
    %v5936 = vld [vmem:[%s179 + $0x1c9] sm:$0xff]
    %v5937 = vld [vmem:[%s179 + $0x1e1] sm:$0xff]
    %v5938 = vld [vmem:[%s179 + $0x1f9] sm:$0xff]
    %v5939 = vld [vmem:[%s179 + $0x211] sm:$0xff]
    %v5940 = vld [vmem:[%s179 + $0x229] sm:$0xff]
    %v5941 = vld [vmem:[%s179 + $0x241] sm:$0xff]
    %v5942 = vld [vmem:[%s179 + $0x259] sm:$0xff]
    %s5943 = scalar_lea.vmem %s3, 32
    %v5944 = vld [vmem:[%s5943] sm:$0xff]
    %v5946 = vsel %vm4897, %v5927, 0
    %v5949 = vsel %vm4897, %v5928, 0
    %v5952 = vsel %vm4897, %v5929, 0
    %v5955 = vsel %vm4897, %v5930, 0
    %v5958 = vsel %vm4897, %v5931, 0
    %v5961 = vsel %vm4897, %v5932, 0
    %v5964 = vsel %vm4897, %v5933, 0
    %v5967 = vsel %vm4897, %v5934, 0
    %v5970 = vsel %vm4897, %v5935, 0
    %v5973 = vsel %vm4897, %v5936, 0
    %v5976 = vsel %vm4897, %v5937, 0
    %v5979 = vsel %vm4897, %v5938, 0
    %v5982 = vsel %vm4897, %v5939, 0
    %v5985 = vsel %vm4897, %v5940, 0
    %v5988 = vsel %vm4897, %v5941, 0
    %v5991 = vsel %vm4897, %v5942, 0
    %5993 = vmatpush.msra.mxu0 0.0
    %5994 = vmatpush.msra.mxu0 0.0
    %5995 = vmatpush.msra.mxu0 0.0
    %5996 = vmatpush.msra.mxu0 0.0
    %5997 = vmatpush.msra.mxu0 0.0
    %5998 = vmatpush.msra.mxu0 0.0
    %5999 = vmatpush.msra.mxu0 0.0
    %6000 = vmatpush.msra.mxu0 0.0
    %6001 = vmatpush.msra.mxu0 0.0
    %6002 = vmatpush.msra.mxu0 0.0
    %6003 = vmatpush.msra.mxu0 0.0
    %6004 = vmatpush.msra.mxu0 0.0
    %6005 = vmatpush.msra.mxu0 0.0
    %6006 = vmatpush.msra.mxu0 0.0
    %6007 = vmatpush.msra.mxu0 0.0
    %6008 = vmatpush.msra.mxu0 %v5944
    %6009 = vmatmul.f32.gmra.mxu0 %v5946
    %v6010 = vpop.f32.mrf.mxu0
    %v6011 = vadd.f32 0.0, %v6010
    %6012 = vmatmul.f32.gmra.mxu0 %v5949
    %v6013 = vpop.f32.mrf.mxu0
    %v6014 = vadd.f32 0.0, %v6013
    %6015 = vmatmul.f32.gmra.mxu0 %v5952
    %v6016 = vpop.f32.mrf.mxu0
    %v6017 = vadd.f32 0.0, %v6016
    %6018 = vmatmul.f32.gmra.mxu0 %v5955
    %v6019 = vpop.f32.mrf.mxu0
    %v6020 = vadd.f32 0.0, %v6019
    %6021 = vmatmul.f32.gmra.mxu0 %v5958
    %v6022 = vpop.f32.mrf.mxu0
    %v6023 = vadd.f32 0.0, %v6022
    %6024 = vmatmul.f32.gmra.mxu0 %v5961
    %v6025 = vpop.f32.mrf.mxu0
    %v6026 = vadd.f32 0.0, %v6025
    %6027 = vmatmul.f32.gmra.mxu0 %v5964
    %v6028 = vpop.f32.mrf.mxu0
    %v6029 = vadd.f32 0.0, %v6028
    %6030 = vmatmul.f32.gmra.mxu0 %v5967
    %v6031 = vpop.f32.mrf.mxu0
    %v6032 = vadd.f32 0.0, %v6031
    %6033 = vmatmul.f32.gmra.mxu0 %v5970
    %v6034 = vpop.f32.mrf.mxu0
    %v6035 = vadd.f32 0.0, %v6034
    %6036 = vmatmul.f32.gmra.mxu0 %v5973
    %v6037 = vpop.f32.mrf.mxu0
    %v6038 = vadd.f32 0.0, %v6037
    %6039 = vmatmul.f32.gmra.mxu0 %v5976
    %v6040 = vpop.f32.mrf.mxu0
    %v6041 = vadd.f32 0.0, %v6040
    %6042 = vmatmul.f32.gmra.mxu0 %v5979
    %v6043 = vpop.f32.mrf.mxu0
    %v6044 = vadd.f32 0.0, %v6043
    %6045 = vmatmul.f32.gmra.mxu0 %v5982
    %v6046 = vpop.f32.mrf.mxu0
    %v6047 = vadd.f32 0.0, %v6046
    %6048 = vmatmul.f32.gmra.mxu0 %v5985
    %v6049 = vpop.f32.mrf.mxu0
    %v6050 = vadd.f32 0.0, %v6049
    %6051 = vmatmul.f32.gmra.mxu0 %v5988
    %v6052 = vpop.f32.mrf.mxu0
    %v6053 = vadd.f32 0.0, %v6052
    %6054 = vmatmul.f32.gmra.mxu0 %v5991
    %v6055 = vpop.f32.mrf.mxu0
    %v6056 = vadd.f32 0.0, %v6055
    %6057 = vdwg.mxu0
    %v6058 = vadd.f32 %v5911, %v6011
    %v6059 = vadd.f32 %v5912, %v6014
    %v6060 = vadd.f32 %v5913, %v6017
    %v6061 = vadd.f32 %v5914, %v6020
    %v6062 = vadd.f32 %v5915, %v6023
    %v6063 = vadd.f32 %v5916, %v6026
    %v6064 = vadd.f32 %v5917, %v6029
    %v6065 = vadd.f32 %v5918, %v6032
    %v6066 = vadd.f32 %v5919, %v6035
    %v6067 = vadd.f32 %v5920, %v6038
    %v6068 = vadd.f32 %v5921, %v6041
    %v6069 = vadd.f32 %v5922, %v6044
    %v6070 = vadd.f32 %v5923, %v6047
    %v6071 = vadd.f32 %v5924, %v6050
    %v6072 = vadd.f32 %v5925, %v6053
    %v6073 = vadd.f32 %v5926, %v6056
    %v6074 = vld [vmem:[%s179 + $0x2] sm:$0xff]
    %v6075 = vld [vmem:[%s179 + $0x1a] sm:$0xff]
    %v6076 = vld [vmem:[%s179 + $0x32] sm:$0xff]
    %v6077 = vld [vmem:[%s179 + $0x4a] sm:$0xff]
    %v6078 = vld [vmem:[%s179 + $0x62] sm:$0xff]
    %v6079 = vld [vmem:[%s179 + $0x7a] sm:$0xff]
    %v6080 = vld [vmem:[%s179 + $0x92] sm:$0xff]
    %v6081 = vld [vmem:[%s179 + $0xaa] sm:$0xff]
    %v6082 = vld [vmem:[%s179 + $0x1b2] sm:$0xff]
    %v6083 = vld [vmem:[%s179 + $0x1ca] sm:$0xff]
    %v6084 = vld [vmem:[%s179 + $0x1e2] sm:$0xff]
    %v6085 = vld [vmem:[%s179 + $0x1fa] sm:$0xff]
    %v6086 = vld [vmem:[%s179 + $0x212] sm:$0xff]
    %v6087 = vld [vmem:[%s179 + $0x22a] sm:$0xff]
    %v6088 = vld [vmem:[%s179 + $0x242] sm:$0xff]
    %v6089 = vld [vmem:[%s179 + $0x25a] sm:$0xff]
    %s6090 = scalar_lea.vmem %s3, 40
    %v6091 = vld [vmem:[%s6090] sm:$0xff]
    %v6093 = vsel %vm4897, %v6074, 0
    %v6096 = vsel %vm4897, %v6075, 0
    %v6099 = vsel %vm4897, %v6076, 0
    %v6102 = vsel %vm4897, %v6077, 0
    %v6105 = vsel %vm4897, %v6078, 0
    %v6108 = vsel %vm4897, %v6079, 0
    %v6111 = vsel %vm4897, %v6080, 0
    %v6114 = vsel %vm4897, %v6081, 0
    %v6117 = vsel %vm4897, %v6082, 0
    %v6120 = vsel %vm4897, %v6083, 0
    %v6123 = vsel %vm4897, %v6084, 0
    %v6126 = vsel %vm4897, %v6085, 0
    %v6129 = vsel %vm4897, %v6086, 0
    %v6132 = vsel %vm4897, %v6087, 0
    %v6135 = vsel %vm4897, %v6088, 0
    %v6138 = vsel %vm4897, %v6089, 0
    %6140 = vmatpush.msra.mxu0 0.0
    %6141 = vmatpush.msra.mxu0 0.0
    %6142 = vmatpush.msra.mxu0 0.0
    %6143 = vmatpush.msra.mxu0 0.0
    %6144 = vmatpush.msra.mxu0 0.0
    %6145 = vmatpush.msra.mxu0 0.0
    %6146 = vmatpush.msra.mxu0 0.0
    %6147 = vmatpush.msra.mxu0 0.0
    %6148 = vmatpush.msra.mxu0 0.0
    %6149 = vmatpush.msra.mxu0 0.0
    %6150 = vmatpush.msra.mxu0 0.0
    %6151 = vmatpush.msra.mxu0 0.0
    %6152 = vmatpush.msra.mxu0 0.0
    %6153 = vmatpush.msra.mxu0 0.0
    %6154 = vmatpush.msra.mxu0 0.0
    %6155 = vmatpush.msra.mxu0 %v6091
    %6156 = vmatmul.f32.gmra.mxu0 %v6093
    %v6157 = vpop.f32.mrf.mxu0
    %v6158 = vadd.f32 0.0, %v6157
    %6159 = vmatmul.f32.gmra.mxu0 %v6096
    %v6160 = vpop.f32.mrf.mxu0
    %v6161 = vadd.f32 0.0, %v6160
    %6162 = vmatmul.f32.gmra.mxu0 %v6099
    %v6163 = vpop.f32.mrf.mxu0
    %v6164 = vadd.f32 0.0, %v6163
    %6165 = vmatmul.f32.gmra.mxu0 %v6102
    %v6166 = vpop.f32.mrf.mxu0
    %v6167 = vadd.f32 0.0, %v6166
    %6168 = vmatmul.f32.gmra.mxu0 %v6105
    %v6169 = vpop.f32.mrf.mxu0
    %v6170 = vadd.f32 0.0, %v6169
    %6171 = vmatmul.f32.gmra.mxu0 %v6108
    %v6172 = vpop.f32.mrf.mxu0
    %v6173 = vadd.f32 0.0, %v6172
    %6174 = vmatmul.f32.gmra.mxu0 %v6111
    %v6175 = vpop.f32.mrf.mxu0
    %v6176 = vadd.f32 0.0, %v6175
    %6177 = vmatmul.f32.gmra.mxu0 %v6114
    %v6178 = vpop.f32.mrf.mxu0
    %v6179 = vadd.f32 0.0, %v6178
    %6180 = vmatmul.f32.gmra.mxu0 %v6117
    %v6181 = vpop.f32.mrf.mxu0
    %v6182 = vadd.f32 0.0, %v6181
    %6183 = vmatmul.f32.gmra.mxu0 %v6120
    %v6184 = vpop.f32.mrf.mxu0
    %v6185 = vadd.f32 0.0, %v6184
    %6186 = vmatmul.f32.gmra.mxu0 %v6123
    %v6187 = vpop.f32.mrf.mxu0
    %v6188 = vadd.f32 0.0, %v6187
    %6189 = vmatmul.f32.gmra.mxu0 %v6126
    %v6190 = vpop.f32.mrf.mxu0
    %v6191 = vadd.f32 0.0, %v6190
    %6192 = vmatmul.f32.gmra.mxu0 %v6129
    %v6193 = vpop.f32.mrf.mxu0
    %v6194 = vadd.f32 0.0, %v6193
    %6195 = vmatmul.f32.gmra.mxu0 %v6132
    %v6196 = vpop.f32.mrf.mxu0
    %v6197 = vadd.f32 0.0, %v6196
    %6198 = vmatmul.f32.gmra.mxu0 %v6135
    %v6199 = vpop.f32.mrf.mxu0
    %v6200 = vadd.f32 0.0, %v6199
    %6201 = vmatmul.f32.gmra.mxu0 %v6138
    %v6202 = vpop.f32.mrf.mxu0
    %v6203 = vadd.f32 0.0, %v6202
    %6204 = vdwg.mxu0
    %v6205 = vadd.f32 %v6058, %v6158
    %v6206 = vadd.f32 %v6059, %v6161
    %v6207 = vadd.f32 %v6060, %v6164
    %v6208 = vadd.f32 %v6061, %v6167
    %v6209 = vadd.f32 %v6062, %v6170
    %v6210 = vadd.f32 %v6063, %v6173
    %v6211 = vadd.f32 %v6064, %v6176
    %v6212 = vadd.f32 %v6065, %v6179
    %v6213 = vadd.f32 %v6066, %v6182
    %v6214 = vadd.f32 %v6067, %v6185
    %v6215 = vadd.f32 %v6068, %v6188
    %v6216 = vadd.f32 %v6069, %v6191
    %v6217 = vadd.f32 %v6070, %v6194
    %v6218 = vadd.f32 %v6071, %v6197
    %v6219 = vadd.f32 %v6072, %v6200
    %v6220 = vadd.f32 %v6073, %v6203
    %v6221 = vld [vmem:[%s3345] sm:$0xff]
    %v6222 = vld [vmem:[%s3345 + $0x18] sm:$0xff]
    %v6223 = vld [vmem:[%s3345 + $0x30] sm:$0xff]
    %v6224 = vld [vmem:[%s3345 + $0x48] sm:$0xff]
    %v6225 = vld [vmem:[%s3345 + $0x60] sm:$0xff]
    %v6226 = vld [vmem:[%s3345 + $0x78] sm:$0xff]
    %v6227 = vld [vmem:[%s3345 + $0x90] sm:$0xff]
    %v6228 = vld [vmem:[%s3345 + $0xa8] sm:$0xff]
    %v6229 = vld [vmem:[%s3345 + $0x1b0] sm:$0xff]
    %v6230 = vld [vmem:[%s3345 + $0x1c8] sm:$0xff]
    %v6231 = vld [vmem:[%s3345 + $0x1e0] sm:$0xff]
    %v6232 = vld [vmem:[%s3345 + $0x1f8] sm:$0xff]
    %v6233 = vld [vmem:[%s3345 + $0x210] sm:$0xff]
    %v6234 = vld [vmem:[%s3345 + $0x228] sm:$0xff]
    %v6235 = vld [vmem:[%s3345 + $0x240] sm:$0xff]
    %v6236 = vld [vmem:[%s3345 + $0x258] sm:$0xff]
    %s6237 = scalar_lea.vmem %s3, 48
    %v6238 = vld [vmem:[%s6237] sm:$0xff]
    %v6240 = vsel %vm4897, %v6221, 0
    %v6243 = vsel %vm4897, %v6222, 0
    %v6246 = vsel %vm4897, %v6223, 0
    %v6249 = vsel %vm4897, %v6224, 0
    %v6252 = vsel %vm4897, %v6225, 0
    %v6255 = vsel %vm4897, %v6226, 0
    %v6258 = vsel %vm4897, %v6227, 0
    %v6261 = vsel %vm4897, %v6228, 0
    %v6264 = vsel %vm4897, %v6229, 0
    %v6267 = vsel %vm4897, %v6230, 0
    %v6270 = vsel %vm4897, %v6231, 0
    %v6273 = vsel %vm4897, %v6232, 0
    %v6276 = vsel %vm4897, %v6233, 0
    %v6279 = vsel %vm4897, %v6234, 0
    %v6282 = vsel %vm4897, %v6235, 0
    %v6285 = vsel %vm4897, %v6236, 0
    %6287 = vmatpush.msra.mxu0 0.0
    %6288 = vmatpush.msra.mxu0 0.0
    %6289 = vmatpush.msra.mxu0 0.0
    %6290 = vmatpush.msra.mxu0 0.0
    %6291 = vmatpush.msra.mxu0 0.0
    %6292 = vmatpush.msra.mxu0 0.0
    %6293 = vmatpush.msra.mxu0 0.0
    %6294 = vmatpush.msra.mxu0 0.0
    %6295 = vmatpush.msra.mxu0 0.0
    %6296 = vmatpush.msra.mxu0 0.0
    %6297 = vmatpush.msra.mxu0 0.0
    %6298 = vmatpush.msra.mxu0 0.0
    %6299 = vmatpush.msra.mxu0 0.0
    %6300 = vmatpush.msra.mxu0 0.0
    %6301 = vmatpush.msra.mxu0 0.0
    %6302 = vmatpush.msra.mxu0 %v6238
    %6303 = vmatmul.f32.gmra.mxu0 %v6240
    %v6304 = vpop.f32.mrf.mxu0
    %v6305 = vadd.f32 0.0, %v6304
    %6306 = vmatmul.f32.gmra.mxu0 %v6243
    %v6307 = vpop.f32.mrf.mxu0
    %v6308 = vadd.f32 0.0, %v6307
    %6309 = vmatmul.f32.gmra.mxu0 %v6246
    %v6310 = vpop.f32.mrf.mxu0
    %v6311 = vadd.f32 0.0, %v6310
    %6312 = vmatmul.f32.gmra.mxu0 %v6249
    %v6313 = vpop.f32.mrf.mxu0
    %v6314 = vadd.f32 0.0, %v6313
    %6315 = vmatmul.f32.gmra.mxu0 %v6252
    %v6316 = vpop.f32.mrf.mxu0
    %v6317 = vadd.f32 0.0, %v6316
    %6318 = vmatmul.f32.gmra.mxu0 %v6255
    %v6319 = vpop.f32.mrf.mxu0
    %v6320 = vadd.f32 0.0, %v6319
    %6321 = vmatmul.f32.gmra.mxu0 %v6258
    %v6322 = vpop.f32.mrf.mxu0
    %v6323 = vadd.f32 0.0, %v6322
    %6324 = vmatmul.f32.gmra.mxu0 %v6261
    %v6325 = vpop.f32.mrf.mxu0
    %v6326 = vadd.f32 0.0, %v6325
    %6327 = vmatmul.f32.gmra.mxu0 %v6264
    %v6328 = vpop.f32.mrf.mxu0
    %v6329 = vadd.f32 0.0, %v6328
    %6330 = vmatmul.f32.gmra.mxu0 %v6267
    %v6331 = vpop.f32.mrf.mxu0
    %v6332 = vadd.f32 0.0, %v6331
    %6333 = vmatmul.f32.gmra.mxu0 %v6270
    %v6334 = vpop.f32.mrf.mxu0
    %v6335 = vadd.f32 0.0, %v6334
    %6336 = vmatmul.f32.gmra.mxu0 %v6273
    %v6337 = vpop.f32.mrf.mxu0
    %v6338 = vadd.f32 0.0, %v6337
    %6339 = vmatmul.f32.gmra.mxu0 %v6276
    %v6340 = vpop.f32.mrf.mxu0
    %v6341 = vadd.f32 0.0, %v6340
    %6342 = vmatmul.f32.gmra.mxu0 %v6279
    %v6343 = vpop.f32.mrf.mxu0
    %v6344 = vadd.f32 0.0, %v6343
    %6345 = vmatmul.f32.gmra.mxu0 %v6282
    %v6346 = vpop.f32.mrf.mxu0
    %v6347 = vadd.f32 0.0, %v6346
    %6348 = vmatmul.f32.gmra.mxu0 %v6285
    %v6349 = vpop.f32.mrf.mxu0
    %v6350 = vadd.f32 0.0, %v6349
    %6351 = vdwg.mxu0
    %v6352 = vadd.f32 %v6205, %v6305
    %v6353 = vadd.f32 %v6206, %v6308
    %v6354 = vadd.f32 %v6207, %v6311
    %v6355 = vadd.f32 %v6208, %v6314
    %v6356 = vadd.f32 %v6209, %v6317
    %v6357 = vadd.f32 %v6210, %v6320
    %v6358 = vadd.f32 %v6211, %v6323
    %v6359 = vadd.f32 %v6212, %v6326
    %v6360 = vadd.f32 %v6213, %v6329
    %v6361 = vadd.f32 %v6214, %v6332
    %v6362 = vadd.f32 %v6215, %v6335
    %v6363 = vadd.f32 %v6216, %v6338
    %v6364 = vadd.f32 %v6217, %v6341
    %v6365 = vadd.f32 %v6218, %v6344
    %v6366 = vadd.f32 %v6219, %v6347
    %v6367 = vadd.f32 %v6220, %v6350
    %v6368 = vld [vmem:[%s3345 + $0x1] sm:$0xff]
    %v6369 = vld [vmem:[%s3345 + $0x19] sm:$0xff]
    %v6370 = vld [vmem:[%s3345 + $0x31] sm:$0xff]
    %v6371 = vld [vmem:[%s3345 + $0x49] sm:$0xff]
    %v6372 = vld [vmem:[%s3345 + $0x61] sm:$0xff]
    %v6373 = vld [vmem:[%s3345 + $0x79] sm:$0xff]
    %v6374 = vld [vmem:[%s3345 + $0x91] sm:$0xff]
    %v6375 = vld [vmem:[%s3345 + $0xa9] sm:$0xff]
    %v6376 = vld [vmem:[%s3345 + $0x1b1] sm:$0xff]
    %v6377 = vld [vmem:[%s3345 + $0x1c9] sm:$0xff]
    %v6378 = vld [vmem:[%s3345 + $0x1e1] sm:$0xff]
    %v6379 = vld [vmem:[%s3345 + $0x1f9] sm:$0xff]
    %v6380 = vld [vmem:[%s3345 + $0x211] sm:$0xff]
    %v6381 = vld [vmem:[%s3345 + $0x229] sm:$0xff]
    %v6382 = vld [vmem:[%s3345 + $0x241] sm:$0xff]
    %v6383 = vld [vmem:[%s3345 + $0x259] sm:$0xff]
    %s6384 = scalar_lea.vmem %s3, 56
    %v6385 = vld [vmem:[%s6384] sm:$0xff]
    %v6387 = vsel %vm4897, %v6368, 0
    %v6390 = vsel %vm4897, %v6369, 0
    %v6393 = vsel %vm4897, %v6370, 0
    %v6396 = vsel %vm4897, %v6371, 0
    %v6399 = vsel %vm4897, %v6372, 0
    %v6402 = vsel %vm4897, %v6373, 0
    %v6405 = vsel %vm4897, %v6374, 0
    %v6408 = vsel %vm4897, %v6375, 0
    %v6411 = vsel %vm4897, %v6376, 0
    %v6414 = vsel %vm4897, %v6377, 0
    %v6417 = vsel %vm4897, %v6378, 0
    %v6420 = vsel %vm4897, %v6379, 0
    %v6423 = vsel %vm4897, %v6380, 0
    %v6426 = vsel %vm4897, %v6381, 0
    %v6429 = vsel %vm4897, %v6382, 0
    %v6432 = vsel %vm4897, %v6383, 0
    %6434 = vmatpush.msra.mxu0 0.0
    %6435 = vmatpush.msra.mxu0 0.0
    %6436 = vmatpush.msra.mxu0 0.0
    %6437 = vmatpush.msra.mxu0 0.0
    %6438 = vmatpush.msra.mxu0 0.0
    %6439 = vmatpush.msra.mxu0 0.0
    %6440 = vmatpush.msra.mxu0 0.0
    %6441 = vmatpush.msra.mxu0 0.0
    %6442 = vmatpush.msra.mxu0 0.0
    %6443 = vmatpush.msra.mxu0 0.0
    %6444 = vmatpush.msra.mxu0 0.0
    %6445 = vmatpush.msra.mxu0 0.0
    %6446 = vmatpush.msra.mxu0 0.0
    %6447 = vmatpush.msra.mxu0 0.0
    %6448 = vmatpush.msra.mxu0 0.0
    %6449 = vmatpush.msra.mxu0 %v6385
    %6450 = vmatmul.f32.gmra.mxu0 %v6387
    %v6451 = vpop.f32.mrf.mxu0
    %v6452 = vadd.f32 0.0, %v6451
    %6453 = vmatmul.f32.gmra.mxu0 %v6390
    %v6454 = vpop.f32.mrf.mxu0
    %v6455 = vadd.f32 0.0, %v6454
    %6456 = vmatmul.f32.gmra.mxu0 %v6393
    %v6457 = vpop.f32.mrf.mxu0
    %v6458 = vadd.f32 0.0, %v6457
    %6459 = vmatmul.f32.gmra.mxu0 %v6396
    %v6460 = vpop.f32.mrf.mxu0
    %v6461 = vadd.f32 0.0, %v6460
    %6462 = vmatmul.f32.gmra.mxu0 %v6399
    %v6463 = vpop.f32.mrf.mxu0
    %v6464 = vadd.f32 0.0, %v6463
    %6465 = vmatmul.f32.gmra.mxu0 %v6402
    %v6466 = vpop.f32.mrf.mxu0
    %v6467 = vadd.f32 0.0, %v6466
    %6468 = vmatmul.f32.gmra.mxu0 %v6405
    %v6469 = vpop.f32.mrf.mxu0
    %v6470 = vadd.f32 0.0, %v6469
    %6471 = vmatmul.f32.gmra.mxu0 %v6408
    %v6472 = vpop.f32.mrf.mxu0
    %v6473 = vadd.f32 0.0, %v6472
    %6474 = vmatmul.f32.gmra.mxu0 %v6411
    %v6475 = vpop.f32.mrf.mxu0
    %v6476 = vadd.f32 0.0, %v6475
    %6477 = vmatmul.f32.gmra.mxu0 %v6414
    %v6478 = vpop.f32.mrf.mxu0
    %v6479 = vadd.f32 0.0, %v6478
    %6480 = vmatmul.f32.gmra.mxu0 %v6417
    %v6481 = vpop.f32.mrf.mxu0
    %v6482 = vadd.f32 0.0, %v6481
    %6483 = vmatmul.f32.gmra.mxu0 %v6420
    %v6484 = vpop.f32.mrf.mxu0
    %v6485 = vadd.f32 0.0, %v6484
    %6486 = vmatmul.f32.gmra.mxu0 %v6423
    %v6487 = vpop.f32.mrf.mxu0
    %v6488 = vadd.f32 0.0, %v6487
    %6489 = vmatmul.f32.gmra.mxu0 %v6426
    %v6490 = vpop.f32.mrf.mxu0
    %v6491 = vadd.f32 0.0, %v6490
    %6492 = vmatmul.f32.gmra.mxu0 %v6429
    %v6493 = vpop.f32.mrf.mxu0
    %v6494 = vadd.f32 0.0, %v6493
    %6495 = vmatmul.f32.gmra.mxu0 %v6432
    %v6496 = vpop.f32.mrf.mxu0
    %v6497 = vadd.f32 0.0, %v6496
    %6498 = vdwg.mxu0
    %v6499 = vadd.f32 %v6352, %v6452
    %v6500 = vadd.f32 %v6353, %v6455
    %v6501 = vadd.f32 %v6354, %v6458
    %v6502 = vadd.f32 %v6355, %v6461
    %v6503 = vadd.f32 %v6356, %v6464
    %v6504 = vadd.f32 %v6357, %v6467
    %v6505 = vadd.f32 %v6358, %v6470
    %v6506 = vadd.f32 %v6359, %v6473
    %v6507 = vadd.f32 %v6360, %v6476
    %v6508 = vadd.f32 %v6361, %v6479
    %v6509 = vadd.f32 %v6362, %v6482
    %v6510 = vadd.f32 %v6363, %v6485
    %v6511 = vadd.f32 %v6364, %v6488
    %v6512 = vadd.f32 %v6365, %v6491
    %v6513 = vadd.f32 %v6366, %v6494
    %v6514 = vadd.f32 %v6367, %v6497
    %v6515 = vld [vmem:[%s3345 + $0x2] sm:$0xff]
    %v6516 = vld [vmem:[%s3345 + $0x1a] sm:$0xff]
    %v6517 = vld [vmem:[%s3345 + $0x32] sm:$0xff]
    %v6518 = vld [vmem:[%s3345 + $0x4a] sm:$0xff]
    %v6519 = vld [vmem:[%s3345 + $0x62] sm:$0xff]
    %v6520 = vld [vmem:[%s3345 + $0x7a] sm:$0xff]
    %v6521 = vld [vmem:[%s3345 + $0x92] sm:$0xff]
    %v6522 = vld [vmem:[%s3345 + $0xaa] sm:$0xff]
    %v6523 = vld [vmem:[%s3345 + $0x1b2] sm:$0xff]
    %v6524 = vld [vmem:[%s3345 + $0x1ca] sm:$0xff]
    %v6525 = vld [vmem:[%s3345 + $0x1e2] sm:$0xff]
    %v6526 = vld [vmem:[%s3345 + $0x1fa] sm:$0xff]
    %v6527 = vld [vmem:[%s3345 + $0x212] sm:$0xff]
    %v6528 = vld [vmem:[%s3345 + $0x22a] sm:$0xff]
    %v6529 = vld [vmem:[%s3345 + $0x242] sm:$0xff]
    %v6530 = vld [vmem:[%s3345 + $0x25a] sm:$0xff]
    %s6531 = scalar_lea.vmem %s3, 64
    %v6532 = vld [vmem:[%s6531] sm:$0xff]
    %v6534 = vsel %vm4897, %v6515, 0
    %v6537 = vsel %vm4897, %v6516, 0
    %v6540 = vsel %vm4897, %v6517, 0
    %v6543 = vsel %vm4897, %v6518, 0
    %v6546 = vsel %vm4897, %v6519, 0
    %v6549 = vsel %vm4897, %v6520, 0
    %v6552 = vsel %vm4897, %v6521, 0
    %v6555 = vsel %vm4897, %v6522, 0
    %v6558 = vsel %vm4897, %v6523, 0
    %v6561 = vsel %vm4897, %v6524, 0
    %v6564 = vsel %vm4897, %v6525, 0
    %v6567 = vsel %vm4897, %v6526, 0
    %v6570 = vsel %vm4897, %v6527, 0
    %v6573 = vsel %vm4897, %v6528, 0
    %v6576 = vsel %vm4897, %v6529, 0
    %v6579 = vsel %vm4897, %v6530, 0
    %6581 = vmatpush.msra.mxu0 0.0
    %6582 = vmatpush.msra.mxu0 0.0
    %6583 = vmatpush.msra.mxu0 0.0
    %6584 = vmatpush.msra.mxu0 0.0
    %6585 = vmatpush.msra.mxu0 0.0
    %6586 = vmatpush.msra.mxu0 0.0
    %6587 = vmatpush.msra.mxu0 0.0
    %6588 = vmatpush.msra.mxu0 0.0
    %6589 = vmatpush.msra.mxu0 0.0
    %6590 = vmatpush.msra.mxu0 0.0
    %6591 = vmatpush.msra.mxu0 0.0
    %6592 = vmatpush.msra.mxu0 0.0
    %6593 = vmatpush.msra.mxu0 0.0
    %6594 = vmatpush.msra.mxu0 0.0
    %6595 = vmatpush.msra.mxu0 0.0
    %6596 = vmatpush.msra.mxu0 %v6532
    %6597 = vmatmul.f32.gmra.mxu0 %v6534
    %v6598 = vpop.f32.mrf.mxu0
    %v6599 = vadd.f32 0.0, %v6598
    %6600 = vmatmul.f32.gmra.mxu0 %v6537
    %v6601 = vpop.f32.mrf.mxu0
    %v6602 = vadd.f32 0.0, %v6601
    %6603 = vmatmul.f32.gmra.mxu0 %v6540
    %v6604 = vpop.f32.mrf.mxu0
    %v6605 = vadd.f32 0.0, %v6604
    %6606 = vmatmul.f32.gmra.mxu0 %v6543
    %v6607 = vpop.f32.mrf.mxu0
    %v6608 = vadd.f32 0.0, %v6607
    %6609 = vmatmul.f32.gmra.mxu0 %v6546
    %v6610 = vpop.f32.mrf.mxu0
    %v6611 = vadd.f32 0.0, %v6610
    %6612 = vmatmul.f32.gmra.mxu0 %v6549
    %v6613 = vpop.f32.mrf.mxu0
    %v6614 = vadd.f32 0.0, %v6613
    %6615 = vmatmul.f32.gmra.mxu0 %v6552
    %v6616 = vpop.f32.mrf.mxu0
    %v6617 = vadd.f32 0.0, %v6616
    %6618 = vmatmul.f32.gmra.mxu0 %v6555
    %v6619 = vpop.f32.mrf.mxu0
    %v6620 = vadd.f32 0.0, %v6619
    %6621 = vmatmul.f32.gmra.mxu0 %v6558
    %v6622 = vpop.f32.mrf.mxu0
    %v6623 = vadd.f32 0.0, %v6622
    %6624 = vmatmul.f32.gmra.mxu0 %v6561
    %v6625 = vpop.f32.mrf.mxu0
    %v6626 = vadd.f32 0.0, %v6625
    %6627 = vmatmul.f32.gmra.mxu0 %v6564
    %v6628 = vpop.f32.mrf.mxu0
    %v6629 = vadd.f32 0.0, %v6628
    %6630 = vmatmul.f32.gmra.mxu0 %v6567
    %v6631 = vpop.f32.mrf.mxu0
    %v6632 = vadd.f32 0.0, %v6631
    %6633 = vmatmul.f32.gmra.mxu0 %v6570
    %v6634 = vpop.f32.mrf.mxu0
    %v6635 = vadd.f32 0.0, %v6634
    %6636 = vmatmul.f32.gmra.mxu0 %v6573
    %v6637 = vpop.f32.mrf.mxu0
    %v6638 = vadd.f32 0.0, %v6637
    %6639 = vmatmul.f32.gmra.mxu0 %v6576
    %v6640 = vpop.f32.mrf.mxu0
    %v6641 = vadd.f32 0.0, %v6640
    %6642 = vmatmul.f32.gmra.mxu0 %v6579
    %v6643 = vpop.f32.mrf.mxu0
    %v6644 = vadd.f32 0.0, %v6643
    %6645 = vdwg.mxu0
    %v6646 = vadd.f32 %v6499, %v6599
    %v6647 = vadd.f32 %v6500, %v6602
    %v6648 = vadd.f32 %v6501, %v6605
    %v6649 = vadd.f32 %v6502, %v6608
    %v6650 = vadd.f32 %v6503, %v6611
    %v6651 = vadd.f32 %v6504, %v6614
    %v6652 = vadd.f32 %v6505, %v6617
    %v6653 = vadd.f32 %v6506, %v6620
    %v6654 = vadd.f32 %v6507, %v6623
    %v6655 = vadd.f32 %v6508, %v6626
    %v6656 = vadd.f32 %v6509, %v6629
    %v6657 = vadd.f32 %v6510, %v6632
    %v6658 = vadd.f32 %v6511, %v6635
    %v6659 = vadd.f32 %v6512, %v6638
    %v6660 = vadd.f32 %v6513, %v6641
    %v6661 = vadd.f32 %v6514, %v6644
    %vm6662 = vcmask 130048
    %v6663 = vsel %vm6662, %v6646, -inf
    %v6664 = vsel %vm6662, %v6647, -inf
    %v6665 = vmax.f32 %v6663, %v6664
    %v6666 = vsel %vm6662, %v6648, -inf
    %v6667 = vsel %vm6662, %v6649, -inf
    %v6668 = vmax.f32 %v6666, %v6667
    %v6669 = vsel %vm6662, %v6650, -inf
    %v6670 = vsel %vm6662, %v6651, -inf
    %v6671 = vmax.f32 %v6669, %v6670
    %v6672 = vsel %vm6662, %v6652, -inf
    %v6673 = vsel %vm6662, %v6653, -inf
    %v6674 = vmax.f32 %v6672, %v6673
    %v6675 = vsel %vm6662, %v6654, -inf
    %v6676 = vsel %vm6662, %v6655, -inf
    %v6677 = vmax.f32 %v6675, %v6676
    %v6678 = vsel %vm6662, %v6656, -inf
    %v6679 = vsel %vm6662, %v6657, -inf
    %v6680 = vmax.f32 %v6678, %v6679
    %v6681 = vsel %vm6662, %v6658, -inf
    %v6682 = vsel %vm6662, %v6659, -inf
    %v6683 = vmax.f32 %v6681, %v6682
    %v6684 = vsel %vm6662, %v6660, -inf
    %v6685 = vsel %vm6662, %v6661, -inf
    %v6686 = vmax.f32 %v6684, %v6685
    %v6687 = vld [vmem:[%s4] sm:$0x1]
    %v6689 = vperm.slane %v6687, 0
    %v6691 = vadd.f32 %v6665, %v6689
    %v6692 = vadd.f32 %v6668, %v6689
    %v6693 = vadd.f32 %v6671, %v6689
    %v6694 = vadd.f32 %v6674, %v6689
    %v6695 = vadd.f32 %v6677, %v6689
    %v6696 = vadd.f32 %v6680, %v6689
    %v6697 = vadd.f32 %v6683, %v6689
    %v6698 = vadd.f32 %v6686, %v6689
    %v6699 = vmax.f32 %v6691, 0.0
    %v6700 = vmax.f32 %v6692, 0.0
    %v6701 = vmax.f32 %v6693, 0.0
    %v6702 = vmax.f32 %v6694, 0.0
    %v6703 = vmax.f32 %v6695, 0.0
    %v6704 = vmax.f32 %v6696, 0.0
    %v6705 = vmax.f32 %v6697, 0.0
    %v6706 = vmax.f32 %v6698, 0.0
    %v6709 = vrot.slane %v6699, 1
    %v6710 = vrot.slane %v6703, 1
    %v6713 = vmax.f32 %v6699, %v6709
    %v6714 = vmax.f32 %v6703, %v6710
    %vm6717 = vcmask 1044484
    %v6718 = vsel %vm6717, %v6713, %v6713
    %vm6719 = vcmask 1046534
    %v6720 = vsel %vm6719, %v6713, %v6718
    %v6721 = vrot.slane %v6714, 7
    %vm6722 = vcmask 1041409
    %v6723 = vsel %vm6722, %v6721, %v6720
    %vm6724 = vcmask 1043459
    %v6725 = vsel %vm6724, %v6721, %v6723
    %vm6726 = vcmask 1045509
    %v6727 = vsel %vm6726, %v6721, %v6725
    %vm6728 = vcmask 1047559
    %v6729 = vsel %vm6728, %v6721, %v6727
    %vm6731 = vcmask 123904
    %6732 = vst.msk [vmem:[#allocation3] sm:$0x3] %vm6731, %v6729
    %6733 = vst.sshfl [vmem:[#allocation1] sm:$0xff pattern:$0x73625140] %v6713
    %s6734 = scalar_lea.vmem [#allocation1], 1
    %v6735 = vld [vmem:[%s6734] ss:$4 sm:$0xff]
    %6736 = vst.sshfl [vmem:[#allocation1 + $0x20] sm:$0xff pattern:$0x73625140] %v6714
    %s6737 = scalar_lea.vmem [#allocation1], 33
    %v6738 = vld [vmem:[%s6737] ss:$4 sm:$0xff]
    %v6739 = vsel %vm6717, %v6735, %v6735
    %v6740 = vsel %vm6719, %v6735, %v6739
    %v6741 = vrot.slane %v6738, 7
    %v6742 = vsel %vm6722, %v6741, %v6740
    %v6743 = vsel %vm6724, %v6741, %v6742
    %v6744 = vsel %vm6726, %v6741, %v6743
    %v6745 = vsel %vm6728, %v6741, %v6744
    %6746 = vrot.lane.b32.xlu0 %v6745, 16
    %v6747 = vpop.permute.xlu0 %6746
    %vm6749 = vcmask 255104
    %6750 = vst.msk [vmem:[#allocation3] sm:$0x3] %vm6749, %v6747
    %6751 = vst.sshfl [vmem:[#allocation1] sm:$0xff pattern:$0x73625140] %v6713
    %s6752 = scalar_lea.vmem [#allocation1], 2
    %v6753 = vld [vmem:[%s6752] ss:$4 sm:$0xff]
    %6754 = vst.sshfl [vmem:[#allocation1 + $0x20] sm:$0xff pattern:$0x73625140] %v6714
    %s6755 = scalar_lea.vmem [#allocation1], 34
    %v6756 = vld [vmem:[%s6755] ss:$4 sm:$0xff]
    %v6757 = vsel %vm6717, %v6753, %v6753
    %v6758 = vsel %vm6719, %v6753, %v6757
    %v6759 = vrot.slane %v6756, 7
    %v6760 = vsel %vm6722, %v6759, %v6758
    %v6761 = vsel %vm6724, %v6759, %v6760
    %v6762 = vsel %vm6726, %v6759, %v6761
    %v6763 = vsel %vm6728, %v6759, %v6762
    %6764 = vrot.lane.b32.xlu0 %v6763, 32
    %v6765 = vpop.permute.xlu0 %6764
    %vm6767 = vcmask 386304
    %6768 = vst.msk [vmem:[#allocation3] sm:$0x3] %vm6767, %v6765
    %6769 = vst.sshfl [vmem:[#allocation1] sm:$0xff pattern:$0x73625140] %v6713
    %s6770 = scalar_lea.vmem [#allocation1], 3
    %v6771 = vld [vmem:[%s6770] ss:$4 sm:$0xff]
    %6772 = vst.sshfl [vmem:[#allocation1 + $0x20] sm:$0xff pattern:$0x73625140] %v6714
    %s6773 = scalar_lea.vmem [#allocation1], 35
    %v6774 = vld [vmem:[%s6773] ss:$4 sm:$0xff]
    %v6775 = vsel %vm6717, %v6771, %v6771
    %v6776 = vsel %vm6719, %v6771, %v6775
    %v6777 = vrot.slane %v6774, 7
    %v6778 = vsel %vm6722, %v6777, %v6776
    %v6779 = vsel %vm6724, %v6777, %v6778
    %v6780 = vsel %vm6726, %v6777, %v6779
    %v6781 = vsel %vm6728, %v6777, %v6780
    %6782 = vrot.lane.b32.xlu0 %v6781, 48
    %v6783 = vpop.permute.xlu0 %6782
    %vm6785 = vcmask 517504
    %6786 = vst.msk [vmem:[#allocation3] sm:$0x3] %vm6785, %v6783
    %v6789 = vrot.slane %v6700, 1
    %v6790 = vrot.slane %v6704, 1
    %v6793 = vmax.f32 %v6700, %v6789
    %v6794 = vmax.f32 %v6704, %v6790
    %v6797 = vsel %vm6717, %v6793, %v6793
    %v6798 = vsel %vm6719, %v6793, %v6797
    %v6799 = vrot.slane %v6794, 7
    %v6800 = vsel %vm6722, %v6799, %v6798
    %v6801 = vsel %vm6724, %v6799, %v6800
    %v6802 = vsel %vm6726, %v6799, %v6801
    %v6803 = vsel %vm6728, %v6799, %v6802
    %6804 = vrot.lane.b32.xlu0 %v6803, 64
    %v6805 = vpop.permute.xlu0 %6804
    %vm6807 = vcmask 648704
    %6808 = vst.msk [vmem:[#allocation3] sm:$0x3] %vm6807, %v6805
    %6809 = vst.sshfl [vmem:[#allocation1] sm:$0xff pattern:$0x73625140] %v6793
    %s6810 = scalar_lea.vmem [#allocation1], 1
    %v6811 = vld [vmem:[%s6810] ss:$4 sm:$0xff]
    %6812 = vst.sshfl [vmem:[#allocation1 + $0x20] sm:$0xff pattern:$0x73625140] %v6794
    %s6813 = scalar_lea.vmem [#allocation1], 33
    %v6814 = vld [vmem:[%s6813] ss:$4 sm:$0xff]
    %v6815 = vsel %vm6717, %v6811, %v6811
    %v6816 = vsel %vm6719, %v6811, %v6815
    %v6817 = vrot.slane %v6814, 7
    %v6818 = vsel %vm6722, %v6817, %v6816
    %v6819 = vsel %vm6724, %v6817, %v6818
    %v6820 = vsel %vm6726, %v6817, %v6819
    %v6821 = vsel %vm6728, %v6817, %v6820
    %6822 = vrot.lane.b32.xlu0 %v6821, 80
    %v6823 = vpop.permute.xlu0 %6822
    %vm6825 = vcmask 779904
    %6826 = vst.msk [vmem:[#allocation3] sm:$0x3] %vm6825, %v6823
    %6827 = vst.sshfl [vmem:[#allocation1] sm:$0xff pattern:$0x73625140] %v6793
    %s6828 = scalar_lea.vmem [#allocation1], 2
    %v6829 = vld [vmem:[%s6828] ss:$4 sm:$0xff]
    %6830 = vst.sshfl [vmem:[#allocation1 + $0x20] sm:$0xff pattern:$0x73625140] %v6794
    %s6831 = scalar_lea.vmem [#allocation1], 34
    %v6832 = vld [vmem:[%s6831] ss:$4 sm:$0xff]
    %v6833 = vsel %vm6717, %v6829, %v6829
    %v6834 = vsel %vm6719, %v6829, %v6833
    %v6835 = vrot.slane %v6832, 7
    %v6836 = vsel %vm6722, %v6835, %v6834
    %v6837 = vsel %vm6724, %v6835, %v6836
    %v6838 = vsel %vm6726, %v6835, %v6837
    %v6839 = vsel %vm6728, %v6835, %v6838
    %6840 = vrot.lane.b32.xlu0 %v6839, 96
    %v6841 = vpop.permute.xlu0 %6840
    %vm6843 = vcmask 911104
    %6844 = vst.msk [vmem:[#allocation3] sm:$0x3] %vm6843, %v6841
    %6845 = vst.sshfl [vmem:[#allocation1] sm:$0xff pattern:$0x73625140] %v6793
    %s6846 = scalar_lea.vmem [#allocation1], 3
    %v6847 = vld [vmem:[%s6846] ss:$4 sm:$0xff]
    %6848 = vst.sshfl [vmem:[#allocation1 + $0x20] sm:$0xff pattern:$0x73625140] %v6794
    %s6849 = scalar_lea.vmem [#allocation1], 35
    %v6850 = vld [vmem:[%s6849] ss:$4 sm:$0xff]
    %v6851 = vsel %vm6717, %v6847, %v6847
    %v6852 = vsel %vm6719, %v6847, %v6851
    %v6853 = vrot.slane %v6850, 7
    %v6854 = vsel %vm6722, %v6853, %v6852
    %v6855 = vsel %vm6724, %v6853, %v6854
    %v6856 = vsel %vm6726, %v6853, %v6855
    %v6857 = vsel %vm6728, %v6853, %v6856
    %6858 = vrot.lane.b32.xlu0 %v6857, 112
    %v6859 = vpop.permute.xlu0 %6858
    %vm6861 = vcmask 1042304
    %6862 = vst.msk [vmem:[#allocation3] sm:$0x3] %vm6861, %v6859
    %v6865 = vrot.slane %v6701, 1
    %v6866 = vrot.slane %v6705, 1
    %v6869 = vmax.f32 %v6701, %v6865
    %v6870 = vmax.f32 %v6705, %v6866
    %v6873 = vsel %vm6717, %v6869, %v6869
    %v6874 = vsel %vm6719, %v6869, %v6873
    %v6875 = vrot.slane %v6870, 7
    %v6876 = vsel %vm6722, %v6875, %v6874
    %v6877 = vsel %vm6724, %v6875, %v6876
    %v6878 = vsel %vm6726, %v6875, %v6877
    %v6879 = vsel %vm6728, %v6875, %v6878
    %6881 = vst.msk [vmem:[#allocation3 + $0x2] sm:$0x3] %vm6731, %v6879
    %6882 = vst.sshfl [vmem:[#allocation1] sm:$0xff pattern:$0x73625140] %v6869
    %s6883 = scalar_lea.vmem [#allocation1], 1
    %v6884 = vld [vmem:[%s6883] ss:$4 sm:$0xff]
    %6885 = vst.sshfl [vmem:[#allocation1 + $0x20] sm:$0xff pattern:$0x73625140] %v6870
    %s6886 = scalar_lea.vmem [#allocation1], 33
    %v6887 = vld [vmem:[%s6886] ss:$4 sm:$0xff]
    %v6888 = vsel %vm6717, %v6884, %v6884
    %v6889 = vsel %vm6719, %v6884, %v6888
    %v6890 = vrot.slane %v6887, 7
    %v6891 = vsel %vm6722, %v6890, %v6889
    %v6892 = vsel %vm6724, %v6890, %v6891
    %v6893 = vsel %vm6726, %v6890, %v6892
    %v6894 = vsel %vm6728, %v6890, %v6893
    %6895 = vrot.lane.b32.xlu0 %v6894, 16
    %v6896 = vpop.permute.xlu0 %6895
    %6898 = vst.msk [vmem:[#allocation3 + $0x2] sm:$0x3] %vm6749, %v6896
    %6899 = vst.sshfl [vmem:[#allocation1] sm:$0xff pattern:$0x73625140] %v6869
    %s6900 = scalar_lea.vmem [#allocation1], 2
    %v6901 = vld [vmem:[%s6900] ss:$4 sm:$0xff]
    %6902 = vst.sshfl [vmem:[#allocation1 + $0x20] sm:$0xff pattern:$0x73625140] %v6870
    %s6903 = scalar_lea.vmem [#allocation1], 34
    %v6904 = vld [vmem:[%s6903] ss:$4 sm:$0xff]
    %v6905 = vsel %vm6717, %v6901, %v6901
    %v6906 = vsel %vm6719, %v6901, %v6905
    %v6907 = vrot.slane %v6904, 7
    %v6908 = vsel %vm6722, %v6907, %v6906
    %v6909 = vsel %vm6724, %v6907, %v6908
    %v6910 = vsel %vm6726, %v6907, %v6909
    %v6911 = vsel %vm6728, %v6907, %v6910
    %6912 = vrot.lane.b32.xlu0 %v6911, 32
    %v6913 = vpop.permute.xlu0 %6912
    %6915 = vst.msk [vmem:[#allocation3 + $0x2] sm:$0x3] %vm6767, %v6913
    %6916 = vst.sshfl [vmem:[#allocation1] sm:$0xff pattern:$0x73625140] %v6869
    %s6917 = scalar_lea.vmem [#allocation1], 3
    %v6918 = vld [vmem:[%s6917] ss:$4 sm:$0xff]
    %6919 = vst.sshfl [vmem:[#allocation1 + $0x20] sm:$0xff pattern:$0x73625140] %v6870
    %s6920 = scalar_lea.vmem [#allocation1], 35
    %v6921 = vld [vmem:[%s6920] ss:$4 sm:$0xff]
    %v6922 = vsel %vm6717, %v6918, %v6918
    %v6923 = vsel %vm6719, %v6918, %v6922
    %v6924 = vrot.slane %v6921, 7
    %v6925 = vsel %vm6722, %v6924, %v6923
    %v6926 = vsel %vm6724, %v6924, %v6925
    %v6927 = vsel %vm6726, %v6924, %v6926
    %v6928 = vsel %vm6728, %v6924, %v6927
    %6929 = vrot.lane.b32.xlu0 %v6928, 48
    %v6930 = vpop.permute.xlu0 %6929
    %6932 = vst.msk [vmem:[#allocation3 + $0x2] sm:$0x3] %vm6785, %v6930
    %v6935 = vrot.slane %v6702, 1
    %v6936 = vrot.slane %v6706, 1
    %v6939 = vmax.f32 %v6702, %v6935
    %v6940 = vmax.f32 %v6706, %v6936
    %v6943 = vsel %vm6717, %v6939, %v6939
    %v6944 = vsel %vm6719, %v6939, %v6943
    %v6945 = vrot.slane %v6940, 7
    %v6946 = vsel %vm6722, %v6945, %v6944
    %v6947 = vsel %vm6724, %v6945, %v6946
    %v6948 = vsel %vm6726, %v6945, %v6947
    %v6949 = vsel %vm6728, %v6945, %v6948
    %6950 = vrot.lane.b32.xlu0 %v6949, 64
    %v6951 = vpop.permute.xlu0 %6950
    %6953 = vst.msk [vmem:[#allocation3 + $0x2] sm:$0x3] %vm6807, %v6951
    %6954 = vst.sshfl [vmem:[#allocation1] sm:$0xff pattern:$0x73625140] %v6939
    %s6955 = scalar_lea.vmem [#allocation1], 1
    %v6956 = vld [vmem:[%s6955] ss:$4 sm:$0xff]
    %6957 = vst.sshfl [vmem:[#allocation1 + $0x20] sm:$0xff pattern:$0x73625140] %v6940
    %s6958 = scalar_lea.vmem [#allocation1], 33
    %v6959 = vld [vmem:[%s6958] ss:$4 sm:$0xff]
    %v6960 = vsel %vm6717, %v6956, %v6956
    %v6961 = vsel %vm6719, %v6956, %v6960
    %v6962 = vrot.slane %v6959, 7
    %v6963 = vsel %vm6722, %v6962, %v6961
    %v6964 = vsel %vm6724, %v6962, %v6963
    %v6965 = vsel %vm6726, %v6962, %v6964
    %v6966 = vsel %vm6728, %v6962, %v6965
    %6967 = vrot.lane.b32.xlu0 %v6966, 80
    %v6968 = vpop.permute.xlu0 %6967
    %6970 = vst.msk [vmem:[#allocation3 + $0x2] sm:$0x3] %vm6825, %v6968
    %6971 = vst.sshfl [vmem:[#allocation1] sm:$0xff pattern:$0x73625140] %v6939
    %s6972 = scalar_lea.vmem [#allocation1], 2
    %v6973 = vld [vmem:[%s6972] ss:$4 sm:$0xff]
    %6974 = vst.sshfl [vmem:[#allocation1 + $0x20] sm:$0xff pattern:$0x73625140] %v6940
    %s6975 = scalar_lea.vmem [#allocation1], 34
    %v6976 = vld [vmem:[%s6975] ss:$4 sm:$0xff]
    %v6977 = vsel %vm6717, %v6973, %v6973
    %v6978 = vsel %vm6719, %v6973, %v6977
    %v6979 = vrot.slane %v6976, 7
    %v6980 = vsel %vm6722, %v6979, %v6978
    %v6981 = vsel %vm6724, %v6979, %v6980
    %v6982 = vsel %vm6726, %v6979, %v6981
    %v6983 = vsel %vm6728, %v6979, %v6982
    %6984 = vrot.lane.b32.xlu0 %v6983, 96
    %v6985 = vpop.permute.xlu0 %6984
    %6987 = vst.msk [vmem:[#allocation3 + $0x2] sm:$0x3] %vm6843, %v6985
    %6988 = vst.sshfl [vmem:[#allocation1] sm:$0xff pattern:$0x73625140] %v6939
    %s6989 = scalar_lea.vmem [#allocation1], 3
    %v6990 = vld [vmem:[%s6989] ss:$4 sm:$0xff]
    %6991 = vst.sshfl [vmem:[#allocation1 + $0x20] sm:$0xff pattern:$0x73625140] %v6940
    %s6992 = scalar_lea.vmem [#allocation1], 35
    %v6993 = vld [vmem:[%s6992] ss:$4 sm:$0xff]
    %v6994 = vsel %vm6717, %v6990, %v6990
    %v6995 = vsel %vm6719, %v6990, %v6994
    %v6996 = vrot.slane %v6993, 7
    %v6997 = vsel %vm6722, %v6996, %v6995
    %v6998 = vsel %vm6724, %v6996, %v6997
    %v6999 = vsel %vm6726, %v6996, %v6998
    %v7000 = vsel %vm6728, %v6996, %v6999
    %7001 = vrot.lane.b32.xlu0 %v7000, 112
    %v7002 = vpop.permute.xlu0 %7001
    %7004 = vst.msk [vmem:[#allocation3 + $0x2] sm:$0x3] %vm6861, %v7002
    %v7005 = vld [vmem:[#allocation3] sm:$0xf]
    %v7006 = vld [vmem:[%s5] sm:$0xff]
    %v7007 = vld [vmem:[%s5 + $0x8] sm:$0xff]
    %v7008 = vld [vmem:[%s5 + $0x10] sm:$0xff]
    %v7009 = vld [vmem:[%s5 + $0x18] sm:$0xff]
    %v7010 = vld [vmem:[%s5 + $0x20] sm:$0xff]
    %v7011 = vld [vmem:[%s5 + $0x28] sm:$0xff]
    %v7012 = vld [vmem:[%s5 + $0x30] sm:$0xff]
    %v7013 = vld [vmem:[%s5 + $0x38] sm:$0xff]
    %v7014 = vld [vmem:[%s5 + $0x40] sm:$0xff]
    %v7015 = vld [vmem:[%s5 + $0x48] sm:$0xff]
    %v7016 = vld [vmem:[%s5 + $0x50] sm:$0xff]
    %v7017 = vld [vmem:[%s5 + $0x58] sm:$0xff]
    %v7018 = vld [vmem:[%s5 + $0x60] sm:$0xff]
    %v7019 = vld [vmem:[%s5 + $0x68] sm:$0xff]
    %v7020 = vld [vmem:[%s5 + $0x70] sm:$0xff]
    %v7021 = vld [vmem:[%s5 + $0x78] sm:$0xff]
    %v7022 = vld [vmem:[%s5 + $0x80] sm:$0xff]
    %v7023 = vld [vmem:[%s5 + $0x88] sm:$0xff]
    %v7024 = vld [vmem:[%s5 + $0x90] sm:$0xff]
    %v7025 = vld [vmem:[%s5 + $0x98] sm:$0xff]
    %v7026 = vld [vmem:[%s5 + $0xa0] sm:$0xff]
    %v7027 = vld [vmem:[%s5 + $0xa8] sm:$0xff]
    %v7028 = vld [vmem:[%s5 + $0xb0] sm:$0xff]
    %v7029 = vld [vmem:[%s5 + $0xb8] sm:$0xff]
    %v7030 = vld [vmem:[%s5 + $0xc0] sm:$0xff]
    %v7031 = vld [vmem:[%s5 + $0xc8] sm:$0xff]
    %v7032 = vld [vmem:[%s5 + $0xd0] sm:$0xff]
    %v7033 = vld [vmem:[%s5 + $0xd8] sm:$0xff]
    %v7034 = vld [vmem:[%s5 + $0xe0] sm:$0xff]
    %v7035 = vld [vmem:[%s5 + $0xe8] sm:$0xff]
    %v7036 = vld [vmem:[%s5 + $0xf0] sm:$0xff]
    %v7037 = vld [vmem:[%s5 + $0xf8] sm:$0xff]
    %v7038 = vld [vmem:[%s6] sm:$0x1]
    %v7040 = vperm.slane %v7038, 0
    %7043 = vst [vmem:[#allocation1] ss:$4 sm:$0xff] %v7005
    %v7044 = vld.sshfl [vmem:[#allocation1] sm:$0xff pattern:$0x73625140]
    %v7045 = vld.sshfl [vmem:[#allocation1 + $0x8] sm:$0xff pattern:$0x73625140]
    %7048 = vmatpush.msra.mxu0 %v7021
    %7049 = vmatpush.msra.mxu0 %v7020
    %7050 = vmatpush.msra.mxu0 %v7019
    %7051 = vmatpush.msra.mxu0 %v7018
    %7052 = vmatpush.msra.mxu0 %v7017
    %7053 = vmatpush.msra.mxu0 %v7016
    %7054 = vmatpush.msra.mxu0 %v7015
    %7055 = vmatpush.msra.mxu0 %v7014
    %7056 = vmatpush.msra.mxu0 %v7013
    %7057 = vmatpush.msra.mxu0 %v7012
    %7058 = vmatpush.msra.mxu0 %v7011
    %7059 = vmatpush.msra.mxu0 %v7010
    %7060 = vmatpush.msra.mxu0 %v7009
    %7061 = vmatpush.msra.mxu0 %v7008
    %7062 = vmatpush.msra.mxu0 %v7007
    %7063 = vmatpush.msra.mxu0 %v7006
    %7064 = vmatmul.f32.gmra.mxu0 %v7044
    %v7065 = vpop.f32.mrf.mxu0
    %v7066 = vadd.f32 %v7040, %v7065
    %7067 = vdwg.mxu0
    %7068 = vmatpush.msra.mxu0 %v7037
    %7069 = vmatpush.msra.mxu0 %v7036
    %7070 = vmatpush.msra.mxu0 %v7035
    %7071 = vmatpush.msra.mxu0 %v7034
    %7072 = vmatpush.msra.mxu0 %v7033
    %7073 = vmatpush.msra.mxu0 %v7032
    %7074 = vmatpush.msra.mxu0 %v7031
    %7075 = vmatpush.msra.mxu0 %v7030
    %7076 = vmatpush.msra.mxu0 %v7029
    %7077 = vmatpush.msra.mxu0 %v7028
    %7078 = vmatpush.msra.mxu0 %v7027
    %7079 = vmatpush.msra.mxu0 %v7026
    %7080 = vmatpush.msra.mxu0 %v7025
    %7081 = vmatpush.msra.mxu0 %v7024
    %7082 = vmatpush.msra.mxu0 %v7023
    %7083 = vmatpush.msra.mxu0 %v7022
    %7084 = vmatmul.f32.gmra.mxu0 %v7045
    %v7085 = vpop.f32.mrf.mxu0
    %v7086 = vadd.f32 %v7066, %v7085
    %7087 = vdwg.mxu0
    %vm7088 = vcmask 25600
    %v7089 = vsel %vm7088, %v7086, -inf
    %7090 = vmax.xlane.f32.xlu0 %v7089
    %v7091 = vpop.xlane.xlu0 %7090
    %v7092 = vsub.f32 %v7086, %v7091
    %v7093 = vmul.f32 %v7092, 1.442695
    %v7094 = vpow.pop %v7093
    %v7095 = vsel %vm7088, %v7094, 0.0
    %7096 = vadd.xlane.f32.xlu0 %v7095
    %v7097 = vpop.xlane.xlu0 %7096
    %v7098 = vlog2.pop %v7097
    %v7099 = vmul.f32 %v7098, 0.6931472
    %v7100 = vsub.f32 %v7092, %v7099
    %7101 = vst.msk [vmem:[#allocation4] sm:$0x3] %vm7088, %v7100
    // Predicated region
    $region30: #{forward.1} parent=1 // pred_check
      _
    $region31: #{forward.1} parent=1 // pred_check_branch
      %7103 = sbr.rel (0) target = $region33
    $region32: #{forward.1} parent=1 // pred_region
      %7105 = vsyncadd [#allocation5], 0
      %s7107 = sshll.u32 [#allocation4], 4
      %s7108 = int_to_ptr.vmem [resolvable:$true] %s7107
      %s7109 = sshll.u32 %s7, 4
      %s7110 = int_to_ptr.hbm [resolvable:$true] %s7109
      %7112 = dma.vmem_to_hbm [thread:$0]  %s7108, 32, %s7110, [#allocation5]
    $region33: #{forward.1} parent=1 // pred_fallthru
      _
    // Predicated region
    $region34: #{forward.1} parent=1 // pred_check
      _
    $region35: #{forward.1} parent=1 // pred_check_branch
      %7114 = sbr.rel (0) target = $region37
    $region36: #{forward.1} parent=1 // pred_region
      %7116 = dma.done [#allocation5], 32
    $region37: #{forward.1} parent=1 // pred_fallthru
      _
    %7117 = vsyncpa [#allocation5], 1

</llo_original>
